<compile_context>
chip_gen: v6e
topology: v6e:2x2x1
jax: 0.10.0
libtpu: 0.0.40
codegen_flags: <defaults>
</compile_context>

<pallas_src>
import functools
import math

import jax
import jax.numpy as jnp
from jax.experimental import pallas as pl
from jax.experimental.pallas import tpu as pltpu

LANE = 128     # channel padding target (TPU lane width)
_EPS = 1e-5


def _geometry(H, W):
    """Flat-layout constants shared by kernel, call builder and wrapper."""
    Wp = W + 2                        # padded width
    Mp = H * Wp                       # over-computed output rows (halo cols kept)
    mid_base = (-(W + 3)) % 8         # makes the big mid store sublane-aligned
    top = mid_base + W + 3            # rows [0, top) of mid = top halo slab
    pm = (mid_base + 2 * Wp + 2 + Mp + 7) // 8 * 8   # flat buffer rows
    return Wp, Mp, mid_base, top, pm


# --------------------------------------------------------------------------- #
# Kernel: one batch image of a fused BasicBlock
# --------------------------------------------------------------------------- #
def _basic_block_kernel(x_ref, mask_ref, w1_ref, b1_ref, w2_ref, b2_ref,
                        o_ref, mid_ref, *, H, W, C):
    """
    x_ref   : (PM, C) bf16  flattened spatially pre-padded NHWC input image
    mask_ref: (Mp, C) bf16  1.0 on valid output columns, 0.0 on the 2 halo cols
    w1_ref  : (9, C, C) bf16  conv1 weights (BN1 scale folded), tap-major
    b1_ref  : (1, C)  f32   BN1 bias
    w2_ref  : (9, C, C) bf16  conv2 weights (BN2 scale folded)
    b2_ref  : (1, C)  f32   BN2 bias
    o_ref   : (Mp, C) bf16  over-computed output (columns W, W+1 are garbage)
    mid_ref : (PM, C) bf16  VMEM scratch: padded conv1 activation (never in HBM)
    """
    Wp, Mp, mid_base, top, pm = _geometry(H, W)
    bot = pm - top - Mp

    # Zero only the tiny top/bottom halo slabs; the left/right halo columns are
    # written as zeros every step by the masked store below.
    mid_ref[pl.ds(0, top), :] = jnp.zeros((top, C), jnp.bfloat16)
    mid_ref[pl.ds(top + Mp, bot), :] = jnp.zeros((bot, C), jnp.bfloat16)

    # ---- conv1 + BN1 + ReLU : 9 contiguous flat-offset slices -> MXU ----
    acc = jnp.dot(x_ref[pl.ds(0, Mp), :], w1_ref[0],
                  preferred_element_type=jnp.float32)
    for t in range(1, 9):
        di, dj = divmod(t, 3)
        acc += jnp.dot(x_ref[pl.ds(di * Wp + dj, Mp), :], w1_ref[t],
                       preferred_element_type=jnp.float32)
    mid = (jnp.maximum(acc + b1_ref[...], 0.0).astype(jnp.bfloat16)
           * mask_ref[...])
    # One contiguous, sublane-aligned store; the masked (zero) columns land
    # exactly on the left/right halo columns of the padded mid layout.
    mid_ref[pl.ds(top, Mp), :] = mid

    # ---- conv2 + BN2 + residual add + ReLU ----
    acc2 = jnp.dot(mid_ref[pl.ds(mid_base, Mp), :], w2_ref[0],
                   preferred_element_type=jnp.float32)
    for t in range(1, 9):
        di, dj = divmod(t, 3)
        acc2 += jnp.dot(mid_ref[pl.ds(mid_base + di * Wp + dj, Mp), :],
                        w2_ref[t], preferred_element_type=jnp.float32)
    # Residual is a flat-offset slice of the (bf16) input; see precision note.
    res = x_ref[pl.ds(W + 3, Mp), :].astype(jnp.float32)
    o_ref[...] = jnp.maximum(acc2 + b2_ref[...] + res, 0.0).astype(jnp.bfloat16)


@functools.lru_cache(maxsize=None)
def _build_block_call(B, H, W, C):
    _, Mp, _, _, PM = _geometry(H, W)
    kernel = functools.partial(_basic_block_kernel, H=H, W=W, C=C)
    return pl.pallas_call(
        kernel,
        out_shape=jax.ShapeDtypeStruct((B, Mp, C), jnp.bfloat16),
        grid=(B,),
        in_specs=[
            pl.BlockSpec((None, PM, C), lambda b: (b, 0, 0)),   # x (per image)
            # Constant index maps below -> DMA'd once, reused every grid step.
            pl.BlockSpec((Mp, C), lambda b: (0, 0)),             # column mask
            pl.BlockSpec((9, C, C), lambda b: (0, 0, 0)),        # w1
            pl.BlockSpec((1, C), lambda b: (0, 0)),              # b1
            pl.BlockSpec((9, C, C), lambda b: (0, 0, 0)),        # w2
            pl.BlockSpec((1, C), lambda b: (0, 0)),              # b2
        ],
        out_specs=pl.BlockSpec((None, Mp, C), lambda b: (b, 0, 0)),
        scratch_shapes=[pltpu.VMEM((PM, C), jnp.bfloat16)],
        compiler_params=pltpu.CompilerParams(
            dimension_semantics=("parallel",)),
    )


# --------------------------------------------------------------------------- #
# Parameter construction (PyTorch-default init, eval-mode BN folded)
# --------------------------------------------------------------------------- #
def _conv_bn_params(key, cin, cout):
    """Conv2d(3x3, bias=False) kaiming_uniform(a=sqrt(5)) + default BN, folded."""
    fan_in = cin * 9
    bound = 1.0 / math.sqrt(fan_in)
    w_oihw = jax.random.uniform(key, (cout, cin, 3, 3), jnp.float32,
                                -bound, bound)
    # BN eval defaults: gamma=1, beta=0, running_mean=0, running_var=1
    scale = 1.0 / jnp.sqrt(1.0 + _EPS)              # gamma / sqrt(var + eps)
    bias = jnp.zeros((cout,), jnp.float32)          # beta - mean * scale
    w_hwio = jnp.transpose(w_oihw, (2, 3, 1, 0)) * scale
    return w_hwio, bias


def _pack_weight(w_hwio, cp):
    kh, kw, cin, cout = w_hwio.shape
    w = jnp.pad(w_hwio, ((0, 0), (0, 0), (0, cp - cin), (0, cp - cout)))
    return w.reshape(kh * kw, cp, cp).astype(jnp.bfloat16)


def _pack_bias(b, cp):
    # Zero-padded bias keeps the padded output channels exactly zero (ReLU(0)=0).
    return jnp.pad(b, (0, cp - b.shape[0])).reshape(1, cp).astype(jnp.float32)


class BasicBlock:
    """Pallas port of PyTorch BasicBlock (eval mode):
    conv3x3-BN-ReLU-conv3x3-BN-(+x)-ReLU fused into one kernel."""
    expansion = 1

    def __init__(self, inplanes, planes, stride=1, downsample=None, *, key=None):
        if stride != 1 or downsample is not None or inplanes != planes:
            # TODO(synk): strided conv1 / projected (downsample) residual are not
            # covered by this fused kernel; HRNet BasicBlocks use the identity
            # residual path implemented here.
            raise NotImplementedError(
                "fused kernel supports stride=1 with identity residual")
        self.planes = planes
        self.cp = ((planes + LANE - 1) // LANE) * LANE
        key = jax.random.PRNGKey(0) if key is None else key
        k1, k2 = jax.random.split(key)
        self.w1_f32, self.b1_f32 = _conv_bn_params(k1, planes, planes)
        self.w2_f32, self.b2_f32 = _conv_bn_params(k2, planes, planes)
        self.w1 = _pack_weight(self.w1_f32, self.cp)
        self.w2 = _pack_weight(self.w2_f32, self.cp)
        self.b1 = _pack_bias(self.b1_f32, self.cp)
        self.b2 = _pack_bias(self.b2_f32, self.cp)

    def __call__(self, x_nchw):
        # NOTE: the residual add uses the bf16-cast input and the conv1 output is
        # rounded to bf16 before conv2 — inference-grade precision.
        # TODO(synk): keep activations NHWC + channel-padded between consecutive
        # blocks to skip the per-block NCHW<->NHWC transposes at network level.
        B, C, H, W = x_nchw.shape
        assert C == self.planes
        Wp, Mp, _, _, PM = _geometry(H, W)
        x = jnp.transpose(x_nchw, (0, 2, 3, 1)).astype(jnp.bfloat16)   # NHWC bf16
        x = jnp.pad(x, ((0, 0), (1, 1), (1, 1), (0, self.cp - C)))     # halo + lanes
        x = x.reshape(B, (H + 2) * Wp, self.cp)                        # flatten spatial
        x = jnp.pad(x, ((0, 0), (0, PM - (H + 2) * Wp), (0, 0)))       # flat tail
        mask1d = ((jnp.arange(Mp) % Wp) < W).astype(jnp.bfloat16)
        mask = jnp.broadcast_to(mask1d[:, None], (Mp, self.cp))
        y = _build_block_call(B, H, W, self.cp)(
            x, mask, self.w1, self.b1, self.w2, self.b2)               # (B, Mp, cp)
        y = y.reshape(B, H, Wp, self.cp)[:, :, :W, :C]                 # drop halo cols
        return jnp.transpose(y, (0, 3, 1, 2)).astype(jnp.float32)      # NCHW f32


# --------------------------------------------------------------------------- #
# Pure-JAX f32 reference (same math as PyTorch eval-mode BasicBlock)
# --------------------------------------------------------------------------- #
def _reference_forward(x_nchw, block):
    x = jnp.transpose(x_nchw, (0, 2, 3, 1))
    dn = ("NHWC", "HWIO", "NHWC")
    h = jax.lax.conv_general_dilated(x, block.w1_f32, (1, 1), "SAME",
                                     dimension_numbers=dn) + block.b1_f32
    h = jnp.maximum(h, 0.0)
    y = jax.lax.conv_general_dilated(h, block.w2_f32, (1, 1), "SAME",
                                     dimension_numbers=dn) + block.b2_f32
    y = jnp.maximum(y + x, 0.0)
    return jnp.transpose(y, (0, 3, 1, 2))


if __name__ == "__main__":
    B, C, H, W = 2, 18, 16, 16        # small HRNet-w18-style BasicBlock input
    key = jax.random.PRNGKey(0)
    kx, kp = jax.random.split(key)
    block = BasicBlock(C, C, key=kp)
    x = jax.random.normal(kx, (B, C, H, W), jnp.float32)   # NCHW like PyTorch

    fwd = jax.jit(block.__call__)
    y = fwd(x)
    jax.block_until_ready(y)

    assert y.shape == (B, C, H, W)
    y_ref = _reference_forward(x, block)
    assert bool(jnp.all(y >= 0.0))                          # final ReLU
    max_err = float(jnp.max(jnp.abs(y - y_ref)))
    assert bool(jnp.allclose(y, y_ref, rtol=5e-2, atol=5e-2)), f"max|diff|={max_err}"
    print("KERNEL_OK")
</pallas_src>

<mosaic_0001>
module attributes {stable_mosaic.version = 11 : i64} {
  func.func @_basic_block_kernel(%arg0: i32, %arg1: memref<1x336x128xbf16, #tpu.memory_space<vmem>>, %arg2: memref<288x128xbf16, #tpu.memory_space<vmem>>, %arg3: memref<9x128x128xbf16, #tpu.memory_space<vmem>>, %arg4: memref<1x128xf32, #tpu.memory_space<vmem>>, %arg5: memref<9x128x128xbf16, #tpu.memory_space<vmem>>, %arg6: memref<1x128xf32, #tpu.memory_space<vmem>>, %arg7: memref<1x288x128xbf16, #tpu.memory_space<vmem>>, %arg8: memref<336x128xbf16, #tpu.memory_space<vmem>>) attributes {dimension_semantics = [#tpu.dimension_semantics<parallel>], iteration_bounds = array<i64: 2>, scalar_prefetch = 0 : i64, scratch_operands = 1 : i64, tpu.core_type = #tpu.core_type<tc>, window_params = [{transform_indices = @transform_0, window_bounds = array<i64: 1, 336, 128>}, {pipeline_mode = #tpu.pipeline_mode<synchronous>, transform_indices = @transform_1, window_bounds = array<i64: 288, 128>}, {pipeline_mode = #tpu.pipeline_mode<synchronous>, transform_indices = @transform_2, window_bounds = array<i64: 9, 128, 128>}, {pipeline_mode = #tpu.pipeline_mode<synchronous>, transform_indices = @transform_3, window_bounds = array<i64: 1, 128>}, {pipeline_mode = #tpu.pipeline_mode<synchronous>, transform_indices = @transform_4, window_bounds = array<i64: 9, 128, 128>}, {pipeline_mode = #tpu.pipeline_mode<synchronous>, transform_indices = @transform_5, window_bounds = array<i64: 1, 128>}, {transform_indices = @transform_6, window_bounds = array<i64: 1, 288, 128>}]} {
    %cst = arith.constant 0.000000e+00 : bf16
    %0 = vector.broadcast %cst : bf16 to vector<24x128xbf16>
    %c0 = arith.constant 0 : index
    %c0_0 = arith.constant 0 : index
    %1 = vector.load %arg8[%c0, %c0_0] : memref<336x128xbf16, #tpu.memory_space<vmem>>, vector<24x128xbf16>
    tpu.vector_store %arg8[%c0, %c0_0], %0 {strides = array<i32>} : memref<336x128xbf16, #tpu.memory_space<vmem>>, vector<24x128xbf16>,
    %cst_1 = arith.constant 0.000000e+00 : bf16
    %2 = vector.broadcast %cst_1 : bf16 to vector<24x128xbf16>
    %c312 = arith.constant 312 : index
    %c0_2 = arith.constant 0 : index
    %3 = vector.load %arg8[%c312, %c0_2] : memref<336x128xbf16, #tpu.memory_space<vmem>>, vector<24x128xbf16>
    tpu.vector_store %arg8[%c312, %c0_2], %2 {strides = array<i32>} : memref<336x128xbf16, #tpu.memory_space<vmem>>, vector<24x128xbf16>,
    %c0_3 = arith.constant 0 : index
    %c0_4 = arith.constant 0 : index
    %c0_5 = arith.constant 0 : index
    %4 = vector.load %arg1[%c0_3, %c0_4, %c0_5] : memref<1x336x128xbf16, #tpu.memory_space<vmem>>, vector<1x288x128xbf16>
    %5 = vector.shape_cast %4 : vector<1x288x128xbf16> to vector<288x128xbf16>
    %c0_6 = arith.constant 0 : index
    %c0_7 = arith.constant 0 : index
    %c0_8 = arith.constant 0 : index
    %6 = vector.load %arg3[%c0_6, %c0_7, %c0_8] : memref<9x128x128xbf16, #tpu.memory_space<vmem>>, vector<1x128x128xbf16>
    %7 = vector.shape_cast %6 : vector<1x128x128xbf16> to vector<128x128xbf16>
    %cst_9 = arith.constant dense<0.000000e+00> : vector<288x128xf32>
    %8 = tpu.matmul %5, %7, %cst_9 {dimension_numbers = #tpu.dot_dimension_numbers<[1], [0], [0], [1], [0, 0, 1, 1], [], []>} : vector<288x128xbf16>, vector<128x128xbf16>, vector<288x128xf32> -> vector<288x128xf32>
    %c0_10 = arith.constant 0 : index
    %c1 = arith.constant 1 : index
    %c0_11 = arith.constant 0 : index
    %9 = vector.load %arg1[%c0_10, %c1, %c0_11] : memref<1x336x128xbf16, #tpu.memory_space<vmem>>, vector<1x288x128xbf16>
    %10 = vector.shape_cast %9 : vector<1x288x128xbf16> to vector<288x128xbf16>
    %c1_12 = arith.constant 1 : index
    %c0_13 = arith.constant 0 : index
    %c0_14 = arith.constant 0 : index
    %11 = vector.load %arg3[%c1_12, %c0_13, %c0_14] : memref<9x128x128xbf16, #tpu.memory_space<vmem>>, vector<1x128x128xbf16>
    %12 = vector.shape_cast %11 : vector<1x128x128xbf16> to vector<128x128xbf16>
    %cst_15 = arith.constant dense<0.000000e+00> : vector<288x128xf32>
    %13 = tpu.matmul %10, %12, %cst_15 {dimension_numbers = #tpu.dot_dimension_numbers<[1], [0], [0], [1], [0, 0, 1, 1], [], []>} : vector<288x128xbf16>, vector<128x128xbf16>, vector<288x128xf32> -> vector<288x128xf32>
    %14 = arith.addf %8, %13 : vector<288x128xf32>
    %c0_16 = arith.constant 0 : index
    %c2 = arith.constant 2 : index
    %c0_17 = arith.constant 0 : index
    %15 = vector.load %arg1[%c0_16, %c2, %c0_17] : memref<1x336x128xbf16, #tpu.memory_space<vmem>>, vector<1x288x128xbf16>
    %16 = vector.shape_cast %15 : vector<1x288x128xbf16> to vector<288x128xbf16>
    %c2_18 = arith.constant 2 : index
    %c0_19 = arith.constant 0 : index
    %c0_20 = arith.constant 0 : index
    %17 = vector.load %arg3[%c2_18, %c0_19, %c0_20] : memref<9x128x128xbf16, #tpu.memory_space<vmem>>, vector<1x128x128xbf16>
    %18 = vector.shape_cast %17 : vector<1x128x128xbf16> to vector<128x128xbf16>
    %cst_21 = arith.constant dense<0.000000e+00> : vector<288x128xf32>
    %19 = tpu.matmul %16, %18, %cst_21 {dimension_numbers = #tpu.dot_dimension_numbers<[1], [0], [0], [1], [0, 0, 1, 1], [], []>} : vector<288x128xbf16>, vector<128x128xbf16>, vector<288x128xf32> -> vector<288x128xf32>
    %20 = arith.addf %14, %19 : vector<288x128xf32>
    %c0_22 = arith.constant 0 : index
    %c18 = arith.constant 18 : index
    %c0_23 = arith.constant 0 : index
    %21 = vector.load %arg1[%c0_22, %c18, %c0_23] : memref<1x336x128xbf16, #tpu.memory_space<vmem>>, vector<1x288x128xbf16>
    %22 = vector.shape_cast %21 : vector<1x288x128xbf16> to vector<288x128xbf16>
    %c3 = arith.constant 3 : index
    %c0_24 = arith.constant 0 : index
    %c0_25 = arith.constant 0 : index
    %23 = vector.load %arg3[%c3, %c0_24, %c0_25] : memref<9x128x128xbf16, #tpu.memory_space<vmem>>, vector<1x128x128xbf16>
    %24 = vector.shape_cast %23 : vector<1x128x128xbf16> to vector<128x128xbf16>
    %cst_26 = arith.constant dense<0.000000e+00> : vector<288x128xf32>
    %25 = tpu.matmul %22, %24, %cst_26 {dimension_numbers = #tpu.dot_dimension_numbers<[1], [0], [0], [1], [0, 0, 1, 1], [], []>} : vector<288x128xbf16>, vector<128x128xbf16>, vector<288x128xf32> -> vector<288x128xf32>
    %26 = arith.addf %20, %25 : vector<288x128xf32>
    %c0_27 = arith.constant 0 : index
    %c19 = arith.constant 19 : index
    %c0_28 = arith.constant 0 : index
    %27 = vector.load %arg1[%c0_27, %c19, %c0_28] : memref<1x336x128xbf16, #tpu.memory_space<vmem>>, vector<1x288x128xbf16>
    %28 = vector.shape_cast %27 : vector<1x288x128xbf16> to vector<288x128xbf16>
    %c4 = arith.constant 4 : index
    %c0_29 = arith.constant 0 : index
    %c0_30 = arith.constant 0 : index
    %29 = vector.load %arg3[%c4, %c0_29, %c0_30] : memref<9x128x128xbf16, #tpu.memory_space<vmem>>, vector<1x128x128xbf16>
    %30 = vector.shape_cast %29 : vector<1x128x128xbf16> to vector<128x128xbf16>
    %cst_31 = arith.constant dense<0.000000e+00> : vector<288x128xf32>
    %31 = tpu.matmul %28, %30, %cst_31 {dimension_numbers = #tpu.dot_dimension_numbers<[1], [0], [0], [1], [0, 0, 1, 1], [], []>} : vector<288x128xbf16>, vector<128x128xbf16>, vector<288x128xf32> -> vector<288x128xf32>
    %32 = arith.addf %26, %31 : vector<288x128xf32>
    %c0_32 = arith.constant 0 : index
    %c20 = arith.constant 20 : index
    %c0_33 = arith.constant 0 : index
    %33 = vector.load %arg1[%c0_32, %c20, %c0_33] : memref<1x336x128xbf16, #tpu.memory_space<vmem>>, vector<1x288x128xbf16>
    %34 = vector.shape_cast %33 : vector<1x288x128xbf16> to vector<288x128xbf16>
    %c5 = arith.constant 5 : index
    %c0_34 = arith.constant 0 : index
    %c0_35 = arith.constant 0 : index
    %35 = vector.load %arg3[%c5, %c0_34, %c0_35] : memref<9x128x128xbf16, #tpu.memory_space<vmem>>, vector<1x128x128xbf16>
    %36 = vector.shape_cast %35 : vector<1x128x128xbf16> to vector<128x128xbf16>
    %cst_36 = arith.constant dense<0.000000e+00> : vector<288x128xf32>
    %37 = tpu.matmul %34, %36, %cst_36 {dimension_numbers = #tpu.dot_dimension_numbers<[1], [0], [0], [1], [0, 0, 1, 1], [], []>} : vector<288x128xbf16>, vector<128x128xbf16>, vector<288x128xf32> -> vector<288x128xf32>
    %38 = arith.addf %32, %37 : vector<288x128xf32>
    %c0_37 = arith.constant 0 : index
    %c36 = arith.constant 36 : index
    %c0_38 = arith.constant 0 : index
    %39 = vector.load %arg1[%c0_37, %c36, %c0_38] : memref<1x336x128xbf16, #tpu.memory_space<vmem>>, vector<1x288x128xbf16>
    %40 = vector.shape_cast %39 : vector<1x288x128xbf16> to vector<288x128xbf16>
    %c6 = arith.constant 6 : index
    %c0_39 = arith.constant 0 : index
    %c0_40 = arith.constant 0 : index
    %41 = vector.load %arg3[%c6, %c0_39, %c0_40] : memref<9x128x128xbf16, #tpu.memory_space<vmem>>, vector<1x128x128xbf16>
    %42 = vector.shape_cast %41 : vector<1x128x128xbf16> to vector<128x128xbf16>
    %cst_41 = arith.constant dense<0.000000e+00> : vector<288x128xf32>
    %43 = tpu.matmul %40, %42, %cst_41 {dimension_numbers = #tpu.dot_dimension_numbers<[1], [0], [0], [1], [0, 0, 1, 1], [], []>} : vector<288x128xbf16>, vector<128x128xbf16>, vector<288x128xf32> -> vector<288x128xf32>
    %44 = arith.addf %38, %43 : vector<288x128xf32>
    %c0_42 = arith.constant 0 : index
    %c37 = arith.constant 37 : index
    %c0_43 = arith.constant 0 : index
    %45 = vector.load %arg1[%c0_42, %c37, %c0_43] : memref<1x336x128xbf16, #tpu.memory_space<vmem>>, vector<1x288x128xbf16>
    %46 = vector.shape_cast %45 : vector<1x288x128xbf16> to vector<288x128xbf16>
    %c7 = arith.constant 7 : index
    %c0_44 = arith.constant 0 : index
    %c0_45 = arith.constant 0 : index
    %47 = vector.load %arg3[%c7, %c0_44, %c0_45] : memref<9x128x128xbf16, #tpu.memory_space<vmem>>, vector<1x128x128xbf16>
    %48 = vector.shape_cast %47 : vector<1x128x128xbf16> to vector<128x128xbf16>
    %cst_46 = arith.constant dense<0.000000e+00> : vector<288x128xf32>
    %49 = tpu.matmul %46, %48, %cst_46 {dimension_numbers = #tpu.dot_dimension_numbers<[1], [0], [0], [1], [0, 0, 1, 1], [], []>} : vector<288x128xbf16>, vector<128x128xbf16>, vector<288x128xf32> -> vector<288x128xf32>
    %50 = arith.addf %44, %49 : vector<288x128xf32>
    %c0_47 = arith.constant 0 : index
    %c38 = arith.constant 38 : index
    %c0_48 = arith.constant 0 : index
    %51 = vector.load %arg1[%c0_47, %c38, %c0_48] : memref<1x336x128xbf16, #tpu.memory_space<vmem>>, vector<1x288x128xbf16>
    %52 = vector.shape_cast %51 : vector<1x288x128xbf16> to vector<288x128xbf16>
    %c8 = arith.constant 8 : index
    %c0_49 = arith.constant 0 : index
    %c0_50 = arith.constant 0 : index
    %53 = vector.load %arg3[%c8, %c0_49, %c0_50] : memref<9x128x128xbf16, #tpu.memory_space<vmem>>, vector<1x128x128xbf16>
    %54 = vector.shape_cast %53 : vector<1x128x128xbf16> to vector<128x128xbf16>
    %cst_51 = arith.constant dense<0.000000e+00> : vector<288x128xf32>
    %55 = tpu.matmul %52, %54, %cst_51 {dimension_numbers = #tpu.dot_dimension_numbers<[1], [0], [0], [1], [0, 0, 1, 1], [], []>} : vector<288x128xbf16>, vector<128x128xbf16>, vector<288x128xf32> -> vector<288x128xf32>
    %56 = arith.addf %50, %55 : vector<288x128xf32>
    %c0_52 = arith.constant 0 : index
    %c0_53 = arith.constant 0 : index
    %57 = vector.load %arg4[%c0_52, %c0_53] : memref<1x128xf32, #tpu.memory_space<vmem>>, vector<1x128xf32>
    %58 = vector.broadcast %57 : vector<1x128xf32> to vector<288x128xf32>
    %59 = arith.addf %56, %58 : vector<288x128xf32>
    %cst_54 = arith.constant 0.000000e+00 : f32
    %60 = vector.broadcast %cst_54 : f32 to vector<288x128xf32>
    %61 = arith.maximumf %59, %60 : vector<288x128xf32>
    %62 = arith.truncf %61 : vector<288x128xf32> to vector<288x128xbf16>
    %c0_55 = arith.constant 0 : index
    %c0_56 = arith.constant 0 : index
    %63 = vector.load %arg2[%c0_55, %c0_56] : memref<288x128xbf16, #tpu.memory_space<vmem>>, vector<288x128xbf16>
    %64 = arith.mulf %62, %63 : vector<288x128xbf16>
    %c24 = arith.constant 24 : index
    %c0_57 = arith.constant 0 : index
    %65 = vector.load %arg8[%c24, %c0_57] : memref<336x128xbf16, #tpu.memory_space<vmem>>, vector<288x128xbf16>
    tpu.vector_store %arg8[%c24, %c0_57], %64 {strides = array<i32>} : memref<336x128xbf16, #tpu.memory_space<vmem>>, vector<288x128xbf16>,
    %c5_58 = arith.constant 5 : index
    %c0_59 = arith.constant 0 : index
    %66 = vector.load %arg8[%c5_58, %c0_59] : memref<336x128xbf16, #tpu.memory_space<vmem>>, vector<288x128xbf16>
    %c0_60 = arith.constant 0 : index
    %c0_61 = arith.constant 0 : index
    %c0_62 = arith.constant 0 : index
    %67 = vector.load %arg5[%c0_60, %c0_61, %c0_62] : memref<9x128x128xbf16, #tpu.memory_space<vmem>>, vector<1x128x128xbf16>
    %68 = vector.shape_cast %67 : vector<1x128x128xbf16> to vector<128x128xbf16>
    %cst_63 = arith.constant dense<0.000000e+00> : vector<288x128xf32>
    %69 = tpu.matmul %66, %68, %cst_63 {dimension_numbers = #tpu.dot_dimension_numbers<[1], [0], [0], [1], [0, 0, 1, 1], [], []>} : vector<288x128xbf16>, vector<128x128xbf16>, vector<288x128xf32> -> vector<288x128xf32>
    %c6_64 = arith.constant 6 : index
    %c0_65 = arith.constant 0 : index
    %70 = vector.load %arg8[%c6_64, %c0_65] : memref<336x128xbf16, #tpu.memory_space<vmem>>, vector<288x128xbf16>
    %c1_66 = arith.constant 1 : index
    %c0_67 = arith.constant 0 : index
    %c0_68 = arith.constant 0 : index
    %71 = vector.load %arg5[%c1_66, %c0_67, %c0_68] : memref<9x128x128xbf16, #tpu.memory_space<vmem>>, vector<1x128x128xbf16>
    %72 = vector.shape_cast %71 : vector<1x128x128xbf16> to vector<128x128xbf16>
    %cst_69 = arith.constant dense<0.000000e+00> : vector<288x128xf32>
    %73 = tpu.matmul %70, %72, %cst_69 {dimension_numbers = #tpu.dot_dimension_numbers<[1], [0], [0], [1], [0, 0, 1, 1], [], []>} : vector<288x128xbf16>, vector<128x128xbf16>, vector<288x128xf32> -> vector<288x128xf32>
    %74 = arith.addf %69, %73 : vector<288x128xf32>
    %c7_70 = arith.constant 7 : index
    %c0_71 = arith.constant 0 : index
    %75 = vector.load %arg8[%c7_70, %c0_71] : memref<336x128xbf16, #tpu.memory_space<vmem>>, vector<288x128xbf16>
    %c2_72 = arith.constant 2 : index
    %c0_73 = arith.constant 0 : index
    %c0_74 = arith.constant 0 : index
    %76 = vector.load %arg5[%c2_72, %c0_73, %c0_74] : memref<9x128x128xbf16, #tpu.memory_space<vmem>>, vector<1x128x128xbf16>
    %77 = vector.shape_cast %76 : vector<1x128x128xbf16> to vector<128x128xbf16>
    %cst_75 = arith.constant dense<0.000000e+00> : vector<288x128xf32>
    %78 = tpu.matmul %75, %77, %cst_75 {dimension_numbers = #tpu.dot_dimension_numbers<[1], [0], [0], [1], [0, 0, 1, 1], [], []>} : vector<288x128xbf16>, vector<128x128xbf16>, vector<288x128xf32> -> vector<288x128xf32>
    %79 = arith.addf %74, %78 : vector<288x128xf32>
    %c23 = arith.constant 23 : index
    %c0_76 = arith.constant 0 : index
    %80 = vector.load %arg8[%c23, %c0_76] : memref<336x128xbf16, #tpu.memory_space<vmem>>, vector<288x128xbf16>
    %c3_77 = arith.constant 3 : index
    %c0_78 = arith.constant 0 : index
    %c0_79 = arith.constant 0 : index
    %81 = vector.load %arg5[%c3_77, %c0_78, %c0_79] : memref<9x128x128xbf16, #tpu.memory_space<vmem>>, vector<1x128x128xbf16>
    %82 = vector.shape_cast %81 : vector<1x128x128xbf16> to vector<128x128xbf16>
    %cst_80 = arith.constant dense<0.000000e+00> : vector<288x128xf32>
    %83 = tpu.matmul %80, %82, %cst_80 {dimension_numbers = #tpu.dot_dimension_numbers<[1], [0], [0], [1], [0, 0, 1, 1], [], []>} : vector<288x128xbf16>, vector<128x128xbf16>, vector<288x128xf32> -> vector<288x128xf32>
    %84 = arith.addf %79, %83 : vector<288x128xf32>
    %c24_81 = arith.constant 24 : index
    %c0_82 = arith.constant 0 : index
    %85 = vector.load %arg8[%c24_81, %c0_82] : memref<336x128xbf16, #tpu.memory_space<vmem>>, vector<288x128xbf16>
    %c4_83 = arith.constant 4 : index
    %c0_84 = arith.constant 0 : index
    %c0_85 = arith.constant 0 : index
    %86 = vector.load %arg5[%c4_83, %c0_84, %c0_85] : memref<9x128x128xbf16, #tpu.memory_space<vmem>>, vector<1x128x128xbf16>
    %87 = vector.shape_cast %86 : vector<1x128x128xbf16> to vector<128x128xbf16>
    %cst_86 = arith.constant dense<0.000000e+00> : vector<288x128xf32>
    %88 = tpu.matmul %85, %87, %cst_86 {dimension_numbers = #tpu.dot_dimension_numbers<[1], [0], [0], [1], [0, 0, 1, 1], [], []>} : vector<288x128xbf16>, vector<128x128xbf16>, vector<288x128xf32> -> vector<288x128xf32>
    %89 = arith.addf %84, %88 : vector<288x128xf32>
    %c25 = arith.constant 25 : index
    %c0_87 = arith.constant 0 : index
    %90 = vector.load %arg8[%c25, %c0_87] : memref<336x128xbf16, #tpu.memory_space<vmem>>, vector<288x128xbf16>
    %c5_88 = arith.constant 5 : index
    %c0_89 = arith.constant 0 : index
    %c0_90 = arith.constant 0 : index
    %91 = vector.load %arg5[%c5_88, %c0_89, %c0_90] : memref<9x128x128xbf16, #tpu.memory_space<vmem>>, vector<1x128x128xbf16>
    %92 = vector.shape_cast %91 : vector<1x128x128xbf16> to vector<128x128xbf16>
    %cst_91 = arith.constant dense<0.000000e+00> : vector<288x128xf32>
    %93 = tpu.matmul %90, %92, %cst_91 {dimension_numbers = #tpu.dot_dimension_numbers<[1], [0], [0], [1], [0, 0, 1, 1], [], []>} : vector<288x128xbf16>, vector<128x128xbf16>, vector<288x128xf32> -> vector<288x128xf32>
    %94 = arith.addf %89, %93 : vector<288x128xf32>
    %c41 = arith.constant 41 : index
    %c0_92 = arith.constant 0 : index
    %95 = vector.load %arg8[%c41, %c0_92] : memref<336x128xbf16, #tpu.memory_space<vmem>>, vector<288x128xbf16>
    %c6_93 = arith.constant 6 : index
    %c0_94 = arith.constant 0 : index
    %c0_95 = arith.constant 0 : index
    %96 = vector.load %arg5[%c6_93, %c0_94, %c0_95] : memref<9x128x128xbf16, #tpu.memory_space<vmem>>, vector<1x128x128xbf16>
    %97 = vector.shape_cast %96 : vector<1x128x128xbf16> to vector<128x128xbf16>
    %cst_96 = arith.constant dense<0.000000e+00> : vector<288x128xf32>
    %98 = tpu.matmul %95, %97, %cst_96 {dimension_numbers = #tpu.dot_dimension_numbers<[1], [0], [0], [1], [0, 0, 1, 1], [], []>} : vector<288x128xbf16>, vector<128x128xbf16>, vector<288x128xf32> -> vector<288x128xf32>
    %99 = arith.addf %94, %98 : vector<288x128xf32>
    %c42 = arith.constant 42 : index
    %c0_97 = arith.constant 0 : index
    %100 = vector.load %arg8[%c42, %c0_97] : memref<336x128xbf16, #tpu.memory_space<vmem>>, vector<288x128xbf16>
    %c7_98 = arith.constant 7 : index
    %c0_99 = arith.constant 0 : index
    %c0_100 = arith.constant 0 : index
    %101 = vector.load %arg5[%c7_98, %c0_99, %c0_100] : memref<9x128x128xbf16, #tpu.memory_space<vmem>>, vector<1x128x128xbf16>
    %102 = vector.shape_cast %101 : vector<1x128x128xbf16> to vector<128x128xbf16>
    %cst_101 = arith.constant dense<0.000000e+00> : vector<288x128xf32>
    %103 = tpu.matmul %100, %102, %cst_101 {dimension_numbers = #tpu.dot_dimension_numbers<[1], [0], [0], [1], [0, 0, 1, 1], [], []>} : vector<288x128xbf16>, vector<128x128xbf16>, vector<288x128xf32> -> vector<288x128xf32>
    %104 = arith.addf %99, %103 : vector<288x128xf32>
    %c43 = arith.constant 43 : index
    %c0_102 = arith.constant 0 : index
    %105 = vector.load %arg8[%c43, %c0_102] : memref<336x128xbf16, #tpu.memory_space<vmem>>, vector<288x128xbf16>
    %c8_103 = arith.constant 8 : index
    %c0_104 = arith.constant 0 : index
    %c0_105 = arith.constant 0 : index
    %106 = vector.load %arg5[%c8_103, %c0_104, %c0_105] : memref<9x128x128xbf16, #tpu.memory_space<vmem>>, vector<1x128x128xbf16>
    %107 = vector.shape_cast %106 : vector<1x128x128xbf16> to vector<128x128xbf16>
    %cst_106 = arith.constant dense<0.000000e+00> : vector<288x128xf32>
    %108 = tpu.matmul %105, %107, %cst_106 {dimension_numbers = #tpu.dot_dimension_numbers<[1], [0], [0], [1], [0, 0, 1, 1], [], []>} : vector<288x128xbf16>, vector<128x128xbf16>, vector<288x128xf32> -> vector<288x128xf32>
    %109 = arith.addf %104, %108 : vector<288x128xf32>
    %c0_107 = arith.constant 0 : index
    %c19_108 = arith.constant 19 : index
    %c0_109 = arith.constant 0 : index
    %110 = vector.load %arg1[%c0_107, %c19_108, %c0_109] : memref<1x336x128xbf16, #tpu.memory_space<vmem>>, vector<1x288x128xbf16>
    %111 = vector.shape_cast %110 : vector<1x288x128xbf16> to vector<288x128xbf16>
    %112 = arith.extf %111 : vector<288x128xbf16> to vector<288x128xf32>
    %c0_110 = arith.constant 0 : index
    %c0_111 = arith.constant 0 : index
    %113 = vector.load %arg6[%c0_110, %c0_111] : memref<1x128xf32, #tpu.memory_space<vmem>>, vector<1x128xf32>
    %114 = vector.broadcast %113 : vector<1x128xf32> to vector<288x128xf32>
    %115 = arith.addf %109, %114 : vector<288x128xf32>
    %116 = arith.addf %115, %112 : vector<288x128xf32>
    %cst_112 = arith.constant 0.000000e+00 : f32
    %117 = vector.broadcast %cst_112 : f32 to vector<288x128xf32>
    %118 = arith.maximumf %116, %117 : vector<288x128xf32>
    %119 = arith.truncf %118 : vector<288x128xf32> to vector<288x128xbf16>
    %c0_113 = arith.constant 0 : index
    %c0_114 = arith.constant 0 : index
    %c0_115 = arith.constant 0 : index
    %120 = vector.load %arg7[%c0_113, %c0_114, %c0_115] : memref<1x288x128xbf16, #tpu.memory_space<vmem>>, vector<1x288x128xbf16>
    %121 = vector.shape_cast %120 : vector<1x288x128xbf16> to vector<288x128xbf16>
    %122 = vector.shape_cast %119 : vector<288x128xbf16> to vector<1x288x128xbf16>
    tpu.vector_store %arg7[%c0_113, %c0_114, %c0_115], %122 {strides = array<i32>} : memref<1x288x128xbf16, #tpu.memory_space<vmem>>, vector<1x288x128xbf16>,
    return
  }
  func.func @transform_0(%arg0: i32) -> (i32, i32, i32) {
    %c0_i32 = arith.constant 0 : i32
    %c0_i32_0 = arith.constant 0 : i32
    %c0_i32_1 = arith.constant 0 : i32
    return %arg0, %c0_i32, %c0_i32_0 : i32, i32, i32
  }
  func.func @transform_1(%arg0: i32) -> (i32, i32) {
    %c0_i32 = arith.constant 0 : i32
    %c0_i32_0 = arith.constant 0 : i32
    %c0_i32_1 = arith.constant 0 : i32
    return %c0_i32, %c0_i32_0 : i32, i32
  }
  func.func @transform_2(%arg0: i32) -> (i32, i32, i32) {
    %c0_i32 = arith.constant 0 : i32
    %c0_i32_0 = arith.constant 0 : i32
    %c0_i32_1 = arith.constant 0 : i32
    %c0_i32_2 = arith.constant 0 : i32
    return %c0_i32, %c0_i32_0, %c0_i32_1 : i32, i32, i32
  }
  func.func @transform_3(%arg0: i32) -> (i32, i32) {
    %c0_i32 = arith.constant 0 : i32
    %c0_i32_0 = arith.constant 0 : i32
    %c0_i32_1 = arith.constant 0 : i32
    return %c0_i32, %c0_i32_0 : i32, i32
  }
  func.func @transform_4(%arg0: i32) -> (i32, i32, i32) {
    %c0_i32 = arith.constant 0 : i32
    %c0_i32_0 = arith.constant 0 : i32
    %c0_i32_1 = arith.constant 0 : i32
    %c0_i32_2 = arith.constant 0 : i32
    return %c0_i32, %c0_i32_0, %c0_i32_1 : i32, i32, i32
  }
  func.func @transform_5(%arg0: i32) -> (i32, i32) {
    %c0_i32 = arith.constant 0 : i32
    %c0_i32_0 = arith.constant 0 : i32
    %c0_i32_1 = arith.constant 0 : i32
    return %c0_i32, %c0_i32_0 : i32, i32
  }
  func.func @transform_6(%arg0: i32) -> (i32, i32, i32) {
    %c0_i32 = arith.constant 0 : i32
    %c0_i32_0 = arith.constant 0 : i32
    %c0_i32_1 = arith.constant 0 : i32
    return %arg0, %c0_i32, %c0_i32_0 : i32, i32, i32
  }
}

</mosaic_0001>

<llo_original>
// kernel: a_call__.1
$region0: #{a_call__.1}
  #allocation0 [shape = 'u32[]', space=smem, size = 0x4, offset = 0x4, fixed_abs, tag = 'smem constant byte address 0x4 - core index']
  #allocation1 [shape = 'u32[144,128]{1,0:T(1,128)}', space=vmem, size = 0x12000, scoped, tag = 'internal scratch']
  #allocation2 [shape = 'bf16[336,128]{1,0:T(8,128)(2,1)}', space=vmem, size = 0x15000, scoped, tag = 'scratch operand']
  %s0 = inlined_call_operand.vmem [shape: bf16[2,336,128], index: 0, kind: input, shape index: {}]
  %s1 = inlined_call_operand.vmem [shape: bf16[288,128], index: 1, kind: input, shape index: {}]
  %s2 = inlined_call_operand.vmem [shape: bf16[9,128,128], index: 2, kind: input, shape index: {}]
  %s3 = inlined_call_operand.vmem [shape: f32[1,128], index: 3, kind: input, shape index: {}, may-alias: {3,5}]
  %s4 = inlined_call_operand.vmem [shape: bf16[9,128,128], index: 4, kind: input, shape index: {}]
  %s5 = inlined_call_operand.vmem [shape: f32[1,128], index: 5, kind: input, shape index: {}, may-alias: {3,5}]
  %s6 = inlined_call_operand.vmem [shape: bf16[2,288,128], index: 6, kind: output, shape index: {}]
  %s7 = sld [smem:[#allocation0]]
  $region57: #{a_call__.1} parent=0
    _
  %s9 = ssub.s32 1, %s7
  %s10 = scalar_select 0, %s9, %s7
  loop: start=0, step=1, limit=4
  $region2: #{a_call__.1} parent=0 // loop_pre_header
    _
  $region3: #{a_call__.1} parent=0 // loop_header
    %s12 = sphi 0, %s16
    %p13 = scmp.ge.s32.totalorder %s12, 4
    %s22 = sphi 0, %s24
    %s25 = sphi 0, %s22
    %s26 = sphi 0, %s25
    %s42 = sphi 0, %s26
    %s46 = sphi 0, %s46
    %s48 = sphi 0, %s46
    %s49 = sphi 0, %s48
    %s63 = sphi 0, %s49
    %s67 = sphi 0, %s67
    %s69 = sphi 0, %s67
    %s70 = sphi 0, %s69
    %s84 = sphi 0, %s70
    %s88 = sphi 0, %s88
    %s90 = sphi 0, %s88
    %s91 = sphi 0, %s90
    %s105 = sphi 0, %s91
    %s109 = sphi 0, %s109
    %s111 = sphi 0, %s109
    %s112 = sphi 0, %s111
    %s126 = sphi 0, %s112
    %s130 = sphi 0, %s130
    %s132 = sphi 0, %s130
    %s133 = sphi 0, %s132
    %s147 = sphi 0, %s133
    %s153 = sphi 0, %s155
    %s156 = sphi 0, %s153
    %s157 = sphi 0, %s156
    %s173 = sphi 0, %s157
  $region4: #{a_call__.1} parent=0 // loop_header_branch
    %15 = sbr.rel (%p13) target = $region8
  $region5: #{a_call__.1} parent=0 // loop_body
    %s17 = ssub.s32 %s12, 1
    %s18 = ssub.s32 %s12, 2
    %s19 = sadd.s32 %s12, 1
    %s20 = ssub.s32 %s12, %s19
    %p21 = scmp.eq.s32.totalorder %s20, 0
    %s23 = sadd.s32 %s22, 1
    %s24 = scalar_select %p21, %s22, %s23
    %p27 = pneg %p21
    %p28 = scmp.eq.s32.totalorder %s12, 1
    %p29 = por %p27, %p28
    %p30 = scmp.ne.s32.totalorder %s22, %s25
    %p31 = scmp.eq.s32.totalorder %s12, 0
    %p32 = por %p30, %p31
    %p33 = scmp.ne.s32.totalorder %s22, %s25
    %p34 = scmp.eq.s32.totalorder %s17, 1
    %p35 = por %p33, %p34
    %p36 = scmp.ne.s32.totalorder %s25, %s26
    %p37 = scmp.eq.s32.totalorder %s17, 0
    %p38 = por %p36, %p37
    %p39 = scmp.ne.s32.totalorder %s25, %s26
    %p40 = scmp.eq.s32.totalorder %s18, 1
    %p41 = por %p39, %p40
    %p43 = scmp.ne.s32.totalorder %s26, %s42
    %p44 = scmp.eq.s32.totalorder %s18, 0
    %p45 = por %p43, %p44
    %s47 = sadd.s32 %s46, 1
    %p50 = scmp.eq.s32.totalorder %s12, 1
    %p51 = scmp.ne.s32.totalorder %s46, %s48
    %p52 = scmp.eq.s32.totalorder %s12, 0
    %p53 = por %p51, %p52
    %p54 = scmp.ne.s32.totalorder %s46, %s48
    %p55 = scmp.eq.s32.totalorder %s17, 1
    %p56 = por %p54, %p55
    %p57 = scmp.ne.s32.totalorder %s48, %s49
    %p58 = scmp.eq.s32.totalorder %s17, 0
    %p59 = por %p57, %p58
    %p60 = scmp.ne.s32.totalorder %s48, %s49
    %p61 = scmp.eq.s32.totalorder %s18, 1
    %p62 = por %p60, %p61
    %p64 = scmp.ne.s32.totalorder %s49, %s63
    %p65 = scmp.eq.s32.totalorder %s18, 0
    %p66 = por %p64, %p65
    %s68 = sadd.s32 %s67, 1
    %p71 = scmp.eq.s32.totalorder %s12, 1
    %p72 = scmp.ne.s32.totalorder %s67, %s69
    %p73 = scmp.eq.s32.totalorder %s12, 0
    %p74 = por %p72, %p73
    %p75 = scmp.ne.s32.totalorder %s67, %s69
    %p76 = scmp.eq.s32.totalorder %s17, 1
    %p77 = por %p75, %p76
    %p78 = scmp.ne.s32.totalorder %s69, %s70
    %p79 = scmp.eq.s32.totalorder %s17, 0
    %p80 = por %p78, %p79
    %p81 = scmp.ne.s32.totalorder %s69, %s70
    %p82 = scmp.eq.s32.totalorder %s18, 1
    %p83 = por %p81, %p82
    %p85 = scmp.ne.s32.totalorder %s70, %s84
    %p86 = scmp.eq.s32.totalorder %s18, 0
    %p87 = por %p85, %p86
    %s89 = sadd.s32 %s88, 1
    %p92 = scmp.eq.s32.totalorder %s12, 1
    %p93 = scmp.ne.s32.totalorder %s88, %s90
    %p94 = scmp.eq.s32.totalorder %s12, 0
    %p95 = por %p93, %p94
    %p96 = scmp.ne.s32.totalorder %s88, %s90
    %p97 = scmp.eq.s32.totalorder %s17, 1
    %p98 = por %p96, %p97
    %p99 = scmp.ne.s32.totalorder %s90, %s91
    %p100 = scmp.eq.s32.totalorder %s17, 0
    %p101 = por %p99, %p100
    %p102 = scmp.ne.s32.totalorder %s90, %s91
    %p103 = scmp.eq.s32.totalorder %s18, 1
    %p104 = por %p102, %p103
    %p106 = scmp.ne.s32.totalorder %s91, %s105
    %p107 = scmp.eq.s32.totalorder %s18, 0
    %p108 = por %p106, %p107
    %s110 = sadd.s32 %s109, 1
    %p113 = scmp.eq.s32.totalorder %s12, 1
    %p114 = scmp.ne.s32.totalorder %s109, %s111
    %p115 = scmp.eq.s32.totalorder %s12, 0
    %p116 = por %p114, %p115
    %p117 = scmp.ne.s32.totalorder %s109, %s111
    %p118 = scmp.eq.s32.totalorder %s17, 1
    %p119 = por %p117, %p118
    %p120 = scmp.ne.s32.totalorder %s111, %s112
    %p121 = scmp.eq.s32.totalorder %s17, 0
    %p122 = por %p120, %p121
    %p123 = scmp.ne.s32.totalorder %s111, %s112
    %p124 = scmp.eq.s32.totalorder %s18, 1
    %p125 = por %p123, %p124
    %p127 = scmp.ne.s32.totalorder %s112, %s126
    %p128 = scmp.eq.s32.totalorder %s18, 0
    %p129 = por %p127, %p128
    %s131 = sadd.s32 %s130, 1
    %p134 = scmp.eq.s32.totalorder %s12, 1
    %p135 = scmp.ne.s32.totalorder %s130, %s132
    %p136 = scmp.eq.s32.totalorder %s12, 0
    %p137 = por %p135, %p136
    %p138 = scmp.ne.s32.totalorder %s130, %s132
    %p139 = scmp.eq.s32.totalorder %s17, 1
    %p140 = por %p138, %p139
    %p141 = scmp.ne.s32.totalorder %s132, %s133
    %p142 = scmp.eq.s32.totalorder %s17, 0
    %p143 = por %p141, %p142
    %p144 = scmp.ne.s32.totalorder %s132, %s133
    %p145 = scmp.eq.s32.totalorder %s18, 1
    %p146 = por %p144, %p145
    %p148 = scmp.ne.s32.totalorder %s133, %s147
    %p149 = scmp.eq.s32.totalorder %s18, 0
    %p150 = por %p148, %p149
    %s151 = ssub.s32 %s12, %s19
    %p152 = scmp.eq.s32.totalorder %s151, 0
    %s154 = sadd.s32 %s153, 1
    %s155 = scalar_select %p152, %s153, %s154
    %p158 = pneg %p152
    %p159 = scmp.eq.s32.totalorder %s12, 1
    %p160 = por %p158, %p159
    %p161 = scmp.ne.s32.totalorder %s153, %s156
    %p162 = scmp.eq.s32.totalorder %s12, 0
    %p163 = por %p161, %p162
    %p164 = scmp.ne.s32.totalorder %s153, %s156
    %p165 = scmp.eq.s32.totalorder %s17, 1
    %p166 = por %p164, %p165
    %p167 = scmp.ne.s32.totalorder %s156, %s157
    %p168 = scmp.eq.s32.totalorder %s17, 0
    %p169 = por %p167, %p168
    %p170 = scmp.ne.s32.totalorder %s156, %s157
    %p171 = scmp.eq.s32.totalorder %s18, 1
    %p172 = por %p170, %p171
    %p174 = scmp.ne.s32.totalorder %s157, %s173
    %p175 = scmp.eq.s32.totalorder %s18, 0
    %p176 = por %p174, %p175
    %p177 = scmp.le.s32.totalorder 1, %s12
    %p178 = scmp.lt.s32.totalorder %s12, 3
    %p179 = pnand %p177, %p178
    %p180 = pneg %p179
    // Predicated region
    $region9: #{a_call__.1} parent=5 // pred_check
      _
    $region10: #{a_call__.1} parent=5 // pred_check_branch
      %182 = sbr.rel (%p179) target = $region12
    $region11: #{a_call__.1} parent=5 // pred_region
      %s183 = ssub.s32 %s12, 1
      // Predicated region
      $region13: #{a_call__.1} parent=11 // pred_check
        %p184 = pneg %p59
      $region14: #{a_call__.1} parent=11 // pred_check_branch
        %186 = sbr.rel (%p184) target = $region16
      $region15: #{a_call__.1} parent=11 // pred_region
        _
      $region16: #{a_call__.1} parent=11 // pred_fallthru
        _
      // Predicated region
      $region17: #{a_call__.1} parent=11 // pred_check
        %p187 = pneg %p80
      $region18: #{a_call__.1} parent=11 // pred_check_branch
        %189 = sbr.rel (%p187) target = $region20
      $region19: #{a_call__.1} parent=11 // pred_region
        _
      $region20: #{a_call__.1} parent=11 // pred_fallthru
        _
      // Predicated region
      $region21: #{a_call__.1} parent=11 // pred_check
        %p190 = pneg %p101
      $region22: #{a_call__.1} parent=11 // pred_check_branch
        %192 = sbr.rel (%p190) target = $region24
      $region23: #{a_call__.1} parent=11 // pred_region
        _
      $region24: #{a_call__.1} parent=11 // pred_fallthru
        _
      // Predicated region
      $region25: #{a_call__.1} parent=11 // pred_check
        %p193 = pneg %p122
      $region26: #{a_call__.1} parent=11 // pred_check_branch
        %195 = sbr.rel (%p193) target = $region28
      $region27: #{a_call__.1} parent=11 // pred_region
        _
      $region28: #{a_call__.1} parent=11 // pred_fallthru
        _
      // Predicated region
      $region29: #{a_call__.1} parent=11 // pred_check
        %p196 = pneg %p143
      $region30: #{a_call__.1} parent=11 // pred_check_branch
        %198 = sbr.rel (%p196) target = $region32
      $region31: #{a_call__.1} parent=11 // pred_region
        _
      $region32: #{a_call__.1} parent=11 // pred_fallthru
        _
    $region12: #{a_call__.1} parent=5 // pred_fallthru
      _
    %p199 = scmp.lt.s32.totalorder %s12, 2
    // Predicated region
    $region33: #{a_call__.1} parent=5 // pred_check
      %p200 = pneg %p199
    $region34: #{a_call__.1} parent=5 // pred_check_branch
      %202 = sbr.rel (%p200) target = $region36
    $region35: #{a_call__.1} parent=5 // pred_region
      // Predicated region
      $region37: #{a_call__.1} parent=35 // pred_check
        %p203 = pneg %p32
      $region38: #{a_call__.1} parent=35 // pred_check_branch
        %205 = sbr.rel (%p203) target = $region40
      $region39: #{a_call__.1} parent=35 // pred_region
        %p206 = scmp.lt.s32.totalorder %s12, 1
        %s207 = scalar_select %p206, %s12, 1
        %s208 = smul.addr %s207, 42
        %s209 = smul.addr %s208, 4
        %s210 = scalar_lea.vmem %s0, %s209
      $region40: #{a_call__.1} parent=35 // pred_fallthru
        _
    $region36: #{a_call__.1} parent=5 // pred_fallthru
      _
    %p211 = scmp.le.s32.totalorder 1, %s12
    %p212 = scmp.lt.s32.totalorder %s12, 3
    %p213 = pnand %p211, %p212
    %p214 = pneg %p213
    // Predicated region
    $region41: #{a_call__.1} parent=5 // pred_check
      _
    $region42: #{a_call__.1} parent=5 // pred_check_branch
      %216 = sbr.rel (%p213) target = $region44
    $region43: #{a_call__.1} parent=5 // pred_region
      %s217 = ssub.s32 %s12, 1
      %p218 = scmp.lt.s32.totalorder %s17, 1
      %s219 = scalar_select %p218, %s17, 1
      %s220 = smul.addr %s219, 42
      %s221 = smul.addr %s220, 4
      %s222 = scalar_lea.vmem %s0, %s221
      %p223 = pneg %p38
      %p224 = pneg %p35
      %p225 = pneg %p59
      %p226 = pneg %p56
      %p227 = pneg %p80
      %p228 = pneg %p77
      %p229 = pneg %p101
      %p230 = pneg %p98
      %p231 = pneg %p122
      %p232 = pneg %p119
      %p233 = pneg %p143
      %p234 = pneg %p140
      %p235 = pneg %p169
      %p236 = pneg %p166
      %p237 = scmp.lt.s32.totalorder %s17, 1
      %s238 = scalar_select %p237, %s17, 1
      %s239 = smul.addr %s238, 36
      %s240 = smul.addr %s239, 4
      %s241 = scalar_lea.vmem %s6, %s240
      %p242 = scmp.lt.s32.totalorder %s17, 1
      %s243 = scalar_select %p242, %s17, 1
      %s244 = smul.addr %s243, 42
      %s245 = smul.addr %s244, 4
      %s246 = scalar_lea.vmem %s0, %s245
      %p247 = scmp.lt.s32.totalorder %s17, 1
      %s248 = scalar_select %p247, %s17, 1
      %s249 = smul.addr %s248, 36
      %s250 = smul.addr %s249, 4
      %s251 = scalar_lea.vmem %s6, %s250
      %253 = vst [vmem:[#allocation2] sm:$0xf] 0
      %254 = vst [vmem:[#allocation2 + $0x4] sm:$0xf] 0
      %255 = vst [vmem:[#allocation2 + $0x8] sm:$0xf] 0
      %256 = vst [vmem:[#allocation2 + $0x9c] sm:$0xf] 0
      %257 = vst [vmem:[#allocation2 + $0xa0] sm:$0xf] 0
      %258 = vst [vmem:[#allocation2 + $0xa4] sm:$0xf] 0
      %v259 = vld [vmem:[%s246] sm:$0xf]
      %v260 = vld [vmem:[%s246 + $0x4] sm:$0xf]
      %v261 = vld [vmem:[%s246 + $0x8] sm:$0xf]
      %v262 = vld [vmem:[%s246 + $0xc] sm:$0xf]
      %v263 = vld [vmem:[%s246 + $0x10] sm:$0xf]
      %v264 = vld [vmem:[%s246 + $0x14] sm:$0xf]
      %v265 = vld [vmem:[%s246 + $0x18] sm:$0xf]
      %v266 = vld [vmem:[%s246 + $0x1c] sm:$0xf]
      %v267 = vld [vmem:[%s246 + $0x20] sm:$0xf]
      %v268 = vld [vmem:[%s246 + $0x24] sm:$0xf]
      %v269 = vld [vmem:[%s246 + $0x28] sm:$0xf]
      %v270 = vld [vmem:[%s246 + $0x2c] sm:$0xf]
      %v271 = vld [vmem:[%s246 + $0x30] sm:$0xf]
      %v272 = vld [vmem:[%s246 + $0x34] sm:$0xf]
      %v273 = vld [vmem:[%s246 + $0x38] sm:$0xf]
      %v274 = vld [vmem:[%s246 + $0x3c] sm:$0xf]
      %v275 = vld [vmem:[%s246 + $0x40] sm:$0xf]
      %v276 = vld [vmem:[%s246 + $0x44] sm:$0xf]
      %v277 = vld [vmem:[%s246 + $0x48] sm:$0xf]
      %v278 = vld [vmem:[%s246 + $0x4c] sm:$0xf]
      %v279 = vld [vmem:[%s246 + $0x50] sm:$0xf]
      %v280 = vld [vmem:[%s246 + $0x54] sm:$0xf]
      %v281 = vld [vmem:[%s246 + $0x58] sm:$0xf]
      %v282 = vld [vmem:[%s246 + $0x5c] sm:$0xf]
      %v283 = vld [vmem:[%s246 + $0x60] sm:$0xf]
      %v284 = vld [vmem:[%s246 + $0x64] sm:$0xf]
      %v285 = vld [vmem:[%s246 + $0x68] sm:$0xf]
      %v286 = vld [vmem:[%s246 + $0x6c] sm:$0xf]
      %v287 = vld [vmem:[%s246 + $0x70] sm:$0xf]
      %v288 = vld [vmem:[%s246 + $0x74] sm:$0xf]
      %v289 = vld [vmem:[%s246 + $0x78] sm:$0xf]
      %v290 = vld [vmem:[%s246 + $0x7c] sm:$0xf]
      %v291 = vld [vmem:[%s246 + $0x80] sm:$0xf]
      %v292 = vld [vmem:[%s246 + $0x84] sm:$0xf]
      %v293 = vld [vmem:[%s246 + $0x88] sm:$0xf]
      %v294 = vld [vmem:[%s246 + $0x8c] sm:$0xf]
      %v295 = vld [vmem:[%s2] sm:$0xf]
      %v296 = vld [vmem:[%s2 + $0x4] sm:$0xf]
      %v297 = vld [vmem:[%s2 + $0x8] sm:$0xf]
      %v298 = vld [vmem:[%s2 + $0xc] sm:$0xf]
      %v299 = vld [vmem:[%s2 + $0x10] sm:$0xf]
      %v300 = vld [vmem:[%s2 + $0x14] sm:$0xf]
      %v301 = vld [vmem:[%s2 + $0x18] sm:$0xf]
      %v302 = vld [vmem:[%s2 + $0x1c] sm:$0xf]
      %v303 = vld [vmem:[%s2 + $0x20] sm:$0xf]
      %v304 = vld [vmem:[%s2 + $0x24] sm:$0xf]
      %v305 = vld [vmem:[%s2 + $0x28] sm:$0xf]
      %v306 = vld [vmem:[%s2 + $0x2c] sm:$0xf]
      %v307 = vld [vmem:[%s2 + $0x30] sm:$0xf]
      %v308 = vld [vmem:[%s2 + $0x34] sm:$0xf]
      %v309 = vld [vmem:[%s2 + $0x38] sm:$0xf]
      %v310 = vld [vmem:[%s2 + $0x3c] sm:$0xf]
      %v311 = vld [vmem:[%s246 + $0x90] sm:$0x1]
      %s312 = scalar_lea.vmem %s2, 64
      %v313 = vld [vmem:[%s312] sm:$0xf]
      %v314 = vld [vmem:[%s312 + $0x4] sm:$0xf]
      %v315 = vld [vmem:[%s312 + $0x8] sm:$0xf]
      %v316 = vld [vmem:[%s312 + $0xc] sm:$0xf]
      %v317 = vld [vmem:[%s312 + $0x10] sm:$0xf]
      %v318 = vld [vmem:[%s312 + $0x14] sm:$0xf]
      %v319 = vld [vmem:[%s312 + $0x18] sm:$0xf]
      %v320 = vld [vmem:[%s312 + $0x1c] sm:$0xf]
      %v321 = vld [vmem:[%s312 + $0x20] sm:$0xf]
      %v322 = vld [vmem:[%s312 + $0x24] sm:$0xf]
      %v323 = vld [vmem:[%s312 + $0x28] sm:$0xf]
      %v324 = vld [vmem:[%s312 + $0x2c] sm:$0xf]
      %v325 = vld [vmem:[%s312 + $0x30] sm:$0xf]
      %v326 = vld [vmem:[%s312 + $0x34] sm:$0xf]
      %v327 = vld [vmem:[%s312 + $0x38] sm:$0xf]
      %v328 = vld [vmem:[%s312 + $0x3c] sm:$0xf]
      %v366 = vunpack.c.l.b16 %v259
      %v367 = vunpack.c.l.b16 %v260
      %v368 = vunpack.c.l.b16 %v261
      %v369 = vunpack.c.l.b16 %v262
      %v370 = vunpack.c.l.b16 %v263
      %v371 = vunpack.c.l.b16 %v264
      %v372 = vunpack.c.l.b16 %v265
      %v373 = vunpack.c.l.b16 %v266
      %v374 = vunpack.c.l.b16 %v267
      %v375 = vunpack.c.l.b16 %v268
      %v376 = vunpack.c.l.b16 %v269
      %v377 = vunpack.c.l.b16 %v270
      %v378 = vunpack.c.l.b16 %v271
      %v379 = vunpack.c.l.b16 %v272
      %v380 = vunpack.c.l.b16 %v273
      %v381 = vunpack.c.l.b16 %v274
      %v382 = vunpack.c.l.b16 %v275
      %v383 = vunpack.c.l.b16 %v276
      %v384 = vunpack.c.l.b16 %v277
      %v385 = vunpack.c.l.b16 %v278
      %v386 = vunpack.c.l.b16 %v279
      %v387 = vunpack.c.l.b16 %v280
      %v388 = vunpack.c.l.b16 %v281
      %v389 = vunpack.c.l.b16 %v282
      %v390 = vunpack.c.l.b16 %v283
      %v391 = vunpack.c.l.b16 %v284
      %v392 = vunpack.c.l.b16 %v285
      %v393 = vunpack.c.l.b16 %v286
      %v394 = vunpack.c.l.b16 %v287
      %v395 = vunpack.c.l.b16 %v288
      %v396 = vunpack.c.l.b16 %v289
      %v397 = vunpack.c.l.b16 %v290
      %v398 = vunpack.c.l.b16 %v291
      %v399 = vunpack.c.l.b16 %v292
      %v400 = vunpack.c.l.b16 %v293
      %v401 = vunpack.c.l.b16 %v294
      %v402 = vunpack.c.l.b16 %v311
      %v403 = vpack.c.b16 %v367, %v366
      %v404 = vpack.c.b16 %v369, %v368
      %v405 = vpack.c.b16 %v371, %v370
      %v406 = vpack.c.b16 %v373, %v372
      %v407 = vpack.c.b16 %v375, %v374
      %v408 = vpack.c.b16 %v377, %v376
      %v409 = vpack.c.b16 %v379, %v378
      %v410 = vpack.c.b16 %v381, %v380
      %v411 = vpack.c.b16 %v383, %v382
      %v412 = vpack.c.b16 %v385, %v384
      %v413 = vpack.c.b16 %v387, %v386
      %v414 = vpack.c.b16 %v389, %v388
      %v415 = vpack.c.b16 %v391, %v390
      %v416 = vpack.c.b16 %v393, %v392
      %v417 = vpack.c.b16 %v395, %v394
      %v418 = vpack.c.b16 %v397, %v396
      %v419 = vpack.c.b16 %v399, %v398
      %v420 = vpack.c.b16 %v401, %v400
      %v421 = vpack.c.b16 %v402, %v402
      %vm422 = vsmask.f32 7424
      %v424 = vshrl.u32 %v403, 16
      %v426 = vshll.u32 %v403, 16
      %v428 = vrot.slane %v426, 1
      %v429 = vor.u32 %v424, %v428
      %v431 = vshll.u32 %v404, 16
      %v433 = vrot.slane %v431, 1
      %v434 = vsel %vm422, %v429, %v433
      %v435 = vshrl.u32 %v404, 16
      %v437 = vor.u32 %v435, %v433
      %v439 = vshll.u32 %v405, 16
      %v441 = vrot.slane %v439, 1
      %v442 = vsel %vm422, %v437, %v441
      %v443 = vshrl.u32 %v405, 16
      %v445 = vor.u32 %v443, %v441
      %v447 = vshll.u32 %v406, 16
      %v449 = vrot.slane %v447, 1
      %v450 = vsel %vm422, %v445, %v449
      %v451 = vshrl.u32 %v406, 16
      %v453 = vor.u32 %v451, %v449
      %v455 = vshll.u32 %v407, 16
      %v457 = vrot.slane %v455, 1
      %v458 = vsel %vm422, %v453, %v457
      %v459 = vshrl.u32 %v407, 16
      %v461 = vor.u32 %v459, %v457
      %v463 = vshll.u32 %v408, 16
      %v465 = vrot.slane %v463, 1
      %v466 = vsel %vm422, %v461, %v465
      %v467 = vshrl.u32 %v408, 16
      %v469 = vor.u32 %v467, %v465
      %v471 = vshll.u32 %v409, 16
      %v473 = vrot.slane %v471, 1
      %v474 = vsel %vm422, %v469, %v473
      %v475 = vshrl.u32 %v409, 16
      %v477 = vor.u32 %v475, %v473
      %v479 = vshll.u32 %v410, 16
      %v481 = vrot.slane %v479, 1
      %v482 = vsel %vm422, %v477, %v481
      %v483 = vshrl.u32 %v410, 16
      %v485 = vor.u32 %v483, %v481
      %v487 = vshll.u32 %v411, 16
      %v489 = vrot.slane %v487, 1
      %v490 = vsel %vm422, %v485, %v489
      %v491 = vshrl.u32 %v411, 16
      %v493 = vor.u32 %v491, %v489
      %v495 = vshll.u32 %v412, 16
      %v497 = vrot.slane %v495, 1
      %v498 = vsel %vm422, %v493, %v497
      %v499 = vshrl.u32 %v412, 16
      %v501 = vor.u32 %v499, %v497
      %v503 = vshll.u32 %v413, 16
      %v505 = vrot.slane %v503, 1
      %v506 = vsel %vm422, %v501, %v505
      %v507 = vshrl.u32 %v413, 16
      %v509 = vor.u32 %v507, %v505
      %v511 = vshll.u32 %v414, 16
      %v513 = vrot.slane %v511, 1
      %v514 = vsel %vm422, %v509, %v513
      %v515 = vshrl.u32 %v414, 16
      %v517 = vor.u32 %v515, %v513
      %v519 = vshll.u32 %v415, 16
      %v521 = vrot.slane %v519, 1
      %v522 = vsel %vm422, %v517, %v521
      %v523 = vshrl.u32 %v415, 16
      %v525 = vor.u32 %v523, %v521
      %v527 = vshll.u32 %v416, 16
      %v529 = vrot.slane %v527, 1
      %v530 = vsel %vm422, %v525, %v529
      %v531 = vshrl.u32 %v416, 16
      %v533 = vor.u32 %v531, %v529
      %v535 = vshll.u32 %v417, 16
      %v537 = vrot.slane %v535, 1
      %v538 = vsel %vm422, %v533, %v537
      %v539 = vshrl.u32 %v417, 16
      %v541 = vor.u32 %v539, %v537
      %v543 = vshll.u32 %v418, 16
      %v545 = vrot.slane %v543, 1
      %v546 = vsel %vm422, %v541, %v545
      %v547 = vshrl.u32 %v418, 16
      %v549 = vor.u32 %v547, %v545
      %v551 = vshll.u32 %v419, 16
      %v553 = vrot.slane %v551, 1
      %v554 = vsel %vm422, %v549, %v553
      %v555 = vshrl.u32 %v419, 16
      %v557 = vor.u32 %v555, %v553
      %v559 = vshll.u32 %v420, 16
      %v561 = vrot.slane %v559, 1
      %v562 = vsel %vm422, %v557, %v561
      %v563 = vshrl.u32 %v420, 16
      %v565 = vor.u32 %v563, %v561
      %v567 = vshll.u32 %v421, 16
      %v569 = vrot.slane %v567, 1
      %v570 = vsel %vm422, %v565, %v569
      %v605 = vunpack.c.l.b16 %v313
      %v606 = vunpack.c.l.b16 %v314
      %v607 = vunpack.c.l.b16 %v315
      %v608 = vunpack.c.l.b16 %v316
      %v609 = vunpack.c.l.b16 %v317
      %v610 = vunpack.c.l.b16 %v318
      %v611 = vunpack.c.l.b16 %v319
      %v612 = vunpack.c.l.b16 %v320
      %v613 = vunpack.c.l.b16 %v321
      %v614 = vunpack.c.l.b16 %v322
      %v615 = vunpack.c.l.b16 %v323
      %v616 = vunpack.c.l.b16 %v324
      %v617 = vunpack.c.l.b16 %v325
      %v618 = vunpack.c.l.b16 %v326
      %v619 = vunpack.c.l.b16 %v327
      %v620 = vunpack.c.l.b16 %v328
      %v621 = vpack.c.b16 %v606, %v605
      %v622 = vpack.c.b16 %v608, %v607
      %v623 = vpack.c.b16 %v610, %v609
      %v624 = vpack.c.b16 %v612, %v611
      %v625 = vpack.c.b16 %v614, %v613
      %v626 = vpack.c.b16 %v616, %v615
      %v627 = vpack.c.b16 %v618, %v617
      %v628 = vpack.c.b16 %v620, %v619
      %637 = vmatprep.subr.bf16.mxu0 0
      %638 = vmatpush1.bf16.msra.mxu0 %v628
      %639 = vmatprep.subr.bf16.mxu0 0
      %640 = vmatpush1.bf16.msra.mxu0 %v627
      %641 = vmatprep.subr.bf16.mxu0 0
      %642 = vmatpush1.bf16.msra.mxu0 %v626
      %643 = vmatprep.subr.bf16.mxu0 0
      %644 = vmatpush1.bf16.msra.mxu0 %v625
      %645 = vmatprep.subr.bf16.mxu0 0
      %646 = vmatpush1.bf16.msra.mxu0 %v624
      %647 = vmatprep.subr.bf16.mxu0 0
      %648 = vmatpush1.bf16.msra.mxu0 %v623
      %649 = vmatprep.subr.bf16.mxu0 0
      %650 = vmatpush1.bf16.msra.mxu0 %v622
      %651 = vmatprep.subr.bf16.mxu0 0
      %652 = vmatpush1.bf16.msra.mxu0 %v621
      %653 = vmatprep.subr.bf16.mxu0 0
      %654 = vmatpush2.bf16.msra.mxu0 0
      %655 = vmatprep.subr.bf16.mxu0 0
      %656 = vmatpush2.bf16.msra.mxu0 0
      %657 = vmatprep.subr.bf16.mxu0 0
      %658 = vmatpush2.bf16.msra.mxu0 0
      %659 = vmatprep.subr.bf16.mxu0 0
      %660 = vmatpush2.bf16.msra.mxu0 0
      %661 = vmatprep.subr.bf16.mxu0 0
      %662 = vmatpush2.bf16.msra.mxu0 0
      %663 = vmatprep.subr.bf16.mxu0 0
      %664 = vmatpush2.bf16.msra.mxu0 0
      %665 = vmatprep.subr.bf16.mxu0 0
      %666 = vmatpush2.bf16.msra.mxu0 0
      %667 = vmatprep.subr.bf16.mxu0 0
      %668 = vmatpush2.bf16.msra.mxu0 0
      %669 = vmatprep.mubr.bf16.mxu0 0
      %670 = vmatmul.mubr.bf16.gmra.mxu0 %v434
      %v671 = vpop.f32.mrf.mxu0
      %v672 = vadd.f32 0.0, %v671
      %v673 = vpop.f32.mrf.mxu0
      %v674 = vpop.f32.mrf.mxu0
      %v675 = vadd.f32 0.0, %v674
      %v676 = vpop.f32.mrf.mxu0
      %677 = vmatprep.mubr.bf16.mxu0 0
      %678 = vmatmul.mubr.bf16.gmra.mxu0 %v442
      %v679 = vpop.f32.mrf.mxu0
      %v680 = vadd.f32 0.0, %v679
      %v681 = vpop.f32.mrf.mxu0
      %v682 = vpop.f32.mrf.mxu0
      %v683 = vadd.f32 0.0, %v682
      %v684 = vpop.f32.mrf.mxu0
      %685 = vmatprep.mubr.bf16.mxu0 0
      %686 = vmatmul.mubr.bf16.gmra.mxu0 %v450
      %v687 = vpop.f32.mrf.mxu0
      %v688 = vadd.f32 0.0, %v687
      %v689 = vpop.f32.mrf.mxu0
      %v690 = vpop.f32.mrf.mxu0
      %v691 = vadd.f32 0.0, %v690
      %v692 = vpop.f32.mrf.mxu0
      %693 = vmatprep.mubr.bf16.mxu0 0
      %694 = vmatmul.mubr.bf16.gmra.mxu0 %v458
      %v695 = vpop.f32.mrf.mxu0
      %v696 = vadd.f32 0.0, %v695
      %v697 = vpop.f32.mrf.mxu0
      %v698 = vpop.f32.mrf.mxu0
      %v699 = vadd.f32 0.0, %v698
      %v700 = vpop.f32.mrf.mxu0
      %701 = vmatprep.mubr.bf16.mxu0 0
      %702 = vmatmul.mubr.bf16.gmra.mxu0 %v466
      %v703 = vpop.f32.mrf.mxu0
      %v704 = vadd.f32 0.0, %v703
      %v705 = vpop.f32.mrf.mxu0
      %v706 = vpop.f32.mrf.mxu0
      %v707 = vadd.f32 0.0, %v706
      %v708 = vpop.f32.mrf.mxu0
      %709 = vmatprep.mubr.bf16.mxu0 0
      %710 = vmatmul.mubr.bf16.gmra.mxu0 %v474
      %v711 = vpop.f32.mrf.mxu0
      %v712 = vadd.f32 0.0, %v711
      %v713 = vpop.f32.mrf.mxu0
      %v714 = vpop.f32.mrf.mxu0
      %v715 = vadd.f32 0.0, %v714
      %v716 = vpop.f32.mrf.mxu0
      %717 = vmatprep.mubr.bf16.mxu0 0
      %718 = vmatmul.mubr.bf16.gmra.mxu0 %v482
      %v719 = vpop.f32.mrf.mxu0
      %v720 = vadd.f32 0.0, %v719
      %v721 = vpop.f32.mrf.mxu0
      %v722 = vpop.f32.mrf.mxu0
      %v723 = vadd.f32 0.0, %v722
      %v724 = vpop.f32.mrf.mxu0
      %725 = vmatprep.mubr.bf16.mxu0 0
      %726 = vmatmul.mubr.bf16.gmra.mxu0 %v490
      %v727 = vpop.f32.mrf.mxu0
      %v728 = vadd.f32 0.0, %v727
      %v729 = vpop.f32.mrf.mxu0
      %v730 = vpop.f32.mrf.mxu0
      %v731 = vadd.f32 0.0, %v730
      %v732 = vpop.f32.mrf.mxu0
      %733 = vmatprep.mubr.bf16.mxu0 0
      %734 = vmatmul.mubr.bf16.gmra.mxu0 %v498
      %v735 = vpop.f32.mrf.mxu0
      %v736 = vadd.f32 0.0, %v735
      %v737 = vpop.f32.mrf.mxu0
      %v738 = vpop.f32.mrf.mxu0
      %v739 = vadd.f32 0.0, %v738
      %v740 = vpop.f32.mrf.mxu0
      %741 = vmatprep.mubr.bf16.mxu0 0
      %742 = vmatmul.mubr.bf16.gmra.mxu0 %v506
      %v743 = vpop.f32.mrf.mxu0
      %v744 = vadd.f32 0.0, %v743
      %v745 = vpop.f32.mrf.mxu0
      %v746 = vpop.f32.mrf.mxu0
      %v747 = vadd.f32 0.0, %v746
      %v748 = vpop.f32.mrf.mxu0
      %749 = vmatprep.mubr.bf16.mxu0 0
      %750 = vmatmul.mubr.bf16.gmra.mxu0 %v514
      %v751 = vpop.f32.mrf.mxu0
      %v752 = vadd.f32 0.0, %v751
      %v753 = vpop.f32.mrf.mxu0
      %v754 = vpop.f32.mrf.mxu0
      %v755 = vadd.f32 0.0, %v754
      %v756 = vpop.f32.mrf.mxu0
      %757 = vmatprep.mubr.bf16.mxu0 0
      %758 = vmatmul.mubr.bf16.gmra.mxu0 %v522
      %v759 = vpop.f32.mrf.mxu0
      %v760 = vadd.f32 0.0, %v759
      %v761 = vpop.f32.mrf.mxu0
      %v762 = vpop.f32.mrf.mxu0
      %v763 = vadd.f32 0.0, %v762
      %v764 = vpop.f32.mrf.mxu0
      %765 = vmatprep.mubr.bf16.mxu0 0
      %766 = vmatmul.mubr.bf16.gmra.mxu0 %v530
      %v767 = vpop.f32.mrf.mxu0
      %v768 = vadd.f32 0.0, %v767
      %v769 = vpop.f32.mrf.mxu0
      %v770 = vpop.f32.mrf.mxu0
      %v771 = vadd.f32 0.0, %v770
      %v772 = vpop.f32.mrf.mxu0
      %773 = vmatprep.mubr.bf16.mxu0 0
      %774 = vmatmul.mubr.bf16.gmra.mxu0 %v538
      %v775 = vpop.f32.mrf.mxu0
      %v776 = vadd.f32 0.0, %v775
      %v777 = vpop.f32.mrf.mxu0
      %v778 = vpop.f32.mrf.mxu0
      %v779 = vadd.f32 0.0, %v778
      %v780 = vpop.f32.mrf.mxu0
      %781 = vmatprep.mubr.bf16.mxu0 0
      %782 = vmatmul.mubr.bf16.gmra.mxu0 %v546
      %v783 = vpop.f32.mrf.mxu0
      %v784 = vadd.f32 0.0, %v783
      %v785 = vpop.f32.mrf.mxu0
      %v786 = vpop.f32.mrf.mxu0
      %v787 = vadd.f32 0.0, %v786
      %v788 = vpop.f32.mrf.mxu0
      %789 = vmatprep.mubr.bf16.mxu0 0
      %790 = vmatmul.mubr.bf16.gmra.mxu0 %v554
      %v791 = vpop.f32.mrf.mxu0
      %v792 = vadd.f32 0.0, %v791
      %v793 = vpop.f32.mrf.mxu0
      %v794 = vpop.f32.mrf.mxu0
      %v795 = vadd.f32 0.0, %v794
      %v796 = vpop.f32.mrf.mxu0
      %797 = vmatprep.mubr.bf16.mxu0 0
      %798 = vmatmul.mubr.bf16.gmra.mxu0 %v562
      %v799 = vpop.f32.mrf.mxu0
      %v800 = vadd.f32 0.0, %v799
      %v801 = vpop.f32.mrf.mxu0
      %v802 = vpop.f32.mrf.mxu0
      %v803 = vadd.f32 0.0, %v802
      %v804 = vpop.f32.mrf.mxu0
      %805 = vmatprep.mubr.bf16.mxu0 0
      %806 = vmatmul.mubr.bf16.gmra.mxu0 %v570
      %v807 = vpop.f32.mrf.mxu0
      %v808 = vadd.f32 0.0, %v807
      %v809 = vpop.f32.mrf.mxu0
      %v810 = vpop.f32.mrf.mxu0
      %v811 = vadd.f32 0.0, %v810
      %v812 = vpop.f32.mrf.mxu0
      %813 = vdwg.mxu0
      %v848 = vunpack.c.l.b16 %v295
      %v849 = vunpack.c.l.b16 %v296
      %v850 = vunpack.c.l.b16 %v297
      %v851 = vunpack.c.l.b16 %v298
      %v852 = vunpack.c.l.b16 %v299
      %v853 = vunpack.c.l.b16 %v300
      %v854 = vunpack.c.l.b16 %v301
      %v855 = vunpack.c.l.b16 %v302
      %v856 = vunpack.c.l.b16 %v303
      %v857 = vunpack.c.l.b16 %v304
      %v858 = vunpack.c.l.b16 %v305
      %v859 = vunpack.c.l.b16 %v306
      %v860 = vunpack.c.l.b16 %v307
      %v861 = vunpack.c.l.b16 %v308
      %v862 = vunpack.c.l.b16 %v309
      %v863 = vunpack.c.l.b16 %v310
      %v864 = vpack.c.b16 %v849, %v848
      %v865 = vpack.c.b16 %v851, %v850
      %v866 = vpack.c.b16 %v853, %v852
      %v867 = vpack.c.b16 %v855, %v854
      %v868 = vpack.c.b16 %v857, %v856
      %v869 = vpack.c.b16 %v859, %v858
      %v870 = vpack.c.b16 %v861, %v860
      %v871 = vpack.c.b16 %v863, %v862
      %880 = vmatprep.subr.bf16.mxu0 0
      %881 = vmatpush1.bf16.msra.mxu0 %v871
      %882 = vmatprep.subr.bf16.mxu0 0
      %883 = vmatpush1.bf16.msra.mxu0 %v870
      %884 = vmatprep.subr.bf16.mxu0 0
      %885 = vmatpush1.bf16.msra.mxu0 %v869
      %886 = vmatprep.subr.bf16.mxu0 0
      %887 = vmatpush1.bf16.msra.mxu0 %v868
      %888 = vmatprep.subr.bf16.mxu0 0
      %889 = vmatpush1.bf16.msra.mxu0 %v867
      %890 = vmatprep.subr.bf16.mxu0 0
      %891 = vmatpush1.bf16.msra.mxu0 %v866
      %892 = vmatprep.subr.bf16.mxu0 0
      %893 = vmatpush1.bf16.msra.mxu0 %v865
      %894 = vmatprep.subr.bf16.mxu0 0
      %895 = vmatpush1.bf16.msra.mxu0 %v864
      %896 = vmatprep.subr.bf16.mxu0 0
      %897 = vmatpush2.bf16.msra.mxu0 0
      %898 = vmatprep.subr.bf16.mxu0 0
      %899 = vmatpush2.bf16.msra.mxu0 0
      %900 = vmatprep.subr.bf16.mxu0 0
      %901 = vmatpush2.bf16.msra.mxu0 0
      %902 = vmatprep.subr.bf16.mxu0 0
      %903 = vmatpush2.bf16.msra.mxu0 0
      %904 = vmatprep.subr.bf16.mxu0 0
      %905 = vmatpush2.bf16.msra.mxu0 0
      %906 = vmatprep.subr.bf16.mxu0 0
      %907 = vmatpush2.bf16.msra.mxu0 0
      %908 = vmatprep.subr.bf16.mxu0 0
      %909 = vmatpush2.bf16.msra.mxu0 0
      %910 = vmatprep.subr.bf16.mxu0 0
      %911 = vmatpush2.bf16.msra.mxu0 0
      %912 = vmatprep.mubr.bf16.mxu0 0
      %913 = vmatmul.mubr.bf16.gmra.mxu0 %v403
      %v914 = vpop.f32.mrf.mxu0
      %v915 = vadd.f32 %v672, %v914
      %v916 = vpop.f32.mrf.mxu0
      %v917 = vpop.f32.mrf.mxu0
      %v918 = vadd.f32 %v675, %v917
      %v919 = vpop.f32.mrf.mxu0
      %920 = vmatprep.mubr.bf16.mxu0 0
      %921 = vmatmul.mubr.bf16.gmra.mxu0 %v404
      %v922 = vpop.f32.mrf.mxu0
      %v923 = vadd.f32 %v680, %v922
      %v924 = vpop.f32.mrf.mxu0
      %v925 = vpop.f32.mrf.mxu0
      %v926 = vadd.f32 %v683, %v925
      %v927 = vpop.f32.mrf.mxu0
      %928 = vmatprep.mubr.bf16.mxu0 0
      %929 = vmatmul.mubr.bf16.gmra.mxu0 %v405
      %v930 = vpop.f32.mrf.mxu0
      %v931 = vadd.f32 %v688, %v930
      %v932 = vpop.f32.mrf.mxu0
      %v933 = vpop.f32.mrf.mxu0
      %v934 = vadd.f32 %v691, %v933
      %v935 = vpop.f32.mrf.mxu0
      %936 = vmatprep.mubr.bf16.mxu0 0
      %937 = vmatmul.mubr.bf16.gmra.mxu0 %v406
      %v938 = vpop.f32.mrf.mxu0
      %v939 = vadd.f32 %v696, %v938
      %v940 = vpop.f32.mrf.mxu0
      %v941 = vpop.f32.mrf.mxu0
      %v942 = vadd.f32 %v699, %v941
      %v943 = vpop.f32.mrf.mxu0
      %944 = vmatprep.mubr.bf16.mxu0 0
      %945 = vmatmul.mubr.bf16.gmra.mxu0 %v407
      %v946 = vpop.f32.mrf.mxu0
      %v947 = vadd.f32 %v704, %v946
      %v948 = vpop.f32.mrf.mxu0
      %v949 = vpop.f32.mrf.mxu0
      %v950 = vadd.f32 %v707, %v949
      %v951 = vpop.f32.mrf.mxu0
      %952 = vmatprep.mubr.bf16.mxu0 0
      %953 = vmatmul.mubr.bf16.gmra.mxu0 %v408
      %v954 = vpop.f32.mrf.mxu0
      %v955 = vadd.f32 %v712, %v954
      %v956 = vpop.f32.mrf.mxu0
      %v957 = vpop.f32.mrf.mxu0
      %v958 = vadd.f32 %v715, %v957
      %v959 = vpop.f32.mrf.mxu0
      %960 = vmatprep.mubr.bf16.mxu0 0
      %961 = vmatmul.mubr.bf16.gmra.mxu0 %v409
      %v962 = vpop.f32.mrf.mxu0
      %v963 = vadd.f32 %v720, %v962
      %v964 = vpop.f32.mrf.mxu0
      %v965 = vpop.f32.mrf.mxu0
      %v966 = vadd.f32 %v723, %v965
      %v967 = vpop.f32.mrf.mxu0
      %968 = vmatprep.mubr.bf16.mxu0 0
      %969 = vmatmul.mubr.bf16.gmra.mxu0 %v410
      %v970 = vpop.f32.mrf.mxu0
      %v971 = vadd.f32 %v728, %v970
      %v972 = vpop.f32.mrf.mxu0
      %v973 = vpop.f32.mrf.mxu0
      %v974 = vadd.f32 %v731, %v973
      %v975 = vpop.f32.mrf.mxu0
      %976 = vmatprep.mubr.bf16.mxu0 0
      %977 = vmatmul.mubr.bf16.gmra.mxu0 %v411
      %v978 = vpop.f32.mrf.mxu0
      %v979 = vadd.f32 %v736, %v978
      %v980 = vpop.f32.mrf.mxu0
      %v981 = vpop.f32.mrf.mxu0
      %v982 = vadd.f32 %v739, %v981
      %v983 = vpop.f32.mrf.mxu0
      %984 = vmatprep.mubr.bf16.mxu0 0
      %985 = vmatmul.mubr.bf16.gmra.mxu0 %v412
      %v986 = vpop.f32.mrf.mxu0
      %v987 = vadd.f32 %v744, %v986
      %v988 = vpop.f32.mrf.mxu0
      %v989 = vpop.f32.mrf.mxu0
      %v990 = vadd.f32 %v747, %v989
      %v991 = vpop.f32.mrf.mxu0
      %992 = vmatprep.mubr.bf16.mxu0 0
      %993 = vmatmul.mubr.bf16.gmra.mxu0 %v413
      %v994 = vpop.f32.mrf.mxu0
      %v995 = vadd.f32 %v752, %v994
      %v996 = vpop.f32.mrf.mxu0
      %v997 = vpop.f32.mrf.mxu0
      %v998 = vadd.f32 %v755, %v997
      %v999 = vpop.f32.mrf.mxu0
      %1000 = vmatprep.mubr.bf16.mxu0 0
      %1001 = vmatmul.mubr.bf16.gmra.mxu0 %v414
      %v1002 = vpop.f32.mrf.mxu0
      %v1003 = vadd.f32 %v760, %v1002
      %v1004 = vpop.f32.mrf.mxu0
      %v1005 = vpop.f32.mrf.mxu0
      %v1006 = vadd.f32 %v763, %v1005
      %v1007 = vpop.f32.mrf.mxu0
      %1008 = vmatprep.mubr.bf16.mxu0 0
      %1009 = vmatmul.mubr.bf16.gmra.mxu0 %v415
      %v1010 = vpop.f32.mrf.mxu0
      %v1011 = vadd.f32 %v768, %v1010
      %v1012 = vpop.f32.mrf.mxu0
      %v1013 = vpop.f32.mrf.mxu0
      %v1014 = vadd.f32 %v771, %v1013
      %v1015 = vpop.f32.mrf.mxu0
      %1016 = vmatprep.mubr.bf16.mxu0 0
      %1017 = vmatmul.mubr.bf16.gmra.mxu0 %v416
      %v1018 = vpop.f32.mrf.mxu0
      %v1019 = vadd.f32 %v776, %v1018
      %v1020 = vpop.f32.mrf.mxu0
      %v1021 = vpop.f32.mrf.mxu0
      %v1022 = vadd.f32 %v779, %v1021
      %v1023 = vpop.f32.mrf.mxu0
      %1024 = vmatprep.mubr.bf16.mxu0 0
      %1025 = vmatmul.mubr.bf16.gmra.mxu0 %v417
      %v1026 = vpop.f32.mrf.mxu0
      %v1027 = vadd.f32 %v784, %v1026
      %v1028 = vpop.f32.mrf.mxu0
      %v1029 = vpop.f32.mrf.mxu0
      %v1030 = vadd.f32 %v787, %v1029
      %v1031 = vpop.f32.mrf.mxu0
      %1032 = vmatprep.mubr.bf16.mxu0 0
      %1033 = vmatmul.mubr.bf16.gmra.mxu0 %v418
      %v1034 = vpop.f32.mrf.mxu0
      %v1035 = vadd.f32 %v792, %v1034
      %v1036 = vpop.f32.mrf.mxu0
      %v1037 = vpop.f32.mrf.mxu0
      %v1038 = vadd.f32 %v795, %v1037
      %v1039 = vpop.f32.mrf.mxu0
      %1040 = vmatprep.mubr.bf16.mxu0 0
      %1041 = vmatmul.mubr.bf16.gmra.mxu0 %v419
      %v1042 = vpop.f32.mrf.mxu0
      %v1043 = vadd.f32 %v800, %v1042
      %v1044 = vpop.f32.mrf.mxu0
      %v1045 = vpop.f32.mrf.mxu0
      %v1046 = vadd.f32 %v803, %v1045
      %v1047 = vpop.f32.mrf.mxu0
      %1048 = vmatprep.mubr.bf16.mxu0 0
      %1049 = vmatmul.mubr.bf16.gmra.mxu0 %v420
      %v1050 = vpop.f32.mrf.mxu0
      %v1051 = vadd.f32 %v808, %v1050
      %v1052 = vpop.f32.mrf.mxu0
      %v1053 = vpop.f32.mrf.mxu0
      %v1054 = vadd.f32 %v811, %v1053
      %v1055 = vpop.f32.mrf.mxu0
      %1056 = vdwg.mxu0
      %v1057 = vld [vmem:[%s246] sm:$0xe]
      %s1058 = scalar_lea.vmem %s2, 128
      %v1059 = vld [vmem:[%s1058] sm:$0xf]
      %v1060 = vld [vmem:[%s1058 + $0x4] sm:$0xf]
      %v1061 = vld [vmem:[%s1058 + $0x8] sm:$0xf]
      %v1062 = vld [vmem:[%s1058 + $0xc] sm:$0xf]
      %v1063 = vld [vmem:[%s1058 + $0x10] sm:$0xf]
      %v1064 = vld [vmem:[%s1058 + $0x14] sm:$0xf]
      %v1065 = vld [vmem:[%s1058 + $0x18] sm:$0xf]
      %v1066 = vld [vmem:[%s1058 + $0x1c] sm:$0xf]
      %v1067 = vld [vmem:[%s1058 + $0x20] sm:$0xf]
      %v1068 = vld [vmem:[%s1058 + $0x24] sm:$0xf]
      %v1069 = vld [vmem:[%s1058 + $0x28] sm:$0xf]
      %v1070 = vld [vmem:[%s1058 + $0x2c] sm:$0xf]
      %v1071 = vld [vmem:[%s1058 + $0x30] sm:$0xf]
      %v1072 = vld [vmem:[%s1058 + $0x34] sm:$0xf]
      %v1073 = vld [vmem:[%s1058 + $0x38] sm:$0xf]
      %v1074 = vld [vmem:[%s1058 + $0x3c] sm:$0xf]
      %v1076 = vunpack.c.l.b16 %v1057
      %v1077 = vpack.c.b16 %v367, %v1076
      %vm1078 = vcmask 1046528
      %v1079 = vrot.slane %v1077, 1
      %v1080 = vrot.slane %v404, 1
      %v1081 = vsel %vm1078, %v1079, %v1080
      %v1082 = vrot.slane %v405, 1
      %v1083 = vsel %vm1078, %v1080, %v1082
      %v1084 = vrot.slane %v406, 1
      %v1085 = vsel %vm1078, %v1082, %v1084
      %v1086 = vrot.slane %v407, 1
      %v1087 = vsel %vm1078, %v1084, %v1086
      %v1088 = vrot.slane %v408, 1
      %v1089 = vsel %vm1078, %v1086, %v1088
      %v1090 = vrot.slane %v409, 1
      %v1091 = vsel %vm1078, %v1088, %v1090
      %v1092 = vrot.slane %v410, 1
      %v1093 = vsel %vm1078, %v1090, %v1092
      %v1094 = vrot.slane %v411, 1
      %v1095 = vsel %vm1078, %v1092, %v1094
      %v1096 = vrot.slane %v412, 1
      %v1097 = vsel %vm1078, %v1094, %v1096
      %v1098 = vrot.slane %v413, 1
      %v1099 = vsel %vm1078, %v1096, %v1098
      %v1100 = vrot.slane %v414, 1
      %v1101 = vsel %vm1078, %v1098, %v1100
      %v1102 = vrot.slane %v415, 1
      %v1103 = vsel %vm1078, %v1100, %v1102
      %v1104 = vrot.slane %v416, 1
      %v1105 = vsel %vm1078, %v1102, %v1104
      %v1106 = vrot.slane %v417, 1
      %v1107 = vsel %vm1078, %v1104, %v1106
      %v1108 = vrot.slane %v418, 1
      %v1109 = vsel %vm1078, %v1106, %v1108
      %v1110 = vrot.slane %v419, 1
      %v1111 = vsel %vm1078, %v1108, %v1110
      %v1112 = vrot.slane %v420, 1
      %v1113 = vsel %vm1078, %v1110, %v1112
      %v1114 = vrot.slane %v421, 1
      %v1115 = vsel %vm1078, %v1112, %v1114
      %v1150 = vunpack.c.l.b16 %v1059
      %v1151 = vunpack.c.l.b16 %v1060
      %v1152 = vunpack.c.l.b16 %v1061
      %v1153 = vunpack.c.l.b16 %v1062
      %v1154 = vunpack.c.l.b16 %v1063
      %v1155 = vunpack.c.l.b16 %v1064
      %v1156 = vunpack.c.l.b16 %v1065
      %v1157 = vunpack.c.l.b16 %v1066
      %v1158 = vunpack.c.l.b16 %v1067
      %v1159 = vunpack.c.l.b16 %v1068
      %v1160 = vunpack.c.l.b16 %v1069
      %v1161 = vunpack.c.l.b16 %v1070
      %v1162 = vunpack.c.l.b16 %v1071
      %v1163 = vunpack.c.l.b16 %v1072
      %v1164 = vunpack.c.l.b16 %v1073
      %v1165 = vunpack.c.l.b16 %v1074
      %v1166 = vpack.c.b16 %v1151, %v1150
      %v1167 = vpack.c.b16 %v1153, %v1152
      %v1168 = vpack.c.b16 %v1155, %v1154
      %v1169 = vpack.c.b16 %v1157, %v1156
      %v1170 = vpack.c.b16 %v1159, %v1158
      %v1171 = vpack.c.b16 %v1161, %v1160
      %v1172 = vpack.c.b16 %v1163, %v1162
      %v1173 = vpack.c.b16 %v1165, %v1164
      %1182 = vmatprep.subr.bf16.mxu0 0
      %1183 = vmatpush1.bf16.msra.mxu0 %v1173
      %1184 = vmatprep.subr.bf16.mxu0 0
      %1185 = vmatpush1.bf16.msra.mxu0 %v1172
      %1186 = vmatprep.subr.bf16.mxu0 0
      %1187 = vmatpush1.bf16.msra.mxu0 %v1171
      %1188 = vmatprep.subr.bf16.mxu0 0
      %1189 = vmatpush1.bf16.msra.mxu0 %v1170
      %1190 = vmatprep.subr.bf16.mxu0 0
      %1191 = vmatpush1.bf16.msra.mxu0 %v1169
      %1192 = vmatprep.subr.bf16.mxu0 0
      %1193 = vmatpush1.bf16.msra.mxu0 %v1168
      %1194 = vmatprep.subr.bf16.mxu0 0
      %1195 = vmatpush1.bf16.msra.mxu0 %v1167
      %1196 = vmatprep.subr.bf16.mxu0 0
      %1197 = vmatpush1.bf16.msra.mxu0 %v1166
      %1198 = vmatprep.subr.bf16.mxu0 0
      %1199 = vmatpush2.bf16.msra.mxu0 0
      %1200 = vmatprep.subr.bf16.mxu0 0
      %1201 = vmatpush2.bf16.msra.mxu0 0
      %1202 = vmatprep.subr.bf16.mxu0 0
      %1203 = vmatpush2.bf16.msra.mxu0 0
      %1204 = vmatprep.subr.bf16.mxu0 0
      %1205 = vmatpush2.bf16.msra.mxu0 0
      %1206 = vmatprep.subr.bf16.mxu0 0
      %1207 = vmatpush2.bf16.msra.mxu0 0
      %1208 = vmatprep.subr.bf16.mxu0 0
      %1209 = vmatpush2.bf16.msra.mxu0 0
      %1210 = vmatprep.subr.bf16.mxu0 0
      %1211 = vmatpush2.bf16.msra.mxu0 0
      %1212 = vmatprep.subr.bf16.mxu0 0
      %1213 = vmatpush2.bf16.msra.mxu0 0
      %1214 = vmatprep.mubr.bf16.mxu0 0
      %1215 = vmatmul.mubr.bf16.gmra.mxu0 %v1081
      %v1216 = vpop.f32.mrf.mxu0
      %v1217 = vadd.f32 0.0, %v1216
      %v1218 = vpop.f32.mrf.mxu0
      %v1219 = vpop.f32.mrf.mxu0
      %v1220 = vadd.f32 0.0, %v1219
      %v1221 = vpop.f32.mrf.mxu0
      %1222 = vmatprep.mubr.bf16.mxu0 0
      %1223 = vmatmul.mubr.bf16.gmra.mxu0 %v1083
      %v1224 = vpop.f32.mrf.mxu0
      %v1225 = vadd.f32 0.0, %v1224
      %v1226 = vpop.f32.mrf.mxu0
      %v1227 = vpop.f32.mrf.mxu0
      %v1228 = vadd.f32 0.0, %v1227
      %v1229 = vpop.f32.mrf.mxu0
      %1230 = vmatprep.mubr.bf16.mxu0 0
      %1231 = vmatmul.mubr.bf16.gmra.mxu0 %v1085
      %v1232 = vpop.f32.mrf.mxu0
      %v1233 = vadd.f32 0.0, %v1232
      %v1234 = vpop.f32.mrf.mxu0
      %v1235 = vpop.f32.mrf.mxu0
      %v1236 = vadd.f32 0.0, %v1235
      %v1237 = vpop.f32.mrf.mxu0
      %1238 = vmatprep.mubr.bf16.mxu0 0
      %1239 = vmatmul.mubr.bf16.gmra.mxu0 %v1087
      %v1240 = vpop.f32.mrf.mxu0
      %v1241 = vadd.f32 0.0, %v1240
      %v1242 = vpop.f32.mrf.mxu0
      %v1243 = vpop.f32.mrf.mxu0
      %v1244 = vadd.f32 0.0, %v1243
      %v1245 = vpop.f32.mrf.mxu0
      %1246 = vmatprep.mubr.bf16.mxu0 0
      %1247 = vmatmul.mubr.bf16.gmra.mxu0 %v1089
      %v1248 = vpop.f32.mrf.mxu0
      %v1249 = vadd.f32 0.0, %v1248
      %v1250 = vpop.f32.mrf.mxu0
      %v1251 = vpop.f32.mrf.mxu0
      %v1252 = vadd.f32 0.0, %v1251
      %v1253 = vpop.f32.mrf.mxu0
      %1254 = vmatprep.mubr.bf16.mxu0 0
      %1255 = vmatmul.mubr.bf16.gmra.mxu0 %v1091
      %v1256 = vpop.f32.mrf.mxu0
      %v1257 = vadd.f32 0.0, %v1256
      %v1258 = vpop.f32.mrf.mxu0
      %v1259 = vpop.f32.mrf.mxu0
      %v1260 = vadd.f32 0.0, %v1259
      %v1261 = vpop.f32.mrf.mxu0
      %1262 = vmatprep.mubr.bf16.mxu0 0
      %1263 = vmatmul.mubr.bf16.gmra.mxu0 %v1093
      %v1264 = vpop.f32.mrf.mxu0
      %v1265 = vadd.f32 0.0, %v1264
      %v1266 = vpop.f32.mrf.mxu0
      %v1267 = vpop.f32.mrf.mxu0
      %v1268 = vadd.f32 0.0, %v1267
      %v1269 = vpop.f32.mrf.mxu0
      %1270 = vmatprep.mubr.bf16.mxu0 0
      %1271 = vmatmul.mubr.bf16.gmra.mxu0 %v1095
      %v1272 = vpop.f32.mrf.mxu0
      %v1273 = vadd.f32 0.0, %v1272
      %v1274 = vpop.f32.mrf.mxu0
      %v1275 = vpop.f32.mrf.mxu0
      %v1276 = vadd.f32 0.0, %v1275
      %v1277 = vpop.f32.mrf.mxu0
      %1278 = vmatprep.mubr.bf16.mxu0 0
      %1279 = vmatmul.mubr.bf16.gmra.mxu0 %v1097
      %v1280 = vpop.f32.mrf.mxu0
      %v1281 = vadd.f32 0.0, %v1280
      %v1282 = vpop.f32.mrf.mxu0
      %v1283 = vpop.f32.mrf.mxu0
      %v1284 = vadd.f32 0.0, %v1283
      %v1285 = vpop.f32.mrf.mxu0
      %1286 = vmatprep.mubr.bf16.mxu0 0
      %1287 = vmatmul.mubr.bf16.gmra.mxu0 %v1099
      %v1288 = vpop.f32.mrf.mxu0
      %v1289 = vadd.f32 0.0, %v1288
      %v1290 = vpop.f32.mrf.mxu0
      %v1291 = vpop.f32.mrf.mxu0
      %v1292 = vadd.f32 0.0, %v1291
      %v1293 = vpop.f32.mrf.mxu0
      %1294 = vmatprep.mubr.bf16.mxu0 0
      %1295 = vmatmul.mubr.bf16.gmra.mxu0 %v1101
      %v1296 = vpop.f32.mrf.mxu0
      %v1297 = vadd.f32 0.0, %v1296
      %v1298 = vpop.f32.mrf.mxu0
      %v1299 = vpop.f32.mrf.mxu0
      %v1300 = vadd.f32 0.0, %v1299
      %v1301 = vpop.f32.mrf.mxu0
      %1302 = vmatprep.mubr.bf16.mxu0 0
      %1303 = vmatmul.mubr.bf16.gmra.mxu0 %v1103
      %v1304 = vpop.f32.mrf.mxu0
      %v1305 = vadd.f32 0.0, %v1304
      %v1306 = vpop.f32.mrf.mxu0
      %v1307 = vpop.f32.mrf.mxu0
      %v1308 = vadd.f32 0.0, %v1307
      %v1309 = vpop.f32.mrf.mxu0
      %1310 = vmatprep.mubr.bf16.mxu0 0
      %1311 = vmatmul.mubr.bf16.gmra.mxu0 %v1105
      %v1312 = vpop.f32.mrf.mxu0
      %v1313 = vadd.f32 0.0, %v1312
      %v1314 = vpop.f32.mrf.mxu0
      %v1315 = vpop.f32.mrf.mxu0
      %v1316 = vadd.f32 0.0, %v1315
      %v1317 = vpop.f32.mrf.mxu0
      %1318 = vmatprep.mubr.bf16.mxu0 0
      %1319 = vmatmul.mubr.bf16.gmra.mxu0 %v1107
      %v1320 = vpop.f32.mrf.mxu0
      %v1321 = vadd.f32 0.0, %v1320
      %v1322 = vpop.f32.mrf.mxu0
      %v1323 = vpop.f32.mrf.mxu0
      %v1324 = vadd.f32 0.0, %v1323
      %v1325 = vpop.f32.mrf.mxu0
      %1326 = vmatprep.mubr.bf16.mxu0 0
      %1327 = vmatmul.mubr.bf16.gmra.mxu0 %v1109
      %v1328 = vpop.f32.mrf.mxu0
      %v1329 = vadd.f32 0.0, %v1328
      %v1330 = vpop.f32.mrf.mxu0
      %v1331 = vpop.f32.mrf.mxu0
      %v1332 = vadd.f32 0.0, %v1331
      %v1333 = vpop.f32.mrf.mxu0
      %1334 = vmatprep.mubr.bf16.mxu0 0
      %1335 = vmatmul.mubr.bf16.gmra.mxu0 %v1111
      %v1336 = vpop.f32.mrf.mxu0
      %v1337 = vadd.f32 0.0, %v1336
      %v1338 = vpop.f32.mrf.mxu0
      %v1339 = vpop.f32.mrf.mxu0
      %v1340 = vadd.f32 0.0, %v1339
      %v1341 = vpop.f32.mrf.mxu0
      %1342 = vmatprep.mubr.bf16.mxu0 0
      %1343 = vmatmul.mubr.bf16.gmra.mxu0 %v1113
      %v1344 = vpop.f32.mrf.mxu0
      %v1345 = vadd.f32 0.0, %v1344
      %v1346 = vpop.f32.mrf.mxu0
      %v1347 = vpop.f32.mrf.mxu0
      %v1348 = vadd.f32 0.0, %v1347
      %v1349 = vpop.f32.mrf.mxu0
      %1350 = vmatprep.mubr.bf16.mxu0 0
      %1351 = vmatmul.mubr.bf16.gmra.mxu0 %v1115
      %v1352 = vpop.f32.mrf.mxu0
      %v1353 = vadd.f32 0.0, %v1352
      %v1354 = vpop.f32.mrf.mxu0
      %v1355 = vpop.f32.mrf.mxu0
      %v1356 = vadd.f32 0.0, %v1355
      %v1357 = vpop.f32.mrf.mxu0
      %1358 = vdwg.mxu0
      %v1359 = vadd.f32 %v915, %v1217
      %v1360 = vadd.f32 %v918, %v1220
      %v1361 = vadd.f32 %v923, %v1225
      %v1362 = vadd.f32 %v926, %v1228
      %v1363 = vadd.f32 %v931, %v1233
      %v1364 = vadd.f32 %v934, %v1236
      %v1365 = vadd.f32 %v939, %v1241
      %v1366 = vadd.f32 %v942, %v1244
      %v1367 = vadd.f32 %v947, %v1249
      %v1368 = vadd.f32 %v950, %v1252
      %v1369 = vadd.f32 %v955, %v1257
      %v1370 = vadd.f32 %v958, %v1260
      %v1371 = vadd.f32 %v963, %v1265
      %v1372 = vadd.f32 %v966, %v1268
      %v1373 = vadd.f32 %v971, %v1273
      %v1374 = vadd.f32 %v974, %v1276
      %v1375 = vadd.f32 %v979, %v1281
      %v1376 = vadd.f32 %v982, %v1284
      %v1377 = vadd.f32 %v987, %v1289
      %v1378 = vadd.f32 %v990, %v1292
      %v1379 = vadd.f32 %v995, %v1297
      %v1380 = vadd.f32 %v998, %v1300
      %v1381 = vadd.f32 %v1003, %v1305
      %v1382 = vadd.f32 %v1006, %v1308
      %v1383 = vadd.f32 %v1011, %v1313
      %v1384 = vadd.f32 %v1014, %v1316
      %v1385 = vadd.f32 %v1019, %v1321
      %v1386 = vadd.f32 %v1022, %v1324
      %v1387 = vadd.f32 %v1027, %v1329
      %v1388 = vadd.f32 %v1030, %v1332
      %v1389 = vadd.f32 %v1035, %v1337
      %v1390 = vadd.f32 %v1038, %v1340
      %v1391 = vadd.f32 %v1043, %v1345
      %v1392 = vadd.f32 %v1046, %v1348
      %v1393 = vadd.f32 %v1051, %v1353
      %v1394 = vadd.f32 %v1054, %v1356
      %v1395 = vld [vmem:[%s246 + $0x8] sm:$0xe]
      %v1396 = vld [vmem:[%s246 + $0xc] sm:$0xf]
      %v1397 = vld [vmem:[%s246 + $0x10] sm:$0xf]
      %v1398 = vld [vmem:[%s246 + $0x14] sm:$0xf]
      %v1399 = vld [vmem:[%s246 + $0x18] sm:$0xf]
      %v1400 = vld [vmem:[%s246 + $0x1c] sm:$0xf]
      %v1401 = vld [vmem:[%s246 + $0x20] sm:$0xf]
      %v1402 = vld [vmem:[%s246 + $0x24] sm:$0xf]
      %v1403 = vld [vmem:[%s246 + $0x28] sm:$0xf]
      %v1404 = vld [vmem:[%s246 + $0x2c] sm:$0xf]
      %v1405 = vld [vmem:[%s246 + $0x30] sm:$0xf]
      %v1406 = vld [vmem:[%s246 + $0x34] sm:$0xf]
      %v1407 = vld [vmem:[%s246 + $0x38] sm:$0xf]
      %v1408 = vld [vmem:[%s246 + $0x3c] sm:$0xf]
      %v1409 = vld [vmem:[%s246 + $0x40] sm:$0xf]
      %v1410 = vld [vmem:[%s246 + $0x44] sm:$0xf]
      %v1411 = vld [vmem:[%s246 + $0x48] sm:$0xf]
      %v1412 = vld [vmem:[%s246 + $0x4c] sm:$0xf]
      %v1413 = vld [vmem:[%s246 + $0x50] sm:$0xf]
      %v1414 = vld [vmem:[%s246 + $0x54] sm:$0xf]
      %v1415 = vld [vmem:[%s246 + $0x58] sm:$0xf]
      %v1416 = vld [vmem:[%s246 + $0x5c] sm:$0xf]
      %v1417 = vld [vmem:[%s246 + $0x60] sm:$0xf]
      %v1418 = vld [vmem:[%s246 + $0x64] sm:$0xf]
      %v1419 = vld [vmem:[%s246 + $0x68] sm:$0xf]
      %v1420 = vld [vmem:[%s246 + $0x6c] sm:$0xf]
      %v1421 = vld [vmem:[%s246 + $0x70] sm:$0xf]
      %v1422 = vld [vmem:[%s246 + $0x74] sm:$0xf]
      %v1423 = vld [vmem:[%s246 + $0x78] sm:$0xf]
      %v1424 = vld [vmem:[%s246 + $0x7c] sm:$0xf]
      %v1425 = vld [vmem:[%s246 + $0x80] sm:$0xf]
      %v1426 = vld [vmem:[%s246 + $0x84] sm:$0xf]
      %v1427 = vld [vmem:[%s246 + $0x88] sm:$0xf]
      %v1428 = vld [vmem:[%s246 + $0x8c] sm:$0xf]
      %v1429 = vld [vmem:[%s246 + $0x90] sm:$0xf]
      %v1430 = vld [vmem:[%s246 + $0x94] sm:$0xf]
      %v1431 = vld [vmem:[%s246 + $0x98] sm:$0x1]
      %s1432 = scalar_lea.vmem %s2, 192
      %v1433 = vld [vmem:[%s1432] sm:$0xf]
      %v1434 = vld [vmem:[%s1432 + $0x4] sm:$0xf]
      %v1435 = vld [vmem:[%s1432 + $0x8] sm:$0xf]
      %v1436 = vld [vmem:[%s1432 + $0xc] sm:$0xf]
      %v1437 = vld [vmem:[%s1432 + $0x10] sm:$0xf]
      %v1438 = vld [vmem:[%s1432 + $0x14] sm:$0xf]
      %v1439 = vld [vmem:[%s1432 + $0x18] sm:$0xf]
      %v1440 = vld [vmem:[%s1432 + $0x1c] sm:$0xf]
      %v1441 = vld [vmem:[%s1432 + $0x20] sm:$0xf]
      %v1442 = vld [vmem:[%s1432 + $0x24] sm:$0xf]
      %v1443 = vld [vmem:[%s1432 + $0x28] sm:$0xf]
      %v1444 = vld [vmem:[%s1432 + $0x2c] sm:$0xf]
      %v1445 = vld [vmem:[%s1432 + $0x30] sm:$0xf]
      %v1446 = vld [vmem:[%s1432 + $0x34] sm:$0xf]
      %v1447 = vld [vmem:[%s1432 + $0x38] sm:$0xf]
      %v1448 = vld [vmem:[%s1432 + $0x3c] sm:$0xf]
      %v1486 = vunpack.c.l.b16 %v1395
      %v1487 = vunpack.c.l.b16 %v1396
      %v1488 = vunpack.c.l.b16 %v1397
      %v1489 = vunpack.c.l.b16 %v1398
      %v1490 = vunpack.c.l.b16 %v1399
      %v1491 = vunpack.c.l.b16 %v1400
      %v1492 = vunpack.c.l.b16 %v1401
      %v1493 = vunpack.c.l.b16 %v1402
      %v1494 = vunpack.c.l.b16 %v1403
      %v1495 = vunpack.c.l.b16 %v1404
      %v1496 = vunpack.c.l.b16 %v1405
      %v1497 = vunpack.c.l.b16 %v1406
      %v1498 = vunpack.c.l.b16 %v1407
      %v1499 = vunpack.c.l.b16 %v1408
      %v1500 = vunpack.c.l.b16 %v1409
      %v1501 = vunpack.c.l.b16 %v1410
      %v1502 = vunpack.c.l.b16 %v1411
      %v1503 = vunpack.c.l.b16 %v1412
      %v1504 = vunpack.c.l.b16 %v1413
      %v1505 = vunpack.c.l.b16 %v1414
      %v1506 = vunpack.c.l.b16 %v1415
      %v1507 = vunpack.c.l.b16 %v1416
      %v1508 = vunpack.c.l.b16 %v1417
      %v1509 = vunpack.c.l.b16 %v1418
      %v1510 = vunpack.c.l.b16 %v1419
      %v1511 = vunpack.c.l.b16 %v1420
      %v1512 = vunpack.c.l.b16 %v1421
      %v1513 = vunpack.c.l.b16 %v1422
      %v1514 = vunpack.c.l.b16 %v1423
      %v1515 = vunpack.c.l.b16 %v1424
      %v1516 = vunpack.c.l.b16 %v1425
      %v1517 = vunpack.c.l.b16 %v1426
      %v1518 = vunpack.c.l.b16 %v1427
      %v1519 = vunpack.c.l.b16 %v1428
      %v1520 = vunpack.c.l.b16 %v1429
      %v1521 = vunpack.c.l.b16 %v1430
      %v1522 = vunpack.c.l.b16 %v1431
      %v1523 = vpack.c.b16 %v1487, %v1486
      %v1524 = vpack.c.b16 %v1489, %v1488
      %v1525 = vpack.c.b16 %v1491, %v1490
      %v1526 = vpack.c.b16 %v1493, %v1492
      %v1527 = vpack.c.b16 %v1495, %v1494
      %v1528 = vpack.c.b16 %v1497, %v1496
      %v1529 = vpack.c.b16 %v1499, %v1498
      %v1530 = vpack.c.b16 %v1501, %v1500
      %v1531 = vpack.c.b16 %v1503, %v1502
      %v1532 = vpack.c.b16 %v1505, %v1504
      %v1533 = vpack.c.b16 %v1507, %v1506
      %v1534 = vpack.c.b16 %v1509, %v1508
      %v1535 = vpack.c.b16 %v1511, %v1510
      %v1536 = vpack.c.b16 %v1513, %v1512
      %v1537 = vpack.c.b16 %v1515, %v1514
      %v1538 = vpack.c.b16 %v1517, %v1516
      %v1539 = vpack.c.b16 %v1519, %v1518
      %v1540 = vpack.c.b16 %v1521, %v1520
      %v1541 = vpack.c.b16 %v1522, %v1522
      %v1542 = vrot.slane %v1523, 1
      %v1543 = vrot.slane %v1524, 1
      %v1544 = vsel %vm1078, %v1542, %v1543
      %v1545 = vrot.slane %v1525, 1
      %v1546 = vsel %vm1078, %v1543, %v1545
      %v1547 = vrot.slane %v1526, 1
      %v1548 = vsel %vm1078, %v1545, %v1547
      %v1549 = vrot.slane %v1527, 1
      %v1550 = vsel %vm1078, %v1547, %v1549
      %v1551 = vrot.slane %v1528, 1
      %v1552 = vsel %vm1078, %v1549, %v1551
      %v1553 = vrot.slane %v1529, 1
      %v1554 = vsel %vm1078, %v1551, %v1553
      %v1555 = vrot.slane %v1530, 1
      %v1556 = vsel %vm1078, %v1553, %v1555
      %v1557 = vrot.slane %v1531, 1
      %v1558 = vsel %vm1078, %v1555, %v1557
      %v1559 = vrot.slane %v1532, 1
      %v1560 = vsel %vm1078, %v1557, %v1559
      %v1561 = vrot.slane %v1533, 1
      %v1562 = vsel %vm1078, %v1559, %v1561
      %v1563 = vrot.slane %v1534, 1
      %v1564 = vsel %vm1078, %v1561, %v1563
      %v1565 = vrot.slane %v1535, 1
      %v1566 = vsel %vm1078, %v1563, %v1565
      %v1567 = vrot.slane %v1536, 1
      %v1568 = vsel %vm1078, %v1565, %v1567
      %v1569 = vrot.slane %v1537, 1
      %v1570 = vsel %vm1078, %v1567, %v1569
      %v1571 = vrot.slane %v1538, 1
      %v1572 = vsel %vm1078, %v1569, %v1571
      %v1573 = vrot.slane %v1539, 1
      %v1574 = vsel %vm1078, %v1571, %v1573
      %v1575 = vrot.slane %v1540, 1
      %v1576 = vsel %vm1078, %v1573, %v1575
      %v1577 = vrot.slane %v1541, 1
      %v1578 = vsel %vm1078, %v1575, %v1577
      %v1613 = vunpack.c.l.b16 %v1433
      %v1614 = vunpack.c.l.b16 %v1434
      %v1615 = vunpack.c.l.b16 %v1435
      %v1616 = vunpack.c.l.b16 %v1436
      %v1617 = vunpack.c.l.b16 %v1437
      %v1618 = vunpack.c.l.b16 %v1438
      %v1619 = vunpack.c.l.b16 %v1439
      %v1620 = vunpack.c.l.b16 %v1440
      %v1621 = vunpack.c.l.b16 %v1441
      %v1622 = vunpack.c.l.b16 %v1442
      %v1623 = vunpack.c.l.b16 %v1443
      %v1624 = vunpack.c.l.b16 %v1444
      %v1625 = vunpack.c.l.b16 %v1445
      %v1626 = vunpack.c.l.b16 %v1446
      %v1627 = vunpack.c.l.b16 %v1447
      %v1628 = vunpack.c.l.b16 %v1448
      %v1629 = vpack.c.b16 %v1614, %v1613
      %v1630 = vpack.c.b16 %v1616, %v1615
      %v1631 = vpack.c.b16 %v1618, %v1617
      %v1632 = vpack.c.b16 %v1620, %v1619
      %v1633 = vpack.c.b16 %v1622, %v1621
      %v1634 = vpack.c.b16 %v1624, %v1623
      %v1635 = vpack.c.b16 %v1626, %v1625
      %v1636 = vpack.c.b16 %v1628, %v1627
      %1645 = vmatprep.subr.bf16.mxu0 0
      %1646 = vmatpush1.bf16.msra.mxu0 %v1636
      %1647 = vmatprep.subr.bf16.mxu0 0
      %1648 = vmatpush1.bf16.msra.mxu0 %v1635
      %1649 = vmatprep.subr.bf16.mxu0 0
      %1650 = vmatpush1.bf16.msra.mxu0 %v1634
      %1651 = vmatprep.subr.bf16.mxu0 0
      %1652 = vmatpush1.bf16.msra.mxu0 %v1633
      %1653 = vmatprep.subr.bf16.mxu0 0
      %1654 = vmatpush1.bf16.msra.mxu0 %v1632
      %1655 = vmatprep.subr.bf16.mxu0 0
      %1656 = vmatpush1.bf16.msra.mxu0 %v1631
      %1657 = vmatprep.subr.bf16.mxu0 0
      %1658 = vmatpush1.bf16.msra.mxu0 %v1630
      %1659 = vmatprep.subr.bf16.mxu0 0
      %1660 = vmatpush1.bf16.msra.mxu0 %v1629
      %1661 = vmatprep.subr.bf16.mxu0 0
      %1662 = vmatpush2.bf16.msra.mxu0 0
      %1663 = vmatprep.subr.bf16.mxu0 0
      %1664 = vmatpush2.bf16.msra.mxu0 0
      %1665 = vmatprep.subr.bf16.mxu0 0
      %1666 = vmatpush2.bf16.msra.mxu0 0
      %1667 = vmatprep.subr.bf16.mxu0 0
      %1668 = vmatpush2.bf16.msra.mxu0 0
      %1669 = vmatprep.subr.bf16.mxu0 0
      %1670 = vmatpush2.bf16.msra.mxu0 0
      %1671 = vmatprep.subr.bf16.mxu0 0
      %1672 = vmatpush2.bf16.msra.mxu0 0
      %1673 = vmatprep.subr.bf16.mxu0 0
      %1674 = vmatpush2.bf16.msra.mxu0 0
      %1675 = vmatprep.subr.bf16.mxu0 0
      %1676 = vmatpush2.bf16.msra.mxu0 0
      %1677 = vmatprep.mubr.bf16.mxu0 0
      %1678 = vmatmul.mubr.bf16.gmra.mxu0 %v1544
      %v1679 = vpop.f32.mrf.mxu0
      %v1680 = vadd.f32 0.0, %v1679
      %v1681 = vpop.f32.mrf.mxu0
      %v1682 = vpop.f32.mrf.mxu0
      %v1683 = vadd.f32 0.0, %v1682
      %v1684 = vpop.f32.mrf.mxu0
      %1685 = vmatprep.mubr.bf16.mxu0 0
      %1686 = vmatmul.mubr.bf16.gmra.mxu0 %v1546
      %v1687 = vpop.f32.mrf.mxu0
      %v1688 = vadd.f32 0.0, %v1687
      %v1689 = vpop.f32.mrf.mxu0
      %v1690 = vpop.f32.mrf.mxu0
      %v1691 = vadd.f32 0.0, %v1690
      %v1692 = vpop.f32.mrf.mxu0
      %1693 = vmatprep.mubr.bf16.mxu0 0
      %1694 = vmatmul.mubr.bf16.gmra.mxu0 %v1548
      %v1695 = vpop.f32.mrf.mxu0
      %v1696 = vadd.f32 0.0, %v1695
      %v1697 = vpop.f32.mrf.mxu0
      %v1698 = vpop.f32.mrf.mxu0
      %v1699 = vadd.f32 0.0, %v1698
      %v1700 = vpop.f32.mrf.mxu0
      %1701 = vmatprep.mubr.bf16.mxu0 0
      %1702 = vmatmul.mubr.bf16.gmra.mxu0 %v1550
      %v1703 = vpop.f32.mrf.mxu0
      %v1704 = vadd.f32 0.0, %v1703
      %v1705 = vpop.f32.mrf.mxu0
      %v1706 = vpop.f32.mrf.mxu0
      %v1707 = vadd.f32 0.0, %v1706
      %v1708 = vpop.f32.mrf.mxu0
      %1709 = vmatprep.mubr.bf16.mxu0 0
      %1710 = vmatmul.mubr.bf16.gmra.mxu0 %v1552
      %v1711 = vpop.f32.mrf.mxu0
      %v1712 = vadd.f32 0.0, %v1711
      %v1713 = vpop.f32.mrf.mxu0
      %v1714 = vpop.f32.mrf.mxu0
      %v1715 = vadd.f32 0.0, %v1714
      %v1716 = vpop.f32.mrf.mxu0
      %1717 = vmatprep.mubr.bf16.mxu0 0
      %1718 = vmatmul.mubr.bf16.gmra.mxu0 %v1554
      %v1719 = vpop.f32.mrf.mxu0
      %v1720 = vadd.f32 0.0, %v1719
      %v1721 = vpop.f32.mrf.mxu0
      %v1722 = vpop.f32.mrf.mxu0
      %v1723 = vadd.f32 0.0, %v1722
      %v1724 = vpop.f32.mrf.mxu0
      %1725 = vmatprep.mubr.bf16.mxu0 0
      %1726 = vmatmul.mubr.bf16.gmra.mxu0 %v1556
      %v1727 = vpop.f32.mrf.mxu0
      %v1728 = vadd.f32 0.0, %v1727
      %v1729 = vpop.f32.mrf.mxu0
      %v1730 = vpop.f32.mrf.mxu0
      %v1731 = vadd.f32 0.0, %v1730
      %v1732 = vpop.f32.mrf.mxu0
      %1733 = vmatprep.mubr.bf16.mxu0 0
      %1734 = vmatmul.mubr.bf16.gmra.mxu0 %v1558
      %v1735 = vpop.f32.mrf.mxu0
      %v1736 = vadd.f32 0.0, %v1735
      %v1737 = vpop.f32.mrf.mxu0
      %v1738 = vpop.f32.mrf.mxu0
      %v1739 = vadd.f32 0.0, %v1738
      %v1740 = vpop.f32.mrf.mxu0
      %1741 = vmatprep.mubr.bf16.mxu0 0
      %1742 = vmatmul.mubr.bf16.gmra.mxu0 %v1560
      %v1743 = vpop.f32.mrf.mxu0
      %v1744 = vadd.f32 0.0, %v1743
      %v1745 = vpop.f32.mrf.mxu0
      %v1746 = vpop.f32.mrf.mxu0
      %v1747 = vadd.f32 0.0, %v1746
      %v1748 = vpop.f32.mrf.mxu0
      %1749 = vmatprep.mubr.bf16.mxu0 0
      %1750 = vmatmul.mubr.bf16.gmra.mxu0 %v1562
      %v1751 = vpop.f32.mrf.mxu0
      %v1752 = vadd.f32 0.0, %v1751
      %v1753 = vpop.f32.mrf.mxu0
      %v1754 = vpop.f32.mrf.mxu0
      %v1755 = vadd.f32 0.0, %v1754
      %v1756 = vpop.f32.mrf.mxu0
      %1757 = vmatprep.mubr.bf16.mxu0 0
      %1758 = vmatmul.mubr.bf16.gmra.mxu0 %v1564
      %v1759 = vpop.f32.mrf.mxu0
      %v1760 = vadd.f32 0.0, %v1759
      %v1761 = vpop.f32.mrf.mxu0
      %v1762 = vpop.f32.mrf.mxu0
      %v1763 = vadd.f32 0.0, %v1762
      %v1764 = vpop.f32.mrf.mxu0
      %1765 = vmatprep.mubr.bf16.mxu0 0
      %1766 = vmatmul.mubr.bf16.gmra.mxu0 %v1566
      %v1767 = vpop.f32.mrf.mxu0
      %v1768 = vadd.f32 0.0, %v1767
      %v1769 = vpop.f32.mrf.mxu0
      %v1770 = vpop.f32.mrf.mxu0
      %v1771 = vadd.f32 0.0, %v1770
      %v1772 = vpop.f32.mrf.mxu0
      %1773 = vmatprep.mubr.bf16.mxu0 0
      %1774 = vmatmul.mubr.bf16.gmra.mxu0 %v1568
      %v1775 = vpop.f32.mrf.mxu0
      %v1776 = vadd.f32 0.0, %v1775
      %v1777 = vpop.f32.mrf.mxu0
      %v1778 = vpop.f32.mrf.mxu0
      %v1779 = vadd.f32 0.0, %v1778
      %v1780 = vpop.f32.mrf.mxu0
      %1781 = vmatprep.mubr.bf16.mxu0 0
      %1782 = vmatmul.mubr.bf16.gmra.mxu0 %v1570
      %v1783 = vpop.f32.mrf.mxu0
      %v1784 = vadd.f32 0.0, %v1783
      %v1785 = vpop.f32.mrf.mxu0
      %v1786 = vpop.f32.mrf.mxu0
      %v1787 = vadd.f32 0.0, %v1786
      %v1788 = vpop.f32.mrf.mxu0
      %1789 = vmatprep.mubr.bf16.mxu0 0
      %1790 = vmatmul.mubr.bf16.gmra.mxu0 %v1572
      %v1791 = vpop.f32.mrf.mxu0
      %v1792 = vadd.f32 0.0, %v1791
      %v1793 = vpop.f32.mrf.mxu0
      %v1794 = vpop.f32.mrf.mxu0
      %v1795 = vadd.f32 0.0, %v1794
      %v1796 = vpop.f32.mrf.mxu0
      %1797 = vmatprep.mubr.bf16.mxu0 0
      %1798 = vmatmul.mubr.bf16.gmra.mxu0 %v1574
      %v1799 = vpop.f32.mrf.mxu0
      %v1800 = vadd.f32 0.0, %v1799
      %v1801 = vpop.f32.mrf.mxu0
      %v1802 = vpop.f32.mrf.mxu0
      %v1803 = vadd.f32 0.0, %v1802
      %v1804 = vpop.f32.mrf.mxu0
      %1805 = vmatprep.mubr.bf16.mxu0 0
      %1806 = vmatmul.mubr.bf16.gmra.mxu0 %v1576
      %v1807 = vpop.f32.mrf.mxu0
      %v1808 = vadd.f32 0.0, %v1807
      %v1809 = vpop.f32.mrf.mxu0
      %v1810 = vpop.f32.mrf.mxu0
      %v1811 = vadd.f32 0.0, %v1810
      %v1812 = vpop.f32.mrf.mxu0
      %1813 = vmatprep.mubr.bf16.mxu0 0
      %1814 = vmatmul.mubr.bf16.gmra.mxu0 %v1578
      %v1815 = vpop.f32.mrf.mxu0
      %v1816 = vadd.f32 0.0, %v1815
      %v1817 = vpop.f32.mrf.mxu0
      %v1818 = vpop.f32.mrf.mxu0
      %v1819 = vadd.f32 0.0, %v1818
      %v1820 = vpop.f32.mrf.mxu0
      %1821 = vdwg.mxu0
      %v1822 = vadd.f32 %v1359, %v1680
      %v1823 = vadd.f32 %v1360, %v1683
      %v1824 = vadd.f32 %v1361, %v1688
      %v1825 = vadd.f32 %v1362, %v1691
      %v1826 = vadd.f32 %v1363, %v1696
      %v1827 = vadd.f32 %v1364, %v1699
      %v1828 = vadd.f32 %v1365, %v1704
      %v1829 = vadd.f32 %v1366, %v1707
      %v1830 = vadd.f32 %v1367, %v1712
      %v1831 = vadd.f32 %v1368, %v1715
      %v1832 = vadd.f32 %v1369, %v1720
      %v1833 = vadd.f32 %v1370, %v1723
      %v1834 = vadd.f32 %v1371, %v1728
      %v1835 = vadd.f32 %v1372, %v1731
      %v1836 = vadd.f32 %v1373, %v1736
      %v1837 = vadd.f32 %v1374, %v1739
      %v1838 = vadd.f32 %v1375, %v1744
      %v1839 = vadd.f32 %v1376, %v1747
      %v1840 = vadd.f32 %v1377, %v1752
      %v1841 = vadd.f32 %v1378, %v1755
      %v1842 = vadd.f32 %v1379, %v1760
      %v1843 = vadd.f32 %v1380, %v1763
      %v1844 = vadd.f32 %v1381, %v1768
      %v1845 = vadd.f32 %v1382, %v1771
      %v1846 = vadd.f32 %v1383, %v1776
      %v1847 = vadd.f32 %v1384, %v1779
      %v1848 = vadd.f32 %v1385, %v1784
      %v1849 = vadd.f32 %v1386, %v1787
      %v1850 = vadd.f32 %v1387, %v1792
      %v1851 = vadd.f32 %v1388, %v1795
      %v1852 = vadd.f32 %v1389, %v1800
      %v1853 = vadd.f32 %v1390, %v1803
      %v1854 = vadd.f32 %v1391, %v1808
      %v1855 = vadd.f32 %v1392, %v1811
      %v1856 = vadd.f32 %v1393, %v1816
      %v1857 = vadd.f32 %v1394, %v1819
      %v1858 = vld [vmem:[%s246 + $0x98] sm:$0x3]
      %s1859 = scalar_lea.vmem %s2, 256
      %v1860 = vld [vmem:[%s1859] sm:$0xf]
      %v1861 = vld [vmem:[%s1859 + $0x4] sm:$0xf]
      %v1862 = vld [vmem:[%s1859 + $0x8] sm:$0xf]
      %v1863 = vld [vmem:[%s1859 + $0xc] sm:$0xf]
      %v1864 = vld [vmem:[%s1859 + $0x10] sm:$0xf]
      %v1865 = vld [vmem:[%s1859 + $0x14] sm:$0xf]
      %v1866 = vld [vmem:[%s1859 + $0x18] sm:$0xf]
      %v1867 = vld [vmem:[%s1859 + $0x1c] sm:$0xf]
      %v1868 = vld [vmem:[%s1859 + $0x20] sm:$0xf]
      %v1869 = vld [vmem:[%s1859 + $0x24] sm:$0xf]
      %v1870 = vld [vmem:[%s1859 + $0x28] sm:$0xf]
      %v1871 = vld [vmem:[%s1859 + $0x2c] sm:$0xf]
      %v1872 = vld [vmem:[%s1859 + $0x30] sm:$0xf]
      %v1873 = vld [vmem:[%s1859 + $0x34] sm:$0xf]
      %v1874 = vld [vmem:[%s1859 + $0x38] sm:$0xf]
      %v1875 = vld [vmem:[%s1859 + $0x3c] sm:$0xf]
      %v1877 = vunpack.c.l.b16 %v1858
      %v1878 = vpack.c.b16 %v1877, %v1877
      %vm1879 = vsmask.f32 6400
      %v1881 = vshrl.u32 %v1523, 16
      %v1883 = vrot.slane %v1881, 1
      %v1884 = vshll.u32 %v1523, 16
      %v1886 = vrot.slane %v1884, 2
      %v1887 = vor.u32 %v1883, %v1886
      %v1889 = vshrl.u32 %v1524, 16
      %v1891 = vrot.slane %v1889, 1
      %v1892 = vshll.u32 %v1524, 16
      %v1894 = vrot.slane %v1892, 2
      %v1895 = vor.u32 %v1891, %v1894
      %v1896 = vsel %vm1879, %v1887, %v1895
      %v1898 = vshrl.u32 %v1525, 16
      %v1900 = vrot.slane %v1898, 1
      %v1901 = vshll.u32 %v1525, 16
      %v1903 = vrot.slane %v1901, 2
      %v1904 = vor.u32 %v1900, %v1903
      %v1905 = vsel %vm1879, %v1895, %v1904
      %v1907 = vshrl.u32 %v1526, 16
      %v1909 = vrot.slane %v1907, 1
      %v1910 = vshll.u32 %v1526, 16
      %v1912 = vrot.slane %v1910, 2
      %v1913 = vor.u32 %v1909, %v1912
      %v1914 = vsel %vm1879, %v1904, %v1913
      %v1916 = vshrl.u32 %v1527, 16
      %v1918 = vrot.slane %v1916, 1
      %v1919 = vshll.u32 %v1527, 16
      %v1921 = vrot.slane %v1919, 2
      %v1922 = vor.u32 %v1918, %v1921
      %v1923 = vsel %vm1879, %v1913, %v1922
      %v1925 = vshrl.u32 %v1528, 16
      %v1927 = vrot.slane %v1925, 1
      %v1928 = vshll.u32 %v1528, 16
      %v1930 = vrot.slane %v1928, 2
      %v1931 = vor.u32 %v1927, %v1930
      %v1932 = vsel %vm1879, %v1922, %v1931
      %v1934 = vshrl.u32 %v1529, 16
      %v1936 = vrot.slane %v1934, 1
      %v1937 = vshll.u32 %v1529, 16
      %v1939 = vrot.slane %v1937, 2
      %v1940 = vor.u32 %v1936, %v1939
      %v1941 = vsel %vm1879, %v1931, %v1940
      %v1943 = vshrl.u32 %v1530, 16
      %v1945 = vrot.slane %v1943, 1
      %v1946 = vshll.u32 %v1530, 16
      %v1948 = vrot.slane %v1946, 2
      %v1949 = vor.u32 %v1945, %v1948
      %v1950 = vsel %vm1879, %v1940, %v1949
      %v1952 = vshrl.u32 %v1531, 16
      %v1954 = vrot.slane %v1952, 1
      %v1955 = vshll.u32 %v1531, 16
      %v1957 = vrot.slane %v1955, 2
      %v1958 = vor.u32 %v1954, %v1957
      %v1959 = vsel %vm1879, %v1949, %v1958
      %v1961 = vshrl.u32 %v1532, 16
      %v1963 = vrot.slane %v1961, 1
      %v1964 = vshll.u32 %v1532, 16
      %v1966 = vrot.slane %v1964, 2
      %v1967 = vor.u32 %v1963, %v1966
      %v1968 = vsel %vm1879, %v1958, %v1967
      %v1970 = vshrl.u32 %v1533, 16
      %v1972 = vrot.slane %v1970, 1
      %v1973 = vshll.u32 %v1533, 16
      %v1975 = vrot.slane %v1973, 2
      %v1976 = vor.u32 %v1972, %v1975
      %v1977 = vsel %vm1879, %v1967, %v1976
      %v1979 = vshrl.u32 %v1534, 16
      %v1981 = vrot.slane %v1979, 1
      %v1982 = vshll.u32 %v1534, 16
      %v1984 = vrot.slane %v1982, 2
      %v1985 = vor.u32 %v1981, %v1984
      %v1986 = vsel %vm1879, %v1976, %v1985
      %v1988 = vshrl.u32 %v1535, 16
      %v1990 = vrot.slane %v1988, 1
      %v1991 = vshll.u32 %v1535, 16
      %v1993 = vrot.slane %v1991, 2
      %v1994 = vor.u32 %v1990, %v1993
      %v1995 = vsel %vm1879, %v1985, %v1994
      %v1997 = vshrl.u32 %v1536, 16
      %v1999 = vrot.slane %v1997, 1
      %v2000 = vshll.u32 %v1536, 16
      %v2002 = vrot.slane %v2000, 2
      %v2003 = vor.u32 %v1999, %v2002
      %v2004 = vsel %vm1879, %v1994, %v2003
      %v2006 = vshrl.u32 %v1537, 16
      %v2008 = vrot.slane %v2006, 1
      %v2009 = vshll.u32 %v1537, 16
      %v2011 = vrot.slane %v2009, 2
      %v2012 = vor.u32 %v2008, %v2011
      %v2013 = vsel %vm1879, %v2003, %v2012
      %v2015 = vshrl.u32 %v1538, 16
      %v2017 = vrot.slane %v2015, 1
      %v2018 = vshll.u32 %v1538, 16
      %v2020 = vrot.slane %v2018, 2
      %v2021 = vor.u32 %v2017, %v2020
      %v2022 = vsel %vm1879, %v2012, %v2021
      %v2024 = vshrl.u32 %v1539, 16
      %v2026 = vrot.slane %v2024, 1
      %v2027 = vshll.u32 %v1539, 16
      %v2029 = vrot.slane %v2027, 2
      %v2030 = vor.u32 %v2026, %v2029
      %v2031 = vsel %vm1879, %v2021, %v2030
      %v2033 = vshrl.u32 %v1540, 16
      %v2035 = vrot.slane %v2033, 1
      %v2036 = vshll.u32 %v1540, 16
      %v2038 = vrot.slane %v2036, 2
      %v2039 = vor.u32 %v2035, %v2038
      %v2040 = vsel %vm1879, %v2030, %v2039
      %v2042 = vshrl.u32 %v1878, 16
      %v2044 = vrot.slane %v2042, 1
      %v2045 = vshll.u32 %v1878, 16
      %v2047 = vrot.slane %v2045, 2
      %v2048 = vor.u32 %v2044, %v2047
      %v2049 = vsel %vm1879, %v2039, %v2048
      %v2084 = vunpack.c.l.b16 %v1860
      %v2085 = vunpack.c.l.b16 %v1861
      %v2086 = vunpack.c.l.b16 %v1862
      %v2087 = vunpack.c.l.b16 %v1863
      %v2088 = vunpack.c.l.b16 %v1864
      %v2089 = vunpack.c.l.b16 %v1865
      %v2090 = vunpack.c.l.b16 %v1866
      %v2091 = vunpack.c.l.b16 %v1867
      %v2092 = vunpack.c.l.b16 %v1868
      %v2093 = vunpack.c.l.b16 %v1869
      %v2094 = vunpack.c.l.b16 %v1870
      %v2095 = vunpack.c.l.b16 %v1871
      %v2096 = vunpack.c.l.b16 %v1872
      %v2097 = vunpack.c.l.b16 %v1873
      %v2098 = vunpack.c.l.b16 %v1874
      %v2099 = vunpack.c.l.b16 %v1875
      %v2100 = vpack.c.b16 %v2085, %v2084
      %v2101 = vpack.c.b16 %v2087, %v2086
      %v2102 = vpack.c.b16 %v2089, %v2088
      %v2103 = vpack.c.b16 %v2091, %v2090
      %v2104 = vpack.c.b16 %v2093, %v2092
      %v2105 = vpack.c.b16 %v2095, %v2094
      %v2106 = vpack.c.b16 %v2097, %v2096
      %v2107 = vpack.c.b16 %v2099, %v2098
      %2116 = vmatprep.subr.bf16.mxu0 0
      %2117 = vmatpush1.bf16.msra.mxu0 %v2107
      %2118 = vmatprep.subr.bf16.mxu0 0
      %2119 = vmatpush1.bf16.msra.mxu0 %v2106
      %2120 = vmatprep.subr.bf16.mxu0 0
      %2121 = vmatpush1.bf16.msra.mxu0 %v2105
      %2122 = vmatprep.subr.bf16.mxu0 0
      %2123 = vmatpush1.bf16.msra.mxu0 %v2104
      %2124 = vmatprep.subr.bf16.mxu0 0
      %2125 = vmatpush1.bf16.msra.mxu0 %v2103
      %2126 = vmatprep.subr.bf16.mxu0 0
      %2127 = vmatpush1.bf16.msra.mxu0 %v2102
      %2128 = vmatprep.subr.bf16.mxu0 0
      %2129 = vmatpush1.bf16.msra.mxu0 %v2101
      %2130 = vmatprep.subr.bf16.mxu0 0
      %2131 = vmatpush1.bf16.msra.mxu0 %v2100
      %2132 = vmatprep.subr.bf16.mxu0 0
      %2133 = vmatpush2.bf16.msra.mxu0 0
      %2134 = vmatprep.subr.bf16.mxu0 0
      %2135 = vmatpush2.bf16.msra.mxu0 0
      %2136 = vmatprep.subr.bf16.mxu0 0
      %2137 = vmatpush2.bf16.msra.mxu0 0
      %2138 = vmatprep.subr.bf16.mxu0 0
      %2139 = vmatpush2.bf16.msra.mxu0 0
      %2140 = vmatprep.subr.bf16.mxu0 0
      %2141 = vmatpush2.bf16.msra.mxu0 0
      %2142 = vmatprep.subr.bf16.mxu0 0
      %2143 = vmatpush2.bf16.msra.mxu0 0
      %2144 = vmatprep.subr.bf16.mxu0 0
      %2145 = vmatpush2.bf16.msra.mxu0 0
      %2146 = vmatprep.subr.bf16.mxu0 0
      %2147 = vmatpush2.bf16.msra.mxu0 0
      %2148 = vmatprep.mubr.bf16.mxu0 0
      %2149 = vmatmul.mubr.bf16.gmra.mxu0 %v1896
      %v2150 = vpop.f32.mrf.mxu0
      %v2151 = vadd.f32 0.0, %v2150
      %v2152 = vpop.f32.mrf.mxu0
      %v2153 = vpop.f32.mrf.mxu0
      %v2154 = vadd.f32 0.0, %v2153
      %v2155 = vpop.f32.mrf.mxu0
      %2156 = vmatprep.mubr.bf16.mxu0 0
      %2157 = vmatmul.mubr.bf16.gmra.mxu0 %v1905
      %v2158 = vpop.f32.mrf.mxu0
      %v2159 = vadd.f32 0.0, %v2158
      %v2160 = vpop.f32.mrf.mxu0
      %v2161 = vpop.f32.mrf.mxu0
      %v2162 = vadd.f32 0.0, %v2161
      %v2163 = vpop.f32.mrf.mxu0
      %2164 = vmatprep.mubr.bf16.mxu0 0
      %2165 = vmatmul.mubr.bf16.gmra.mxu0 %v1914
      %v2166 = vpop.f32.mrf.mxu0
      %v2167 = vadd.f32 0.0, %v2166
      %v2168 = vpop.f32.mrf.mxu0
      %v2169 = vpop.f32.mrf.mxu0
      %v2170 = vadd.f32 0.0, %v2169
      %v2171 = vpop.f32.mrf.mxu0
      %2172 = vmatprep.mubr.bf16.mxu0 0
      %2173 = vmatmul.mubr.bf16.gmra.mxu0 %v1923
      %v2174 = vpop.f32.mrf.mxu0
      %v2175 = vadd.f32 0.0, %v2174
      %v2176 = vpop.f32.mrf.mxu0
      %v2177 = vpop.f32.mrf.mxu0
      %v2178 = vadd.f32 0.0, %v2177
      %v2179 = vpop.f32.mrf.mxu0
      %2180 = vmatprep.mubr.bf16.mxu0 0
      %2181 = vmatmul.mubr.bf16.gmra.mxu0 %v1932
      %v2182 = vpop.f32.mrf.mxu0
      %v2183 = vadd.f32 0.0, %v2182
      %v2184 = vpop.f32.mrf.mxu0
      %v2185 = vpop.f32.mrf.mxu0
      %v2186 = vadd.f32 0.0, %v2185
      %v2187 = vpop.f32.mrf.mxu0
      %2188 = vmatprep.mubr.bf16.mxu0 0
      %2189 = vmatmul.mubr.bf16.gmra.mxu0 %v1941
      %v2190 = vpop.f32.mrf.mxu0
      %v2191 = vadd.f32 0.0, %v2190
      %v2192 = vpop.f32.mrf.mxu0
      %v2193 = vpop.f32.mrf.mxu0
      %v2194 = vadd.f32 0.0, %v2193
      %v2195 = vpop.f32.mrf.mxu0
      %2196 = vmatprep.mubr.bf16.mxu0 0
      %2197 = vmatmul.mubr.bf16.gmra.mxu0 %v1950
      %v2198 = vpop.f32.mrf.mxu0
      %v2199 = vadd.f32 0.0, %v2198
      %v2200 = vpop.f32.mrf.mxu0
      %v2201 = vpop.f32.mrf.mxu0
      %v2202 = vadd.f32 0.0, %v2201
      %v2203 = vpop.f32.mrf.mxu0
      %2204 = vmatprep.mubr.bf16.mxu0 0
      %2205 = vmatmul.mubr.bf16.gmra.mxu0 %v1959
      %v2206 = vpop.f32.mrf.mxu0
      %v2207 = vadd.f32 0.0, %v2206
      %v2208 = vpop.f32.mrf.mxu0
      %v2209 = vpop.f32.mrf.mxu0
      %v2210 = vadd.f32 0.0, %v2209
      %v2211 = vpop.f32.mrf.mxu0
      %2212 = vmatprep.mubr.bf16.mxu0 0
      %2213 = vmatmul.mubr.bf16.gmra.mxu0 %v1968
      %v2214 = vpop.f32.mrf.mxu0
      %v2215 = vadd.f32 0.0, %v2214
      %v2216 = vpop.f32.mrf.mxu0
      %v2217 = vpop.f32.mrf.mxu0
      %v2218 = vadd.f32 0.0, %v2217
      %v2219 = vpop.f32.mrf.mxu0
      %2220 = vmatprep.mubr.bf16.mxu0 0
      %2221 = vmatmul.mubr.bf16.gmra.mxu0 %v1977
      %v2222 = vpop.f32.mrf.mxu0
      %v2223 = vadd.f32 0.0, %v2222
      %v2224 = vpop.f32.mrf.mxu0
      %v2225 = vpop.f32.mrf.mxu0
      %v2226 = vadd.f32 0.0, %v2225
      %v2227 = vpop.f32.mrf.mxu0
      %2228 = vmatprep.mubr.bf16.mxu0 0
      %2229 = vmatmul.mubr.bf16.gmra.mxu0 %v1986
      %v2230 = vpop.f32.mrf.mxu0
      %v2231 = vadd.f32 0.0, %v2230
      %v2232 = vpop.f32.mrf.mxu0
      %v2233 = vpop.f32.mrf.mxu0
      %v2234 = vadd.f32 0.0, %v2233
      %v2235 = vpop.f32.mrf.mxu0
      %2236 = vmatprep.mubr.bf16.mxu0 0
      %2237 = vmatmul.mubr.bf16.gmra.mxu0 %v1995
      %v2238 = vpop.f32.mrf.mxu0
      %v2239 = vadd.f32 0.0, %v2238
      %v2240 = vpop.f32.mrf.mxu0
      %v2241 = vpop.f32.mrf.mxu0
      %v2242 = vadd.f32 0.0, %v2241
      %v2243 = vpop.f32.mrf.mxu0
      %2244 = vmatprep.mubr.bf16.mxu0 0
      %2245 = vmatmul.mubr.bf16.gmra.mxu0 %v2004
      %v2246 = vpop.f32.mrf.mxu0
      %v2247 = vadd.f32 0.0, %v2246
      %v2248 = vpop.f32.mrf.mxu0
      %v2249 = vpop.f32.mrf.mxu0
      %v2250 = vadd.f32 0.0, %v2249
      %v2251 = vpop.f32.mrf.mxu0
      %2252 = vmatprep.mubr.bf16.mxu0 0
      %2253 = vmatmul.mubr.bf16.gmra.mxu0 %v2013
      %v2254 = vpop.f32.mrf.mxu0
      %v2255 = vadd.f32 0.0, %v2254
      %v2256 = vpop.f32.mrf.mxu0
      %v2257 = vpop.f32.mrf.mxu0
      %v2258 = vadd.f32 0.0, %v2257
      %v2259 = vpop.f32.mrf.mxu0
      %2260 = vmatprep.mubr.bf16.mxu0 0
      %2261 = vmatmul.mubr.bf16.gmra.mxu0 %v2022
      %v2262 = vpop.f32.mrf.mxu0
      %v2263 = vadd.f32 0.0, %v2262
      %v2264 = vpop.f32.mrf.mxu0
      %v2265 = vpop.f32.mrf.mxu0
      %v2266 = vadd.f32 0.0, %v2265
      %v2267 = vpop.f32.mrf.mxu0
      %2268 = vmatprep.mubr.bf16.mxu0 0
      %2269 = vmatmul.mubr.bf16.gmra.mxu0 %v2031
      %v2270 = vpop.f32.mrf.mxu0
      %v2271 = vadd.f32 0.0, %v2270
      %v2272 = vpop.f32.mrf.mxu0
      %v2273 = vpop.f32.mrf.mxu0
      %v2274 = vadd.f32 0.0, %v2273
      %v2275 = vpop.f32.mrf.mxu0
      %2276 = vmatprep.mubr.bf16.mxu0 0
      %2277 = vmatmul.mubr.bf16.gmra.mxu0 %v2040
      %v2278 = vpop.f32.mrf.mxu0
      %v2279 = vadd.f32 0.0, %v2278
      %v2280 = vpop.f32.mrf.mxu0
      %v2281 = vpop.f32.mrf.mxu0
      %v2282 = vadd.f32 0.0, %v2281
      %v2283 = vpop.f32.mrf.mxu0
      %2284 = vmatprep.mubr.bf16.mxu0 0
      %2285 = vmatmul.mubr.bf16.gmra.mxu0 %v2049
      %v2286 = vpop.f32.mrf.mxu0
      %v2287 = vadd.f32 0.0, %v2286
      %v2288 = vpop.f32.mrf.mxu0
      %v2289 = vpop.f32.mrf.mxu0
      %v2290 = vadd.f32 0.0, %v2289
      %v2291 = vpop.f32.mrf.mxu0
      %2292 = vdwg.mxu0
      %v2293 = vadd.f32 %v1822, %v2151
      %v2294 = vadd.f32 %v1823, %v2154
      %v2295 = vadd.f32 %v1824, %v2159
      %v2296 = vadd.f32 %v1825, %v2162
      %v2297 = vadd.f32 %v1826, %v2167
      %v2298 = vadd.f32 %v1827, %v2170
      %v2299 = vadd.f32 %v1828, %v2175
      %v2300 = vadd.f32 %v1829, %v2178
      %v2301 = vadd.f32 %v1830, %v2183
      %v2302 = vadd.f32 %v1831, %v2186
      %v2303 = vadd.f32 %v1832, %v2191
      %v2304 = vadd.f32 %v1833, %v2194
      %v2305 = vadd.f32 %v1834, %v2199
      %v2306 = vadd.f32 %v1835, %v2202
      %v2307 = vadd.f32 %v1836, %v2207
      %v2308 = vadd.f32 %v1837, %v2210
      %v2309 = vadd.f32 %v1838, %v2215
      %v2310 = vadd.f32 %v1839, %v2218
      %v2311 = vadd.f32 %v1840, %v2223
      %v2312 = vadd.f32 %v1841, %v2226
      %v2313 = vadd.f32 %v1842, %v2231
      %v2314 = vadd.f32 %v1843, %v2234
      %v2315 = vadd.f32 %v1844, %v2239
      %v2316 = vadd.f32 %v1845, %v2242
      %v2317 = vadd.f32 %v1846, %v2247
      %v2318 = vadd.f32 %v1847, %v2250
      %v2319 = vadd.f32 %v1848, %v2255
      %v2320 = vadd.f32 %v1849, %v2258
      %v2321 = vadd.f32 %v1850, %v2263
      %v2322 = vadd.f32 %v1851, %v2266
      %v2323 = vadd.f32 %v1852, %v2271
      %v2324 = vadd.f32 %v1853, %v2274
      %v2325 = vadd.f32 %v1854, %v2279
      %v2326 = vadd.f32 %v1855, %v2282
      %v2327 = vadd.f32 %v1856, %v2287
      %v2328 = vadd.f32 %v1857, %v2290
      %v2329 = vld [vmem:[%s246 + $0x8] sm:$0xc]
      %s2330 = scalar_lea.vmem %s2, 320
      %v2331 = vld [vmem:[%s2330] sm:$0xf]
      %v2332 = vld [vmem:[%s2330 + $0x4] sm:$0xf]
      %v2333 = vld [vmem:[%s2330 + $0x8] sm:$0xf]
      %v2334 = vld [vmem:[%s2330 + $0xc] sm:$0xf]
      %v2335 = vld [vmem:[%s2330 + $0x10] sm:$0xf]
      %v2336 = vld [vmem:[%s2330 + $0x14] sm:$0xf]
      %v2337 = vld [vmem:[%s2330 + $0x18] sm:$0xf]
      %v2338 = vld [vmem:[%s2330 + $0x1c] sm:$0xf]
      %v2339 = vld [vmem:[%s2330 + $0x20] sm:$0xf]
      %v2340 = vld [vmem:[%s2330 + $0x24] sm:$0xf]
      %v2341 = vld [vmem:[%s2330 + $0x28] sm:$0xf]
      %v2342 = vld [vmem:[%s2330 + $0x2c] sm:$0xf]
      %v2343 = vld [vmem:[%s2330 + $0x30] sm:$0xf]
      %v2344 = vld [vmem:[%s2330 + $0x34] sm:$0xf]
      %v2345 = vld [vmem:[%s2330 + $0x38] sm:$0xf]
      %v2346 = vld [vmem:[%s2330 + $0x3c] sm:$0xf]
      %v2348 = vunpack.c.l.b16 %v2329
      %v2349 = vpack.c.b16 %v1487, %v2348
      %vm2350 = vcmask 1045504
      %v2351 = vrot.slane %v2349, 2
      %v2352 = vrot.slane %v1524, 2
      %v2353 = vsel %vm2350, %v2351, %v2352
      %v2354 = vrot.slane %v1525, 2
      %v2355 = vsel %vm2350, %v2352, %v2354
      %v2356 = vrot.slane %v1526, 2
      %v2357 = vsel %vm2350, %v2354, %v2356
      %v2358 = vrot.slane %v1527, 2
      %v2359 = vsel %vm2350, %v2356, %v2358
      %v2360 = vrot.slane %v1528, 2
      %v2361 = vsel %vm2350, %v2358, %v2360
      %v2362 = vrot.slane %v1529, 2
      %v2363 = vsel %vm2350, %v2360, %v2362
      %v2364 = vrot.slane %v1530, 2
      %v2365 = vsel %vm2350, %v2362, %v2364
      %v2366 = vrot.slane %v1531, 2
      %v2367 = vsel %vm2350, %v2364, %v2366
      %v2368 = vrot.slane %v1532, 2
      %v2369 = vsel %vm2350, %v2366, %v2368
      %v2370 = vrot.slane %v1533, 2
      %v2371 = vsel %vm2350, %v2368, %v2370
      %v2372 = vrot.slane %v1534, 2
      %v2373 = vsel %vm2350, %v2370, %v2372
      %v2374 = vrot.slane %v1535, 2
      %v2375 = vsel %vm2350, %v2372, %v2374
      %v2376 = vrot.slane %v1536, 2
      %v2377 = vsel %vm2350, %v2374, %v2376
      %v2378 = vrot.slane %v1537, 2
      %v2379 = vsel %vm2350, %v2376, %v2378
      %v2380 = vrot.slane %v1538, 2
      %v2381 = vsel %vm2350, %v2378, %v2380
      %v2382 = vrot.slane %v1539, 2
      %v2383 = vsel %vm2350, %v2380, %v2382
      %v2384 = vrot.slane %v1540, 2
      %v2385 = vsel %vm2350, %v2382, %v2384
      %v2386 = vrot.slane %v1878, 2
      %v2387 = vsel %vm2350, %v2384, %v2386
      %v2422 = vunpack.c.l.b16 %v2331
      %v2423 = vunpack.c.l.b16 %v2332
      %v2424 = vunpack.c.l.b16 %v2333
      %v2425 = vunpack.c.l.b16 %v2334
      %v2426 = vunpack.c.l.b16 %v2335
      %v2427 = vunpack.c.l.b16 %v2336
      %v2428 = vunpack.c.l.b16 %v2337
      %v2429 = vunpack.c.l.b16 %v2338
      %v2430 = vunpack.c.l.b16 %v2339
      %v2431 = vunpack.c.l.b16 %v2340
      %v2432 = vunpack.c.l.b16 %v2341
      %v2433 = vunpack.c.l.b16 %v2342
      %v2434 = vunpack.c.l.b16 %v2343
      %v2435 = vunpack.c.l.b16 %v2344
      %v2436 = vunpack.c.l.b16 %v2345
      %v2437 = vunpack.c.l.b16 %v2346
      %v2438 = vpack.c.b16 %v2423, %v2422
      %v2439 = vpack.c.b16 %v2425, %v2424
      %v2440 = vpack.c.b16 %v2427, %v2426
      %v2441 = vpack.c.b16 %v2429, %v2428
      %v2442 = vpack.c.b16 %v2431, %v2430
      %v2443 = vpack.c.b16 %v2433, %v2432
      %v2444 = vpack.c.b16 %v2435, %v2434
      %v2445 = vpack.c.b16 %v2437, %v2436
      %2454 = vmatprep.subr.bf16.mxu0 0
      %2455 = vmatpush1.bf16.msra.mxu0 %v2445
      %2456 = vmatprep.subr.bf16.mxu0 0
      %2457 = vmatpush1.bf16.msra.mxu0 %v2444
      %2458 = vmatprep.subr.bf16.mxu0 0
      %2459 = vmatpush1.bf16.msra.mxu0 %v2443
      %2460 = vmatprep.subr.bf16.mxu0 0
      %2461 = vmatpush1.bf16.msra.mxu0 %v2442
      %2462 = vmatprep.subr.bf16.mxu0 0
      %2463 = vmatpush1.bf16.msra.mxu0 %v2441
      %2464 = vmatprep.subr.bf16.mxu0 0
      %2465 = vmatpush1.bf16.msra.mxu0 %v2440
      %2466 = vmatprep.subr.bf16.mxu0 0
      %2467 = vmatpush1.bf16.msra.mxu0 %v2439
      %2468 = vmatprep.subr.bf16.mxu0 0
      %2469 = vmatpush1.bf16.msra.mxu0 %v2438
      %2470 = vmatprep.subr.bf16.mxu0 0
      %2471 = vmatpush2.bf16.msra.mxu0 0
      %2472 = vmatprep.subr.bf16.mxu0 0
      %2473 = vmatpush2.bf16.msra.mxu0 0
      %2474 = vmatprep.subr.bf16.mxu0 0
      %2475 = vmatpush2.bf16.msra.mxu0 0
      %2476 = vmatprep.subr.bf16.mxu0 0
      %2477 = vmatpush2.bf16.msra.mxu0 0
      %2478 = vmatprep.subr.bf16.mxu0 0
      %2479 = vmatpush2.bf16.msra.mxu0 0
      %2480 = vmatprep.subr.bf16.mxu0 0
      %2481 = vmatpush2.bf16.msra.mxu0 0
      %2482 = vmatprep.subr.bf16.mxu0 0
      %2483 = vmatpush2.bf16.msra.mxu0 0
      %2484 = vmatprep.subr.bf16.mxu0 0
      %2485 = vmatpush2.bf16.msra.mxu0 0
      %2486 = vmatprep.mubr.bf16.mxu0 0
      %2487 = vmatmul.mubr.bf16.gmra.mxu0 %v2353
      %v2488 = vpop.f32.mrf.mxu0
      %v2489 = vadd.f32 0.0, %v2488
      %v2490 = vpop.f32.mrf.mxu0
      %v2491 = vpop.f32.mrf.mxu0
      %v2492 = vadd.f32 0.0, %v2491
      %v2493 = vpop.f32.mrf.mxu0
      %2494 = vmatprep.mubr.bf16.mxu0 0
      %2495 = vmatmul.mubr.bf16.gmra.mxu0 %v2355
      %v2496 = vpop.f32.mrf.mxu0
      %v2497 = vadd.f32 0.0, %v2496
      %v2498 = vpop.f32.mrf.mxu0
      %v2499 = vpop.f32.mrf.mxu0
      %v2500 = vadd.f32 0.0, %v2499
      %v2501 = vpop.f32.mrf.mxu0
      %2502 = vmatprep.mubr.bf16.mxu0 0
      %2503 = vmatmul.mubr.bf16.gmra.mxu0 %v2357
      %v2504 = vpop.f32.mrf.mxu0
      %v2505 = vadd.f32 0.0, %v2504
      %v2506 = vpop.f32.mrf.mxu0
      %v2507 = vpop.f32.mrf.mxu0
      %v2508 = vadd.f32 0.0, %v2507
      %v2509 = vpop.f32.mrf.mxu0
      %2510 = vmatprep.mubr.bf16.mxu0 0
      %2511 = vmatmul.mubr.bf16.gmra.mxu0 %v2359
      %v2512 = vpop.f32.mrf.mxu0
      %v2513 = vadd.f32 0.0, %v2512
      %v2514 = vpop.f32.mrf.mxu0
      %v2515 = vpop.f32.mrf.mxu0
      %v2516 = vadd.f32 0.0, %v2515
      %v2517 = vpop.f32.mrf.mxu0
      %2518 = vmatprep.mubr.bf16.mxu0 0
      %2519 = vmatmul.mubr.bf16.gmra.mxu0 %v2361
      %v2520 = vpop.f32.mrf.mxu0
      %v2521 = vadd.f32 0.0, %v2520
      %v2522 = vpop.f32.mrf.mxu0
      %v2523 = vpop.f32.mrf.mxu0
      %v2524 = vadd.f32 0.0, %v2523
      %v2525 = vpop.f32.mrf.mxu0
      %2526 = vmatprep.mubr.bf16.mxu0 0
      %2527 = vmatmul.mubr.bf16.gmra.mxu0 %v2363
      %v2528 = vpop.f32.mrf.mxu0
      %v2529 = vadd.f32 0.0, %v2528
      %v2530 = vpop.f32.mrf.mxu0
      %v2531 = vpop.f32.mrf.mxu0
      %v2532 = vadd.f32 0.0, %v2531
      %v2533 = vpop.f32.mrf.mxu0
      %2534 = vmatprep.mubr.bf16.mxu0 0
      %2535 = vmatmul.mubr.bf16.gmra.mxu0 %v2365
      %v2536 = vpop.f32.mrf.mxu0
      %v2537 = vadd.f32 0.0, %v2536
      %v2538 = vpop.f32.mrf.mxu0
      %v2539 = vpop.f32.mrf.mxu0
      %v2540 = vadd.f32 0.0, %v2539
      %v2541 = vpop.f32.mrf.mxu0
      %2542 = vmatprep.mubr.bf16.mxu0 0
      %2543 = vmatmul.mubr.bf16.gmra.mxu0 %v2367
      %v2544 = vpop.f32.mrf.mxu0
      %v2545 = vadd.f32 0.0, %v2544
      %v2546 = vpop.f32.mrf.mxu0
      %v2547 = vpop.f32.mrf.mxu0
      %v2548 = vadd.f32 0.0, %v2547
      %v2549 = vpop.f32.mrf.mxu0
      %2550 = vmatprep.mubr.bf16.mxu0 0
      %2551 = vmatmul.mubr.bf16.gmra.mxu0 %v2369
      %v2552 = vpop.f32.mrf.mxu0
      %v2553 = vadd.f32 0.0, %v2552
      %v2554 = vpop.f32.mrf.mxu0
      %v2555 = vpop.f32.mrf.mxu0
      %v2556 = vadd.f32 0.0, %v2555
      %v2557 = vpop.f32.mrf.mxu0
      %2558 = vmatprep.mubr.bf16.mxu0 0
      %2559 = vmatmul.mubr.bf16.gmra.mxu0 %v2371
      %v2560 = vpop.f32.mrf.mxu0
      %v2561 = vadd.f32 0.0, %v2560
      %v2562 = vpop.f32.mrf.mxu0
      %v2563 = vpop.f32.mrf.mxu0
      %v2564 = vadd.f32 0.0, %v2563
      %v2565 = vpop.f32.mrf.mxu0
      %2566 = vmatprep.mubr.bf16.mxu0 0
      %2567 = vmatmul.mubr.bf16.gmra.mxu0 %v2373
      %v2568 = vpop.f32.mrf.mxu0
      %v2569 = vadd.f32 0.0, %v2568
      %v2570 = vpop.f32.mrf.mxu0
      %v2571 = vpop.f32.mrf.mxu0
      %v2572 = vadd.f32 0.0, %v2571
      %v2573 = vpop.f32.mrf.mxu0
      %2574 = vmatprep.mubr.bf16.mxu0 0
      %2575 = vmatmul.mubr.bf16.gmra.mxu0 %v2375
      %v2576 = vpop.f32.mrf.mxu0
      %v2577 = vadd.f32 0.0, %v2576
      %v2578 = vpop.f32.mrf.mxu0
      %v2579 = vpop.f32.mrf.mxu0
      %v2580 = vadd.f32 0.0, %v2579
      %v2581 = vpop.f32.mrf.mxu0
      %2582 = vmatprep.mubr.bf16.mxu0 0
      %2583 = vmatmul.mubr.bf16.gmra.mxu0 %v2377
      %v2584 = vpop.f32.mrf.mxu0
      %v2585 = vadd.f32 0.0, %v2584
      %v2586 = vpop.f32.mrf.mxu0
      %v2587 = vpop.f32.mrf.mxu0
      %v2588 = vadd.f32 0.0, %v2587
      %v2589 = vpop.f32.mrf.mxu0
      %2590 = vmatprep.mubr.bf16.mxu0 0
      %2591 = vmatmul.mubr.bf16.gmra.mxu0 %v2379
      %v2592 = vpop.f32.mrf.mxu0
      %v2593 = vadd.f32 0.0, %v2592
      %v2594 = vpop.f32.mrf.mxu0
      %v2595 = vpop.f32.mrf.mxu0
      %v2596 = vadd.f32 0.0, %v2595
      %v2597 = vpop.f32.mrf.mxu0
      %2598 = vmatprep.mubr.bf16.mxu0 0
      %2599 = vmatmul.mubr.bf16.gmra.mxu0 %v2381
      %v2600 = vpop.f32.mrf.mxu0
      %v2601 = vadd.f32 0.0, %v2600
      %v2602 = vpop.f32.mrf.mxu0
      %v2603 = vpop.f32.mrf.mxu0
      %v2604 = vadd.f32 0.0, %v2603
      %v2605 = vpop.f32.mrf.mxu0
      %2606 = vmatprep.mubr.bf16.mxu0 0
      %2607 = vmatmul.mubr.bf16.gmra.mxu0 %v2383
      %v2608 = vpop.f32.mrf.mxu0
      %v2609 = vadd.f32 0.0, %v2608
      %v2610 = vpop.f32.mrf.mxu0
      %v2611 = vpop.f32.mrf.mxu0
      %v2612 = vadd.f32 0.0, %v2611
      %v2613 = vpop.f32.mrf.mxu0
      %2614 = vmatprep.mubr.bf16.mxu0 0
      %2615 = vmatmul.mubr.bf16.gmra.mxu0 %v2385
      %v2616 = vpop.f32.mrf.mxu0
      %v2617 = vadd.f32 0.0, %v2616
      %v2618 = vpop.f32.mrf.mxu0
      %v2619 = vpop.f32.mrf.mxu0
      %v2620 = vadd.f32 0.0, %v2619
      %v2621 = vpop.f32.mrf.mxu0
      %2622 = vmatprep.mubr.bf16.mxu0 0
      %2623 = vmatmul.mubr.bf16.gmra.mxu0 %v2387
      %v2624 = vpop.f32.mrf.mxu0
      %v2625 = vadd.f32 0.0, %v2624
      %v2626 = vpop.f32.mrf.mxu0
      %v2627 = vpop.f32.mrf.mxu0
      %v2628 = vadd.f32 0.0, %v2627
      %v2629 = vpop.f32.mrf.mxu0
      %2630 = vdwg.mxu0
      %v2631 = vadd.f32 %v2293, %v2489
      %v2632 = vadd.f32 %v2294, %v2492
      %v2633 = vadd.f32 %v2295, %v2497
      %v2634 = vadd.f32 %v2296, %v2500
      %v2635 = vadd.f32 %v2297, %v2505
      %v2636 = vadd.f32 %v2298, %v2508
      %v2637 = vadd.f32 %v2299, %v2513
      %v2638 = vadd.f32 %v2300, %v2516
      %v2639 = vadd.f32 %v2301, %v2521
      %v2640 = vadd.f32 %v2302, %v2524
      %v2641 = vadd.f32 %v2303, %v2529
      %v2642 = vadd.f32 %v2304, %v2532
      %v2643 = vadd.f32 %v2305, %v2537
      %v2644 = vadd.f32 %v2306, %v2540
      %v2645 = vadd.f32 %v2307, %v2545
      %v2646 = vadd.f32 %v2308, %v2548
      %v2647 = vadd.f32 %v2309, %v2553
      %v2648 = vadd.f32 %v2310, %v2556
      %v2649 = vadd.f32 %v2311, %v2561
      %v2650 = vadd.f32 %v2312, %v2564
      %v2651 = vadd.f32 %v2313, %v2569
      %v2652 = vadd.f32 %v2314, %v2572
      %v2653 = vadd.f32 %v2315, %v2577
      %v2654 = vadd.f32 %v2316, %v2580
      %v2655 = vadd.f32 %v2317, %v2585
      %v2656 = vadd.f32 %v2318, %v2588
      %v2657 = vadd.f32 %v2319, %v2593
      %v2658 = vadd.f32 %v2320, %v2596
      %v2659 = vadd.f32 %v2321, %v2601
      %v2660 = vadd.f32 %v2322, %v2604
      %v2661 = vadd.f32 %v2323, %v2609
      %v2662 = vadd.f32 %v2324, %v2612
      %v2663 = vadd.f32 %v2325, %v2617
      %v2664 = vadd.f32 %v2326, %v2620
      %v2665 = vadd.f32 %v2327, %v2625
      %v2666 = vadd.f32 %v2328, %v2628
      %v2667 = vld [vmem:[%s246 + $0x10] sm:$0xc]
      %v2668 = vld [vmem:[%s246 + $0x14] sm:$0xf]
      %v2669 = vld [vmem:[%s246 + $0x18] sm:$0xf]
      %v2670 = vld [vmem:[%s246 + $0x1c] sm:$0xf]
      %v2671 = vld [vmem:[%s246 + $0x20] sm:$0xf]
      %v2672 = vld [vmem:[%s246 + $0x24] sm:$0xf]
      %v2673 = vld [vmem:[%s246 + $0x28] sm:$0xf]
      %v2674 = vld [vmem:[%s246 + $0x2c] sm:$0xf]
      %v2675 = vld [vmem:[%s246 + $0x30] sm:$0xf]
      %v2676 = vld [vmem:[%s246 + $0x34] sm:$0xf]
      %v2677 = vld [vmem:[%s246 + $0x38] sm:$0xf]
      %v2678 = vld [vmem:[%s246 + $0x3c] sm:$0xf]
      %v2679 = vld [vmem:[%s246 + $0x40] sm:$0xf]
      %v2680 = vld [vmem:[%s246 + $0x44] sm:$0xf]
      %v2681 = vld [vmem:[%s246 + $0x48] sm:$0xf]
      %v2682 = vld [vmem:[%s246 + $0x4c] sm:$0xf]
      %v2683 = vld [vmem:[%s246 + $0x50] sm:$0xf]
      %v2684 = vld [vmem:[%s246 + $0x54] sm:$0xf]
      %v2685 = vld [vmem:[%s246 + $0x58] sm:$0xf]
      %v2686 = vld [vmem:[%s246 + $0x5c] sm:$0xf]
      %v2687 = vld [vmem:[%s246 + $0x60] sm:$0xf]
      %v2688 = vld [vmem:[%s246 + $0x64] sm:$0xf]
      %v2689 = vld [vmem:[%s246 + $0x68] sm:$0xf]
      %v2690 = vld [vmem:[%s246 + $0x6c] sm:$0xf]
      %v2691 = vld [vmem:[%s246 + $0x70] sm:$0xf]
      %v2692 = vld [vmem:[%s246 + $0x74] sm:$0xf]
      %v2693 = vld [vmem:[%s246 + $0x78] sm:$0xf]
      %v2694 = vld [vmem:[%s246 + $0x7c] sm:$0xf]
      %v2695 = vld [vmem:[%s246 + $0x80] sm:$0xf]
      %v2696 = vld [vmem:[%s246 + $0x84] sm:$0xf]
      %v2697 = vld [vmem:[%s246 + $0x88] sm:$0xf]
      %v2698 = vld [vmem:[%s246 + $0x8c] sm:$0xf]
      %v2699 = vld [vmem:[%s246 + $0x90] sm:$0xf]
      %v2700 = vld [vmem:[%s246 + $0x94] sm:$0xf]
      %v2701 = vld [vmem:[%s246 + $0x98] sm:$0xf]
      %v2702 = vld [vmem:[%s246 + $0x9c] sm:$0xf]
      %v2703 = vld [vmem:[%s246 + $0xa0] sm:$0x3]
      %s2704 = scalar_lea.vmem %s2, 384
      %v2705 = vld [vmem:[%s2704] sm:$0xf]
      %v2706 = vld [vmem:[%s2704 + $0x4] sm:$0xf]
      %v2707 = vld [vmem:[%s2704 + $0x8] sm:$0xf]
      %v2708 = vld [vmem:[%s2704 + $0xc] sm:$0xf]
      %v2709 = vld [vmem:[%s2704 + $0x10] sm:$0xf]
      %v2710 = vld [vmem:[%s2704 + $0x14] sm:$0xf]
      %v2711 = vld [vmem:[%s2704 + $0x18] sm:$0xf]
      %v2712 = vld [vmem:[%s2704 + $0x1c] sm:$0xf]
      %v2713 = vld [vmem:[%s2704 + $0x20] sm:$0xf]
      %v2714 = vld [vmem:[%s2704 + $0x24] sm:$0xf]
      %v2715 = vld [vmem:[%s2704 + $0x28] sm:$0xf]
      %v2716 = vld [vmem:[%s2704 + $0x2c] sm:$0xf]
      %v2717 = vld [vmem:[%s2704 + $0x30] sm:$0xf]
      %v2718 = vld [vmem:[%s2704 + $0x34] sm:$0xf]
      %v2719 = vld [vmem:[%s2704 + $0x38] sm:$0xf]
      %v2720 = vld [vmem:[%s2704 + $0x3c] sm:$0xf]
      %v2758 = vunpack.c.l.b16 %v2667
      %v2759 = vunpack.c.l.b16 %v2668
      %v2760 = vunpack.c.l.b16 %v2669
      %v2761 = vunpack.c.l.b16 %v2670
      %v2762 = vunpack.c.l.b16 %v2671
      %v2763 = vunpack.c.l.b16 %v2672
      %v2764 = vunpack.c.l.b16 %v2673
      %v2765 = vunpack.c.l.b16 %v2674
      %v2766 = vunpack.c.l.b16 %v2675
      %v2767 = vunpack.c.l.b16 %v2676
      %v2768 = vunpack.c.l.b16 %v2677
      %v2769 = vunpack.c.l.b16 %v2678
      %v2770 = vunpack.c.l.b16 %v2679
      %v2771 = vunpack.c.l.b16 %v2680
      %v2772 = vunpack.c.l.b16 %v2681
      %v2773 = vunpack.c.l.b16 %v2682
      %v2774 = vunpack.c.l.b16 %v2683
      %v2775 = vunpack.c.l.b16 %v2684
      %v2776 = vunpack.c.l.b16 %v2685
      %v2777 = vunpack.c.l.b16 %v2686
      %v2778 = vunpack.c.l.b16 %v2687
      %v2779 = vunpack.c.l.b16 %v2688
      %v2780 = vunpack.c.l.b16 %v2689
      %v2781 = vunpack.c.l.b16 %v2690
      %v2782 = vunpack.c.l.b16 %v2691
      %v2783 = vunpack.c.l.b16 %v2692
      %v2784 = vunpack.c.l.b16 %v2693
      %v2785 = vunpack.c.l.b16 %v2694
      %v2786 = vunpack.c.l.b16 %v2695
      %v2787 = vunpack.c.l.b16 %v2696
      %v2788 = vunpack.c.l.b16 %v2697
      %v2789 = vunpack.c.l.b16 %v2698
      %v2790 = vunpack.c.l.b16 %v2699
      %v2791 = vunpack.c.l.b16 %v2700
      %v2792 = vunpack.c.l.b16 %v2701
      %v2793 = vunpack.c.l.b16 %v2702
      %v2794 = vunpack.c.l.b16 %v2703
      %v2795 = vpack.c.b16 %v2759, %v2758
      %v2796 = vpack.c.b16 %v2761, %v2760
      %v2797 = vpack.c.b16 %v2763, %v2762
      %v2798 = vpack.c.b16 %v2765, %v2764
      %v2799 = vpack.c.b16 %v2767, %v2766
      %v2800 = vpack.c.b16 %v2769, %v2768
      %v2801 = vpack.c.b16 %v2771, %v2770
      %v2802 = vpack.c.b16 %v2773, %v2772
      %v2803 = vpack.c.b16 %v2775, %v2774
      %v2804 = vpack.c.b16 %v2777, %v2776
      %v2805 = vpack.c.b16 %v2779, %v2778
      %v2806 = vpack.c.b16 %v2781, %v2780
      %v2807 = vpack.c.b16 %v2783, %v2782
      %v2808 = vpack.c.b16 %v2785, %v2784
      %v2809 = vpack.c.b16 %v2787, %v2786
      %v2810 = vpack.c.b16 %v2789, %v2788
      %v2811 = vpack.c.b16 %v2791, %v2790
      %v2812 = vpack.c.b16 %v2793, %v2792
      %v2813 = vpack.c.b16 %v2794, %v2794
      %v2814 = vrot.slane %v2795, 2
      %v2815 = vrot.slane %v2796, 2
      %v2816 = vsel %vm2350, %v2814, %v2815
      %v2817 = vrot.slane %v2797, 2
      %v2818 = vsel %vm2350, %v2815, %v2817
      %v2819 = vrot.slane %v2798, 2
      %v2820 = vsel %vm2350, %v2817, %v2819
      %v2821 = vrot.slane %v2799, 2
      %v2822 = vsel %vm2350, %v2819, %v2821
      %v2823 = vrot.slane %v2800, 2
      %v2824 = vsel %vm2350, %v2821, %v2823
      %v2825 = vrot.slane %v2801, 2
      %v2826 = vsel %vm2350, %v2823, %v2825
      %v2827 = vrot.slane %v2802, 2
      %v2828 = vsel %vm2350, %v2825, %v2827
      %v2829 = vrot.slane %v2803, 2
      %v2830 = vsel %vm2350, %v2827, %v2829
      %v2831 = vrot.slane %v2804, 2
      %v2832 = vsel %vm2350, %v2829, %v2831
      %v2833 = vrot.slane %v2805, 2
      %v2834 = vsel %vm2350, %v2831, %v2833
      %v2835 = vrot.slane %v2806, 2
      %v2836 = vsel %vm2350, %v2833, %v2835
      %v2837 = vrot.slane %v2807, 2
      %v2838 = vsel %vm2350, %v2835, %v2837
      %v2839 = vrot.slane %v2808, 2
      %v2840 = vsel %vm2350, %v2837, %v2839
      %v2841 = vrot.slane %v2809, 2
      %v2842 = vsel %vm2350, %v2839, %v2841
      %v2843 = vrot.slane %v2810, 2
      %v2844 = vsel %vm2350, %v2841, %v2843
      %v2845 = vrot.slane %v2811, 2
      %v2846 = vsel %vm2350, %v2843, %v2845
      %v2847 = vrot.slane %v2812, 2
      %v2848 = vsel %vm2350, %v2845, %v2847
      %v2849 = vrot.slane %v2813, 2
      %v2850 = vsel %vm2350, %v2847, %v2849
      %v2885 = vunpack.c.l.b16 %v2705
      %v2886 = vunpack.c.l.b16 %v2706
      %v2887 = vunpack.c.l.b16 %v2707
      %v2888 = vunpack.c.l.b16 %v2708
      %v2889 = vunpack.c.l.b16 %v2709
      %v2890 = vunpack.c.l.b16 %v2710
      %v2891 = vunpack.c.l.b16 %v2711
      %v2892 = vunpack.c.l.b16 %v2712
      %v2893 = vunpack.c.l.b16 %v2713
      %v2894 = vunpack.c.l.b16 %v2714
      %v2895 = vunpack.c.l.b16 %v2715
      %v2896 = vunpack.c.l.b16 %v2716
      %v2897 = vunpack.c.l.b16 %v2717
      %v2898 = vunpack.c.l.b16 %v2718
      %v2899 = vunpack.c.l.b16 %v2719
      %v2900 = vunpack.c.l.b16 %v2720
      %v2901 = vpack.c.b16 %v2886, %v2885
      %v2902 = vpack.c.b16 %v2888, %v2887
      %v2903 = vpack.c.b16 %v2890, %v2889
      %v2904 = vpack.c.b16 %v2892, %v2891
      %v2905 = vpack.c.b16 %v2894, %v2893
      %v2906 = vpack.c.b16 %v2896, %v2895
      %v2907 = vpack.c.b16 %v2898, %v2897
      %v2908 = vpack.c.b16 %v2900, %v2899
      %2917 = vmatprep.subr.bf16.mxu0 0
      %2918 = vmatpush1.bf16.msra.mxu0 %v2908
      %2919 = vmatprep.subr.bf16.mxu0 0
      %2920 = vmatpush1.bf16.msra.mxu0 %v2907
      %2921 = vmatprep.subr.bf16.mxu0 0
      %2922 = vmatpush1.bf16.msra.mxu0 %v2906
      %2923 = vmatprep.subr.bf16.mxu0 0
      %2924 = vmatpush1.bf16.msra.mxu0 %v2905
      %2925 = vmatprep.subr.bf16.mxu0 0
      %2926 = vmatpush1.bf16.msra.mxu0 %v2904
      %2927 = vmatprep.subr.bf16.mxu0 0
      %2928 = vmatpush1.bf16.msra.mxu0 %v2903
      %2929 = vmatprep.subr.bf16.mxu0 0
      %2930 = vmatpush1.bf16.msra.mxu0 %v2902
      %2931 = vmatprep.subr.bf16.mxu0 0
      %2932 = vmatpush1.bf16.msra.mxu0 %v2901
      %2933 = vmatprep.subr.bf16.mxu0 0
      %2934 = vmatpush2.bf16.msra.mxu0 0
      %2935 = vmatprep.subr.bf16.mxu0 0
      %2936 = vmatpush2.bf16.msra.mxu0 0
      %2937 = vmatprep.subr.bf16.mxu0 0
      %2938 = vmatpush2.bf16.msra.mxu0 0
      %2939 = vmatprep.subr.bf16.mxu0 0
      %2940 = vmatpush2.bf16.msra.mxu0 0
      %2941 = vmatprep.subr.bf16.mxu0 0
      %2942 = vmatpush2.bf16.msra.mxu0 0
      %2943 = vmatprep.subr.bf16.mxu0 0
      %2944 = vmatpush2.bf16.msra.mxu0 0
      %2945 = vmatprep.subr.bf16.mxu0 0
      %2946 = vmatpush2.bf16.msra.mxu0 0
      %2947 = vmatprep.subr.bf16.mxu0 0
      %2948 = vmatpush2.bf16.msra.mxu0 0
      %2949 = vmatprep.mubr.bf16.mxu0 0
      %2950 = vmatmul.mubr.bf16.gmra.mxu0 %v2816
      %v2951 = vpop.f32.mrf.mxu0
      %v2952 = vadd.f32 0.0, %v2951
      %v2953 = vpop.f32.mrf.mxu0
      %v2954 = vpop.f32.mrf.mxu0
      %v2955 = vadd.f32 0.0, %v2954
      %v2956 = vpop.f32.mrf.mxu0
      %2957 = vmatprep.mubr.bf16.mxu0 0
      %2958 = vmatmul.mubr.bf16.gmra.mxu0 %v2818
      %v2959 = vpop.f32.mrf.mxu0
      %v2960 = vadd.f32 0.0, %v2959
      %v2961 = vpop.f32.mrf.mxu0
      %v2962 = vpop.f32.mrf.mxu0
      %v2963 = vadd.f32 0.0, %v2962
      %v2964 = vpop.f32.mrf.mxu0
      %2965 = vmatprep.mubr.bf16.mxu0 0
      %2966 = vmatmul.mubr.bf16.gmra.mxu0 %v2820
      %v2967 = vpop.f32.mrf.mxu0
      %v2968 = vadd.f32 0.0, %v2967
      %v2969 = vpop.f32.mrf.mxu0
      %v2970 = vpop.f32.mrf.mxu0
      %v2971 = vadd.f32 0.0, %v2970
      %v2972 = vpop.f32.mrf.mxu0
      %2973 = vmatprep.mubr.bf16.mxu0 0
      %2974 = vmatmul.mubr.bf16.gmra.mxu0 %v2822
      %v2975 = vpop.f32.mrf.mxu0
      %v2976 = vadd.f32 0.0, %v2975
      %v2977 = vpop.f32.mrf.mxu0
      %v2978 = vpop.f32.mrf.mxu0
      %v2979 = vadd.f32 0.0, %v2978
      %v2980 = vpop.f32.mrf.mxu0
      %2981 = vmatprep.mubr.bf16.mxu0 0
      %2982 = vmatmul.mubr.bf16.gmra.mxu0 %v2824
      %v2983 = vpop.f32.mrf.mxu0
      %v2984 = vadd.f32 0.0, %v2983
      %v2985 = vpop.f32.mrf.mxu0
      %v2986 = vpop.f32.mrf.mxu0
      %v2987 = vadd.f32 0.0, %v2986
      %v2988 = vpop.f32.mrf.mxu0
      %2989 = vmatprep.mubr.bf16.mxu0 0
      %2990 = vmatmul.mubr.bf16.gmra.mxu0 %v2826
      %v2991 = vpop.f32.mrf.mxu0
      %v2992 = vadd.f32 0.0, %v2991
      %v2993 = vpop.f32.mrf.mxu0
      %v2994 = vpop.f32.mrf.mxu0
      %v2995 = vadd.f32 0.0, %v2994
      %v2996 = vpop.f32.mrf.mxu0
      %2997 = vmatprep.mubr.bf16.mxu0 0
      %2998 = vmatmul.mubr.bf16.gmra.mxu0 %v2828
      %v2999 = vpop.f32.mrf.mxu0
      %v3000 = vadd.f32 0.0, %v2999
      %v3001 = vpop.f32.mrf.mxu0
      %v3002 = vpop.f32.mrf.mxu0
      %v3003 = vadd.f32 0.0, %v3002
      %v3004 = vpop.f32.mrf.mxu0
      %3005 = vmatprep.mubr.bf16.mxu0 0
      %3006 = vmatmul.mubr.bf16.gmra.mxu0 %v2830
      %v3007 = vpop.f32.mrf.mxu0
      %v3008 = vadd.f32 0.0, %v3007
      %v3009 = vpop.f32.mrf.mxu0
      %v3010 = vpop.f32.mrf.mxu0
      %v3011 = vadd.f32 0.0, %v3010
      %v3012 = vpop.f32.mrf.mxu0
      %3013 = vmatprep.mubr.bf16.mxu0 0
      %3014 = vmatmul.mubr.bf16.gmra.mxu0 %v2832
      %v3015 = vpop.f32.mrf.mxu0
      %v3016 = vadd.f32 0.0, %v3015
      %v3017 = vpop.f32.mrf.mxu0
      %v3018 = vpop.f32.mrf.mxu0
      %v3019 = vadd.f32 0.0, %v3018
      %v3020 = vpop.f32.mrf.mxu0
      %3021 = vmatprep.mubr.bf16.mxu0 0
      %3022 = vmatmul.mubr.bf16.gmra.mxu0 %v2834
      %v3023 = vpop.f32.mrf.mxu0
      %v3024 = vadd.f32 0.0, %v3023
      %v3025 = vpop.f32.mrf.mxu0
      %v3026 = vpop.f32.mrf.mxu0
      %v3027 = vadd.f32 0.0, %v3026
      %v3028 = vpop.f32.mrf.mxu0
      %3029 = vmatprep.mubr.bf16.mxu0 0
      %3030 = vmatmul.mubr.bf16.gmra.mxu0 %v2836
      %v3031 = vpop.f32.mrf.mxu0
      %v3032 = vadd.f32 0.0, %v3031
      %v3033 = vpop.f32.mrf.mxu0
      %v3034 = vpop.f32.mrf.mxu0
      %v3035 = vadd.f32 0.0, %v3034
      %v3036 = vpop.f32.mrf.mxu0
      %3037 = vmatprep.mubr.bf16.mxu0 0
      %3038 = vmatmul.mubr.bf16.gmra.mxu0 %v2838
      %v3039 = vpop.f32.mrf.mxu0
      %v3040 = vadd.f32 0.0, %v3039
      %v3041 = vpop.f32.mrf.mxu0
      %v3042 = vpop.f32.mrf.mxu0
      %v3043 = vadd.f32 0.0, %v3042
      %v3044 = vpop.f32.mrf.mxu0
      %3045 = vmatprep.mubr.bf16.mxu0 0
      %3046 = vmatmul.mubr.bf16.gmra.mxu0 %v2840
      %v3047 = vpop.f32.mrf.mxu0
      %v3048 = vadd.f32 0.0, %v3047
      %v3049 = vpop.f32.mrf.mxu0
      %v3050 = vpop.f32.mrf.mxu0
      %v3051 = vadd.f32 0.0, %v3050
      %v3052 = vpop.f32.mrf.mxu0
      %3053 = vmatprep.mubr.bf16.mxu0 0
      %3054 = vmatmul.mubr.bf16.gmra.mxu0 %v2842
      %v3055 = vpop.f32.mrf.mxu0
      %v3056 = vadd.f32 0.0, %v3055
      %v3057 = vpop.f32.mrf.mxu0
      %v3058 = vpop.f32.mrf.mxu0
      %v3059 = vadd.f32 0.0, %v3058
      %v3060 = vpop.f32.mrf.mxu0
      %3061 = vmatprep.mubr.bf16.mxu0 0
      %3062 = vmatmul.mubr.bf16.gmra.mxu0 %v2844
      %v3063 = vpop.f32.mrf.mxu0
      %v3064 = vadd.f32 0.0, %v3063
      %v3065 = vpop.f32.mrf.mxu0
      %v3066 = vpop.f32.mrf.mxu0
      %v3067 = vadd.f32 0.0, %v3066
      %v3068 = vpop.f32.mrf.mxu0
      %3069 = vmatprep.mubr.bf16.mxu0 0
      %3070 = vmatmul.mubr.bf16.gmra.mxu0 %v2846
      %v3071 = vpop.f32.mrf.mxu0
      %v3072 = vadd.f32 0.0, %v3071
      %v3073 = vpop.f32.mrf.mxu0
      %v3074 = vpop.f32.mrf.mxu0
      %v3075 = vadd.f32 0.0, %v3074
      %v3076 = vpop.f32.mrf.mxu0
      %3077 = vmatprep.mubr.bf16.mxu0 0
      %3078 = vmatmul.mubr.bf16.gmra.mxu0 %v2848
      %v3079 = vpop.f32.mrf.mxu0
      %v3080 = vadd.f32 0.0, %v3079
      %v3081 = vpop.f32.mrf.mxu0
      %v3082 = vpop.f32.mrf.mxu0
      %v3083 = vadd.f32 0.0, %v3082
      %v3084 = vpop.f32.mrf.mxu0
      %3085 = vmatprep.mubr.bf16.mxu0 0
      %3086 = vmatmul.mubr.bf16.gmra.mxu0 %v2850
      %v3087 = vpop.f32.mrf.mxu0
      %v3088 = vadd.f32 0.0, %v3087
      %v3089 = vpop.f32.mrf.mxu0
      %v3090 = vpop.f32.mrf.mxu0
      %v3091 = vadd.f32 0.0, %v3090
      %v3092 = vpop.f32.mrf.mxu0
      %3093 = vdwg.mxu0
      %v3094 = vadd.f32 %v2631, %v2952
      %v3095 = vadd.f32 %v2632, %v2955
      %v3096 = vadd.f32 %v2633, %v2960
      %v3097 = vadd.f32 %v2634, %v2963
      %v3098 = vadd.f32 %v2635, %v2968
      %v3099 = vadd.f32 %v2636, %v2971
      %v3100 = vadd.f32 %v2637, %v2976
      %v3101 = vadd.f32 %v2638, %v2979
      %v3102 = vadd.f32 %v2639, %v2984
      %v3103 = vadd.f32 %v2640, %v2987
      %v3104 = vadd.f32 %v2641, %v2992
      %v3105 = vadd.f32 %v2642, %v2995
      %v3106 = vadd.f32 %v2643, %v3000
      %v3107 = vadd.f32 %v2644, %v3003
      %v3108 = vadd.f32 %v2645, %v3008
      %v3109 = vadd.f32 %v2646, %v3011
      %v3110 = vadd.f32 %v2647, %v3016
      %v3111 = vadd.f32 %v2648, %v3019
      %v3112 = vadd.f32 %v2649, %v3024
      %v3113 = vadd.f32 %v2650, %v3027
      %v3114 = vadd.f32 %v2651, %v3032
      %v3115 = vadd.f32 %v2652, %v3035
      %v3116 = vadd.f32 %v2653, %v3040
      %v3117 = vadd.f32 %v2654, %v3043
      %v3118 = vadd.f32 %v2655, %v3048
      %v3119 = vadd.f32 %v2656, %v3051
      %v3120 = vadd.f32 %v2657, %v3056
      %v3121 = vadd.f32 %v2658, %v3059
      %v3122 = vadd.f32 %v2659, %v3064
      %v3123 = vadd.f32 %v2660, %v3067
      %v3124 = vadd.f32 %v2661, %v3072
      %v3125 = vadd.f32 %v2662, %v3075
      %v3126 = vadd.f32 %v2663, %v3080
      %v3127 = vadd.f32 %v2664, %v3083
      %v3128 = vadd.f32 %v2665, %v3088
      %v3129 = vadd.f32 %v2666, %v3091
      %v3130 = vld [vmem:[%s246 + $0xa0] sm:$0x7]
      %s3131 = scalar_lea.vmem %s2, 448
      %v3132 = vld [vmem:[%s3131] sm:$0xf]
      %v3133 = vld [vmem:[%s3131 + $0x4] sm:$0xf]
      %v3134 = vld [vmem:[%s3131 + $0x8] sm:$0xf]
      %v3135 = vld [vmem:[%s3131 + $0xc] sm:$0xf]
      %v3136 = vld [vmem:[%s3131 + $0x10] sm:$0xf]
      %v3137 = vld [vmem:[%s3131 + $0x14] sm:$0xf]
      %v3138 = vld [vmem:[%s3131 + $0x18] sm:$0xf]
      %v3139 = vld [vmem:[%s3131 + $0x1c] sm:$0xf]
      %v3140 = vld [vmem:[%s3131 + $0x20] sm:$0xf]
      %v3141 = vld [vmem:[%s3131 + $0x24] sm:$0xf]
      %v3142 = vld [vmem:[%s3131 + $0x28] sm:$0xf]
      %v3143 = vld [vmem:[%s3131 + $0x2c] sm:$0xf]
      %v3144 = vld [vmem:[%s3131 + $0x30] sm:$0xf]
      %v3145 = vld [vmem:[%s3131 + $0x34] sm:$0xf]
      %v3146 = vld [vmem:[%s3131 + $0x38] sm:$0xf]
      %v3147 = vld [vmem:[%s3131 + $0x3c] sm:$0xf]
      %v3149 = vunpack.c.l.b16 %v3130
      %v3150 = vpack.c.b16 %v3149, %v3149
      %vm3151 = vsmask.f32 5376
      %v3153 = vshrl.u32 %v2795, 16
      %v3155 = vrot.slane %v3153, 2
      %v3156 = vshll.u32 %v2795, 16
      %v3158 = vrot.slane %v3156, 3
      %v3159 = vor.u32 %v3155, %v3158
      %v3161 = vshrl.u32 %v2796, 16
      %v3163 = vrot.slane %v3161, 2
      %v3164 = vshll.u32 %v2796, 16
      %v3166 = vrot.slane %v3164, 3
      %v3167 = vor.u32 %v3163, %v3166
      %v3168 = vsel %vm3151, %v3159, %v3167
      %v3170 = vshrl.u32 %v2797, 16
      %v3172 = vrot.slane %v3170, 2
      %v3173 = vshll.u32 %v2797, 16
      %v3175 = vrot.slane %v3173, 3
      %v3176 = vor.u32 %v3172, %v3175
      %v3177 = vsel %vm3151, %v3167, %v3176
      %v3179 = vshrl.u32 %v2798, 16
      %v3181 = vrot.slane %v3179, 2
      %v3182 = vshll.u32 %v2798, 16
      %v3184 = vrot.slane %v3182, 3
      %v3185 = vor.u32 %v3181, %v3184
      %v3186 = vsel %vm3151, %v3176, %v3185
      %v3188 = vshrl.u32 %v2799, 16
      %v3190 = vrot.slane %v3188, 2
      %v3191 = vshll.u32 %v2799, 16
      %v3193 = vrot.slane %v3191, 3
      %v3194 = vor.u32 %v3190, %v3193
      %v3195 = vsel %vm3151, %v3185, %v3194
      %v3197 = vshrl.u32 %v2800, 16
      %v3199 = vrot.slane %v3197, 2
      %v3200 = vshll.u32 %v2800, 16
      %v3202 = vrot.slane %v3200, 3
      %v3203 = vor.u32 %v3199, %v3202
      %v3204 = vsel %vm3151, %v3194, %v3203
      %v3206 = vshrl.u32 %v2801, 16
      %v3208 = vrot.slane %v3206, 2
      %v3209 = vshll.u32 %v2801, 16
      %v3211 = vrot.slane %v3209, 3
      %v3212 = vor.u32 %v3208, %v3211
      %v3213 = vsel %vm3151, %v3203, %v3212
      %v3215 = vshrl.u32 %v2802, 16
      %v3217 = vrot.slane %v3215, 2
      %v3218 = vshll.u32 %v2802, 16
      %v3220 = vrot.slane %v3218, 3
      %v3221 = vor.u32 %v3217, %v3220
      %v3222 = vsel %vm3151, %v3212, %v3221
      %v3224 = vshrl.u32 %v2803, 16
      %v3226 = vrot.slane %v3224, 2
      %v3227 = vshll.u32 %v2803, 16
      %v3229 = vrot.slane %v3227, 3
      %v3230 = vor.u32 %v3226, %v3229
      %v3231 = vsel %vm3151, %v3221, %v3230
      %v3233 = vshrl.u32 %v2804, 16
      %v3235 = vrot.slane %v3233, 2
      %v3236 = vshll.u32 %v2804, 16
      %v3238 = vrot.slane %v3236, 3
      %v3239 = vor.u32 %v3235, %v3238
      %v3240 = vsel %vm3151, %v3230, %v3239
      %v3242 = vshrl.u32 %v2805, 16
      %v3244 = vrot.slane %v3242, 2
      %v3245 = vshll.u32 %v2805, 16
      %v3247 = vrot.slane %v3245, 3
      %v3248 = vor.u32 %v3244, %v3247
      %v3249 = vsel %vm3151, %v3239, %v3248
      %v3251 = vshrl.u32 %v2806, 16
      %v3253 = vrot.slane %v3251, 2
      %v3254 = vshll.u32 %v2806, 16
      %v3256 = vrot.slane %v3254, 3
      %v3257 = vor.u32 %v3253, %v3256
      %v3258 = vsel %vm3151, %v3248, %v3257
      %v3260 = vshrl.u32 %v2807, 16
      %v3262 = vrot.slane %v3260, 2
      %v3263 = vshll.u32 %v2807, 16
      %v3265 = vrot.slane %v3263, 3
      %v3266 = vor.u32 %v3262, %v3265
      %v3267 = vsel %vm3151, %v3257, %v3266
      %v3269 = vshrl.u32 %v2808, 16
      %v3271 = vrot.slane %v3269, 2
      %v3272 = vshll.u32 %v2808, 16
      %v3274 = vrot.slane %v3272, 3
      %v3275 = vor.u32 %v3271, %v3274
      %v3276 = vsel %vm3151, %v3266, %v3275
      %v3278 = vshrl.u32 %v2809, 16
      %v3280 = vrot.slane %v3278, 2
      %v3281 = vshll.u32 %v2809, 16
      %v3283 = vrot.slane %v3281, 3
      %v3284 = vor.u32 %v3280, %v3283
      %v3285 = vsel %vm3151, %v3275, %v3284
      %v3287 = vshrl.u32 %v2810, 16
      %v3289 = vrot.slane %v3287, 2
      %v3290 = vshll.u32 %v2810, 16
      %v3292 = vrot.slane %v3290, 3
      %v3293 = vor.u32 %v3289, %v3292
      %v3294 = vsel %vm3151, %v3284, %v3293
      %v3296 = vshrl.u32 %v2811, 16
      %v3298 = vrot.slane %v3296, 2
      %v3299 = vshll.u32 %v2811, 16
      %v3301 = vrot.slane %v3299, 3
      %v3302 = vor.u32 %v3298, %v3301
      %v3303 = vsel %vm3151, %v3293, %v3302
      %v3305 = vshrl.u32 %v2812, 16
      %v3307 = vrot.slane %v3305, 2
      %v3308 = vshll.u32 %v2812, 16
      %v3310 = vrot.slane %v3308, 3
      %v3311 = vor.u32 %v3307, %v3310
      %v3312 = vsel %vm3151, %v3302, %v3311
      %v3314 = vshrl.u32 %v3150, 16
      %v3316 = vrot.slane %v3314, 2
      %v3317 = vshll.u32 %v3150, 16
      %v3319 = vrot.slane %v3317, 3
      %v3320 = vor.u32 %v3316, %v3319
      %v3321 = vsel %vm3151, %v3311, %v3320
      %v3356 = vunpack.c.l.b16 %v3132
      %v3357 = vunpack.c.l.b16 %v3133
      %v3358 = vunpack.c.l.b16 %v3134
      %v3359 = vunpack.c.l.b16 %v3135
      %v3360 = vunpack.c.l.b16 %v3136
      %v3361 = vunpack.c.l.b16 %v3137
      %v3362 = vunpack.c.l.b16 %v3138
      %v3363 = vunpack.c.l.b16 %v3139
      %v3364 = vunpack.c.l.b16 %v3140
      %v3365 = vunpack.c.l.b16 %v3141
      %v3366 = vunpack.c.l.b16 %v3142
      %v3367 = vunpack.c.l.b16 %v3143
      %v3368 = vunpack.c.l.b16 %v3144
      %v3369 = vunpack.c.l.b16 %v3145
      %v3370 = vunpack.c.l.b16 %v3146
      %v3371 = vunpack.c.l.b16 %v3147
      %v3372 = vpack.c.b16 %v3357, %v3356
      %v3373 = vpack.c.b16 %v3359, %v3358
      %v3374 = vpack.c.b16 %v3361, %v3360
      %v3375 = vpack.c.b16 %v3363, %v3362
      %v3376 = vpack.c.b16 %v3365, %v3364
      %v3377 = vpack.c.b16 %v3367, %v3366
      %v3378 = vpack.c.b16 %v3369, %v3368
      %v3379 = vpack.c.b16 %v3371, %v3370
      %3388 = vmatprep.subr.bf16.mxu0 0
      %3389 = vmatpush1.bf16.msra.mxu0 %v3379
      %3390 = vmatprep.subr.bf16.mxu0 0
      %3391 = vmatpush1.bf16.msra.mxu0 %v3378
      %3392 = vmatprep.subr.bf16.mxu0 0
      %3393 = vmatpush1.bf16.msra.mxu0 %v3377
      %3394 = vmatprep.subr.bf16.mxu0 0
      %3395 = vmatpush1.bf16.msra.mxu0 %v3376
      %3396 = vmatprep.subr.bf16.mxu0 0
      %3397 = vmatpush1.bf16.msra.mxu0 %v3375
      %3398 = vmatprep.subr.bf16.mxu0 0
      %3399 = vmatpush1.bf16.msra.mxu0 %v3374
      %3400 = vmatprep.subr.bf16.mxu0 0
      %3401 = vmatpush1.bf16.msra.mxu0 %v3373
      %3402 = vmatprep.subr.bf16.mxu0 0
      %3403 = vmatpush1.bf16.msra.mxu0 %v3372
      %3404 = vmatprep.subr.bf16.mxu0 0
      %3405 = vmatpush2.bf16.msra.mxu0 0
      %3406 = vmatprep.subr.bf16.mxu0 0
      %3407 = vmatpush2.bf16.msra.mxu0 0
      %3408 = vmatprep.subr.bf16.mxu0 0
      %3409 = vmatpush2.bf16.msra.mxu0 0
      %3410 = vmatprep.subr.bf16.mxu0 0
      %3411 = vmatpush2.bf16.msra.mxu0 0
      %3412 = vmatprep.subr.bf16.mxu0 0
      %3413 = vmatpush2.bf16.msra.mxu0 0
      %3414 = vmatprep.subr.bf16.mxu0 0
      %3415 = vmatpush2.bf16.msra.mxu0 0
      %3416 = vmatprep.subr.bf16.mxu0 0
      %3417 = vmatpush2.bf16.msra.mxu0 0
      %3418 = vmatprep.subr.bf16.mxu0 0
      %3419 = vmatpush2.bf16.msra.mxu0 0
      %3420 = vmatprep.mubr.bf16.mxu0 0
      %3421 = vmatmul.mubr.bf16.gmra.mxu0 %v3168
      %v3422 = vpop.f32.mrf.mxu0
      %v3423 = vadd.f32 0.0, %v3422
      %v3424 = vpop.f32.mrf.mxu0
      %v3425 = vpop.f32.mrf.mxu0
      %v3426 = vadd.f32 0.0, %v3425
      %v3427 = vpop.f32.mrf.mxu0
      %3428 = vmatprep.mubr.bf16.mxu0 0
      %3429 = vmatmul.mubr.bf16.gmra.mxu0 %v3177
      %v3430 = vpop.f32.mrf.mxu0
      %v3431 = vadd.f32 0.0, %v3430
      %v3432 = vpop.f32.mrf.mxu0
      %v3433 = vpop.f32.mrf.mxu0
      %v3434 = vadd.f32 0.0, %v3433
      %v3435 = vpop.f32.mrf.mxu0
      %3436 = vmatprep.mubr.bf16.mxu0 0
      %3437 = vmatmul.mubr.bf16.gmra.mxu0 %v3186
      %v3438 = vpop.f32.mrf.mxu0
      %v3439 = vadd.f32 0.0, %v3438
      %v3440 = vpop.f32.mrf.mxu0
      %v3441 = vpop.f32.mrf.mxu0
      %v3442 = vadd.f32 0.0, %v3441
      %v3443 = vpop.f32.mrf.mxu0
      %3444 = vmatprep.mubr.bf16.mxu0 0
      %3445 = vmatmul.mubr.bf16.gmra.mxu0 %v3195
      %v3446 = vpop.f32.mrf.mxu0
      %v3447 = vadd.f32 0.0, %v3446
      %v3448 = vpop.f32.mrf.mxu0
      %v3449 = vpop.f32.mrf.mxu0
      %v3450 = vadd.f32 0.0, %v3449
      %v3451 = vpop.f32.mrf.mxu0
      %3452 = vmatprep.mubr.bf16.mxu0 0
      %3453 = vmatmul.mubr.bf16.gmra.mxu0 %v3204
      %v3454 = vpop.f32.mrf.mxu0
      %v3455 = vadd.f32 0.0, %v3454
      %v3456 = vpop.f32.mrf.mxu0
      %v3457 = vpop.f32.mrf.mxu0
      %v3458 = vadd.f32 0.0, %v3457
      %v3459 = vpop.f32.mrf.mxu0
      %3460 = vmatprep.mubr.bf16.mxu0 0
      %3461 = vmatmul.mubr.bf16.gmra.mxu0 %v3213
      %v3462 = vpop.f32.mrf.mxu0
      %v3463 = vadd.f32 0.0, %v3462
      %v3464 = vpop.f32.mrf.mxu0
      %v3465 = vpop.f32.mrf.mxu0
      %v3466 = vadd.f32 0.0, %v3465
      %v3467 = vpop.f32.mrf.mxu0
      %3468 = vmatprep.mubr.bf16.mxu0 0
      %3469 = vmatmul.mubr.bf16.gmra.mxu0 %v3222
      %v3470 = vpop.f32.mrf.mxu0
      %v3471 = vadd.f32 0.0, %v3470
      %v3472 = vpop.f32.mrf.mxu0
      %v3473 = vpop.f32.mrf.mxu0
      %v3474 = vadd.f32 0.0, %v3473
      %v3475 = vpop.f32.mrf.mxu0
      %3476 = vmatprep.mubr.bf16.mxu0 0
      %3477 = vmatmul.mubr.bf16.gmra.mxu0 %v3231
      %v3478 = vpop.f32.mrf.mxu0
      %v3479 = vadd.f32 0.0, %v3478
      %v3480 = vpop.f32.mrf.mxu0
      %v3481 = vpop.f32.mrf.mxu0
      %v3482 = vadd.f32 0.0, %v3481
      %v3483 = vpop.f32.mrf.mxu0
      %3484 = vmatprep.mubr.bf16.mxu0 0
      %3485 = vmatmul.mubr.bf16.gmra.mxu0 %v3240
      %v3486 = vpop.f32.mrf.mxu0
      %v3487 = vadd.f32 0.0, %v3486
      %v3488 = vpop.f32.mrf.mxu0
      %v3489 = vpop.f32.mrf.mxu0
      %v3490 = vadd.f32 0.0, %v3489
      %v3491 = vpop.f32.mrf.mxu0
      %3492 = vmatprep.mubr.bf16.mxu0 0
      %3493 = vmatmul.mubr.bf16.gmra.mxu0 %v3249
      %v3494 = vpop.f32.mrf.mxu0
      %v3495 = vadd.f32 0.0, %v3494
      %v3496 = vpop.f32.mrf.mxu0
      %v3497 = vpop.f32.mrf.mxu0
      %v3498 = vadd.f32 0.0, %v3497
      %v3499 = vpop.f32.mrf.mxu0
      %3500 = vmatprep.mubr.bf16.mxu0 0
      %3501 = vmatmul.mubr.bf16.gmra.mxu0 %v3258
      %v3502 = vpop.f32.mrf.mxu0
      %v3503 = vadd.f32 0.0, %v3502
      %v3504 = vpop.f32.mrf.mxu0
      %v3505 = vpop.f32.mrf.mxu0
      %v3506 = vadd.f32 0.0, %v3505
      %v3507 = vpop.f32.mrf.mxu0
      %3508 = vmatprep.mubr.bf16.mxu0 0
      %3509 = vmatmul.mubr.bf16.gmra.mxu0 %v3267
      %v3510 = vpop.f32.mrf.mxu0
      %v3511 = vadd.f32 0.0, %v3510
      %v3512 = vpop.f32.mrf.mxu0
      %v3513 = vpop.f32.mrf.mxu0
      %v3514 = vadd.f32 0.0, %v3513
      %v3515 = vpop.f32.mrf.mxu0
      %3516 = vmatprep.mubr.bf16.mxu0 0
      %3517 = vmatmul.mubr.bf16.gmra.mxu0 %v3276
      %v3518 = vpop.f32.mrf.mxu0
      %v3519 = vadd.f32 0.0, %v3518
      %v3520 = vpop.f32.mrf.mxu0
      %v3521 = vpop.f32.mrf.mxu0
      %v3522 = vadd.f32 0.0, %v3521
      %v3523 = vpop.f32.mrf.mxu0
      %3524 = vmatprep.mubr.bf16.mxu0 0
      %3525 = vmatmul.mubr.bf16.gmra.mxu0 %v3285
      %v3526 = vpop.f32.mrf.mxu0
      %v3527 = vadd.f32 0.0, %v3526
      %v3528 = vpop.f32.mrf.mxu0
      %v3529 = vpop.f32.mrf.mxu0
      %v3530 = vadd.f32 0.0, %v3529
      %v3531 = vpop.f32.mrf.mxu0
      %3532 = vmatprep.mubr.bf16.mxu0 0
      %3533 = vmatmul.mubr.bf16.gmra.mxu0 %v3294
      %v3534 = vpop.f32.mrf.mxu0
      %v3535 = vadd.f32 0.0, %v3534
      %v3536 = vpop.f32.mrf.mxu0
      %v3537 = vpop.f32.mrf.mxu0
      %v3538 = vadd.f32 0.0, %v3537
      %v3539 = vpop.f32.mrf.mxu0
      %3540 = vmatprep.mubr.bf16.mxu0 0
      %3541 = vmatmul.mubr.bf16.gmra.mxu0 %v3303
      %v3542 = vpop.f32.mrf.mxu0
      %v3543 = vadd.f32 0.0, %v3542
      %v3544 = vpop.f32.mrf.mxu0
      %v3545 = vpop.f32.mrf.mxu0
      %v3546 = vadd.f32 0.0, %v3545
      %v3547 = vpop.f32.mrf.mxu0
      %3548 = vmatprep.mubr.bf16.mxu0 0
      %3549 = vmatmul.mubr.bf16.gmra.mxu0 %v3312
      %v3550 = vpop.f32.mrf.mxu0
      %v3551 = vadd.f32 0.0, %v3550
      %v3552 = vpop.f32.mrf.mxu0
      %v3553 = vpop.f32.mrf.mxu0
      %v3554 = vadd.f32 0.0, %v3553
      %v3555 = vpop.f32.mrf.mxu0
      %3556 = vmatprep.mubr.bf16.mxu0 0
      %3557 = vmatmul.mubr.bf16.gmra.mxu0 %v3321
      %v3558 = vpop.f32.mrf.mxu0
      %v3559 = vadd.f32 0.0, %v3558
      %v3560 = vpop.f32.mrf.mxu0
      %v3561 = vpop.f32.mrf.mxu0
      %v3562 = vadd.f32 0.0, %v3561
      %v3563 = vpop.f32.mrf.mxu0
      %3564 = vdwg.mxu0
      %v3565 = vadd.f32 %v3094, %v3423
      %v3566 = vadd.f32 %v3095, %v3426
      %v3567 = vadd.f32 %v3096, %v3431
      %v3568 = vadd.f32 %v3097, %v3434
      %v3569 = vadd.f32 %v3098, %v3439
      %v3570 = vadd.f32 %v3099, %v3442
      %v3571 = vadd.f32 %v3100, %v3447
      %v3572 = vadd.f32 %v3101, %v3450
      %v3573 = vadd.f32 %v3102, %v3455
      %v3574 = vadd.f32 %v3103, %v3458
      %v3575 = vadd.f32 %v3104, %v3463
      %v3576 = vadd.f32 %v3105, %v3466
      %v3577 = vadd.f32 %v3106, %v3471
      %v3578 = vadd.f32 %v3107, %v3474
      %v3579 = vadd.f32 %v3108, %v3479
      %v3580 = vadd.f32 %v3109, %v3482
      %v3581 = vadd.f32 %v3110, %v3487
      %v3582 = vadd.f32 %v3111, %v3490
      %v3583 = vadd.f32 %v3112, %v3495
      %v3584 = vadd.f32 %v3113, %v3498
      %v3585 = vadd.f32 %v3114, %v3503
      %v3586 = vadd.f32 %v3115, %v3506
      %v3587 = vadd.f32 %v3116, %v3511
      %v3588 = vadd.f32 %v3117, %v3514
      %v3589 = vadd.f32 %v3118, %v3519
      %v3590 = vadd.f32 %v3119, %v3522
      %v3591 = vadd.f32 %v3120, %v3527
      %v3592 = vadd.f32 %v3121, %v3530
      %v3593 = vadd.f32 %v3122, %v3535
      %v3594 = vadd.f32 %v3123, %v3538
      %v3595 = vadd.f32 %v3124, %v3543
      %v3596 = vadd.f32 %v3125, %v3546
      %v3597 = vadd.f32 %v3126, %v3551
      %v3598 = vadd.f32 %v3127, %v3554
      %v3599 = vadd.f32 %v3128, %v3559
      %v3600 = vadd.f32 %v3129, %v3562
      %v3601 = vld [vmem:[%s246 + $0x10] sm:$0x8]
      %s3602 = scalar_lea.vmem %s2, 512
      %v3603 = vld [vmem:[%s3602] sm:$0xf]
      %v3604 = vld [vmem:[%s3602 + $0x4] sm:$0xf]
      %v3605 = vld [vmem:[%s3602 + $0x8] sm:$0xf]
      %v3606 = vld [vmem:[%s3602 + $0xc] sm:$0xf]
      %v3607 = vld [vmem:[%s3602 + $0x10] sm:$0xf]
      %v3608 = vld [vmem:[%s3602 + $0x14] sm:$0xf]
      %v3609 = vld [vmem:[%s3602 + $0x18] sm:$0xf]
      %v3610 = vld [vmem:[%s3602 + $0x1c] sm:$0xf]
      %v3611 = vld [vmem:[%s3602 + $0x20] sm:$0xf]
      %v3612 = vld [vmem:[%s3602 + $0x24] sm:$0xf]
      %v3613 = vld [vmem:[%s3602 + $0x28] sm:$0xf]
      %v3614 = vld [vmem:[%s3602 + $0x2c] sm:$0xf]
      %v3615 = vld [vmem:[%s3602 + $0x30] sm:$0xf]
      %v3616 = vld [vmem:[%s3602 + $0x34] sm:$0xf]
      %v3617 = vld [vmem:[%s3602 + $0x38] sm:$0xf]
      %v3618 = vld [vmem:[%s3602 + $0x3c] sm:$0xf]
      %v3620 = vunpack.c.l.b16 %v3601
      %v3621 = vpack.c.b16 %v2759, %v3620
      %vm3622 = vcmask 1044480
      %v3623 = vrot.slane %v3621, 3
      %v3624 = vrot.slane %v2796, 3
      %v3625 = vsel %vm3622, %v3623, %v3624
      %v3626 = vrot.slane %v2797, 3
      %v3627 = vsel %vm3622, %v3624, %v3626
      %v3628 = vrot.slane %v2798, 3
      %v3629 = vsel %vm3622, %v3626, %v3628
      %v3630 = vrot.slane %v2799, 3
      %v3631 = vsel %vm3622, %v3628, %v3630
      %v3632 = vrot.slane %v2800, 3
      %v3633 = vsel %vm3622, %v3630, %v3632
      %v3634 = vrot.slane %v2801, 3
      %v3635 = vsel %vm3622, %v3632, %v3634
      %v3636 = vrot.slane %v2802, 3
      %v3637 = vsel %vm3622, %v3634, %v3636
      %v3638 = vrot.slane %v2803, 3
      %v3639 = vsel %vm3622, %v3636, %v3638
      %v3640 = vrot.slane %v2804, 3
      %v3641 = vsel %vm3622, %v3638, %v3640
      %v3642 = vrot.slane %v2805, 3
      %v3643 = vsel %vm3622, %v3640, %v3642
      %v3644 = vrot.slane %v2806, 3
      %v3645 = vsel %vm3622, %v3642, %v3644
      %v3646 = vrot.slane %v2807, 3
      %v3647 = vsel %vm3622, %v3644, %v3646
      %v3648 = vrot.slane %v2808, 3
      %v3649 = vsel %vm3622, %v3646, %v3648
      %v3650 = vrot.slane %v2809, 3
      %v3651 = vsel %vm3622, %v3648, %v3650
      %v3652 = vrot.slane %v2810, 3
      %v3653 = vsel %vm3622, %v3650, %v3652
      %v3654 = vrot.slane %v2811, 3
      %v3655 = vsel %vm3622, %v3652, %v3654
      %v3656 = vrot.slane %v2812, 3
      %v3657 = vsel %vm3622, %v3654, %v3656
      %v3658 = vrot.slane %v3150, 3
      %v3659 = vsel %vm3622, %v3656, %v3658
      %v3694 = vunpack.c.l.b16 %v3603
      %v3695 = vunpack.c.l.b16 %v3604
      %v3696 = vunpack.c.l.b16 %v3605
      %v3697 = vunpack.c.l.b16 %v3606
      %v3698 = vunpack.c.l.b16 %v3607
      %v3699 = vunpack.c.l.b16 %v3608
      %v3700 = vunpack.c.l.b16 %v3609
      %v3701 = vunpack.c.l.b16 %v3610
      %v3702 = vunpack.c.l.b16 %v3611
      %v3703 = vunpack.c.l.b16 %v3612
      %v3704 = vunpack.c.l.b16 %v3613
      %v3705 = vunpack.c.l.b16 %v3614
      %v3706 = vunpack.c.l.b16 %v3615
      %v3707 = vunpack.c.l.b16 %v3616
      %v3708 = vunpack.c.l.b16 %v3617
      %v3709 = vunpack.c.l.b16 %v3618
      %v3710 = vpack.c.b16 %v3695, %v3694
      %v3711 = vpack.c.b16 %v3697, %v3696
      %v3712 = vpack.c.b16 %v3699, %v3698
      %v3713 = vpack.c.b16 %v3701, %v3700
      %v3714 = vpack.c.b16 %v3703, %v3702
      %v3715 = vpack.c.b16 %v3705, %v3704
      %v3716 = vpack.c.b16 %v3707, %v3706
      %v3717 = vpack.c.b16 %v3709, %v3708
      %3726 = vmatprep.subr.bf16.mxu0 0
      %3727 = vmatpush1.bf16.msra.mxu0 %v3717
      %3728 = vmatprep.subr.bf16.mxu0 0
      %3729 = vmatpush1.bf16.msra.mxu0 %v3716
      %3730 = vmatprep.subr.bf16.mxu0 0
      %3731 = vmatpush1.bf16.msra.mxu0 %v3715
      %3732 = vmatprep.subr.bf16.mxu0 0
      %3733 = vmatpush1.bf16.msra.mxu0 %v3714
      %3734 = vmatprep.subr.bf16.mxu0 0
      %3735 = vmatpush1.bf16.msra.mxu0 %v3713
      %3736 = vmatprep.subr.bf16.mxu0 0
      %3737 = vmatpush1.bf16.msra.mxu0 %v3712
      %3738 = vmatprep.subr.bf16.mxu0 0
      %3739 = vmatpush1.bf16.msra.mxu0 %v3711
      %3740 = vmatprep.subr.bf16.mxu0 0
      %3741 = vmatpush1.bf16.msra.mxu0 %v3710
      %3742 = vmatprep.subr.bf16.mxu0 0
      %3743 = vmatpush2.bf16.msra.mxu0 0
      %3744 = vmatprep.subr.bf16.mxu0 0
      %3745 = vmatpush2.bf16.msra.mxu0 0
      %3746 = vmatprep.subr.bf16.mxu0 0
      %3747 = vmatpush2.bf16.msra.mxu0 0
      %3748 = vmatprep.subr.bf16.mxu0 0
      %3749 = vmatpush2.bf16.msra.mxu0 0
      %3750 = vmatprep.subr.bf16.mxu0 0
      %3751 = vmatpush2.bf16.msra.mxu0 0
      %3752 = vmatprep.subr.bf16.mxu0 0
      %3753 = vmatpush2.bf16.msra.mxu0 0
      %3754 = vmatprep.subr.bf16.mxu0 0
      %3755 = vmatpush2.bf16.msra.mxu0 0
      %3756 = vmatprep.subr.bf16.mxu0 0
      %3757 = vmatpush2.bf16.msra.mxu0 0
      %3758 = vmatprep.mubr.bf16.mxu0 0
      %3759 = vmatmul.mubr.bf16.gmra.mxu0 %v3625
      %v3760 = vpop.f32.mrf.mxu0
      %v3761 = vadd.f32 0.0, %v3760
      %v3762 = vpop.f32.mrf.mxu0
      %v3763 = vpop.f32.mrf.mxu0
      %v3764 = vadd.f32 0.0, %v3763
      %v3765 = vpop.f32.mrf.mxu0
      %3766 = vmatprep.mubr.bf16.mxu0 0
      %3767 = vmatmul.mubr.bf16.gmra.mxu0 %v3627
      %v3768 = vpop.f32.mrf.mxu0
      %v3769 = vadd.f32 0.0, %v3768
      %v3770 = vpop.f32.mrf.mxu0
      %v3771 = vpop.f32.mrf.mxu0
      %v3772 = vadd.f32 0.0, %v3771
      %v3773 = vpop.f32.mrf.mxu0
      %3774 = vmatprep.mubr.bf16.mxu0 0
      %3775 = vmatmul.mubr.bf16.gmra.mxu0 %v3629
      %v3776 = vpop.f32.mrf.mxu0
      %v3777 = vadd.f32 0.0, %v3776
      %v3778 = vpop.f32.mrf.mxu0
      %v3779 = vpop.f32.mrf.mxu0
      %v3780 = vadd.f32 0.0, %v3779
      %v3781 = vpop.f32.mrf.mxu0
      %3782 = vmatprep.mubr.bf16.mxu0 0
      %3783 = vmatmul.mubr.bf16.gmra.mxu0 %v3631
      %v3784 = vpop.f32.mrf.mxu0
      %v3785 = vadd.f32 0.0, %v3784
      %v3786 = vpop.f32.mrf.mxu0
      %v3787 = vpop.f32.mrf.mxu0
      %v3788 = vadd.f32 0.0, %v3787
      %v3789 = vpop.f32.mrf.mxu0
      %3790 = vmatprep.mubr.bf16.mxu0 0
      %3791 = vmatmul.mubr.bf16.gmra.mxu0 %v3633
      %v3792 = vpop.f32.mrf.mxu0
      %v3793 = vadd.f32 0.0, %v3792
      %v3794 = vpop.f32.mrf.mxu0
      %v3795 = vpop.f32.mrf.mxu0
      %v3796 = vadd.f32 0.0, %v3795
      %v3797 = vpop.f32.mrf.mxu0
      %3798 = vmatprep.mubr.bf16.mxu0 0
      %3799 = vmatmul.mubr.bf16.gmra.mxu0 %v3635
      %v3800 = vpop.f32.mrf.mxu0
      %v3801 = vadd.f32 0.0, %v3800
      %v3802 = vpop.f32.mrf.mxu0
      %v3803 = vpop.f32.mrf.mxu0
      %v3804 = vadd.f32 0.0, %v3803
      %v3805 = vpop.f32.mrf.mxu0
      %3806 = vmatprep.mubr.bf16.mxu0 0
      %3807 = vmatmul.mubr.bf16.gmra.mxu0 %v3637
      %v3808 = vpop.f32.mrf.mxu0
      %v3809 = vadd.f32 0.0, %v3808
      %v3810 = vpop.f32.mrf.mxu0
      %v3811 = vpop.f32.mrf.mxu0
      %v3812 = vadd.f32 0.0, %v3811
      %v3813 = vpop.f32.mrf.mxu0
      %3814 = vmatprep.mubr.bf16.mxu0 0
      %3815 = vmatmul.mubr.bf16.gmra.mxu0 %v3639
      %v3816 = vpop.f32.mrf.mxu0
      %v3817 = vadd.f32 0.0, %v3816
      %v3818 = vpop.f32.mrf.mxu0
      %v3819 = vpop.f32.mrf.mxu0
      %v3820 = vadd.f32 0.0, %v3819
      %v3821 = vpop.f32.mrf.mxu0
      %3822 = vmatprep.mubr.bf16.mxu0 0
      %3823 = vmatmul.mubr.bf16.gmra.mxu0 %v3641
      %v3824 = vpop.f32.mrf.mxu0
      %v3825 = vadd.f32 0.0, %v3824
      %v3826 = vpop.f32.mrf.mxu0
      %v3827 = vpop.f32.mrf.mxu0
      %v3828 = vadd.f32 0.0, %v3827
      %v3829 = vpop.f32.mrf.mxu0
      %3830 = vmatprep.mubr.bf16.mxu0 0
      %3831 = vmatmul.mubr.bf16.gmra.mxu0 %v3643
      %v3832 = vpop.f32.mrf.mxu0
      %v3833 = vadd.f32 0.0, %v3832
      %v3834 = vpop.f32.mrf.mxu0
      %v3835 = vpop.f32.mrf.mxu0
      %v3836 = vadd.f32 0.0, %v3835
      %v3837 = vpop.f32.mrf.mxu0
      %3838 = vmatprep.mubr.bf16.mxu0 0
      %3839 = vmatmul.mubr.bf16.gmra.mxu0 %v3645
      %v3840 = vpop.f32.mrf.mxu0
      %v3841 = vadd.f32 0.0, %v3840
      %v3842 = vpop.f32.mrf.mxu0
      %v3843 = vpop.f32.mrf.mxu0
      %v3844 = vadd.f32 0.0, %v3843
      %v3845 = vpop.f32.mrf.mxu0
      %3846 = vmatprep.mubr.bf16.mxu0 0
      %3847 = vmatmul.mubr.bf16.gmra.mxu0 %v3647
      %v3848 = vpop.f32.mrf.mxu0
      %v3849 = vadd.f32 0.0, %v3848
      %v3850 = vpop.f32.mrf.mxu0
      %v3851 = vpop.f32.mrf.mxu0
      %v3852 = vadd.f32 0.0, %v3851
      %v3853 = vpop.f32.mrf.mxu0
      %3854 = vmatprep.mubr.bf16.mxu0 0
      %3855 = vmatmul.mubr.bf16.gmra.mxu0 %v3649
      %v3856 = vpop.f32.mrf.mxu0
      %v3857 = vadd.f32 0.0, %v3856
      %v3858 = vpop.f32.mrf.mxu0
      %v3859 = vpop.f32.mrf.mxu0
      %v3860 = vadd.f32 0.0, %v3859
      %v3861 = vpop.f32.mrf.mxu0
      %3862 = vmatprep.mubr.bf16.mxu0 0
      %3863 = vmatmul.mubr.bf16.gmra.mxu0 %v3651
      %v3864 = vpop.f32.mrf.mxu0
      %v3865 = vadd.f32 0.0, %v3864
      %v3866 = vpop.f32.mrf.mxu0
      %v3867 = vpop.f32.mrf.mxu0
      %v3868 = vadd.f32 0.0, %v3867
      %v3869 = vpop.f32.mrf.mxu0
      %3870 = vmatprep.mubr.bf16.mxu0 0
      %3871 = vmatmul.mubr.bf16.gmra.mxu0 %v3653
      %v3872 = vpop.f32.mrf.mxu0
      %v3873 = vadd.f32 0.0, %v3872
      %v3874 = vpop.f32.mrf.mxu0
      %v3875 = vpop.f32.mrf.mxu0
      %v3876 = vadd.f32 0.0, %v3875
      %v3877 = vpop.f32.mrf.mxu0
      %3878 = vmatprep.mubr.bf16.mxu0 0
      %3879 = vmatmul.mubr.bf16.gmra.mxu0 %v3655
      %v3880 = vpop.f32.mrf.mxu0
      %v3881 = vadd.f32 0.0, %v3880
      %v3882 = vpop.f32.mrf.mxu0
      %v3883 = vpop.f32.mrf.mxu0
      %v3884 = vadd.f32 0.0, %v3883
      %v3885 = vpop.f32.mrf.mxu0
      %3886 = vmatprep.mubr.bf16.mxu0 0
      %3887 = vmatmul.mubr.bf16.gmra.mxu0 %v3657
      %v3888 = vpop.f32.mrf.mxu0
      %v3889 = vadd.f32 0.0, %v3888
      %v3890 = vpop.f32.mrf.mxu0
      %v3891 = vpop.f32.mrf.mxu0
      %v3892 = vadd.f32 0.0, %v3891
      %v3893 = vpop.f32.mrf.mxu0
      %3894 = vmatprep.mubr.bf16.mxu0 0
      %3895 = vmatmul.mubr.bf16.gmra.mxu0 %v3659
      %v3896 = vpop.f32.mrf.mxu0
      %v3897 = vadd.f32 0.0, %v3896
      %v3898 = vpop.f32.mrf.mxu0
      %v3899 = vpop.f32.mrf.mxu0
      %v3900 = vadd.f32 0.0, %v3899
      %v3901 = vpop.f32.mrf.mxu0
      %3902 = vdwg.mxu0
      %v3903 = vadd.f32 %v3565, %v3761
      %v3904 = vadd.f32 %v3566, %v3764
      %v3905 = vadd.f32 %v3567, %v3769
      %v3906 = vadd.f32 %v3568, %v3772
      %v3907 = vadd.f32 %v3569, %v3777
      %v3908 = vadd.f32 %v3570, %v3780
      %v3909 = vadd.f32 %v3571, %v3785
      %v3910 = vadd.f32 %v3572, %v3788
      %v3911 = vadd.f32 %v3573, %v3793
      %v3912 = vadd.f32 %v3574, %v3796
      %v3913 = vadd.f32 %v3575, %v3801
      %v3914 = vadd.f32 %v3576, %v3804
      %v3915 = vadd.f32 %v3577, %v3809
      %v3916 = vadd.f32 %v3578, %v3812
      %v3917 = vadd.f32 %v3579, %v3817
      %v3918 = vadd.f32 %v3580, %v3820
      %v3919 = vadd.f32 %v3581, %v3825
      %v3920 = vadd.f32 %v3582, %v3828
      %v3921 = vadd.f32 %v3583, %v3833
      %v3922 = vadd.f32 %v3584, %v3836
      %v3923 = vadd.f32 %v3585, %v3841
      %v3924 = vadd.f32 %v3586, %v3844
      %v3925 = vadd.f32 %v3587, %v3849
      %v3926 = vadd.f32 %v3588, %v3852
      %v3927 = vadd.f32 %v3589, %v3857
      %v3928 = vadd.f32 %v3590, %v3860
      %v3929 = vadd.f32 %v3591, %v3865
      %v3930 = vadd.f32 %v3592, %v3868
      %v3931 = vadd.f32 %v3593, %v3873
      %v3932 = vadd.f32 %v3594, %v3876
      %v3933 = vadd.f32 %v3595, %v3881
      %v3934 = vadd.f32 %v3596, %v3884
      %v3935 = vadd.f32 %v3597, %v3889
      %v3936 = vadd.f32 %v3598, %v3892
      %v3937 = vadd.f32 %v3599, %v3897
      %v3938 = vadd.f32 %v3600, %v3900
      %v3939 = vld [vmem:[%s3] sm:$0x1]
      %v3941 = vlaneseq
      %v3942 = vshrl.u32 %v3941, 7
      %v3943 = vsub.s32 0, %v3942
      %v3944 = vrot.slane %v3939, %v3943
      %v3946 = vadd.f32 %v3903, %v3944
      %v3947 = vadd.f32 %v3904, %v3944
      %v3948 = vadd.f32 %v3905, %v3944
      %v3949 = vadd.f32 %v3906, %v3944
      %v3950 = vadd.f32 %v3907, %v3944
      %v3951 = vadd.f32 %v3908, %v3944
      %v3952 = vadd.f32 %v3909, %v3944
      %v3953 = vadd.f32 %v3910, %v3944
      %v3954 = vadd.f32 %v3911, %v3944
      %v3955 = vadd.f32 %v3912, %v3944
      %v3956 = vadd.f32 %v3913, %v3944
      %v3957 = vadd.f32 %v3914, %v3944
      %v3958 = vadd.f32 %v3915, %v3944
      %v3959 = vadd.f32 %v3916, %v3944
      %v3960 = vadd.f32 %v3917, %v3944
      %v3961 = vadd.f32 %v3918, %v3944
      %v3962 = vadd.f32 %v3919, %v3944
      %v3963 = vadd.f32 %v3920, %v3944
      %v3964 = vadd.f32 %v3921, %v3944
      %v3965 = vadd.f32 %v3922, %v3944
      %v3966 = vadd.f32 %v3923, %v3944
      %v3967 = vadd.f32 %v3924, %v3944
      %v3968 = vadd.f32 %v3925, %v3944
      %v3969 = vadd.f32 %v3926, %v3944
      %v3970 = vadd.f32 %v3927, %v3944
      %v3971 = vadd.f32 %v3928, %v3944
      %v3972 = vadd.f32 %v3929, %v3944
      %v3973 = vadd.f32 %v3930, %v3944
      %v3974 = vadd.f32 %v3931, %v3944
      %v3975 = vadd.f32 %v3932, %v3944
      %v3976 = vadd.f32 %v3933, %v3944
      %v3977 = vadd.f32 %v3934, %v3944
      %v3978 = vadd.f32 %v3935, %v3944
      %v3979 = vadd.f32 %v3936, %v3944
      %v3980 = vadd.f32 %v3937, %v3944
      %v3981 = vadd.f32 %v3938, %v3944
      %v3982 = vmax.f32 %v3946, 0.0
      %v3983 = vmax.f32 %v3947, 0.0
      %v3984 = vmax.f32 %v3948, 0.0
      %v3985 = vmax.f32 %v3949, 0.0
      %v3986 = vmax.f32 %v3950, 0.0
      %v3987 = vmax.f32 %v3951, 0.0
      %v3988 = vmax.f32 %v3952, 0.0
      %v3989 = vmax.f32 %v3953, 0.0
      %v3990 = vmax.f32 %v3954, 0.0
      %v3991 = vmax.f32 %v3955, 0.0
      %v3992 = vmax.f32 %v3956, 0.0
      %v3993 = vmax.f32 %v3957, 0.0
      %v3994 = vmax.f32 %v3958, 0.0
      %v3995 = vmax.f32 %v3959, 0.0
      %v3996 = vmax.f32 %v3960, 0.0
      %v3997 = vmax.f32 %v3961, 0.0
      %v3998 = vmax.f32 %v3962, 0.0
      %v3999 = vmax.f32 %v3963, 0.0
      %v4000 = vmax.f32 %v3964, 0.0
      %v4001 = vmax.f32 %v3965, 0.0
      %v4002 = vmax.f32 %v3966, 0.0
      %v4003 = vmax.f32 %v3967, 0.0
      %v4004 = vmax.f32 %v3968, 0.0
      %v4005 = vmax.f32 %v3969, 0.0
      %v4006 = vmax.f32 %v3970, 0.0
      %v4007 = vmax.f32 %v3971, 0.0
      %v4008 = vmax.f32 %v3972, 0.0
      %v4009 = vmax.f32 %v3973, 0.0
      %v4010 = vmax.f32 %v3974, 0.0
      %v4011 = vmax.f32 %v3975, 0.0
      %v4012 = vmax.f32 %v3976, 0.0
      %v4013 = vmax.f32 %v3977, 0.0
      %v4014 = vmax.f32 %v3978, 0.0
      %v4015 = vmax.f32 %v3979, 0.0
      %v4016 = vmax.f32 %v3980, 0.0
      %v4017 = vmax.f32 %v3981, 0.0
      %v4018 = vpack.c.bf16 %v3983, %v3982
      %v4019 = vpack.c.bf16 %v3985, %v3984
      %v4020 = vpack.c.bf16 %v3987, %v3986
      %v4021 = vpack.c.bf16 %v3989, %v3988
      %v4022 = vpack.c.bf16 %v3991, %v3990
      %v4023 = vpack.c.bf16 %v3993, %v3992
      %v4024 = vpack.c.bf16 %v3995, %v3994
      %v4025 = vpack.c.bf16 %v3997, %v3996
      %v4026 = vpack.c.bf16 %v3999, %v3998
      %v4027 = vpack.c.bf16 %v4001, %v4000
      %v4028 = vpack.c.bf16 %v4003, %v4002
      %v4029 = vpack.c.bf16 %v4005, %v4004
      %v4030 = vpack.c.bf16 %v4007, %v4006
      %v4031 = vpack.c.bf16 %v4009, %v4008
      %v4032 = vpack.c.bf16 %v4011, %v4010
      %v4033 = vpack.c.bf16 %v4013, %v4012
      %v4034 = vpack.c.bf16 %v4015, %v4014
      %v4035 = vpack.c.bf16 %v4017, %v4016
      %v4036 = vld [vmem:[%s1] sm:$0xf]
      %v4037 = vld [vmem:[%s1 + $0x4] sm:$0xf]
      %v4038 = vld [vmem:[%s1 + $0x8] sm:$0xf]
      %v4039 = vld [vmem:[%s1 + $0xc] sm:$0xf]
      %v4040 = vld [vmem:[%s1 + $0x10] sm:$0xf]
      %v4041 = vld [vmem:[%s1 + $0x14] sm:$0xf]
      %v4042 = vld [vmem:[%s1 + $0x18] sm:$0xf]
      %v4043 = vld [vmem:[%s1 + $0x1c] sm:$0xf]
      %v4044 = vld [vmem:[%s1 + $0x20] sm:$0xf]
      %v4045 = vld [vmem:[%s1 + $0x24] sm:$0xf]
      %v4046 = vld [vmem:[%s1 + $0x28] sm:$0xf]
      %v4047 = vld [vmem:[%s1 + $0x2c] sm:$0xf]
      %v4048 = vld [vmem:[%s1 + $0x30] sm:$0xf]
      %v4049 = vld [vmem:[%s1 + $0x34] sm:$0xf]
      %v4050 = vld [vmem:[%s1 + $0x38] sm:$0xf]
      %v4051 = vld [vmem:[%s1 + $0x3c] sm:$0xf]
      %v4052 = vld [vmem:[%s1 + $0x40] sm:$0xf]
      %v4053 = vld [vmem:[%s1 + $0x44] sm:$0xf]
      %v4054 = vld [vmem:[%s1 + $0x48] sm:$0xf]
      %v4055 = vld [vmem:[%s1 + $0x4c] sm:$0xf]
      %v4056 = vld [vmem:[%s1 + $0x50] sm:$0xf]
      %v4057 = vld [vmem:[%s1 + $0x54] sm:$0xf]
      %v4058 = vld [vmem:[%s1 + $0x58] sm:$0xf]
      %v4059 = vld [vmem:[%s1 + $0x5c] sm:$0xf]
      %v4060 = vld [vmem:[%s1 + $0x60] sm:$0xf]
      %v4061 = vld [vmem:[%s1 + $0x64] sm:$0xf]
      %v4062 = vld [vmem:[%s1 + $0x68] sm:$0xf]
      %v4063 = vld [vmem:[%s1 + $0x6c] sm:$0xf]
      %v4064 = vld [vmem:[%s1 + $0x70] sm:$0xf]
      %v4065 = vld [vmem:[%s1 + $0x74] sm:$0xf]
      %v4066 = vld [vmem:[%s1 + $0x78] sm:$0xf]
      %v4067 = vld [vmem:[%s1 + $0x7c] sm:$0xf]
      %v4068 = vld [vmem:[%s1 + $0x80] sm:$0xf]
      %v4069 = vld [vmem:[%s1 + $0x84] sm:$0xf]
      %v4070 = vld [vmem:[%s1 + $0x88] sm:$0xf]
      %v4071 = vld [vmem:[%s1 + $0x8c] sm:$0xf]
      %v4108 = vunpack.c.l.b16 %v4036
      %v4109 = vunpack.c.l.b16 %v4037
      %v4110 = vunpack.c.l.b16 %v4038
      %v4111 = vunpack.c.l.b16 %v4039
      %v4112 = vunpack.c.l.b16 %v4040
      %v4113 = vunpack.c.l.b16 %v4041
      %v4114 = vunpack.c.l.b16 %v4042
      %v4115 = vunpack.c.l.b16 %v4043
      %v4116 = vunpack.c.l.b16 %v4044
      %v4117 = vunpack.c.l.b16 %v4045
      %v4118 = vunpack.c.l.b16 %v4046
      %v4119 = vunpack.c.l.b16 %v4047
      %v4120 = vunpack.c.l.b16 %v4048
      %v4121 = vunpack.c.l.b16 %v4049
      %v4122 = vunpack.c.l.b16 %v4050
      %v4123 = vunpack.c.l.b16 %v4051
      %v4124 = vunpack.c.l.b16 %v4052
      %v4125 = vunpack.c.l.b16 %v4053
      %v4126 = vunpack.c.l.b16 %v4054
      %v4127 = vunpack.c.l.b16 %v4055
      %v4128 = vunpack.c.l.b16 %v4056
      %v4129 = vunpack.c.l.b16 %v4057
      %v4130 = vunpack.c.l.b16 %v4058
      %v4131 = vunpack.c.l.b16 %v4059
      %v4132 = vunpack.c.l.b16 %v4060
      %v4133 = vunpack.c.l.b16 %v4061
      %v4134 = vunpack.c.l.b16 %v4062
      %v4135 = vunpack.c.l.b16 %v4063
      %v4136 = vunpack.c.l.b16 %v4064
      %v4137 = vunpack.c.l.b16 %v4065
      %v4138 = vunpack.c.l.b16 %v4066
      %v4139 = vunpack.c.l.b16 %v4067
      %v4140 = vunpack.c.l.b16 %v4068
      %v4141 = vunpack.c.l.b16 %v4069
      %v4142 = vunpack.c.l.b16 %v4070
      %v4143 = vunpack.c.l.b16 %v4071
      %v4144 = vpack.c.b16 %v4109, %v4108
      %v4145 = vpack.c.b16 %v4111, %v4110
      %v4146 = vpack.c.b16 %v4113, %v4112
      %v4147 = vpack.c.b16 %v4115, %v4114
      %v4148 = vpack.c.b16 %v4117, %v4116
      %v4149 = vpack.c.b16 %v4119, %v4118
      %v4150 = vpack.c.b16 %v4121, %v4120
      %v4151 = vpack.c.b16 %v4123, %v4122
      %v4152 = vpack.c.b16 %v4125, %v4124
      %v4153 = vpack.c.b16 %v4127, %v4126
      %v4154 = vpack.c.b16 %v4129, %v4128
      %v4155 = vpack.c.b16 %v4131, %v4130
      %v4156 = vpack.c.b16 %v4133, %v4132
      %v4157 = vpack.c.b16 %v4135, %v4134
      %v4158 = vpack.c.b16 %v4137, %v4136
      %v4159 = vpack.c.b16 %v4139, %v4138
      %v4160 = vpack.c.b16 %v4141, %v4140
      %v4161 = vpack.c.b16 %v4143, %v4142
      %v4180 = vmul.bf16 %v4018, %v4144
      %v4181 = vmul.bf16 %v4019, %v4145
      %v4182 = vmul.bf16 %v4020, %v4146
      %v4183 = vmul.bf16 %v4021, %v4147
      %v4184 = vmul.bf16 %v4022, %v4148
      %v4185 = vmul.bf16 %v4023, %v4149
      %v4186 = vmul.bf16 %v4024, %v4150
      %v4187 = vmul.bf16 %v4025, %v4151
      %v4188 = vmul.bf16 %v4026, %v4152
      %v4189 = vmul.bf16 %v4027, %v4153
      %v4190 = vmul.bf16 %v4028, %v4154
      %v4191 = vmul.bf16 %v4029, %v4155
      %v4192 = vmul.bf16 %v4030, %v4156
      %v4193 = vmul.bf16 %v4031, %v4157
      %v4194 = vmul.bf16 %v4032, %v4158
      %v4195 = vmul.bf16 %v4033, %v4159
      %v4196 = vmul.bf16 %v4034, %v4160
      %v4197 = vmul.bf16 %v4035, %v4161
      %v4216 = vunpack.c.l.b16 %v4180
      %v4217 = vunpack.c.h.b16 %v4180
      %v4218 = vunpack.c.l.b16 %v4181
      %v4219 = vunpack.c.h.b16 %v4181
      %v4220 = vunpack.c.l.b16 %v4182
      %v4221 = vunpack.c.h.b16 %v4182
      %v4222 = vunpack.c.l.b16 %v4183
      %v4223 = vunpack.c.h.b16 %v4183
      %v4224 = vunpack.c.l.b16 %v4184
      %v4225 = vunpack.c.h.b16 %v4184
      %v4226 = vunpack.c.l.b16 %v4185
      %v4227 = vunpack.c.h.b16 %v4185
      %v4228 = vunpack.c.l.b16 %v4186
      %v4229 = vunpack.c.h.b16 %v4186
      %v4230 = vunpack.c.l.b16 %v4187
      %v4231 = vunpack.c.h.b16 %v4187
      %v4232 = vunpack.c.l.b16 %v4188
      %v4233 = vunpack.c.h.b16 %v4188
      %v4234 = vunpack.c.l.b16 %v4189
      %v4235 = vunpack.c.h.b16 %v4189
      %v4236 = vunpack.c.l.b16 %v4190
      %v4237 = vunpack.c.h.b16 %v4190
      %v4238 = vunpack.c.l.b16 %v4191
      %v4239 = vunpack.c.h.b16 %v4191
      %v4240 = vunpack.c.l.b16 %v4192
      %v4241 = vunpack.c.h.b16 %v4192
      %v4242 = vunpack.c.l.b16 %v4193
      %v4243 = vunpack.c.h.b16 %v4193
      %v4244 = vunpack.c.l.b16 %v4194
      %v4245 = vunpack.c.h.b16 %v4194
      %v4246 = vunpack.c.l.b16 %v4195
      %v4247 = vunpack.c.h.b16 %v4195
      %v4248 = vunpack.c.l.b16 %v4196
      %v4249 = vunpack.c.h.b16 %v4196
      %v4250 = vunpack.c.l.b16 %v4197
      %v4251 = vunpack.c.h.b16 %v4197
      %v4252 = vpack.c.b16 %v4216, %v4216
      %v4253 = vpack.c.b16 %v4217, %v4217
      %v4254 = vpack.c.b16 %v4218, %v4218
      %v4255 = vpack.c.b16 %v4219, %v4219
      %v4256 = vpack.c.b16 %v4220, %v4220
      %v4257 = vpack.c.b16 %v4221, %v4221
      %v4258 = vpack.c.b16 %v4222, %v4222
      %v4259 = vpack.c.b16 %v4223, %v4223
      %v4260 = vpack.c.b16 %v4224, %v4224
      %v4261 = vpack.c.b16 %v4225, %v4225
      %v4262 = vpack.c.b16 %v4226, %v4226
      %v4263 = vpack.c.b16 %v4227, %v4227
      %v4264 = vpack.c.b16 %v4228, %v4228
      %v4265 = vpack.c.b16 %v4229, %v4229
      %v4266 = vpack.c.b16 %v4230, %v4230
      %v4267 = vpack.c.b16 %v4231, %v4231
      %v4268 = vpack.c.b16 %v4232, %v4232
      %v4269 = vpack.c.b16 %v4233, %v4233
      %v4270 = vpack.c.b16 %v4234, %v4234
      %v4271 = vpack.c.b16 %v4235, %v4235
      %v4272 = vpack.c.b16 %v4236, %v4236
      %v4273 = vpack.c.b16 %v4237, %v4237
      %v4274 = vpack.c.b16 %v4238, %v4238
      %v4275 = vpack.c.b16 %v4239, %v4239
      %v4276 = vpack.c.b16 %v4240, %v4240
      %v4277 = vpack.c.b16 %v4241, %v4241
      %v4278 = vpack.c.b16 %v4242, %v4242
      %v4279 = vpack.c.b16 %v4243, %v4243
      %v4280 = vpack.c.b16 %v4244, %v4244
      %v4281 = vpack.c.b16 %v4245, %v4245
      %v4282 = vpack.c.b16 %v4246, %v4246
      %v4283 = vpack.c.b16 %v4247, %v4247
      %v4284 = vpack.c.b16 %v4248, %v4248
      %v4285 = vpack.c.b16 %v4249, %v4249
      %v4286 = vpack.c.b16 %v4250, %v4250
      %v4287 = vpack.c.b16 %v4251, %v4251
      %4324 = vst [vmem:[#allocation2 + $0xc] sm:$0xf] %v4252
      %4325 = vst [vmem:[#allocation2 + $0x10] sm:$0xf] %v4253
      %4326 = vst [vmem:[#allocation2 + $0x14] sm:$0xf] %v4254
      %4327 = vst [vmem:[#allocation2 + $0x18] sm:$0xf] %v4255
      %4328 = vst [vmem:[#allocation2 + $0x1c] sm:$0xf] %v4256
      %4329 = vst [vmem:[#allocation2 + $0x20] sm:$0xf] %v4257
      %4330 = vst [vmem:[#allocation2 + $0x24] sm:$0xf] %v4258
      %4331 = vst [vmem:[#allocation2 + $0x28] sm:$0xf] %v4259
      %4332 = vst [vmem:[#allocation2 + $0x2c] sm:$0xf] %v4260
      %4333 = vst [vmem:[#allocation2 + $0x30] sm:$0xf] %v4261
      %4334 = vst [vmem:[#allocation2 + $0x34] sm:$0xf] %v4262
      %4335 = vst [vmem:[#allocation2 + $0x38] sm:$0xf] %v4263
      %4336 = vst [vmem:[#allocation2 + $0x3c] sm:$0xf] %v4264
      %4337 = vst [vmem:[#allocation2 + $0x40] sm:$0xf] %v4265
      %4338 = vst [vmem:[#allocation2 + $0x44] sm:$0xf] %v4266
      %4339 = vst [vmem:[#allocation2 + $0x48] sm:$0xf] %v4267
      %4340 = vst [vmem:[#allocation2 + $0x4c] sm:$0xf] %v4268
      %4341 = vst [vmem:[#allocation2 + $0x50] sm:$0xf] %v4269
      %4342 = vst [vmem:[#allocation2 + $0x54] sm:$0xf] %v4270
      %4343 = vst [vmem:[#allocation2 + $0x58] sm:$0xf] %v4271
      %4344 = vst [vmem:[#allocation2 + $0x5c] sm:$0xf] %v4272
      %4345 = vst [vmem:[#allocation2 + $0x60] sm:$0xf] %v4273
      %4346 = vst [vmem:[#allocation2 + $0x64] sm:$0xf] %v4274
      %4347 = vst [vmem:[#allocation2 + $0x68] sm:$0xf] %v4275
      %4348 = vst [vmem:[#allocation2 + $0x6c] sm:$0xf] %v4276
      %4349 = vst [vmem:[#allocation2 + $0x70] sm:$0xf] %v4277
      %4350 = vst [vmem:[#allocation2 + $0x74] sm:$0xf] %v4278
      %4351 = vst [vmem:[#allocation2 + $0x78] sm:$0xf] %v4279
      %4352 = vst [vmem:[#allocation2 + $0x7c] sm:$0xf] %v4280
      %4353 = vst [vmem:[#allocation2 + $0x80] sm:$0xf] %v4281
      %4354 = vst [vmem:[#allocation2 + $0x84] sm:$0xf] %v4282
      %4355 = vst [vmem:[#allocation2 + $0x88] sm:$0xf] %v4283
      %4356 = vst [vmem:[#allocation2 + $0x8c] sm:$0xf] %v4284
      %4357 = vst [vmem:[#allocation2 + $0x90] sm:$0xf] %v4285
      %4358 = vst [vmem:[#allocation2 + $0x94] sm:$0xf] %v4286
      %4359 = vst [vmem:[#allocation2 + $0x98] sm:$0xf] %v4287
      %v4360 = vld [vmem:[#allocation2] sm:$0xc]
      %v4361 = vld [vmem:[#allocation2 + $0x4] sm:$0xf]
      %v4362 = vld [vmem:[#allocation2 + $0x8] sm:$0xf]
      %v4363 = vld [vmem:[#allocation2 + $0xc] sm:$0xf]
      %v4364 = vld [vmem:[#allocation2 + $0x10] sm:$0xf]
      %v4365 = vld [vmem:[#allocation2 + $0x14] sm:$0xf]
      %v4366 = vld [vmem:[#allocation2 + $0x18] sm:$0xf]
      %v4367 = vld [vmem:[#allocation2 + $0x1c] sm:$0xf]
      %v4368 = vld [vmem:[#allocation2 + $0x20] sm:$0xf]
      %v4369 = vld [vmem:[#allocation2 + $0x24] sm:$0xf]
      %v4370 = vld [vmem:[#allocation2 + $0x28] sm:$0xf]
      %v4371 = vld [vmem:[#allocation2 + $0x2c] sm:$0xf]
      %v4372 = vld [vmem:[#allocation2 + $0x30] sm:$0xf]
      %v4373 = vld [vmem:[#allocation2 + $0x34] sm:$0xf]
      %v4374 = vld [vmem:[#allocation2 + $0x38] sm:$0xf]
      %v4375 = vld [vmem:[#allocation2 + $0x3c] sm:$0xf]
      %v4376 = vld [vmem:[#allocation2 + $0x40] sm:$0xf]
      %v4377 = vld [vmem:[#allocation2 + $0x44] sm:$0xf]
      %v4378 = vld [vmem:[#allocation2 + $0x48] sm:$0xf]
      %v4379 = vld [vmem:[#allocation2 + $0x4c] sm:$0xf]
      %v4380 = vld [vmem:[#allocation2 + $0x50] sm:$0xf]
      %v4381 = vld [vmem:[#allocation2 + $0x54] sm:$0xf]
      %v4382 = vld [vmem:[#allocation2 + $0x58] sm:$0xf]
      %v4383 = vld [vmem:[#allocation2 + $0x5c] sm:$0xf]
      %v4384 = vld [vmem:[#allocation2 + $0x60] sm:$0xf]
      %v4385 = vld [vmem:[#allocation2 + $0x64] sm:$0xf]
      %v4386 = vld [vmem:[#allocation2 + $0x68] sm:$0xf]
      %v4387 = vld [vmem:[#allocation2 + $0x6c] sm:$0xf]
      %v4388 = vld [vmem:[#allocation2 + $0x70] sm:$0xf]
      %v4389 = vld [vmem:[#allocation2 + $0x74] sm:$0xf]
      %v4390 = vld [vmem:[#allocation2 + $0x78] sm:$0xf]
      %v4391 = vld [vmem:[#allocation2 + $0x7c] sm:$0xf]
      %v4392 = vld [vmem:[#allocation2 + $0x80] sm:$0xf]
      %v4393 = vld [vmem:[#allocation2 + $0x84] sm:$0xf]
      %v4394 = vld [vmem:[#allocation2 + $0x88] sm:$0xf]
      %v4395 = vld [vmem:[#allocation2 + $0x8c] sm:$0xf]
      %v4396 = vld [vmem:[#allocation2 + $0x90] sm:$0x7]
      %v4397 = vld [vmem:[%s4] sm:$0xf]
      %v4398 = vld [vmem:[%s4 + $0x4] sm:$0xf]
      %v4399 = vld [vmem:[%s4 + $0x8] sm:$0xf]
      %v4400 = vld [vmem:[%s4 + $0xc] sm:$0xf]
      %v4401 = vld [vmem:[%s4 + $0x10] sm:$0xf]
      %v4402 = vld [vmem:[%s4 + $0x14] sm:$0xf]
      %v4403 = vld [vmem:[%s4 + $0x18] sm:$0xf]
      %v4404 = vld [vmem:[%s4 + $0x1c] sm:$0xf]
      %v4405 = vld [vmem:[%s4 + $0x20] sm:$0xf]
      %v4406 = vld [vmem:[%s4 + $0x24] sm:$0xf]
      %v4407 = vld [vmem:[%s4 + $0x28] sm:$0xf]
      %v4408 = vld [vmem:[%s4 + $0x2c] sm:$0xf]
      %v4409 = vld [vmem:[%s4 + $0x30] sm:$0xf]
      %v4410 = vld [vmem:[%s4 + $0x34] sm:$0xf]
      %v4411 = vld [vmem:[%s4 + $0x38] sm:$0xf]
      %v4412 = vld [vmem:[%s4 + $0x3c] sm:$0xf]
      %v4413 = vld [vmem:[#allocation2] sm:$0x8]
      %s4414 = scalar_lea.vmem %s4, 64
      %v4415 = vld [vmem:[%s4414] sm:$0xf]
      %v4416 = vld [vmem:[%s4414 + $0x4] sm:$0xf]
      %v4417 = vld [vmem:[%s4414 + $0x8] sm:$0xf]
      %v4418 = vld [vmem:[%s4414 + $0xc] sm:$0xf]
      %v4419 = vld [vmem:[%s4414 + $0x10] sm:$0xf]
      %v4420 = vld [vmem:[%s4414 + $0x14] sm:$0xf]
      %v4421 = vld [vmem:[%s4414 + $0x18] sm:$0xf]
      %v4422 = vld [vmem:[%s4414 + $0x1c] sm:$0xf]
      %v4423 = vld [vmem:[%s4414 + $0x20] sm:$0xf]
      %v4424 = vld [vmem:[%s4414 + $0x24] sm:$0xf]
      %v4425 = vld [vmem:[%s4414 + $0x28] sm:$0xf]
      %v4426 = vld [vmem:[%s4414 + $0x2c] sm:$0xf]
      %v4427 = vld [vmem:[%s4414 + $0x30] sm:$0xf]
      %v4428 = vld [vmem:[%s4414 + $0x34] sm:$0xf]
      %v4429 = vld [vmem:[%s4414 + $0x38] sm:$0xf]
      %v4430 = vld [vmem:[%s4414 + $0x3c] sm:$0xf]
      %v4468 = vunpack.c.l.b16 %v4413
      %v4469 = vunpack.c.l.b16 %v4361
      %v4470 = vunpack.c.l.b16 %v4362
      %v4471 = vunpack.c.l.b16 %v4363
      %v4472 = vunpack.c.l.b16 %v4364
      %v4473 = vunpack.c.l.b16 %v4365
      %v4474 = vunpack.c.l.b16 %v4366
      %v4475 = vunpack.c.l.b16 %v4367
      %v4476 = vunpack.c.l.b16 %v4368
      %v4477 = vunpack.c.l.b16 %v4369
      %v4478 = vunpack.c.l.b16 %v4370
      %v4479 = vunpack.c.l.b16 %v4371
      %v4480 = vunpack.c.l.b16 %v4372
      %v4481 = vunpack.c.l.b16 %v4373
      %v4482 = vunpack.c.l.b16 %v4374
      %v4483 = vunpack.c.l.b16 %v4375
      %v4484 = vunpack.c.l.b16 %v4376
      %v4485 = vunpack.c.l.b16 %v4377
      %v4486 = vunpack.c.l.b16 %v4378
      %v4487 = vunpack.c.l.b16 %v4379
      %v4488 = vunpack.c.l.b16 %v4380
      %v4489 = vunpack.c.l.b16 %v4381
      %v4490 = vunpack.c.l.b16 %v4382
      %v4491 = vunpack.c.l.b16 %v4383
      %v4492 = vunpack.c.l.b16 %v4384
      %v4493 = vunpack.c.l.b16 %v4385
      %v4494 = vunpack.c.l.b16 %v4386
      %v4495 = vunpack.c.l.b16 %v4387
      %v4496 = vunpack.c.l.b16 %v4388
      %v4497 = vunpack.c.l.b16 %v4389
      %v4498 = vunpack.c.l.b16 %v4390
      %v4499 = vunpack.c.l.b16 %v4391
      %v4500 = vunpack.c.l.b16 %v4392
      %v4501 = vunpack.c.l.b16 %v4393
      %v4502 = vunpack.c.l.b16 %v4394
      %v4503 = vunpack.c.l.b16 %v4395
      %v4504 = vunpack.c.l.b16 %v4396
      %v4505 = vpack.c.b16 %v4469, %v4468
      %v4506 = vpack.c.b16 %v4471, %v4470
      %v4507 = vpack.c.b16 %v4473, %v4472
      %v4508 = vpack.c.b16 %v4475, %v4474
      %v4509 = vpack.c.b16 %v4477, %v4476
      %v4510 = vpack.c.b16 %v4479, %v4478
      %v4511 = vpack.c.b16 %v4481, %v4480
      %v4512 = vpack.c.b16 %v4483, %v4482
      %v4513 = vpack.c.b16 %v4485, %v4484
      %v4514 = vpack.c.b16 %v4487, %v4486
      %v4515 = vpack.c.b16 %v4489, %v4488
      %v4516 = vpack.c.b16 %v4491, %v4490
      %v4517 = vpack.c.b16 %v4493, %v4492
      %v4518 = vpack.c.b16 %v4495, %v4494
      %v4519 = vpack.c.b16 %v4497, %v4496
      %v4520 = vpack.c.b16 %v4499, %v4498
      %v4521 = vpack.c.b16 %v4501, %v4500
      %v4522 = vpack.c.b16 %v4503, %v4502
      %v4523 = vpack.c.b16 %v4504, %v4504
      %v4524 = vrot.slane %v4505, 3
      %v4525 = vrot.slane %v4506, 3
      %v4526 = vsel %vm3622, %v4524, %v4525
      %v4527 = vrot.slane %v4507, 3
      %v4528 = vsel %vm3622, %v4525, %v4527
      %v4529 = vrot.slane %v4508, 3
      %v4530 = vsel %vm3622, %v4527, %v4529
      %v4531 = vrot.slane %v4509, 3
      %v4532 = vsel %vm3622, %v4529, %v4531
      %v4533 = vrot.slane %v4510, 3
      %v4534 = vsel %vm3622, %v4531, %v4533
      %v4535 = vrot.slane %v4511, 3
      %v4536 = vsel %vm3622, %v4533, %v4535
      %v4537 = vrot.slane %v4512, 3
      %v4538 = vsel %vm3622, %v4535, %v4537
      %v4539 = vrot.slane %v4513, 3
      %v4540 = vsel %vm3622, %v4537, %v4539
      %v4541 = vrot.slane %v4514, 3
      %v4542 = vsel %vm3622, %v4539, %v4541
      %v4543 = vrot.slane %v4515, 3
      %v4544 = vsel %vm3622, %v4541, %v4543
      %v4545 = vrot.slane %v4516, 3
      %v4546 = vsel %vm3622, %v4543, %v4545
      %v4547 = vrot.slane %v4517, 3
      %v4548 = vsel %vm3622, %v4545, %v4547
      %v4549 = vrot.slane %v4518, 3
      %v4550 = vsel %vm3622, %v4547, %v4549
      %v4551 = vrot.slane %v4519, 3
      %v4552 = vsel %vm3622, %v4549, %v4551
      %v4553 = vrot.slane %v4520, 3
      %v4554 = vsel %vm3622, %v4551, %v4553
      %v4555 = vrot.slane %v4521, 3
      %v4556 = vsel %vm3622, %v4553, %v4555
      %v4557 = vrot.slane %v4522, 3
      %v4558 = vsel %vm3622, %v4555, %v4557
      %v4559 = vrot.slane %v4523, 3
      %v4560 = vsel %vm3622, %v4557, %v4559
      %v4595 = vunpack.c.l.b16 %v4415
      %v4596 = vunpack.c.l.b16 %v4416
      %v4597 = vunpack.c.l.b16 %v4417
      %v4598 = vunpack.c.l.b16 %v4418
      %v4599 = vunpack.c.l.b16 %v4419
      %v4600 = vunpack.c.l.b16 %v4420
      %v4601 = vunpack.c.l.b16 %v4421
      %v4602 = vunpack.c.l.b16 %v4422
      %v4603 = vunpack.c.l.b16 %v4423
      %v4604 = vunpack.c.l.b16 %v4424
      %v4605 = vunpack.c.l.b16 %v4425
      %v4606 = vunpack.c.l.b16 %v4426
      %v4607 = vunpack.c.l.b16 %v4427
      %v4608 = vunpack.c.l.b16 %v4428
      %v4609 = vunpack.c.l.b16 %v4429
      %v4610 = vunpack.c.l.b16 %v4430
      %v4611 = vpack.c.b16 %v4596, %v4595
      %v4612 = vpack.c.b16 %v4598, %v4597
      %v4613 = vpack.c.b16 %v4600, %v4599
      %v4614 = vpack.c.b16 %v4602, %v4601
      %v4615 = vpack.c.b16 %v4604, %v4603
      %v4616 = vpack.c.b16 %v4606, %v4605
      %v4617 = vpack.c.b16 %v4608, %v4607
      %v4618 = vpack.c.b16 %v4610, %v4609
      %4627 = vmatprep.subr.bf16.mxu0 0
      %4628 = vmatpush1.bf16.msra.mxu0 %v4618
      %4629 = vmatprep.subr.bf16.mxu0 0
      %4630 = vmatpush1.bf16.msra.mxu0 %v4617
      %4631 = vmatprep.subr.bf16.mxu0 0
      %4632 = vmatpush1.bf16.msra.mxu0 %v4616
      %4633 = vmatprep.subr.bf16.mxu0 0
      %4634 = vmatpush1.bf16.msra.mxu0 %v4615
      %4635 = vmatprep.subr.bf16.mxu0 0
      %4636 = vmatpush1.bf16.msra.mxu0 %v4614
      %4637 = vmatprep.subr.bf16.mxu0 0
      %4638 = vmatpush1.bf16.msra.mxu0 %v4613
      %4639 = vmatprep.subr.bf16.mxu0 0
      %4640 = vmatpush1.bf16.msra.mxu0 %v4612
      %4641 = vmatprep.subr.bf16.mxu0 0
      %4642 = vmatpush1.bf16.msra.mxu0 %v4611
      %4643 = vmatprep.subr.bf16.mxu0 0
      %4644 = vmatpush2.bf16.msra.mxu0 0
      %4645 = vmatprep.subr.bf16.mxu0 0
      %4646 = vmatpush2.bf16.msra.mxu0 0
      %4647 = vmatprep.subr.bf16.mxu0 0
      %4648 = vmatpush2.bf16.msra.mxu0 0
      %4649 = vmatprep.subr.bf16.mxu0 0
      %4650 = vmatpush2.bf16.msra.mxu0 0
      %4651 = vmatprep.subr.bf16.mxu0 0
      %4652 = vmatpush2.bf16.msra.mxu0 0
      %4653 = vmatprep.subr.bf16.mxu0 0
      %4654 = vmatpush2.bf16.msra.mxu0 0
      %4655 = vmatprep.subr.bf16.mxu0 0
      %4656 = vmatpush2.bf16.msra.mxu0 0
      %4657 = vmatprep.subr.bf16.mxu0 0
      %4658 = vmatpush2.bf16.msra.mxu0 0
      %4659 = vmatprep.mubr.bf16.mxu0 0
      %4660 = vmatmul.mubr.bf16.gmra.mxu0 %v4526
      %v4661 = vpop.f32.mrf.mxu0
      %v4662 = vadd.f32 0.0, %v4661
      %v4663 = vpop.f32.mrf.mxu0
      %v4664 = vpop.f32.mrf.mxu0
      %v4665 = vadd.f32 0.0, %v4664
      %v4666 = vpop.f32.mrf.mxu0
      %4667 = vmatprep.mubr.bf16.mxu0 0
      %4668 = vmatmul.mubr.bf16.gmra.mxu0 %v4528
      %v4669 = vpop.f32.mrf.mxu0
      %v4670 = vadd.f32 0.0, %v4669
      %v4671 = vpop.f32.mrf.mxu0
      %v4672 = vpop.f32.mrf.mxu0
      %v4673 = vadd.f32 0.0, %v4672
      %v4674 = vpop.f32.mrf.mxu0
      %4675 = vmatprep.mubr.bf16.mxu0 0
      %4676 = vmatmul.mubr.bf16.gmra.mxu0 %v4530
      %v4677 = vpop.f32.mrf.mxu0
      %v4678 = vadd.f32 0.0, %v4677
      %v4679 = vpop.f32.mrf.mxu0
      %v4680 = vpop.f32.mrf.mxu0
      %v4681 = vadd.f32 0.0, %v4680
      %v4682 = vpop.f32.mrf.mxu0
      %4683 = vmatprep.mubr.bf16.mxu0 0
      %4684 = vmatmul.mubr.bf16.gmra.mxu0 %v4532
      %v4685 = vpop.f32.mrf.mxu0
      %v4686 = vadd.f32 0.0, %v4685
      %v4687 = vpop.f32.mrf.mxu0
      %v4688 = vpop.f32.mrf.mxu0
      %v4689 = vadd.f32 0.0, %v4688
      %v4690 = vpop.f32.mrf.mxu0
      %4691 = vmatprep.mubr.bf16.mxu0 0
      %4692 = vmatmul.mubr.bf16.gmra.mxu0 %v4534
      %v4693 = vpop.f32.mrf.mxu0
      %v4694 = vadd.f32 0.0, %v4693
      %v4695 = vpop.f32.mrf.mxu0
      %v4696 = vpop.f32.mrf.mxu0
      %v4697 = vadd.f32 0.0, %v4696
      %v4698 = vpop.f32.mrf.mxu0
      %4699 = vmatprep.mubr.bf16.mxu0 0
      %4700 = vmatmul.mubr.bf16.gmra.mxu0 %v4536
      %v4701 = vpop.f32.mrf.mxu0
      %v4702 = vadd.f32 0.0, %v4701
      %v4703 = vpop.f32.mrf.mxu0
      %v4704 = vpop.f32.mrf.mxu0
      %v4705 = vadd.f32 0.0, %v4704
      %v4706 = vpop.f32.mrf.mxu0
      %4707 = vmatprep.mubr.bf16.mxu0 0
      %4708 = vmatmul.mubr.bf16.gmra.mxu0 %v4538
      %v4709 = vpop.f32.mrf.mxu0
      %v4710 = vadd.f32 0.0, %v4709
      %v4711 = vpop.f32.mrf.mxu0
      %v4712 = vpop.f32.mrf.mxu0
      %v4713 = vadd.f32 0.0, %v4712
      %v4714 = vpop.f32.mrf.mxu0
      %4715 = vmatprep.mubr.bf16.mxu0 0
      %4716 = vmatmul.mubr.bf16.gmra.mxu0 %v4540
      %v4717 = vpop.f32.mrf.mxu0
      %v4718 = vadd.f32 0.0, %v4717
      %v4719 = vpop.f32.mrf.mxu0
      %v4720 = vpop.f32.mrf.mxu0
      %v4721 = vadd.f32 0.0, %v4720
      %v4722 = vpop.f32.mrf.mxu0
      %4723 = vmatprep.mubr.bf16.mxu0 0
      %4724 = vmatmul.mubr.bf16.gmra.mxu0 %v4542
      %v4725 = vpop.f32.mrf.mxu0
      %v4726 = vadd.f32 0.0, %v4725
      %v4727 = vpop.f32.mrf.mxu0
      %v4728 = vpop.f32.mrf.mxu0
      %v4729 = vadd.f32 0.0, %v4728
      %v4730 = vpop.f32.mrf.mxu0
      %4731 = vmatprep.mubr.bf16.mxu0 0
      %4732 = vmatmul.mubr.bf16.gmra.mxu0 %v4544
      %v4733 = vpop.f32.mrf.mxu0
      %v4734 = vadd.f32 0.0, %v4733
      %v4735 = vpop.f32.mrf.mxu0
      %v4736 = vpop.f32.mrf.mxu0
      %v4737 = vadd.f32 0.0, %v4736
      %v4738 = vpop.f32.mrf.mxu0
      %4739 = vmatprep.mubr.bf16.mxu0 0
      %4740 = vmatmul.mubr.bf16.gmra.mxu0 %v4546
      %v4741 = vpop.f32.mrf.mxu0
      %v4742 = vadd.f32 0.0, %v4741
      %v4743 = vpop.f32.mrf.mxu0
      %v4744 = vpop.f32.mrf.mxu0
      %v4745 = vadd.f32 0.0, %v4744
      %v4746 = vpop.f32.mrf.mxu0
      %4747 = vmatprep.mubr.bf16.mxu0 0
      %4748 = vmatmul.mubr.bf16.gmra.mxu0 %v4548
      %v4749 = vpop.f32.mrf.mxu0
      %v4750 = vadd.f32 0.0, %v4749
      %v4751 = vpop.f32.mrf.mxu0
      %v4752 = vpop.f32.mrf.mxu0
      %v4753 = vadd.f32 0.0, %v4752
      %v4754 = vpop.f32.mrf.mxu0
      %4755 = vmatprep.mubr.bf16.mxu0 0
      %4756 = vmatmul.mubr.bf16.gmra.mxu0 %v4550
      %v4757 = vpop.f32.mrf.mxu0
      %v4758 = vadd.f32 0.0, %v4757
      %v4759 = vpop.f32.mrf.mxu0
      %v4760 = vpop.f32.mrf.mxu0
      %v4761 = vadd.f32 0.0, %v4760
      %v4762 = vpop.f32.mrf.mxu0
      %4763 = vmatprep.mubr.bf16.mxu0 0
      %4764 = vmatmul.mubr.bf16.gmra.mxu0 %v4552
      %v4765 = vpop.f32.mrf.mxu0
      %v4766 = vadd.f32 0.0, %v4765
      %v4767 = vpop.f32.mrf.mxu0
      %v4768 = vpop.f32.mrf.mxu0
      %v4769 = vadd.f32 0.0, %v4768
      %v4770 = vpop.f32.mrf.mxu0
      %4771 = vmatprep.mubr.bf16.mxu0 0
      %4772 = vmatmul.mubr.bf16.gmra.mxu0 %v4554
      %v4773 = vpop.f32.mrf.mxu0
      %v4774 = vadd.f32 0.0, %v4773
      %v4775 = vpop.f32.mrf.mxu0
      %v4776 = vpop.f32.mrf.mxu0
      %v4777 = vadd.f32 0.0, %v4776
      %v4778 = vpop.f32.mrf.mxu0
      %4779 = vmatprep.mubr.bf16.mxu0 0
      %4780 = vmatmul.mubr.bf16.gmra.mxu0 %v4556
      %v4781 = vpop.f32.mrf.mxu0
      %v4782 = vadd.f32 0.0, %v4781
      %v4783 = vpop.f32.mrf.mxu0
      %v4784 = vpop.f32.mrf.mxu0
      %v4785 = vadd.f32 0.0, %v4784
      %v4786 = vpop.f32.mrf.mxu0
      %4787 = vmatprep.mubr.bf16.mxu0 0
      %4788 = vmatmul.mubr.bf16.gmra.mxu0 %v4558
      %v4789 = vpop.f32.mrf.mxu0
      %v4790 = vadd.f32 0.0, %v4789
      %v4791 = vpop.f32.mrf.mxu0
      %v4792 = vpop.f32.mrf.mxu0
      %v4793 = vadd.f32 0.0, %v4792
      %v4794 = vpop.f32.mrf.mxu0
      %4795 = vmatprep.mubr.bf16.mxu0 0
      %4796 = vmatmul.mubr.bf16.gmra.mxu0 %v4560
      %v4797 = vpop.f32.mrf.mxu0
      %v4798 = vadd.f32 0.0, %v4797
      %v4799 = vpop.f32.mrf.mxu0
      %v4800 = vpop.f32.mrf.mxu0
      %v4801 = vadd.f32 0.0, %v4800
      %v4802 = vpop.f32.mrf.mxu0
      %4803 = vdwg.mxu0
      %v4805 = vunpack.c.l.b16 %v4360
      %v4806 = vpack.c.b16 %v4469, %v4805
      %v4808 = vshrl.u32 %v4806, 16
      %v4810 = vrot.slane %v4808, 2
      %v4811 = vshll.u32 %v4806, 16
      %v4813 = vrot.slane %v4811, 3
      %v4814 = vor.u32 %v4810, %v4813
      %v4816 = vshrl.u32 %v4506, 16
      %v4818 = vrot.slane %v4816, 2
      %v4819 = vshll.u32 %v4506, 16
      %v4821 = vrot.slane %v4819, 3
      %v4822 = vor.u32 %v4818, %v4821
      %v4823 = vsel %vm3151, %v4814, %v4822
      %v4825 = vshrl.u32 %v4507, 16
      %v4827 = vrot.slane %v4825, 2
      %v4828 = vshll.u32 %v4507, 16
      %v4830 = vrot.slane %v4828, 3
      %v4831 = vor.u32 %v4827, %v4830
      %v4832 = vsel %vm3151, %v4822, %v4831
      %v4834 = vshrl.u32 %v4508, 16
      %v4836 = vrot.slane %v4834, 2
      %v4837 = vshll.u32 %v4508, 16
      %v4839 = vrot.slane %v4837, 3
      %v4840 = vor.u32 %v4836, %v4839
      %v4841 = vsel %vm3151, %v4831, %v4840
      %v4843 = vshrl.u32 %v4509, 16
      %v4845 = vrot.slane %v4843, 2
      %v4846 = vshll.u32 %v4509, 16
      %v4848 = vrot.slane %v4846, 3
      %v4849 = vor.u32 %v4845, %v4848
      %v4850 = vsel %vm3151, %v4840, %v4849
      %v4852 = vshrl.u32 %v4510, 16
      %v4854 = vrot.slane %v4852, 2
      %v4855 = vshll.u32 %v4510, 16
      %v4857 = vrot.slane %v4855, 3
      %v4858 = vor.u32 %v4854, %v4857
      %v4859 = vsel %vm3151, %v4849, %v4858
      %v4861 = vshrl.u32 %v4511, 16
      %v4863 = vrot.slane %v4861, 2
      %v4864 = vshll.u32 %v4511, 16
      %v4866 = vrot.slane %v4864, 3
      %v4867 = vor.u32 %v4863, %v4866
      %v4868 = vsel %vm3151, %v4858, %v4867
      %v4870 = vshrl.u32 %v4512, 16
      %v4872 = vrot.slane %v4870, 2
      %v4873 = vshll.u32 %v4512, 16
      %v4875 = vrot.slane %v4873, 3
      %v4876 = vor.u32 %v4872, %v4875
      %v4877 = vsel %vm3151, %v4867, %v4876
      %v4879 = vshrl.u32 %v4513, 16
      %v4881 = vrot.slane %v4879, 2
      %v4882 = vshll.u32 %v4513, 16
      %v4884 = vrot.slane %v4882, 3
      %v4885 = vor.u32 %v4881, %v4884
      %v4886 = vsel %vm3151, %v4876, %v4885
      %v4888 = vshrl.u32 %v4514, 16
      %v4890 = vrot.slane %v4888, 2
      %v4891 = vshll.u32 %v4514, 16
      %v4893 = vrot.slane %v4891, 3
      %v4894 = vor.u32 %v4890, %v4893
      %v4895 = vsel %vm3151, %v4885, %v4894
      %v4897 = vshrl.u32 %v4515, 16
      %v4899 = vrot.slane %v4897, 2
      %v4900 = vshll.u32 %v4515, 16
      %v4902 = vrot.slane %v4900, 3
      %v4903 = vor.u32 %v4899, %v4902
      %v4904 = vsel %vm3151, %v4894, %v4903
      %v4906 = vshrl.u32 %v4516, 16
      %v4908 = vrot.slane %v4906, 2
      %v4909 = vshll.u32 %v4516, 16
      %v4911 = vrot.slane %v4909, 3
      %v4912 = vor.u32 %v4908, %v4911
      %v4913 = vsel %vm3151, %v4903, %v4912
      %v4915 = vshrl.u32 %v4517, 16
      %v4917 = vrot.slane %v4915, 2
      %v4918 = vshll.u32 %v4517, 16
      %v4920 = vrot.slane %v4918, 3
      %v4921 = vor.u32 %v4917, %v4920
      %v4922 = vsel %vm3151, %v4912, %v4921
      %v4924 = vshrl.u32 %v4518, 16
      %v4926 = vrot.slane %v4924, 2
      %v4927 = vshll.u32 %v4518, 16
      %v4929 = vrot.slane %v4927, 3
      %v4930 = vor.u32 %v4926, %v4929
      %v4931 = vsel %vm3151, %v4921, %v4930
      %v4933 = vshrl.u32 %v4519, 16
      %v4935 = vrot.slane %v4933, 2
      %v4936 = vshll.u32 %v4519, 16
      %v4938 = vrot.slane %v4936, 3
      %v4939 = vor.u32 %v4935, %v4938
      %v4940 = vsel %vm3151, %v4930, %v4939
      %v4942 = vshrl.u32 %v4520, 16
      %v4944 = vrot.slane %v4942, 2
      %v4945 = vshll.u32 %v4520, 16
      %v4947 = vrot.slane %v4945, 3
      %v4948 = vor.u32 %v4944, %v4947
      %v4949 = vsel %vm3151, %v4939, %v4948
      %v4951 = vshrl.u32 %v4521, 16
      %v4953 = vrot.slane %v4951, 2
      %v4954 = vshll.u32 %v4521, 16
      %v4956 = vrot.slane %v4954, 3
      %v4957 = vor.u32 %v4953, %v4956
      %v4958 = vsel %vm3151, %v4948, %v4957
      %v4960 = vshrl.u32 %v4522, 16
      %v4962 = vrot.slane %v4960, 2
      %v4963 = vshll.u32 %v4522, 16
      %v4965 = vrot.slane %v4963, 3
      %v4966 = vor.u32 %v4962, %v4965
      %v4967 = vsel %vm3151, %v4957, %v4966
      %v4969 = vshrl.u32 %v4523, 16
      %v4971 = vrot.slane %v4969, 2
      %v4972 = vshll.u32 %v4523, 16
      %v4974 = vrot.slane %v4972, 3
      %v4975 = vor.u32 %v4971, %v4974
      %v4976 = vsel %vm3151, %v4966, %v4975
      %v5011 = vunpack.c.l.b16 %v4397
      %v5012 = vunpack.c.l.b16 %v4398
      %v5013 = vunpack.c.l.b16 %v4399
      %v5014 = vunpack.c.l.b16 %v4400
      %v5015 = vunpack.c.l.b16 %v4401
      %v5016 = vunpack.c.l.b16 %v4402
      %v5017 = vunpack.c.l.b16 %v4403
      %v5018 = vunpack.c.l.b16 %v4404
      %v5019 = vunpack.c.l.b16 %v4405
      %v5020 = vunpack.c.l.b16 %v4406
      %v5021 = vunpack.c.l.b16 %v4407
      %v5022 = vunpack.c.l.b16 %v4408
      %v5023 = vunpack.c.l.b16 %v4409
      %v5024 = vunpack.c.l.b16 %v4410
      %v5025 = vunpack.c.l.b16 %v4411
      %v5026 = vunpack.c.l.b16 %v4412
      %v5027 = vpack.c.b16 %v5012, %v5011
      %v5028 = vpack.c.b16 %v5014, %v5013
      %v5029 = vpack.c.b16 %v5016, %v5015
      %v5030 = vpack.c.b16 %v5018, %v5017
      %v5031 = vpack.c.b16 %v5020, %v5019
      %v5032 = vpack.c.b16 %v5022, %v5021
      %v5033 = vpack.c.b16 %v5024, %v5023
      %v5034 = vpack.c.b16 %v5026, %v5025
      %5043 = vmatprep.subr.bf16.mxu0 0
      %5044 = vmatpush1.bf16.msra.mxu0 %v5034
      %5045 = vmatprep.subr.bf16.mxu0 0
      %5046 = vmatpush1.bf16.msra.mxu0 %v5033
      %5047 = vmatprep.subr.bf16.mxu0 0
      %5048 = vmatpush1.bf16.msra.mxu0 %v5032
      %5049 = vmatprep.subr.bf16.mxu0 0
      %5050 = vmatpush1.bf16.msra.mxu0 %v5031
      %5051 = vmatprep.subr.bf16.mxu0 0
      %5052 = vmatpush1.bf16.msra.mxu0 %v5030
      %5053 = vmatprep.subr.bf16.mxu0 0
      %5054 = vmatpush1.bf16.msra.mxu0 %v5029
      %5055 = vmatprep.subr.bf16.mxu0 0
      %5056 = vmatpush1.bf16.msra.mxu0 %v5028
      %5057 = vmatprep.subr.bf16.mxu0 0
      %5058 = vmatpush1.bf16.msra.mxu0 %v5027
      %5059 = vmatprep.subr.bf16.mxu0 0
      %5060 = vmatpush2.bf16.msra.mxu0 0
      %5061 = vmatprep.subr.bf16.mxu0 0
      %5062 = vmatpush2.bf16.msra.mxu0 0
      %5063 = vmatprep.subr.bf16.mxu0 0
      %5064 = vmatpush2.bf16.msra.mxu0 0
      %5065 = vmatprep.subr.bf16.mxu0 0
      %5066 = vmatpush2.bf16.msra.mxu0 0
      %5067 = vmatprep.subr.bf16.mxu0 0
      %5068 = vmatpush2.bf16.msra.mxu0 0
      %5069 = vmatprep.subr.bf16.mxu0 0
      %5070 = vmatpush2.bf16.msra.mxu0 0
      %5071 = vmatprep.subr.bf16.mxu0 0
      %5072 = vmatpush2.bf16.msra.mxu0 0
      %5073 = vmatprep.subr.bf16.mxu0 0
      %5074 = vmatpush2.bf16.msra.mxu0 0
      %5075 = vmatprep.mubr.bf16.mxu0 0
      %5076 = vmatmul.mubr.bf16.gmra.mxu0 %v4823
      %v5077 = vpop.f32.mrf.mxu0
      %v5078 = vadd.f32 %v4662, %v5077
      %v5079 = vpop.f32.mrf.mxu0
      %v5080 = vpop.f32.mrf.mxu0
      %v5081 = vadd.f32 %v4665, %v5080
      %v5082 = vpop.f32.mrf.mxu0
      %5083 = vmatprep.mubr.bf16.mxu0 0
      %5084 = vmatmul.mubr.bf16.gmra.mxu0 %v4832
      %v5085 = vpop.f32.mrf.mxu0
      %v5086 = vadd.f32 %v4670, %v5085
      %v5087 = vpop.f32.mrf.mxu0
      %v5088 = vpop.f32.mrf.mxu0
      %v5089 = vadd.f32 %v4673, %v5088
      %v5090 = vpop.f32.mrf.mxu0
      %5091 = vmatprep.mubr.bf16.mxu0 0
      %5092 = vmatmul.mubr.bf16.gmra.mxu0 %v4841
      %v5093 = vpop.f32.mrf.mxu0
      %v5094 = vadd.f32 %v4678, %v5093
      %v5095 = vpop.f32.mrf.mxu0
      %v5096 = vpop.f32.mrf.mxu0
      %v5097 = vadd.f32 %v4681, %v5096
      %v5098 = vpop.f32.mrf.mxu0
      %5099 = vmatprep.mubr.bf16.mxu0 0
      %5100 = vmatmul.mubr.bf16.gmra.mxu0 %v4850
      %v5101 = vpop.f32.mrf.mxu0
      %v5102 = vadd.f32 %v4686, %v5101
      %v5103 = vpop.f32.mrf.mxu0
      %v5104 = vpop.f32.mrf.mxu0
      %v5105 = vadd.f32 %v4689, %v5104
      %v5106 = vpop.f32.mrf.mxu0
      %5107 = vmatprep.mubr.bf16.mxu0 0
      %5108 = vmatmul.mubr.bf16.gmra.mxu0 %v4859
      %v5109 = vpop.f32.mrf.mxu0
      %v5110 = vadd.f32 %v4694, %v5109
      %v5111 = vpop.f32.mrf.mxu0
      %v5112 = vpop.f32.mrf.mxu0
      %v5113 = vadd.f32 %v4697, %v5112
      %v5114 = vpop.f32.mrf.mxu0
      %5115 = vmatprep.mubr.bf16.mxu0 0
      %5116 = vmatmul.mubr.bf16.gmra.mxu0 %v4868
      %v5117 = vpop.f32.mrf.mxu0
      %v5118 = vadd.f32 %v4702, %v5117
      %v5119 = vpop.f32.mrf.mxu0
      %v5120 = vpop.f32.mrf.mxu0
      %v5121 = vadd.f32 %v4705, %v5120
      %v5122 = vpop.f32.mrf.mxu0
      %5123 = vmatprep.mubr.bf16.mxu0 0
      %5124 = vmatmul.mubr.bf16.gmra.mxu0 %v4877
      %v5125 = vpop.f32.mrf.mxu0
      %v5126 = vadd.f32 %v4710, %v5125
      %v5127 = vpop.f32.mrf.mxu0
      %v5128 = vpop.f32.mrf.mxu0
      %v5129 = vadd.f32 %v4713, %v5128
      %v5130 = vpop.f32.mrf.mxu0
      %5131 = vmatprep.mubr.bf16.mxu0 0
      %5132 = vmatmul.mubr.bf16.gmra.mxu0 %v4886
      %v5133 = vpop.f32.mrf.mxu0
      %v5134 = vadd.f32 %v4718, %v5133
      %v5135 = vpop.f32.mrf.mxu0
      %v5136 = vpop.f32.mrf.mxu0
      %v5137 = vadd.f32 %v4721, %v5136
      %v5138 = vpop.f32.mrf.mxu0
      %5139 = vmatprep.mubr.bf16.mxu0 0
      %5140 = vmatmul.mubr.bf16.gmra.mxu0 %v4895
      %v5141 = vpop.f32.mrf.mxu0
      %v5142 = vadd.f32 %v4726, %v5141
      %v5143 = vpop.f32.mrf.mxu0
      %v5144 = vpop.f32.mrf.mxu0
      %v5145 = vadd.f32 %v4729, %v5144
      %v5146 = vpop.f32.mrf.mxu0
      %5147 = vmatprep.mubr.bf16.mxu0 0
      %5148 = vmatmul.mubr.bf16.gmra.mxu0 %v4904
      %v5149 = vpop.f32.mrf.mxu0
      %v5150 = vadd.f32 %v4734, %v5149
      %v5151 = vpop.f32.mrf.mxu0
      %v5152 = vpop.f32.mrf.mxu0
      %v5153 = vadd.f32 %v4737, %v5152
      %v5154 = vpop.f32.mrf.mxu0
      %5155 = vmatprep.mubr.bf16.mxu0 0
      %5156 = vmatmul.mubr.bf16.gmra.mxu0 %v4913
      %v5157 = vpop.f32.mrf.mxu0
      %v5158 = vadd.f32 %v4742, %v5157
      %v5159 = vpop.f32.mrf.mxu0
      %v5160 = vpop.f32.mrf.mxu0
      %v5161 = vadd.f32 %v4745, %v5160
      %v5162 = vpop.f32.mrf.mxu0
      %5163 = vmatprep.mubr.bf16.mxu0 0
      %5164 = vmatmul.mubr.bf16.gmra.mxu0 %v4922
      %v5165 = vpop.f32.mrf.mxu0
      %v5166 = vadd.f32 %v4750, %v5165
      %v5167 = vpop.f32.mrf.mxu0
      %v5168 = vpop.f32.mrf.mxu0
      %v5169 = vadd.f32 %v4753, %v5168
      %v5170 = vpop.f32.mrf.mxu0
      %5171 = vmatprep.mubr.bf16.mxu0 0
      %5172 = vmatmul.mubr.bf16.gmra.mxu0 %v4931
      %v5173 = vpop.f32.mrf.mxu0
      %v5174 = vadd.f32 %v4758, %v5173
      %v5175 = vpop.f32.mrf.mxu0
      %v5176 = vpop.f32.mrf.mxu0
      %v5177 = vadd.f32 %v4761, %v5176
      %v5178 = vpop.f32.mrf.mxu0
      %5179 = vmatprep.mubr.bf16.mxu0 0
      %5180 = vmatmul.mubr.bf16.gmra.mxu0 %v4940
      %v5181 = vpop.f32.mrf.mxu0
      %v5182 = vadd.f32 %v4766, %v5181
      %v5183 = vpop.f32.mrf.mxu0
      %v5184 = vpop.f32.mrf.mxu0
      %v5185 = vadd.f32 %v4769, %v5184
      %v5186 = vpop.f32.mrf.mxu0
      %5187 = vmatprep.mubr.bf16.mxu0 0
      %5188 = vmatmul.mubr.bf16.gmra.mxu0 %v4949
      %v5189 = vpop.f32.mrf.mxu0
      %v5190 = vadd.f32 %v4774, %v5189
      %v5191 = vpop.f32.mrf.mxu0
      %v5192 = vpop.f32.mrf.mxu0
      %v5193 = vadd.f32 %v4777, %v5192
      %v5194 = vpop.f32.mrf.mxu0
      %5195 = vmatprep.mubr.bf16.mxu0 0
      %5196 = vmatmul.mubr.bf16.gmra.mxu0 %v4958
      %v5197 = vpop.f32.mrf.mxu0
      %v5198 = vadd.f32 %v4782, %v5197
      %v5199 = vpop.f32.mrf.mxu0
      %v5200 = vpop.f32.mrf.mxu0
      %v5201 = vadd.f32 %v4785, %v5200
      %v5202 = vpop.f32.mrf.mxu0
      %5203 = vmatprep.mubr.bf16.mxu0 0
      %5204 = vmatmul.mubr.bf16.gmra.mxu0 %v4967
      %v5205 = vpop.f32.mrf.mxu0
      %v5206 = vadd.f32 %v4790, %v5205
      %v5207 = vpop.f32.mrf.mxu0
      %v5208 = vpop.f32.mrf.mxu0
      %v5209 = vadd.f32 %v4793, %v5208
      %v5210 = vpop.f32.mrf.mxu0
      %5211 = vmatprep.mubr.bf16.mxu0 0
      %5212 = vmatmul.mubr.bf16.gmra.mxu0 %v4976
      %v5213 = vpop.f32.mrf.mxu0
      %v5214 = vadd.f32 %v4798, %v5213
      %v5215 = vpop.f32.mrf.mxu0
      %v5216 = vpop.f32.mrf.mxu0
      %v5217 = vadd.f32 %v4801, %v5216
      %v5218 = vpop.f32.mrf.mxu0
      %5219 = vdwg.mxu0
      %v5220 = vld [vmem:[#allocation2 + $0x90] sm:$0xf]
      %s5221 = scalar_lea.vmem %s4, 128
      %v5222 = vld [vmem:[%s5221] sm:$0xf]
      %v5223 = vld [vmem:[%s5221 + $0x4] sm:$0xf]
      %v5224 = vld [vmem:[%s5221 + $0x8] sm:$0xf]
      %v5225 = vld [vmem:[%s5221 + $0xc] sm:$0xf]
      %v5226 = vld [vmem:[%s5221 + $0x10] sm:$0xf]
      %v5227 = vld [vmem:[%s5221 + $0x14] sm:$0xf]
      %v5228 = vld [vmem:[%s5221 + $0x18] sm:$0xf]
      %v5229 = vld [vmem:[%s5221 + $0x1c] sm:$0xf]
      %v5230 = vld [vmem:[%s5221 + $0x20] sm:$0xf]
      %v5231 = vld [vmem:[%s5221 + $0x24] sm:$0xf]
      %v5232 = vld [vmem:[%s5221 + $0x28] sm:$0xf]
      %v5233 = vld [vmem:[%s5221 + $0x2c] sm:$0xf]
      %v5234 = vld [vmem:[%s5221 + $0x30] sm:$0xf]
      %v5235 = vld [vmem:[%s5221 + $0x34] sm:$0xf]
      %v5236 = vld [vmem:[%s5221 + $0x38] sm:$0xf]
      %v5237 = vld [vmem:[%s5221 + $0x3c] sm:$0xf]
      %v5239 = vunpack.c.l.b16 %v5220
      %v5240 = vpack.c.b16 %v5239, %v5239
      %vm5241 = vsmask.f32 4352
      %v5243 = vshrl.u32 %v4505, 16
      %v5245 = vrot.slane %v5243, 3
      %v5246 = vshll.u32 %v4505, 16
      %v5248 = vrot.slane %v5246, 4
      %v5249 = vor.u32 %v5245, %v5248
      %v5250 = vrot.slane %v4816, 3
      %v5251 = vrot.slane %v4819, 4
      %v5252 = vor.u32 %v5250, %v5251
      %v5253 = vsel %vm5241, %v5249, %v5252
      %v5254 = vrot.slane %v4825, 3
      %v5255 = vrot.slane %v4828, 4
      %v5256 = vor.u32 %v5254, %v5255
      %v5257 = vsel %vm5241, %v5252, %v5256
      %v5258 = vrot.slane %v4834, 3
      %v5259 = vrot.slane %v4837, 4
      %v5260 = vor.u32 %v5258, %v5259
      %v5261 = vsel %vm5241, %v5256, %v5260
      %v5262 = vrot.slane %v4843, 3
      %v5263 = vrot.slane %v4846, 4
      %v5264 = vor.u32 %v5262, %v5263
      %v5265 = vsel %vm5241, %v5260, %v5264
      %v5266 = vrot.slane %v4852, 3
      %v5267 = vrot.slane %v4855, 4
      %v5268 = vor.u32 %v5266, %v5267
      %v5269 = vsel %vm5241, %v5264, %v5268
      %v5270 = vrot.slane %v4861, 3
      %v5271 = vrot.slane %v4864, 4
      %v5272 = vor.u32 %v5270, %v5271
      %v5273 = vsel %vm5241, %v5268, %v5272
      %v5274 = vrot.slane %v4870, 3
      %v5275 = vrot.slane %v4873, 4
      %v5276 = vor.u32 %v5274, %v5275
      %v5277 = vsel %vm5241, %v5272, %v5276
      %v5278 = vrot.slane %v4879, 3
      %v5279 = vrot.slane %v4882, 4
      %v5280 = vor.u32 %v5278, %v5279
      %v5281 = vsel %vm5241, %v5276, %v5280
      %v5282 = vrot.slane %v4888, 3
      %v5283 = vrot.slane %v4891, 4
      %v5284 = vor.u32 %v5282, %v5283
      %v5285 = vsel %vm5241, %v5280, %v5284
      %v5286 = vrot.slane %v4897, 3
      %v5287 = vrot.slane %v4900, 4
      %v5288 = vor.u32 %v5286, %v5287
      %v5289 = vsel %vm5241, %v5284, %v5288
      %v5290 = vrot.slane %v4906, 3
      %v5291 = vrot.slane %v4909, 4
      %v5292 = vor.u32 %v5290, %v5291
      %v5293 = vsel %vm5241, %v5288, %v5292
      %v5294 = vrot.slane %v4915, 3
      %v5295 = vrot.slane %v4918, 4
      %v5296 = vor.u32 %v5294, %v5295
      %v5297 = vsel %vm5241, %v5292, %v5296
      %v5298 = vrot.slane %v4924, 3
      %v5299 = vrot.slane %v4927, 4
      %v5300 = vor.u32 %v5298, %v5299
      %v5301 = vsel %vm5241, %v5296, %v5300
      %v5302 = vrot.slane %v4933, 3
      %v5303 = vrot.slane %v4936, 4
      %v5304 = vor.u32 %v5302, %v5303
      %v5305 = vsel %vm5241, %v5300, %v5304
      %v5306 = vrot.slane %v4942, 3
      %v5307 = vrot.slane %v4945, 4
      %v5308 = vor.u32 %v5306, %v5307
      %v5309 = vsel %vm5241, %v5304, %v5308
      %v5310 = vrot.slane %v4951, 3
      %v5311 = vrot.slane %v4954, 4
      %v5312 = vor.u32 %v5310, %v5311
      %v5313 = vsel %vm5241, %v5308, %v5312
      %v5314 = vrot.slane %v4960, 3
      %v5315 = vrot.slane %v4963, 4
      %v5316 = vor.u32 %v5314, %v5315
      %v5317 = vsel %vm5241, %v5312, %v5316
      %v5319 = vshrl.u32 %v5240, 16
      %v5321 = vrot.slane %v5319, 3
      %v5322 = vshll.u32 %v5240, 16
      %v5324 = vrot.slane %v5322, 4
      %v5325 = vor.u32 %v5321, %v5324
      %v5326 = vsel %vm5241, %v5316, %v5325
      %v5361 = vunpack.c.l.b16 %v5222
      %v5362 = vunpack.c.l.b16 %v5223
      %v5363 = vunpack.c.l.b16 %v5224
      %v5364 = vunpack.c.l.b16 %v5225
      %v5365 = vunpack.c.l.b16 %v5226
      %v5366 = vunpack.c.l.b16 %v5227
      %v5367 = vunpack.c.l.b16 %v5228
      %v5368 = vunpack.c.l.b16 %v5229
      %v5369 = vunpack.c.l.b16 %v5230
      %v5370 = vunpack.c.l.b16 %v5231
      %v5371 = vunpack.c.l.b16 %v5232
      %v5372 = vunpack.c.l.b16 %v5233
      %v5373 = vunpack.c.l.b16 %v5234
      %v5374 = vunpack.c.l.b16 %v5235
      %v5375 = vunpack.c.l.b16 %v5236
      %v5376 = vunpack.c.l.b16 %v5237
      %v5377 = vpack.c.b16 %v5362, %v5361
      %v5378 = vpack.c.b16 %v5364, %v5363
      %v5379 = vpack.c.b16 %v5366, %v5365
      %v5380 = vpack.c.b16 %v5368, %v5367
      %v5381 = vpack.c.b16 %v5370, %v5369
      %v5382 = vpack.c.b16 %v5372, %v5371
      %v5383 = vpack.c.b16 %v5374, %v5373
      %v5384 = vpack.c.b16 %v5376, %v5375
      %5393 = vmatprep.subr.bf16.mxu0 0
      %5394 = vmatpush1.bf16.msra.mxu0 %v5384
      %5395 = vmatprep.subr.bf16.mxu0 0
      %5396 = vmatpush1.bf16.msra.mxu0 %v5383
      %5397 = vmatprep.subr.bf16.mxu0 0
      %5398 = vmatpush1.bf16.msra.mxu0 %v5382
      %5399 = vmatprep.subr.bf16.mxu0 0
      %5400 = vmatpush1.bf16.msra.mxu0 %v5381
      %5401 = vmatprep.subr.bf16.mxu0 0
      %5402 = vmatpush1.bf16.msra.mxu0 %v5380
      %5403 = vmatprep.subr.bf16.mxu0 0
      %5404 = vmatpush1.bf16.msra.mxu0 %v5379
      %5405 = vmatprep.subr.bf16.mxu0 0
      %5406 = vmatpush1.bf16.msra.mxu0 %v5378
      %5407 = vmatprep.subr.bf16.mxu0 0
      %5408 = vmatpush1.bf16.msra.mxu0 %v5377
      %5409 = vmatprep.subr.bf16.mxu0 0
      %5410 = vmatpush2.bf16.msra.mxu0 0
      %5411 = vmatprep.subr.bf16.mxu0 0
      %5412 = vmatpush2.bf16.msra.mxu0 0
      %5413 = vmatprep.subr.bf16.mxu0 0
      %5414 = vmatpush2.bf16.msra.mxu0 0
      %5415 = vmatprep.subr.bf16.mxu0 0
      %5416 = vmatpush2.bf16.msra.mxu0 0
      %5417 = vmatprep.subr.bf16.mxu0 0
      %5418 = vmatpush2.bf16.msra.mxu0 0
      %5419 = vmatprep.subr.bf16.mxu0 0
      %5420 = vmatpush2.bf16.msra.mxu0 0
      %5421 = vmatprep.subr.bf16.mxu0 0
      %5422 = vmatpush2.bf16.msra.mxu0 0
      %5423 = vmatprep.subr.bf16.mxu0 0
      %5424 = vmatpush2.bf16.msra.mxu0 0
      %5425 = vmatprep.mubr.bf16.mxu0 0
      %5426 = vmatmul.mubr.bf16.gmra.mxu0 %v5253
      %v5427 = vpop.f32.mrf.mxu0
      %v5428 = vadd.f32 0.0, %v5427
      %v5429 = vpop.f32.mrf.mxu0
      %v5430 = vpop.f32.mrf.mxu0
      %v5431 = vadd.f32 0.0, %v5430
      %v5432 = vpop.f32.mrf.mxu0
      %5433 = vmatprep.mubr.bf16.mxu0 0
      %5434 = vmatmul.mubr.bf16.gmra.mxu0 %v5257
      %v5435 = vpop.f32.mrf.mxu0
      %v5436 = vadd.f32 0.0, %v5435
      %v5437 = vpop.f32.mrf.mxu0
      %v5438 = vpop.f32.mrf.mxu0
      %v5439 = vadd.f32 0.0, %v5438
      %v5440 = vpop.f32.mrf.mxu0
      %5441 = vmatprep.mubr.bf16.mxu0 0
      %5442 = vmatmul.mubr.bf16.gmra.mxu0 %v5261
      %v5443 = vpop.f32.mrf.mxu0
      %v5444 = vadd.f32 0.0, %v5443
      %v5445 = vpop.f32.mrf.mxu0
      %v5446 = vpop.f32.mrf.mxu0
      %v5447 = vadd.f32 0.0, %v5446
      %v5448 = vpop.f32.mrf.mxu0
      %5449 = vmatprep.mubr.bf16.mxu0 0
      %5450 = vmatmul.mubr.bf16.gmra.mxu0 %v5265
      %v5451 = vpop.f32.mrf.mxu0
      %v5452 = vadd.f32 0.0, %v5451
      %v5453 = vpop.f32.mrf.mxu0
      %v5454 = vpop.f32.mrf.mxu0
      %v5455 = vadd.f32 0.0, %v5454
      %v5456 = vpop.f32.mrf.mxu0
      %5457 = vmatprep.mubr.bf16.mxu0 0
      %5458 = vmatmul.mubr.bf16.gmra.mxu0 %v5269
      %v5459 = vpop.f32.mrf.mxu0
      %v5460 = vadd.f32 0.0, %v5459
      %v5461 = vpop.f32.mrf.mxu0
      %v5462 = vpop.f32.mrf.mxu0
      %v5463 = vadd.f32 0.0, %v5462
      %v5464 = vpop.f32.mrf.mxu0
      %5465 = vmatprep.mubr.bf16.mxu0 0
      %5466 = vmatmul.mubr.bf16.gmra.mxu0 %v5273
      %v5467 = vpop.f32.mrf.mxu0
      %v5468 = vadd.f32 0.0, %v5467
      %v5469 = vpop.f32.mrf.mxu0
      %v5470 = vpop.f32.mrf.mxu0
      %v5471 = vadd.f32 0.0, %v5470
      %v5472 = vpop.f32.mrf.mxu0
      %5473 = vmatprep.mubr.bf16.mxu0 0
      %5474 = vmatmul.mubr.bf16.gmra.mxu0 %v5277
      %v5475 = vpop.f32.mrf.mxu0
      %v5476 = vadd.f32 0.0, %v5475
      %v5477 = vpop.f32.mrf.mxu0
      %v5478 = vpop.f32.mrf.mxu0
      %v5479 = vadd.f32 0.0, %v5478
      %v5480 = vpop.f32.mrf.mxu0
      %5481 = vmatprep.mubr.bf16.mxu0 0
      %5482 = vmatmul.mubr.bf16.gmra.mxu0 %v5281
      %v5483 = vpop.f32.mrf.mxu0
      %v5484 = vadd.f32 0.0, %v5483
      %v5485 = vpop.f32.mrf.mxu0
      %v5486 = vpop.f32.mrf.mxu0
      %v5487 = vadd.f32 0.0, %v5486
      %v5488 = vpop.f32.mrf.mxu0
      %5489 = vmatprep.mubr.bf16.mxu0 0
      %5490 = vmatmul.mubr.bf16.gmra.mxu0 %v5285
      %v5491 = vpop.f32.mrf.mxu0
      %v5492 = vadd.f32 0.0, %v5491
      %v5493 = vpop.f32.mrf.mxu0
      %v5494 = vpop.f32.mrf.mxu0
      %v5495 = vadd.f32 0.0, %v5494
      %v5496 = vpop.f32.mrf.mxu0
      %5497 = vmatprep.mubr.bf16.mxu0 0
      %5498 = vmatmul.mubr.bf16.gmra.mxu0 %v5289
      %v5499 = vpop.f32.mrf.mxu0
      %v5500 = vadd.f32 0.0, %v5499
      %v5501 = vpop.f32.mrf.mxu0
      %v5502 = vpop.f32.mrf.mxu0
      %v5503 = vadd.f32 0.0, %v5502
      %v5504 = vpop.f32.mrf.mxu0
      %5505 = vmatprep.mubr.bf16.mxu0 0
      %5506 = vmatmul.mubr.bf16.gmra.mxu0 %v5293
      %v5507 = vpop.f32.mrf.mxu0
      %v5508 = vadd.f32 0.0, %v5507
      %v5509 = vpop.f32.mrf.mxu0
      %v5510 = vpop.f32.mrf.mxu0
      %v5511 = vadd.f32 0.0, %v5510
      %v5512 = vpop.f32.mrf.mxu0
      %5513 = vmatprep.mubr.bf16.mxu0 0
      %5514 = vmatmul.mubr.bf16.gmra.mxu0 %v5297
      %v5515 = vpop.f32.mrf.mxu0
      %v5516 = vadd.f32 0.0, %v5515
      %v5517 = vpop.f32.mrf.mxu0
      %v5518 = vpop.f32.mrf.mxu0
      %v5519 = vadd.f32 0.0, %v5518
      %v5520 = vpop.f32.mrf.mxu0
      %5521 = vmatprep.mubr.bf16.mxu0 0
      %5522 = vmatmul.mubr.bf16.gmra.mxu0 %v5301
      %v5523 = vpop.f32.mrf.mxu0
      %v5524 = vadd.f32 0.0, %v5523
      %v5525 = vpop.f32.mrf.mxu0
      %v5526 = vpop.f32.mrf.mxu0
      %v5527 = vadd.f32 0.0, %v5526
      %v5528 = vpop.f32.mrf.mxu0
      %5529 = vmatprep.mubr.bf16.mxu0 0
      %5530 = vmatmul.mubr.bf16.gmra.mxu0 %v5305
      %v5531 = vpop.f32.mrf.mxu0
      %v5532 = vadd.f32 0.0, %v5531
      %v5533 = vpop.f32.mrf.mxu0
      %v5534 = vpop.f32.mrf.mxu0
      %v5535 = vadd.f32 0.0, %v5534
      %v5536 = vpop.f32.mrf.mxu0
      %5537 = vmatprep.mubr.bf16.mxu0 0
      %5538 = vmatmul.mubr.bf16.gmra.mxu0 %v5309
      %v5539 = vpop.f32.mrf.mxu0
      %v5540 = vadd.f32 0.0, %v5539
      %v5541 = vpop.f32.mrf.mxu0
      %v5542 = vpop.f32.mrf.mxu0
      %v5543 = vadd.f32 0.0, %v5542
      %v5544 = vpop.f32.mrf.mxu0
      %5545 = vmatprep.mubr.bf16.mxu0 0
      %5546 = vmatmul.mubr.bf16.gmra.mxu0 %v5313
      %v5547 = vpop.f32.mrf.mxu0
      %v5548 = vadd.f32 0.0, %v5547
      %v5549 = vpop.f32.mrf.mxu0
      %v5550 = vpop.f32.mrf.mxu0
      %v5551 = vadd.f32 0.0, %v5550
      %v5552 = vpop.f32.mrf.mxu0
      %5553 = vmatprep.mubr.bf16.mxu0 0
      %5554 = vmatmul.mubr.bf16.gmra.mxu0 %v5317
      %v5555 = vpop.f32.mrf.mxu0
      %v5556 = vadd.f32 0.0, %v5555
      %v5557 = vpop.f32.mrf.mxu0
      %v5558 = vpop.f32.mrf.mxu0
      %v5559 = vadd.f32 0.0, %v5558
      %v5560 = vpop.f32.mrf.mxu0
      %5561 = vmatprep.mubr.bf16.mxu0 0
      %5562 = vmatmul.mubr.bf16.gmra.mxu0 %v5326
      %v5563 = vpop.f32.mrf.mxu0
      %v5564 = vadd.f32 0.0, %v5563
      %v5565 = vpop.f32.mrf.mxu0
      %v5566 = vpop.f32.mrf.mxu0
      %v5567 = vadd.f32 0.0, %v5566
      %v5568 = vpop.f32.mrf.mxu0
      %5569 = vdwg.mxu0
      %v5570 = vadd.f32 %v5078, %v5428
      %v5571 = vadd.f32 %v5081, %v5431
      %v5572 = vadd.f32 %v5086, %v5436
      %v5573 = vadd.f32 %v5089, %v5439
      %v5574 = vadd.f32 %v5094, %v5444
      %v5575 = vadd.f32 %v5097, %v5447
      %v5576 = vadd.f32 %v5102, %v5452
      %v5577 = vadd.f32 %v5105, %v5455
      %v5578 = vadd.f32 %v5110, %v5460
      %v5579 = vadd.f32 %v5113, %v5463
      %v5580 = vadd.f32 %v5118, %v5468
      %v5581 = vadd.f32 %v5121, %v5471
      %v5582 = vadd.f32 %v5126, %v5476
      %v5583 = vadd.f32 %v5129, %v5479
      %v5584 = vadd.f32 %v5134, %v5484
      %v5585 = vadd.f32 %v5137, %v5487
      %v5586 = vadd.f32 %v5142, %v5492
      %v5587 = vadd.f32 %v5145, %v5495
      %v5588 = vadd.f32 %v5150, %v5500
      %v5589 = vadd.f32 %v5153, %v5503
      %v5590 = vadd.f32 %v5158, %v5508
      %v5591 = vadd.f32 %v5161, %v5511
      %v5592 = vadd.f32 %v5166, %v5516
      %v5593 = vadd.f32 %v5169, %v5519
      %v5594 = vadd.f32 %v5174, %v5524
      %v5595 = vadd.f32 %v5177, %v5527
      %v5596 = vadd.f32 %v5182, %v5532
      %v5597 = vadd.f32 %v5185, %v5535
      %v5598 = vadd.f32 %v5190, %v5540
      %v5599 = vadd.f32 %v5193, %v5543
      %v5600 = vadd.f32 %v5198, %v5548
      %v5601 = vadd.f32 %v5201, %v5551
      %v5602 = vadd.f32 %v5206, %v5556
      %v5603 = vadd.f32 %v5209, %v5559
      %v5604 = vadd.f32 %v5214, %v5564
      %v5605 = vadd.f32 %v5217, %v5567
      %v5606 = vld [vmem:[#allocation2 + $0x8] sm:$0x8]
      %v5607 = vld [vmem:[#allocation2 + $0xc] sm:$0xf]
      %v5608 = vld [vmem:[#allocation2 + $0x10] sm:$0xf]
      %v5609 = vld [vmem:[#allocation2 + $0x14] sm:$0xf]
      %v5610 = vld [vmem:[#allocation2 + $0x18] sm:$0xf]
      %v5611 = vld [vmem:[#allocation2 + $0x1c] sm:$0xf]
      %v5612 = vld [vmem:[#allocation2 + $0x20] sm:$0xf]
      %v5613 = vld [vmem:[#allocation2 + $0x24] sm:$0xf]
      %v5614 = vld [vmem:[#allocation2 + $0x28] sm:$0xf]
      %v5615 = vld [vmem:[#allocation2 + $0x2c] sm:$0xf]
      %v5616 = vld [vmem:[#allocation2 + $0x30] sm:$0xf]
      %v5617 = vld [vmem:[#allocation2 + $0x34] sm:$0xf]
      %v5618 = vld [vmem:[#allocation2 + $0x38] sm:$0xf]
      %v5619 = vld [vmem:[#allocation2 + $0x3c] sm:$0xf]
      %v5620 = vld [vmem:[#allocation2 + $0x40] sm:$0xf]
      %v5621 = vld [vmem:[#allocation2 + $0x44] sm:$0xf]
      %v5622 = vld [vmem:[#allocation2 + $0x48] sm:$0xf]
      %v5623 = vld [vmem:[#allocation2 + $0x4c] sm:$0xf]
      %v5624 = vld [vmem:[#allocation2 + $0x50] sm:$0xf]
      %v5625 = vld [vmem:[#allocation2 + $0x54] sm:$0xf]
      %v5626 = vld [vmem:[#allocation2 + $0x58] sm:$0xf]
      %v5627 = vld [vmem:[#allocation2 + $0x5c] sm:$0xf]
      %v5628 = vld [vmem:[#allocation2 + $0x60] sm:$0xf]
      %v5629 = vld [vmem:[#allocation2 + $0x64] sm:$0xf]
      %v5630 = vld [vmem:[#allocation2 + $0x68] sm:$0xf]
      %v5631 = vld [vmem:[#allocation2 + $0x6c] sm:$0xf]
      %v5632 = vld [vmem:[#allocation2 + $0x70] sm:$0xf]
      %v5633 = vld [vmem:[#allocation2 + $0x74] sm:$0xf]
      %v5634 = vld [vmem:[#allocation2 + $0x78] sm:$0xf]
      %v5635 = vld [vmem:[#allocation2 + $0x7c] sm:$0xf]
      %v5636 = vld [vmem:[#allocation2 + $0x80] sm:$0xf]
      %v5637 = vld [vmem:[#allocation2 + $0x84] sm:$0xf]
      %v5638 = vld [vmem:[#allocation2 + $0x88] sm:$0xf]
      %v5639 = vld [vmem:[#allocation2 + $0x8c] sm:$0xf]
      %v5640 = vld [vmem:[#allocation2 + $0x90] sm:$0xf]
      %v5641 = vld [vmem:[#allocation2 + $0x94] sm:$0xf]
      %v5642 = vld [vmem:[#allocation2 + $0x98] sm:$0xf]
      %s5643 = scalar_lea.vmem %s4, 192
      %v5644 = vld [vmem:[%s5643] sm:$0xf]
      %v5645 = vld [vmem:[%s5643 + $0x4] sm:$0xf]
      %v5646 = vld [vmem:[%s5643 + $0x8] sm:$0xf]
      %v5647 = vld [vmem:[%s5643 + $0xc] sm:$0xf]
      %v5648 = vld [vmem:[%s5643 + $0x10] sm:$0xf]
      %v5649 = vld [vmem:[%s5643 + $0x14] sm:$0xf]
      %v5650 = vld [vmem:[%s5643 + $0x18] sm:$0xf]
      %v5651 = vld [vmem:[%s5643 + $0x1c] sm:$0xf]
      %v5652 = vld [vmem:[%s5643 + $0x20] sm:$0xf]
      %v5653 = vld [vmem:[%s5643 + $0x24] sm:$0xf]
      %v5654 = vld [vmem:[%s5643 + $0x28] sm:$0xf]
      %v5655 = vld [vmem:[%s5643 + $0x2c] sm:$0xf]
      %v5656 = vld [vmem:[%s5643 + $0x30] sm:$0xf]
      %v5657 = vld [vmem:[%s5643 + $0x34] sm:$0xf]
      %v5658 = vld [vmem:[%s5643 + $0x38] sm:$0xf]
      %v5659 = vld [vmem:[%s5643 + $0x3c] sm:$0xf]
      %v5697 = vunpack.c.l.b16 %v5606
      %v5698 = vunpack.c.l.b16 %v5607
      %v5699 = vunpack.c.l.b16 %v5608
      %v5700 = vunpack.c.l.b16 %v5609
      %v5701 = vunpack.c.l.b16 %v5610
      %v5702 = vunpack.c.l.b16 %v5611
      %v5703 = vunpack.c.l.b16 %v5612
      %v5704 = vunpack.c.l.b16 %v5613
      %v5705 = vunpack.c.l.b16 %v5614
      %v5706 = vunpack.c.l.b16 %v5615
      %v5707 = vunpack.c.l.b16 %v5616
      %v5708 = vunpack.c.l.b16 %v5617
      %v5709 = vunpack.c.l.b16 %v5618
      %v5710 = vunpack.c.l.b16 %v5619
      %v5711 = vunpack.c.l.b16 %v5620
      %v5712 = vunpack.c.l.b16 %v5621
      %v5713 = vunpack.c.l.b16 %v5622
      %v5714 = vunpack.c.l.b16 %v5623
      %v5715 = vunpack.c.l.b16 %v5624
      %v5716 = vunpack.c.l.b16 %v5625
      %v5717 = vunpack.c.l.b16 %v5626
      %v5718 = vunpack.c.l.b16 %v5627
      %v5719 = vunpack.c.l.b16 %v5628
      %v5720 = vunpack.c.l.b16 %v5629
      %v5721 = vunpack.c.l.b16 %v5630
      %v5722 = vunpack.c.l.b16 %v5631
      %v5723 = vunpack.c.l.b16 %v5632
      %v5724 = vunpack.c.l.b16 %v5633
      %v5725 = vunpack.c.l.b16 %v5634
      %v5726 = vunpack.c.l.b16 %v5635
      %v5727 = vunpack.c.l.b16 %v5636
      %v5728 = vunpack.c.l.b16 %v5637
      %v5729 = vunpack.c.l.b16 %v5638
      %v5730 = vunpack.c.l.b16 %v5639
      %v5731 = vunpack.c.l.b16 %v5640
      %v5732 = vunpack.c.l.b16 %v5641
      %v5733 = vunpack.c.l.b16 %v5642
      %v5734 = vpack.c.b16 %v5698, %v5697
      %v5735 = vpack.c.b16 %v5700, %v5699
      %v5736 = vpack.c.b16 %v5702, %v5701
      %v5737 = vpack.c.b16 %v5704, %v5703
      %v5738 = vpack.c.b16 %v5706, %v5705
      %v5739 = vpack.c.b16 %v5708, %v5707
      %v5740 = vpack.c.b16 %v5710, %v5709
      %v5741 = vpack.c.b16 %v5712, %v5711
      %v5742 = vpack.c.b16 %v5714, %v5713
      %v5743 = vpack.c.b16 %v5716, %v5715
      %v5744 = vpack.c.b16 %v5718, %v5717
      %v5745 = vpack.c.b16 %v5720, %v5719
      %v5746 = vpack.c.b16 %v5722, %v5721
      %v5747 = vpack.c.b16 %v5724, %v5723
      %v5748 = vpack.c.b16 %v5726, %v5725
      %v5749 = vpack.c.b16 %v5728, %v5727
      %v5750 = vpack.c.b16 %v5730, %v5729
      %v5751 = vpack.c.b16 %v5732, %v5731
      %v5752 = vpack.c.b16 %v5733, %v5733
      %v5754 = vshrl.u32 %v5734, 16
      %v5756 = vrot.slane %v5754, 3
      %v5757 = vshll.u32 %v5734, 16
      %v5759 = vrot.slane %v5757, 4
      %v5760 = vor.u32 %v5756, %v5759
      %v5762 = vshrl.u32 %v5735, 16
      %v5764 = vrot.slane %v5762, 3
      %v5765 = vshll.u32 %v5735, 16
      %v5767 = vrot.slane %v5765, 4
      %v5768 = vor.u32 %v5764, %v5767
      %v5769 = vsel %vm5241, %v5760, %v5768
      %v5771 = vshrl.u32 %v5736, 16
      %v5773 = vrot.slane %v5771, 3
      %v5774 = vshll.u32 %v5736, 16
      %v5776 = vrot.slane %v5774, 4
      %v5777 = vor.u32 %v5773, %v5776
      %v5778 = vsel %vm5241, %v5768, %v5777
      %v5780 = vshrl.u32 %v5737, 16
      %v5782 = vrot.slane %v5780, 3
      %v5783 = vshll.u32 %v5737, 16
      %v5785 = vrot.slane %v5783, 4
      %v5786 = vor.u32 %v5782, %v5785
      %v5787 = vsel %vm5241, %v5777, %v5786
      %v5789 = vshrl.u32 %v5738, 16
      %v5791 = vrot.slane %v5789, 3
      %v5792 = vshll.u32 %v5738, 16
      %v5794 = vrot.slane %v5792, 4
      %v5795 = vor.u32 %v5791, %v5794
      %v5796 = vsel %vm5241, %v5786, %v5795
      %v5798 = vshrl.u32 %v5739, 16
      %v5800 = vrot.slane %v5798, 3
      %v5801 = vshll.u32 %v5739, 16
      %v5803 = vrot.slane %v5801, 4
      %v5804 = vor.u32 %v5800, %v5803
      %v5805 = vsel %vm5241, %v5795, %v5804
      %v5807 = vshrl.u32 %v5740, 16
      %v5809 = vrot.slane %v5807, 3
      %v5810 = vshll.u32 %v5740, 16
      %v5812 = vrot.slane %v5810, 4
      %v5813 = vor.u32 %v5809, %v5812
      %v5814 = vsel %vm5241, %v5804, %v5813
      %v5816 = vshrl.u32 %v5741, 16
      %v5818 = vrot.slane %v5816, 3
      %v5819 = vshll.u32 %v5741, 16
      %v5821 = vrot.slane %v5819, 4
      %v5822 = vor.u32 %v5818, %v5821
      %v5823 = vsel %vm5241, %v5813, %v5822
      %v5825 = vshrl.u32 %v5742, 16
      %v5827 = vrot.slane %v5825, 3
      %v5828 = vshll.u32 %v5742, 16
      %v5830 = vrot.slane %v5828, 4
      %v5831 = vor.u32 %v5827, %v5830
      %v5832 = vsel %vm5241, %v5822, %v5831
      %v5834 = vshrl.u32 %v5743, 16
      %v5836 = vrot.slane %v5834, 3
      %v5837 = vshll.u32 %v5743, 16
      %v5839 = vrot.slane %v5837, 4
      %v5840 = vor.u32 %v5836, %v5839
      %v5841 = vsel %vm5241, %v5831, %v5840
      %v5843 = vshrl.u32 %v5744, 16
      %v5845 = vrot.slane %v5843, 3
      %v5846 = vshll.u32 %v5744, 16
      %v5848 = vrot.slane %v5846, 4
      %v5849 = vor.u32 %v5845, %v5848
      %v5850 = vsel %vm5241, %v5840, %v5849
      %v5852 = vshrl.u32 %v5745, 16
      %v5854 = vrot.slane %v5852, 3
      %v5855 = vshll.u32 %v5745, 16
      %v5857 = vrot.slane %v5855, 4
      %v5858 = vor.u32 %v5854, %v5857
      %v5859 = vsel %vm5241, %v5849, %v5858
      %v5861 = vshrl.u32 %v5746, 16
      %v5863 = vrot.slane %v5861, 3
      %v5864 = vshll.u32 %v5746, 16
      %v5866 = vrot.slane %v5864, 4
      %v5867 = vor.u32 %v5863, %v5866
      %v5868 = vsel %vm5241, %v5858, %v5867
      %v5870 = vshrl.u32 %v5747, 16
      %v5872 = vrot.slane %v5870, 3
      %v5873 = vshll.u32 %v5747, 16
      %v5875 = vrot.slane %v5873, 4
      %v5876 = vor.u32 %v5872, %v5875
      %v5877 = vsel %vm5241, %v5867, %v5876
      %v5879 = vshrl.u32 %v5748, 16
      %v5881 = vrot.slane %v5879, 3
      %v5882 = vshll.u32 %v5748, 16
      %v5884 = vrot.slane %v5882, 4
      %v5885 = vor.u32 %v5881, %v5884
      %v5886 = vsel %vm5241, %v5876, %v5885
      %v5888 = vshrl.u32 %v5749, 16
      %v5890 = vrot.slane %v5888, 3
      %v5891 = vshll.u32 %v5749, 16
      %v5893 = vrot.slane %v5891, 4
      %v5894 = vor.u32 %v5890, %v5893
      %v5895 = vsel %vm5241, %v5885, %v5894
      %v5897 = vshrl.u32 %v5750, 16
      %v5899 = vrot.slane %v5897, 3
      %v5900 = vshll.u32 %v5750, 16
      %v5902 = vrot.slane %v5900, 4
      %v5903 = vor.u32 %v5899, %v5902
      %v5904 = vsel %vm5241, %v5894, %v5903
      %v5906 = vshrl.u32 %v5751, 16
      %v5908 = vrot.slane %v5906, 3
      %v5909 = vshll.u32 %v5751, 16
      %v5911 = vrot.slane %v5909, 4
      %v5912 = vor.u32 %v5908, %v5911
      %v5913 = vsel %vm5241, %v5903, %v5912
      %v5915 = vshrl.u32 %v5752, 16
      %v5917 = vrot.slane %v5915, 3
      %v5918 = vshll.u32 %v5752, 16
      %v5920 = vrot.slane %v5918, 4
      %v5921 = vor.u32 %v5917, %v5920
      %v5922 = vsel %vm5241, %v5912, %v5921
      %v5957 = vunpack.c.l.b16 %v5644
      %v5958 = vunpack.c.l.b16 %v5645
      %v5959 = vunpack.c.l.b16 %v5646
      %v5960 = vunpack.c.l.b16 %v5647
      %v5961 = vunpack.c.l.b16 %v5648
      %v5962 = vunpack.c.l.b16 %v5649
      %v5963 = vunpack.c.l.b16 %v5650
      %v5964 = vunpack.c.l.b16 %v5651
      %v5965 = vunpack.c.l.b16 %v5652
      %v5966 = vunpack.c.l.b16 %v5653
      %v5967 = vunpack.c.l.b16 %v5654
      %v5968 = vunpack.c.l.b16 %v5655
      %v5969 = vunpack.c.l.b16 %v5656
      %v5970 = vunpack.c.l.b16 %v5657
      %v5971 = vunpack.c.l.b16 %v5658
      %v5972 = vunpack.c.l.b16 %v5659
      %v5973 = vpack.c.b16 %v5958, %v5957
      %v5974 = vpack.c.b16 %v5960, %v5959
      %v5975 = vpack.c.b16 %v5962, %v5961
      %v5976 = vpack.c.b16 %v5964, %v5963
      %v5977 = vpack.c.b16 %v5966, %v5965
      %v5978 = vpack.c.b16 %v5968, %v5967
      %v5979 = vpack.c.b16 %v5970, %v5969
      %v5980 = vpack.c.b16 %v5972, %v5971
      %5989 = vmatprep.subr.bf16.mxu0 0
      %5990 = vmatpush1.bf16.msra.mxu0 %v5980
      %5991 = vmatprep.subr.bf16.mxu0 0
      %5992 = vmatpush1.bf16.msra.mxu0 %v5979
      %5993 = vmatprep.subr.bf16.mxu0 0
      %5994 = vmatpush1.bf16.msra.mxu0 %v5978
      %5995 = vmatprep.subr.bf16.mxu0 0
      %5996 = vmatpush1.bf16.msra.mxu0 %v5977
      %5997 = vmatprep.subr.bf16.mxu0 0
      %5998 = vmatpush1.bf16.msra.mxu0 %v5976
      %5999 = vmatprep.subr.bf16.mxu0 0
      %6000 = vmatpush1.bf16.msra.mxu0 %v5975
      %6001 = vmatprep.subr.bf16.mxu0 0
      %6002 = vmatpush1.bf16.msra.mxu0 %v5974
      %6003 = vmatprep.subr.bf16.mxu0 0
      %6004 = vmatpush1.bf16.msra.mxu0 %v5973
      %6005 = vmatprep.subr.bf16.mxu0 0
      %6006 = vmatpush2.bf16.msra.mxu0 0
      %6007 = vmatprep.subr.bf16.mxu0 0
      %6008 = vmatpush2.bf16.msra.mxu0 0
      %6009 = vmatprep.subr.bf16.mxu0 0
      %6010 = vmatpush2.bf16.msra.mxu0 0
      %6011 = vmatprep.subr.bf16.mxu0 0
      %6012 = vmatpush2.bf16.msra.mxu0 0
      %6013 = vmatprep.subr.bf16.mxu0 0
      %6014 = vmatpush2.bf16.msra.mxu0 0
      %6015 = vmatprep.subr.bf16.mxu0 0
      %6016 = vmatpush2.bf16.msra.mxu0 0
      %6017 = vmatprep.subr.bf16.mxu0 0
      %6018 = vmatpush2.bf16.msra.mxu0 0
      %6019 = vmatprep.subr.bf16.mxu0 0
      %6020 = vmatpush2.bf16.msra.mxu0 0
      %6021 = vmatprep.mubr.bf16.mxu0 0
      %6022 = vmatmul.mubr.bf16.gmra.mxu0 %v5769
      %v6023 = vpop.f32.mrf.mxu0
      %v6024 = vadd.f32 0.0, %v6023
      %v6025 = vpop.f32.mrf.mxu0
      %v6026 = vpop.f32.mrf.mxu0
      %v6027 = vadd.f32 0.0, %v6026
      %v6028 = vpop.f32.mrf.mxu0
      %6029 = vmatprep.mubr.bf16.mxu0 0
      %6030 = vmatmul.mubr.bf16.gmra.mxu0 %v5778
      %v6031 = vpop.f32.mrf.mxu0
      %v6032 = vadd.f32 0.0, %v6031
      %v6033 = vpop.f32.mrf.mxu0
      %v6034 = vpop.f32.mrf.mxu0
      %v6035 = vadd.f32 0.0, %v6034
      %v6036 = vpop.f32.mrf.mxu0
      %6037 = vmatprep.mubr.bf16.mxu0 0
      %6038 = vmatmul.mubr.bf16.gmra.mxu0 %v5787
      %v6039 = vpop.f32.mrf.mxu0
      %v6040 = vadd.f32 0.0, %v6039
      %v6041 = vpop.f32.mrf.mxu0
      %v6042 = vpop.f32.mrf.mxu0
      %v6043 = vadd.f32 0.0, %v6042
      %v6044 = vpop.f32.mrf.mxu0
      %6045 = vmatprep.mubr.bf16.mxu0 0
      %6046 = vmatmul.mubr.bf16.gmra.mxu0 %v5796
      %v6047 = vpop.f32.mrf.mxu0
      %v6048 = vadd.f32 0.0, %v6047
      %v6049 = vpop.f32.mrf.mxu0
      %v6050 = vpop.f32.mrf.mxu0
      %v6051 = vadd.f32 0.0, %v6050
      %v6052 = vpop.f32.mrf.mxu0
      %6053 = vmatprep.mubr.bf16.mxu0 0
      %6054 = vmatmul.mubr.bf16.gmra.mxu0 %v5805
      %v6055 = vpop.f32.mrf.mxu0
      %v6056 = vadd.f32 0.0, %v6055
      %v6057 = vpop.f32.mrf.mxu0
      %v6058 = vpop.f32.mrf.mxu0
      %v6059 = vadd.f32 0.0, %v6058
      %v6060 = vpop.f32.mrf.mxu0
      %6061 = vmatprep.mubr.bf16.mxu0 0
      %6062 = vmatmul.mubr.bf16.gmra.mxu0 %v5814
      %v6063 = vpop.f32.mrf.mxu0
      %v6064 = vadd.f32 0.0, %v6063
      %v6065 = vpop.f32.mrf.mxu0
      %v6066 = vpop.f32.mrf.mxu0
      %v6067 = vadd.f32 0.0, %v6066
      %v6068 = vpop.f32.mrf.mxu0
      %6069 = vmatprep.mubr.bf16.mxu0 0
      %6070 = vmatmul.mubr.bf16.gmra.mxu0 %v5823
      %v6071 = vpop.f32.mrf.mxu0
      %v6072 = vadd.f32 0.0, %v6071
      %v6073 = vpop.f32.mrf.mxu0
      %v6074 = vpop.f32.mrf.mxu0
      %v6075 = vadd.f32 0.0, %v6074
      %v6076 = vpop.f32.mrf.mxu0
      %6077 = vmatprep.mubr.bf16.mxu0 0
      %6078 = vmatmul.mubr.bf16.gmra.mxu0 %v5832
      %v6079 = vpop.f32.mrf.mxu0
      %v6080 = vadd.f32 0.0, %v6079
      %v6081 = vpop.f32.mrf.mxu0
      %v6082 = vpop.f32.mrf.mxu0
      %v6083 = vadd.f32 0.0, %v6082
      %v6084 = vpop.f32.mrf.mxu0
      %6085 = vmatprep.mubr.bf16.mxu0 0
      %6086 = vmatmul.mubr.bf16.gmra.mxu0 %v5841
      %v6087 = vpop.f32.mrf.mxu0
      %v6088 = vadd.f32 0.0, %v6087
      %v6089 = vpop.f32.mrf.mxu0
      %v6090 = vpop.f32.mrf.mxu0
      %v6091 = vadd.f32 0.0, %v6090
      %v6092 = vpop.f32.mrf.mxu0
      %6093 = vmatprep.mubr.bf16.mxu0 0
      %6094 = vmatmul.mubr.bf16.gmra.mxu0 %v5850
      %v6095 = vpop.f32.mrf.mxu0
      %v6096 = vadd.f32 0.0, %v6095
      %v6097 = vpop.f32.mrf.mxu0
      %v6098 = vpop.f32.mrf.mxu0
      %v6099 = vadd.f32 0.0, %v6098
      %v6100 = vpop.f32.mrf.mxu0
      %6101 = vmatprep.mubr.bf16.mxu0 0
      %6102 = vmatmul.mubr.bf16.gmra.mxu0 %v5859
      %v6103 = vpop.f32.mrf.mxu0
      %v6104 = vadd.f32 0.0, %v6103
      %v6105 = vpop.f32.mrf.mxu0
      %v6106 = vpop.f32.mrf.mxu0
      %v6107 = vadd.f32 0.0, %v6106
      %v6108 = vpop.f32.mrf.mxu0
      %6109 = vmatprep.mubr.bf16.mxu0 0
      %6110 = vmatmul.mubr.bf16.gmra.mxu0 %v5868
      %v6111 = vpop.f32.mrf.mxu0
      %v6112 = vadd.f32 0.0, %v6111
      %v6113 = vpop.f32.mrf.mxu0
      %v6114 = vpop.f32.mrf.mxu0
      %v6115 = vadd.f32 0.0, %v6114
      %v6116 = vpop.f32.mrf.mxu0
      %6117 = vmatprep.mubr.bf16.mxu0 0
      %6118 = vmatmul.mubr.bf16.gmra.mxu0 %v5877
      %v6119 = vpop.f32.mrf.mxu0
      %v6120 = vadd.f32 0.0, %v6119
      %v6121 = vpop.f32.mrf.mxu0
      %v6122 = vpop.f32.mrf.mxu0
      %v6123 = vadd.f32 0.0, %v6122
      %v6124 = vpop.f32.mrf.mxu0
      %6125 = vmatprep.mubr.bf16.mxu0 0
      %6126 = vmatmul.mubr.bf16.gmra.mxu0 %v5886
      %v6127 = vpop.f32.mrf.mxu0
      %v6128 = vadd.f32 0.0, %v6127
      %v6129 = vpop.f32.mrf.mxu0
      %v6130 = vpop.f32.mrf.mxu0
      %v6131 = vadd.f32 0.0, %v6130
      %v6132 = vpop.f32.mrf.mxu0
      %6133 = vmatprep.mubr.bf16.mxu0 0
      %6134 = vmatmul.mubr.bf16.gmra.mxu0 %v5895
      %v6135 = vpop.f32.mrf.mxu0
      %v6136 = vadd.f32 0.0, %v6135
      %v6137 = vpop.f32.mrf.mxu0
      %v6138 = vpop.f32.mrf.mxu0
      %v6139 = vadd.f32 0.0, %v6138
      %v6140 = vpop.f32.mrf.mxu0
      %6141 = vmatprep.mubr.bf16.mxu0 0
      %6142 = vmatmul.mubr.bf16.gmra.mxu0 %v5904
      %v6143 = vpop.f32.mrf.mxu0
      %v6144 = vadd.f32 0.0, %v6143
      %v6145 = vpop.f32.mrf.mxu0
      %v6146 = vpop.f32.mrf.mxu0
      %v6147 = vadd.f32 0.0, %v6146
      %v6148 = vpop.f32.mrf.mxu0
      %6149 = vmatprep.mubr.bf16.mxu0 0
      %6150 = vmatmul.mubr.bf16.gmra.mxu0 %v5913
      %v6151 = vpop.f32.mrf.mxu0
      %v6152 = vadd.f32 0.0, %v6151
      %v6153 = vpop.f32.mrf.mxu0
      %v6154 = vpop.f32.mrf.mxu0
      %v6155 = vadd.f32 0.0, %v6154
      %v6156 = vpop.f32.mrf.mxu0
      %6157 = vmatprep.mubr.bf16.mxu0 0
      %6158 = vmatmul.mubr.bf16.gmra.mxu0 %v5922
      %v6159 = vpop.f32.mrf.mxu0
      %v6160 = vadd.f32 0.0, %v6159
      %v6161 = vpop.f32.mrf.mxu0
      %v6162 = vpop.f32.mrf.mxu0
      %v6163 = vadd.f32 0.0, %v6162
      %v6164 = vpop.f32.mrf.mxu0
      %6165 = vdwg.mxu0
      %v6166 = vadd.f32 %v5570, %v6024
      %v6167 = vadd.f32 %v5571, %v6027
      %v6168 = vadd.f32 %v5572, %v6032
      %v6169 = vadd.f32 %v5573, %v6035
      %v6170 = vadd.f32 %v5574, %v6040
      %v6171 = vadd.f32 %v5575, %v6043
      %v6172 = vadd.f32 %v5576, %v6048
      %v6173 = vadd.f32 %v5577, %v6051
      %v6174 = vadd.f32 %v5578, %v6056
      %v6175 = vadd.f32 %v5579, %v6059
      %v6176 = vadd.f32 %v5580, %v6064
      %v6177 = vadd.f32 %v5581, %v6067
      %v6178 = vadd.f32 %v5582, %v6072
      %v6179 = vadd.f32 %v5583, %v6075
      %v6180 = vadd.f32 %v5584, %v6080
      %v6181 = vadd.f32 %v5585, %v6083
      %v6182 = vadd.f32 %v5586, %v6088
      %v6183 = vadd.f32 %v5587, %v6091
      %v6184 = vadd.f32 %v5588, %v6096
      %v6185 = vadd.f32 %v5589, %v6099
      %v6186 = vadd.f32 %v5590, %v6104
      %v6187 = vadd.f32 %v5591, %v6107
      %v6188 = vadd.f32 %v5592, %v6112
      %v6189 = vadd.f32 %v5593, %v6115
      %v6190 = vadd.f32 %v5594, %v6120
      %v6191 = vadd.f32 %v5595, %v6123
      %v6192 = vadd.f32 %v5596, %v6128
      %v6193 = vadd.f32 %v5597, %v6131
      %v6194 = vadd.f32 %v5598, %v6136
      %v6195 = vadd.f32 %v5599, %v6139
      %v6196 = vadd.f32 %v5600, %v6144
      %v6197 = vadd.f32 %v5601, %v6147
      %v6198 = vadd.f32 %v5602, %v6152
      %v6199 = vadd.f32 %v5603, %v6155
      %v6200 = vadd.f32 %v5604, %v6160
      %v6201 = vadd.f32 %v5605, %v6163
      %s6202 = scalar_lea.vmem %s4, 256
      %v6203 = vld [vmem:[%s6202] sm:$0xf]
      %v6204 = vld [vmem:[%s6202 + $0x4] sm:$0xf]
      %v6205 = vld [vmem:[%s6202 + $0x8] sm:$0xf]
      %v6206 = vld [vmem:[%s6202 + $0xc] sm:$0xf]
      %v6207 = vld [vmem:[%s6202 + $0x10] sm:$0xf]
      %v6208 = vld [vmem:[%s6202 + $0x14] sm:$0xf]
      %v6209 = vld [vmem:[%s6202 + $0x18] sm:$0xf]
      %v6210 = vld [vmem:[%s6202 + $0x1c] sm:$0xf]
      %v6211 = vld [vmem:[%s6202 + $0x20] sm:$0xf]
      %v6212 = vld [vmem:[%s6202 + $0x24] sm:$0xf]
      %v6213 = vld [vmem:[%s6202 + $0x28] sm:$0xf]
      %v6214 = vld [vmem:[%s6202 + $0x2c] sm:$0xf]
      %v6215 = vld [vmem:[%s6202 + $0x30] sm:$0xf]
      %v6216 = vld [vmem:[%s6202 + $0x34] sm:$0xf]
      %v6217 = vld [vmem:[%s6202 + $0x38] sm:$0xf]
      %v6218 = vld [vmem:[%s6202 + $0x3c] sm:$0xf]
      %v6219 = vpack.c.b16 %v5699, %v5698
      %v6220 = vpack.c.b16 %v5701, %v5700
      %v6221 = vpack.c.b16 %v5703, %v5702
      %v6222 = vpack.c.b16 %v5705, %v5704
      %v6223 = vpack.c.b16 %v5707, %v5706
      %v6224 = vpack.c.b16 %v5709, %v5708
      %v6225 = vpack.c.b16 %v5711, %v5710
      %v6226 = vpack.c.b16 %v5713, %v5712
      %v6227 = vpack.c.b16 %v5715, %v5714
      %v6228 = vpack.c.b16 %v5717, %v5716
      %v6229 = vpack.c.b16 %v5719, %v5718
      %v6230 = vpack.c.b16 %v5721, %v5720
      %v6231 = vpack.c.b16 %v5723, %v5722
      %v6232 = vpack.c.b16 %v5725, %v5724
      %v6233 = vpack.c.b16 %v5727, %v5726
      %v6234 = vpack.c.b16 %v5729, %v5728
      %v6235 = vpack.c.b16 %v5731, %v5730
      %v6236 = vpack.c.b16 %v5733, %v5732
      %v6271 = vunpack.c.l.b16 %v6203
      %v6272 = vunpack.c.l.b16 %v6204
      %v6273 = vunpack.c.l.b16 %v6205
      %v6274 = vunpack.c.l.b16 %v6206
      %v6275 = vunpack.c.l.b16 %v6207
      %v6276 = vunpack.c.l.b16 %v6208
      %v6277 = vunpack.c.l.b16 %v6209
      %v6278 = vunpack.c.l.b16 %v6210
      %v6279 = vunpack.c.l.b16 %v6211
      %v6280 = vunpack.c.l.b16 %v6212
      %v6281 = vunpack.c.l.b16 %v6213
      %v6282 = vunpack.c.l.b16 %v6214
      %v6283 = vunpack.c.l.b16 %v6215
      %v6284 = vunpack.c.l.b16 %v6216
      %v6285 = vunpack.c.l.b16 %v6217
      %v6286 = vunpack.c.l.b16 %v6218
      %v6287 = vpack.c.b16 %v6272, %v6271
      %v6288 = vpack.c.b16 %v6274, %v6273
      %v6289 = vpack.c.b16 %v6276, %v6275
      %v6290 = vpack.c.b16 %v6278, %v6277
      %v6291 = vpack.c.b16 %v6280, %v6279
      %v6292 = vpack.c.b16 %v6282, %v6281
      %v6293 = vpack.c.b16 %v6284, %v6283
      %v6294 = vpack.c.b16 %v6286, %v6285
      %6303 = vmatprep.subr.bf16.mxu0 0
      %6304 = vmatpush1.bf16.msra.mxu0 %v6294
      %6305 = vmatprep.subr.bf16.mxu0 0
      %6306 = vmatpush1.bf16.msra.mxu0 %v6293
      %6307 = vmatprep.subr.bf16.mxu0 0
      %6308 = vmatpush1.bf16.msra.mxu0 %v6292
      %6309 = vmatprep.subr.bf16.mxu0 0
      %6310 = vmatpush1.bf16.msra.mxu0 %v6291
      %6311 = vmatprep.subr.bf16.mxu0 0
      %6312 = vmatpush1.bf16.msra.mxu0 %v6290
      %6313 = vmatprep.subr.bf16.mxu0 0
      %6314 = vmatpush1.bf16.msra.mxu0 %v6289
      %6315 = vmatprep.subr.bf16.mxu0 0
      %6316 = vmatpush1.bf16.msra.mxu0 %v6288
      %6317 = vmatprep.subr.bf16.mxu0 0
      %6318 = vmatpush1.bf16.msra.mxu0 %v6287
      %6319 = vmatprep.subr.bf16.mxu0 0
      %6320 = vmatpush2.bf16.msra.mxu0 0
      %6321 = vmatprep.subr.bf16.mxu0 0
      %6322 = vmatpush2.bf16.msra.mxu0 0
      %6323 = vmatprep.subr.bf16.mxu0 0
      %6324 = vmatpush2.bf16.msra.mxu0 0
      %6325 = vmatprep.subr.bf16.mxu0 0
      %6326 = vmatpush2.bf16.msra.mxu0 0
      %6327 = vmatprep.subr.bf16.mxu0 0
      %6328 = vmatpush2.bf16.msra.mxu0 0
      %6329 = vmatprep.subr.bf16.mxu0 0
      %6330 = vmatpush2.bf16.msra.mxu0 0
      %6331 = vmatprep.subr.bf16.mxu0 0
      %6332 = vmatpush2.bf16.msra.mxu0 0
      %6333 = vmatprep.subr.bf16.mxu0 0
      %6334 = vmatpush2.bf16.msra.mxu0 0
      %6335 = vmatprep.mubr.bf16.mxu0 0
      %6336 = vmatmul.mubr.bf16.gmra.mxu0 %v6219
      %v6337 = vpop.f32.mrf.mxu0
      %v6338 = vadd.f32 0.0, %v6337
      %v6339 = vpop.f32.mrf.mxu0
      %v6340 = vpop.f32.mrf.mxu0
      %v6341 = vadd.f32 0.0, %v6340
      %v6342 = vpop.f32.mrf.mxu0
      %6343 = vmatprep.mubr.bf16.mxu0 0
      %6344 = vmatmul.mubr.bf16.gmra.mxu0 %v6220
      %v6345 = vpop.f32.mrf.mxu0
      %v6346 = vadd.f32 0.0, %v6345
      %v6347 = vpop.f32.mrf.mxu0
      %v6348 = vpop.f32.mrf.mxu0
      %v6349 = vadd.f32 0.0, %v6348
      %v6350 = vpop.f32.mrf.mxu0
      %6351 = vmatprep.mubr.bf16.mxu0 0
      %6352 = vmatmul.mubr.bf16.gmra.mxu0 %v6221
      %v6353 = vpop.f32.mrf.mxu0
      %v6354 = vadd.f32 0.0, %v6353
      %v6355 = vpop.f32.mrf.mxu0
      %v6356 = vpop.f32.mrf.mxu0
      %v6357 = vadd.f32 0.0, %v6356
      %v6358 = vpop.f32.mrf.mxu0
      %6359 = vmatprep.mubr.bf16.mxu0 0
      %6360 = vmatmul.mubr.bf16.gmra.mxu0 %v6222
      %v6361 = vpop.f32.mrf.mxu0
      %v6362 = vadd.f32 0.0, %v6361
      %v6363 = vpop.f32.mrf.mxu0
      %v6364 = vpop.f32.mrf.mxu0
      %v6365 = vadd.f32 0.0, %v6364
      %v6366 = vpop.f32.mrf.mxu0
      %6367 = vmatprep.mubr.bf16.mxu0 0
      %6368 = vmatmul.mubr.bf16.gmra.mxu0 %v6223
      %v6369 = vpop.f32.mrf.mxu0
      %v6370 = vadd.f32 0.0, %v6369
      %v6371 = vpop.f32.mrf.mxu0
      %v6372 = vpop.f32.mrf.mxu0
      %v6373 = vadd.f32 0.0, %v6372
      %v6374 = vpop.f32.mrf.mxu0
      %6375 = vmatprep.mubr.bf16.mxu0 0
      %6376 = vmatmul.mubr.bf16.gmra.mxu0 %v6224
      %v6377 = vpop.f32.mrf.mxu0
      %v6378 = vadd.f32 0.0, %v6377
      %v6379 = vpop.f32.mrf.mxu0
      %v6380 = vpop.f32.mrf.mxu0
      %v6381 = vadd.f32 0.0, %v6380
      %v6382 = vpop.f32.mrf.mxu0
      %6383 = vmatprep.mubr.bf16.mxu0 0
      %6384 = vmatmul.mubr.bf16.gmra.mxu0 %v6225
      %v6385 = vpop.f32.mrf.mxu0
      %v6386 = vadd.f32 0.0, %v6385
      %v6387 = vpop.f32.mrf.mxu0
      %v6388 = vpop.f32.mrf.mxu0
      %v6389 = vadd.f32 0.0, %v6388
      %v6390 = vpop.f32.mrf.mxu0
      %6391 = vmatprep.mubr.bf16.mxu0 0
      %6392 = vmatmul.mubr.bf16.gmra.mxu0 %v6226
      %v6393 = vpop.f32.mrf.mxu0
      %v6394 = vadd.f32 0.0, %v6393
      %v6395 = vpop.f32.mrf.mxu0
      %v6396 = vpop.f32.mrf.mxu0
      %v6397 = vadd.f32 0.0, %v6396
      %v6398 = vpop.f32.mrf.mxu0
      %6399 = vmatprep.mubr.bf16.mxu0 0
      %6400 = vmatmul.mubr.bf16.gmra.mxu0 %v6227
      %v6401 = vpop.f32.mrf.mxu0
      %v6402 = vadd.f32 0.0, %v6401
      %v6403 = vpop.f32.mrf.mxu0
      %v6404 = vpop.f32.mrf.mxu0
      %v6405 = vadd.f32 0.0, %v6404
      %v6406 = vpop.f32.mrf.mxu0
      %6407 = vmatprep.mubr.bf16.mxu0 0
      %6408 = vmatmul.mubr.bf16.gmra.mxu0 %v6228
      %v6409 = vpop.f32.mrf.mxu0
      %v6410 = vadd.f32 0.0, %v6409
      %v6411 = vpop.f32.mrf.mxu0
      %v6412 = vpop.f32.mrf.mxu0
      %v6413 = vadd.f32 0.0, %v6412
      %v6414 = vpop.f32.mrf.mxu0
      %6415 = vmatprep.mubr.bf16.mxu0 0
      %6416 = vmatmul.mubr.bf16.gmra.mxu0 %v6229
      %v6417 = vpop.f32.mrf.mxu0
      %v6418 = vadd.f32 0.0, %v6417
      %v6419 = vpop.f32.mrf.mxu0
      %v6420 = vpop.f32.mrf.mxu0
      %v6421 = vadd.f32 0.0, %v6420
      %v6422 = vpop.f32.mrf.mxu0
      %6423 = vmatprep.mubr.bf16.mxu0 0
      %6424 = vmatmul.mubr.bf16.gmra.mxu0 %v6230
      %v6425 = vpop.f32.mrf.mxu0
      %v6426 = vadd.f32 0.0, %v6425
      %v6427 = vpop.f32.mrf.mxu0
      %v6428 = vpop.f32.mrf.mxu0
      %v6429 = vadd.f32 0.0, %v6428
      %v6430 = vpop.f32.mrf.mxu0
      %6431 = vmatprep.mubr.bf16.mxu0 0
      %6432 = vmatmul.mubr.bf16.gmra.mxu0 %v6231
      %v6433 = vpop.f32.mrf.mxu0
      %v6434 = vadd.f32 0.0, %v6433
      %v6435 = vpop.f32.mrf.mxu0
      %v6436 = vpop.f32.mrf.mxu0
      %v6437 = vadd.f32 0.0, %v6436
      %v6438 = vpop.f32.mrf.mxu0
      %6439 = vmatprep.mubr.bf16.mxu0 0
      %6440 = vmatmul.mubr.bf16.gmra.mxu0 %v6232
      %v6441 = vpop.f32.mrf.mxu0
      %v6442 = vadd.f32 0.0, %v6441
      %v6443 = vpop.f32.mrf.mxu0
      %v6444 = vpop.f32.mrf.mxu0
      %v6445 = vadd.f32 0.0, %v6444
      %v6446 = vpop.f32.mrf.mxu0
      %6447 = vmatprep.mubr.bf16.mxu0 0
      %6448 = vmatmul.mubr.bf16.gmra.mxu0 %v6233
      %v6449 = vpop.f32.mrf.mxu0
      %v6450 = vadd.f32 0.0, %v6449
      %v6451 = vpop.f32.mrf.mxu0
      %v6452 = vpop.f32.mrf.mxu0
      %v6453 = vadd.f32 0.0, %v6452
      %v6454 = vpop.f32.mrf.mxu0
      %6455 = vmatprep.mubr.bf16.mxu0 0
      %6456 = vmatmul.mubr.bf16.gmra.mxu0 %v6234
      %v6457 = vpop.f32.mrf.mxu0
      %v6458 = vadd.f32 0.0, %v6457
      %v6459 = vpop.f32.mrf.mxu0
      %v6460 = vpop.f32.mrf.mxu0
      %v6461 = vadd.f32 0.0, %v6460
      %v6462 = vpop.f32.mrf.mxu0
      %6463 = vmatprep.mubr.bf16.mxu0 0
      %6464 = vmatmul.mubr.bf16.gmra.mxu0 %v6235
      %v6465 = vpop.f32.mrf.mxu0
      %v6466 = vadd.f32 0.0, %v6465
      %v6467 = vpop.f32.mrf.mxu0
      %v6468 = vpop.f32.mrf.mxu0
      %v6469 = vadd.f32 0.0, %v6468
      %v6470 = vpop.f32.mrf.mxu0
      %6471 = vmatprep.mubr.bf16.mxu0 0
      %6472 = vmatmul.mubr.bf16.gmra.mxu0 %v6236
      %v6473 = vpop.f32.mrf.mxu0
      %v6474 = vadd.f32 0.0, %v6473
      %v6475 = vpop.f32.mrf.mxu0
      %v6476 = vpop.f32.mrf.mxu0
      %v6477 = vadd.f32 0.0, %v6476
      %v6478 = vpop.f32.mrf.mxu0
      %6479 = vdwg.mxu0
      %v6480 = vadd.f32 %v6166, %v6338
      %v6481 = vadd.f32 %v6167, %v6341
      %v6482 = vadd.f32 %v6168, %v6346
      %v6483 = vadd.f32 %v6169, %v6349
      %v6484 = vadd.f32 %v6170, %v6354
      %v6485 = vadd.f32 %v6171, %v6357
      %v6486 = vadd.f32 %v6172, %v6362
      %v6487 = vadd.f32 %v6173, %v6365
      %v6488 = vadd.f32 %v6174, %v6370
      %v6489 = vadd.f32 %v6175, %v6373
      %v6490 = vadd.f32 %v6176, %v6378
      %v6491 = vadd.f32 %v6177, %v6381
      %v6492 = vadd.f32 %v6178, %v6386
      %v6493 = vadd.f32 %v6179, %v6389
      %v6494 = vadd.f32 %v6180, %v6394
      %v6495 = vadd.f32 %v6181, %v6397
      %v6496 = vadd.f32 %v6182, %v6402
      %v6497 = vadd.f32 %v6183, %v6405
      %v6498 = vadd.f32 %v6184, %v6410
      %v6499 = vadd.f32 %v6185, %v6413
      %v6500 = vadd.f32 %v6186, %v6418
      %v6501 = vadd.f32 %v6187, %v6421
      %v6502 = vadd.f32 %v6188, %v6426
      %v6503 = vadd.f32 %v6189, %v6429
      %v6504 = vadd.f32 %v6190, %v6434
      %v6505 = vadd.f32 %v6191, %v6437
      %v6506 = vadd.f32 %v6192, %v6442
      %v6507 = vadd.f32 %v6193, %v6445
      %v6508 = vadd.f32 %v6194, %v6450
      %v6509 = vadd.f32 %v6195, %v6453
      %v6510 = vadd.f32 %v6196, %v6458
      %v6511 = vadd.f32 %v6197, %v6461
      %v6512 = vadd.f32 %v6198, %v6466
      %v6513 = vadd.f32 %v6199, %v6469
      %v6514 = vadd.f32 %v6200, %v6474
      %v6515 = vadd.f32 %v6201, %v6477
      %v6516 = vld [vmem:[#allocation2 + $0xc] sm:$0xf]
      %v6517 = vld [vmem:[#allocation2 + $0x10] sm:$0xf]
      %v6518 = vld [vmem:[#allocation2 + $0x14] sm:$0xf]
      %v6519 = vld [vmem:[#allocation2 + $0x18] sm:$0xf]
      %v6520 = vld [vmem:[#allocation2 + $0x1c] sm:$0xf]
      %v6521 = vld [vmem:[#allocation2 + $0x20] sm:$0xf]
      %v6522 = vld [vmem:[#allocation2 + $0x24] sm:$0xf]
      %v6523 = vld [vmem:[#allocation2 + $0x28] sm:$0xf]
      %v6524 = vld [vmem:[#allocation2 + $0x2c] sm:$0xf]
      %v6525 = vld [vmem:[#allocation2 + $0x30] sm:$0xf]
      %v6526 = vld [vmem:[#allocation2 + $0x34] sm:$0xf]
      %v6527 = vld [vmem:[#allocation2 + $0x38] sm:$0xf]
      %v6528 = vld [vmem:[#allocation2 + $0x3c] sm:$0xf]
      %v6529 = vld [vmem:[#allocation2 + $0x40] sm:$0xf]
      %v6530 = vld [vmem:[#allocation2 + $0x44] sm:$0xf]
      %v6531 = vld [vmem:[#allocation2 + $0x48] sm:$0xf]
      %v6532 = vld [vmem:[#allocation2 + $0x4c] sm:$0xf]
      %v6533 = vld [vmem:[#allocation2 + $0x50] sm:$0xf]
      %v6534 = vld [vmem:[#allocation2 + $0x54] sm:$0xf]
      %v6535 = vld [vmem:[#allocation2 + $0x58] sm:$0xf]
      %v6536 = vld [vmem:[#allocation2 + $0x5c] sm:$0xf]
      %v6537 = vld [vmem:[#allocation2 + $0x60] sm:$0xf]
      %v6538 = vld [vmem:[#allocation2 + $0x64] sm:$0xf]
      %v6539 = vld [vmem:[#allocation2 + $0x68] sm:$0xf]
      %v6540 = vld [vmem:[#allocation2 + $0x6c] sm:$0xf]
      %v6541 = vld [vmem:[#allocation2 + $0x70] sm:$0xf]
      %v6542 = vld [vmem:[#allocation2 + $0x74] sm:$0xf]
      %v6543 = vld [vmem:[#allocation2 + $0x78] sm:$0xf]
      %v6544 = vld [vmem:[#allocation2 + $0x7c] sm:$0xf]
      %v6545 = vld [vmem:[#allocation2 + $0x80] sm:$0xf]
      %v6546 = vld [vmem:[#allocation2 + $0x84] sm:$0xf]
      %v6547 = vld [vmem:[#allocation2 + $0x88] sm:$0xf]
      %v6548 = vld [vmem:[#allocation2 + $0x8c] sm:$0xf]
      %v6549 = vld [vmem:[#allocation2 + $0x90] sm:$0xf]
      %v6550 = vld [vmem:[#allocation2 + $0x94] sm:$0xf]
      %v6551 = vld [vmem:[#allocation2 + $0x98] sm:$0xf]
      %v6552 = vld [vmem:[#allocation2 + $0x9c] sm:$0x1]
      %s6553 = scalar_lea.vmem %s4, 320
      %v6554 = vld [vmem:[%s6553] sm:$0xf]
      %v6555 = vld [vmem:[%s6553 + $0x4] sm:$0xf]
      %v6556 = vld [vmem:[%s6553 + $0x8] sm:$0xf]
      %v6557 = vld [vmem:[%s6553 + $0xc] sm:$0xf]
      %v6558 = vld [vmem:[%s6553 + $0x10] sm:$0xf]
      %v6559 = vld [vmem:[%s6553 + $0x14] sm:$0xf]
      %v6560 = vld [vmem:[%s6553 + $0x18] sm:$0xf]
      %v6561 = vld [vmem:[%s6553 + $0x1c] sm:$0xf]
      %v6562 = vld [vmem:[%s6553 + $0x20] sm:$0xf]
      %v6563 = vld [vmem:[%s6553 + $0x24] sm:$0xf]
      %v6564 = vld [vmem:[%s6553 + $0x28] sm:$0xf]
      %v6565 = vld [vmem:[%s6553 + $0x2c] sm:$0xf]
      %v6566 = vld [vmem:[%s6553 + $0x30] sm:$0xf]
      %v6567 = vld [vmem:[%s6553 + $0x34] sm:$0xf]
      %v6568 = vld [vmem:[%s6553 + $0x38] sm:$0xf]
      %v6569 = vld [vmem:[%s6553 + $0x3c] sm:$0xf]
      %v6607 = vunpack.c.l.b16 %v6516
      %v6608 = vunpack.c.l.b16 %v6517
      %v6609 = vunpack.c.l.b16 %v6518
      %v6610 = vunpack.c.l.b16 %v6519
      %v6611 = vunpack.c.l.b16 %v6520
      %v6612 = vunpack.c.l.b16 %v6521
      %v6613 = vunpack.c.l.b16 %v6522
      %v6614 = vunpack.c.l.b16 %v6523
      %v6615 = vunpack.c.l.b16 %v6524
      %v6616 = vunpack.c.l.b16 %v6525
      %v6617 = vunpack.c.l.b16 %v6526
      %v6618 = vunpack.c.l.b16 %v6527
      %v6619 = vunpack.c.l.b16 %v6528
      %v6620 = vunpack.c.l.b16 %v6529
      %v6621 = vunpack.c.l.b16 %v6530
      %v6622 = vunpack.c.l.b16 %v6531
      %v6623 = vunpack.c.l.b16 %v6532
      %v6624 = vunpack.c.l.b16 %v6533
      %v6625 = vunpack.c.l.b16 %v6534
      %v6626 = vunpack.c.l.b16 %v6535
      %v6627 = vunpack.c.l.b16 %v6536
      %v6628 = vunpack.c.l.b16 %v6537
      %v6629 = vunpack.c.l.b16 %v6538
      %v6630 = vunpack.c.l.b16 %v6539
      %v6631 = vunpack.c.l.b16 %v6540
      %v6632 = vunpack.c.l.b16 %v6541
      %v6633 = vunpack.c.l.b16 %v6542
      %v6634 = vunpack.c.l.b16 %v6543
      %v6635 = vunpack.c.l.b16 %v6544
      %v6636 = vunpack.c.l.b16 %v6545
      %v6637 = vunpack.c.l.b16 %v6546
      %v6638 = vunpack.c.l.b16 %v6547
      %v6639 = vunpack.c.l.b16 %v6548
      %v6640 = vunpack.c.l.b16 %v6549
      %v6641 = vunpack.c.l.b16 %v6550
      %v6642 = vunpack.c.l.b16 %v6551
      %v6643 = vunpack.c.l.b16 %v6552
      %v6644 = vpack.c.b16 %v6608, %v6607
      %v6645 = vpack.c.b16 %v6610, %v6609
      %v6646 = vpack.c.b16 %v6612, %v6611
      %v6647 = vpack.c.b16 %v6614, %v6613
      %v6648 = vpack.c.b16 %v6616, %v6615
      %v6649 = vpack.c.b16 %v6618, %v6617
      %v6650 = vpack.c.b16 %v6620, %v6619
      %v6651 = vpack.c.b16 %v6622, %v6621
      %v6652 = vpack.c.b16 %v6624, %v6623
      %v6653 = vpack.c.b16 %v6626, %v6625
      %v6654 = vpack.c.b16 %v6628, %v6627
      %v6655 = vpack.c.b16 %v6630, %v6629
      %v6656 = vpack.c.b16 %v6632, %v6631
      %v6657 = vpack.c.b16 %v6634, %v6633
      %v6658 = vpack.c.b16 %v6636, %v6635
      %v6659 = vpack.c.b16 %v6638, %v6637
      %v6660 = vpack.c.b16 %v6640, %v6639
      %v6661 = vpack.c.b16 %v6642, %v6641
      %v6662 = vpack.c.b16 %v6643, %v6643
      %v6664 = vshrl.u32 %v6644, 16
      %v6666 = vshll.u32 %v6644, 16
      %v6668 = vrot.slane %v6666, 1
      %v6669 = vor.u32 %v6664, %v6668
      %v6671 = vshll.u32 %v6645, 16
      %v6673 = vrot.slane %v6671, 1
      %v6674 = vsel %vm422, %v6669, %v6673
      %v6675 = vshrl.u32 %v6645, 16
      %v6677 = vor.u32 %v6675, %v6673
      %v6679 = vshll.u32 %v6646, 16
      %v6681 = vrot.slane %v6679, 1
      %v6682 = vsel %vm422, %v6677, %v6681
      %v6683 = vshrl.u32 %v6646, 16
      %v6685 = vor.u32 %v6683, %v6681
      %v6687 = vshll.u32 %v6647, 16
      %v6689 = vrot.slane %v6687, 1
      %v6690 = vsel %vm422, %v6685, %v6689
      %v6691 = vshrl.u32 %v6647, 16
      %v6693 = vor.u32 %v6691, %v6689
      %v6695 = vshll.u32 %v6648, 16
      %v6697 = vrot.slane %v6695, 1
      %v6698 = vsel %vm422, %v6693, %v6697
      %v6699 = vshrl.u32 %v6648, 16
      %v6701 = vor.u32 %v6699, %v6697
      %v6703 = vshll.u32 %v6649, 16
      %v6705 = vrot.slane %v6703, 1
      %v6706 = vsel %vm422, %v6701, %v6705
      %v6707 = vshrl.u32 %v6649, 16
      %v6709 = vor.u32 %v6707, %v6705
      %v6711 = vshll.u32 %v6650, 16
      %v6713 = vrot.slane %v6711, 1
      %v6714 = vsel %vm422, %v6709, %v6713
      %v6715 = vshrl.u32 %v6650, 16
      %v6717 = vor.u32 %v6715, %v6713
      %v6719 = vshll.u32 %v6651, 16
      %v6721 = vrot.slane %v6719, 1
      %v6722 = vsel %vm422, %v6717, %v6721
      %v6723 = vshrl.u32 %v6651, 16
      %v6725 = vor.u32 %v6723, %v6721
      %v6727 = vshll.u32 %v6652, 16
      %v6729 = vrot.slane %v6727, 1
      %v6730 = vsel %vm422, %v6725, %v6729
      %v6731 = vshrl.u32 %v6652, 16
      %v6733 = vor.u32 %v6731, %v6729
      %v6735 = vshll.u32 %v6653, 16
      %v6737 = vrot.slane %v6735, 1
      %v6738 = vsel %vm422, %v6733, %v6737
      %v6739 = vshrl.u32 %v6653, 16
      %v6741 = vor.u32 %v6739, %v6737
      %v6743 = vshll.u32 %v6654, 16
      %v6745 = vrot.slane %v6743, 1
      %v6746 = vsel %vm422, %v6741, %v6745
      %v6747 = vshrl.u32 %v6654, 16
      %v6749 = vor.u32 %v6747, %v6745
      %v6751 = vshll.u32 %v6655, 16
      %v6753 = vrot.slane %v6751, 1
      %v6754 = vsel %vm422, %v6749, %v6753
      %v6755 = vshrl.u32 %v6655, 16
      %v6757 = vor.u32 %v6755, %v6753
      %v6759 = vshll.u32 %v6656, 16
      %v6761 = vrot.slane %v6759, 1
      %v6762 = vsel %vm422, %v6757, %v6761
      %v6763 = vshrl.u32 %v6656, 16
      %v6765 = vor.u32 %v6763, %v6761
      %v6767 = vshll.u32 %v6657, 16
      %v6769 = vrot.slane %v6767, 1
      %v6770 = vsel %vm422, %v6765, %v6769
      %v6771 = vshrl.u32 %v6657, 16
      %v6773 = vor.u32 %v6771, %v6769
      %v6775 = vshll.u32 %v6658, 16
      %v6777 = vrot.slane %v6775, 1
      %v6778 = vsel %vm422, %v6773, %v6777
      %v6779 = vshrl.u32 %v6658, 16
      %v6781 = vor.u32 %v6779, %v6777
      %v6783 = vshll.u32 %v6659, 16
      %v6785 = vrot.slane %v6783, 1
      %v6786 = vsel %vm422, %v6781, %v6785
      %v6787 = vshrl.u32 %v6659, 16
      %v6789 = vor.u32 %v6787, %v6785
      %v6791 = vshll.u32 %v6660, 16
      %v6793 = vrot.slane %v6791, 1
      %v6794 = vsel %vm422, %v6789, %v6793
      %v6795 = vshrl.u32 %v6660, 16
      %v6797 = vor.u32 %v6795, %v6793
      %v6799 = vshll.u32 %v6661, 16
      %v6801 = vrot.slane %v6799, 1
      %v6802 = vsel %vm422, %v6797, %v6801
      %v6803 = vshrl.u32 %v6661, 16
      %v6805 = vor.u32 %v6803, %v6801
      %v6807 = vshll.u32 %v6662, 16
      %v6809 = vrot.slane %v6807, 1
      %v6810 = vsel %vm422, %v6805, %v6809
      %v6845 = vunpack.c.l.b16 %v6554
      %v6846 = vunpack.c.l.b16 %v6555
      %v6847 = vunpack.c.l.b16 %v6556
      %v6848 = vunpack.c.l.b16 %v6557
      %v6849 = vunpack.c.l.b16 %v6558
      %v6850 = vunpack.c.l.b16 %v6559
      %v6851 = vunpack.c.l.b16 %v6560
      %v6852 = vunpack.c.l.b16 %v6561
      %v6853 = vunpack.c.l.b16 %v6562
      %v6854 = vunpack.c.l.b16 %v6563
      %v6855 = vunpack.c.l.b16 %v6564
      %v6856 = vunpack.c.l.b16 %v6565
      %v6857 = vunpack.c.l.b16 %v6566
      %v6858 = vunpack.c.l.b16 %v6567
      %v6859 = vunpack.c.l.b16 %v6568
      %v6860 = vunpack.c.l.b16 %v6569
      %v6861 = vpack.c.b16 %v6846, %v6845
      %v6862 = vpack.c.b16 %v6848, %v6847
      %v6863 = vpack.c.b16 %v6850, %v6849
      %v6864 = vpack.c.b16 %v6852, %v6851
      %v6865 = vpack.c.b16 %v6854, %v6853
      %v6866 = vpack.c.b16 %v6856, %v6855
      %v6867 = vpack.c.b16 %v6858, %v6857
      %v6868 = vpack.c.b16 %v6860, %v6859
      %6877 = vmatprep.subr.bf16.mxu0 0
      %6878 = vmatpush1.bf16.msra.mxu0 %v6868
      %6879 = vmatprep.subr.bf16.mxu0 0
      %6880 = vmatpush1.bf16.msra.mxu0 %v6867
      %6881 = vmatprep.subr.bf16.mxu0 0
      %6882 = vmatpush1.bf16.msra.mxu0 %v6866
      %6883 = vmatprep.subr.bf16.mxu0 0
      %6884 = vmatpush1.bf16.msra.mxu0 %v6865
      %6885 = vmatprep.subr.bf16.mxu0 0
      %6886 = vmatpush1.bf16.msra.mxu0 %v6864
      %6887 = vmatprep.subr.bf16.mxu0 0
      %6888 = vmatpush1.bf16.msra.mxu0 %v6863
      %6889 = vmatprep.subr.bf16.mxu0 0
      %6890 = vmatpush1.bf16.msra.mxu0 %v6862
      %6891 = vmatprep.subr.bf16.mxu0 0
      %6892 = vmatpush1.bf16.msra.mxu0 %v6861
      %6893 = vmatprep.subr.bf16.mxu0 0
      %6894 = vmatpush2.bf16.msra.mxu0 0
      %6895 = vmatprep.subr.bf16.mxu0 0
      %6896 = vmatpush2.bf16.msra.mxu0 0
      %6897 = vmatprep.subr.bf16.mxu0 0
      %6898 = vmatpush2.bf16.msra.mxu0 0
      %6899 = vmatprep.subr.bf16.mxu0 0
      %6900 = vmatpush2.bf16.msra.mxu0 0
      %6901 = vmatprep.subr.bf16.mxu0 0
      %6902 = vmatpush2.bf16.msra.mxu0 0
      %6903 = vmatprep.subr.bf16.mxu0 0
      %6904 = vmatpush2.bf16.msra.mxu0 0
      %6905 = vmatprep.subr.bf16.mxu0 0
      %6906 = vmatpush2.bf16.msra.mxu0 0
      %6907 = vmatprep.subr.bf16.mxu0 0
      %6908 = vmatpush2.bf16.msra.mxu0 0
      %6909 = vmatprep.mubr.bf16.mxu0 0
      %6910 = vmatmul.mubr.bf16.gmra.mxu0 %v6674
      %v6911 = vpop.f32.mrf.mxu0
      %v6912 = vadd.f32 0.0, %v6911
      %v6913 = vpop.f32.mrf.mxu0
      %v6914 = vpop.f32.mrf.mxu0
      %v6915 = vadd.f32 0.0, %v6914
      %v6916 = vpop.f32.mrf.mxu0
      %6917 = vmatprep.mubr.bf16.mxu0 0
      %6918 = vmatmul.mubr.bf16.gmra.mxu0 %v6682
      %v6919 = vpop.f32.mrf.mxu0
      %v6920 = vadd.f32 0.0, %v6919
      %v6921 = vpop.f32.mrf.mxu0
      %v6922 = vpop.f32.mrf.mxu0
      %v6923 = vadd.f32 0.0, %v6922
      %v6924 = vpop.f32.mrf.mxu0
      %6925 = vmatprep.mubr.bf16.mxu0 0
      %6926 = vmatmul.mubr.bf16.gmra.mxu0 %v6690
      %v6927 = vpop.f32.mrf.mxu0
      %v6928 = vadd.f32 0.0, %v6927
      %v6929 = vpop.f32.mrf.mxu0
      %v6930 = vpop.f32.mrf.mxu0
      %v6931 = vadd.f32 0.0, %v6930
      %v6932 = vpop.f32.mrf.mxu0
      %6933 = vmatprep.mubr.bf16.mxu0 0
      %6934 = vmatmul.mubr.bf16.gmra.mxu0 %v6698
      %v6935 = vpop.f32.mrf.mxu0
      %v6936 = vadd.f32 0.0, %v6935
      %v6937 = vpop.f32.mrf.mxu0
      %v6938 = vpop.f32.mrf.mxu0
      %v6939 = vadd.f32 0.0, %v6938
      %v6940 = vpop.f32.mrf.mxu0
      %6941 = vmatprep.mubr.bf16.mxu0 0
      %6942 = vmatmul.mubr.bf16.gmra.mxu0 %v6706
      %v6943 = vpop.f32.mrf.mxu0
      %v6944 = vadd.f32 0.0, %v6943
      %v6945 = vpop.f32.mrf.mxu0
      %v6946 = vpop.f32.mrf.mxu0
      %v6947 = vadd.f32 0.0, %v6946
      %v6948 = vpop.f32.mrf.mxu0
      %6949 = vmatprep.mubr.bf16.mxu0 0
      %6950 = vmatmul.mubr.bf16.gmra.mxu0 %v6714
      %v6951 = vpop.f32.mrf.mxu0
      %v6952 = vadd.f32 0.0, %v6951
      %v6953 = vpop.f32.mrf.mxu0
      %v6954 = vpop.f32.mrf.mxu0
      %v6955 = vadd.f32 0.0, %v6954
      %v6956 = vpop.f32.mrf.mxu0
      %6957 = vmatprep.mubr.bf16.mxu0 0
      %6958 = vmatmul.mubr.bf16.gmra.mxu0 %v6722
      %v6959 = vpop.f32.mrf.mxu0
      %v6960 = vadd.f32 0.0, %v6959
      %v6961 = vpop.f32.mrf.mxu0
      %v6962 = vpop.f32.mrf.mxu0
      %v6963 = vadd.f32 0.0, %v6962
      %v6964 = vpop.f32.mrf.mxu0
      %6965 = vmatprep.mubr.bf16.mxu0 0
      %6966 = vmatmul.mubr.bf16.gmra.mxu0 %v6730
      %v6967 = vpop.f32.mrf.mxu0
      %v6968 = vadd.f32 0.0, %v6967
      %v6969 = vpop.f32.mrf.mxu0
      %v6970 = vpop.f32.mrf.mxu0
      %v6971 = vadd.f32 0.0, %v6970
      %v6972 = vpop.f32.mrf.mxu0
      %6973 = vmatprep.mubr.bf16.mxu0 0
      %6974 = vmatmul.mubr.bf16.gmra.mxu0 %v6738
      %v6975 = vpop.f32.mrf.mxu0
      %v6976 = vadd.f32 0.0, %v6975
      %v6977 = vpop.f32.mrf.mxu0
      %v6978 = vpop.f32.mrf.mxu0
      %v6979 = vadd.f32 0.0, %v6978
      %v6980 = vpop.f32.mrf.mxu0
      %6981 = vmatprep.mubr.bf16.mxu0 0
      %6982 = vmatmul.mubr.bf16.gmra.mxu0 %v6746
      %v6983 = vpop.f32.mrf.mxu0
      %v6984 = vadd.f32 0.0, %v6983
      %v6985 = vpop.f32.mrf.mxu0
      %v6986 = vpop.f32.mrf.mxu0
      %v6987 = vadd.f32 0.0, %v6986
      %v6988 = vpop.f32.mrf.mxu0
      %6989 = vmatprep.mubr.bf16.mxu0 0
      %6990 = vmatmul.mubr.bf16.gmra.mxu0 %v6754
      %v6991 = vpop.f32.mrf.mxu0
      %v6992 = vadd.f32 0.0, %v6991
      %v6993 = vpop.f32.mrf.mxu0
      %v6994 = vpop.f32.mrf.mxu0
      %v6995 = vadd.f32 0.0, %v6994
      %v6996 = vpop.f32.mrf.mxu0
      %6997 = vmatprep.mubr.bf16.mxu0 0
      %6998 = vmatmul.mubr.bf16.gmra.mxu0 %v6762
      %v6999 = vpop.f32.mrf.mxu0
      %v7000 = vadd.f32 0.0, %v6999
      %v7001 = vpop.f32.mrf.mxu0
      %v7002 = vpop.f32.mrf.mxu0
      %v7003 = vadd.f32 0.0, %v7002
      %v7004 = vpop.f32.mrf.mxu0
      %7005 = vmatprep.mubr.bf16.mxu0 0
      %7006 = vmatmul.mubr.bf16.gmra.mxu0 %v6770
      %v7007 = vpop.f32.mrf.mxu0
      %v7008 = vadd.f32 0.0, %v7007
      %v7009 = vpop.f32.mrf.mxu0
      %v7010 = vpop.f32.mrf.mxu0
      %v7011 = vadd.f32 0.0, %v7010
      %v7012 = vpop.f32.mrf.mxu0
      %7013 = vmatprep.mubr.bf16.mxu0 0
      %7014 = vmatmul.mubr.bf16.gmra.mxu0 %v6778
      %v7015 = vpop.f32.mrf.mxu0
      %v7016 = vadd.f32 0.0, %v7015
      %v7017 = vpop.f32.mrf.mxu0
      %v7018 = vpop.f32.mrf.mxu0
      %v7019 = vadd.f32 0.0, %v7018
      %v7020 = vpop.f32.mrf.mxu0
      %7021 = vmatprep.mubr.bf16.mxu0 0
      %7022 = vmatmul.mubr.bf16.gmra.mxu0 %v6786
      %v7023 = vpop.f32.mrf.mxu0
      %v7024 = vadd.f32 0.0, %v7023
      %v7025 = vpop.f32.mrf.mxu0
      %v7026 = vpop.f32.mrf.mxu0
      %v7027 = vadd.f32 0.0, %v7026
      %v7028 = vpop.f32.mrf.mxu0
      %7029 = vmatprep.mubr.bf16.mxu0 0
      %7030 = vmatmul.mubr.bf16.gmra.mxu0 %v6794
      %v7031 = vpop.f32.mrf.mxu0
      %v7032 = vadd.f32 0.0, %v7031
      %v7033 = vpop.f32.mrf.mxu0
      %v7034 = vpop.f32.mrf.mxu0
      %v7035 = vadd.f32 0.0, %v7034
      %v7036 = vpop.f32.mrf.mxu0
      %7037 = vmatprep.mubr.bf16.mxu0 0
      %7038 = vmatmul.mubr.bf16.gmra.mxu0 %v6802
      %v7039 = vpop.f32.mrf.mxu0
      %v7040 = vadd.f32 0.0, %v7039
      %v7041 = vpop.f32.mrf.mxu0
      %v7042 = vpop.f32.mrf.mxu0
      %v7043 = vadd.f32 0.0, %v7042
      %v7044 = vpop.f32.mrf.mxu0
      %7045 = vmatprep.mubr.bf16.mxu0 0
      %7046 = vmatmul.mubr.bf16.gmra.mxu0 %v6810
      %v7047 = vpop.f32.mrf.mxu0
      %v7048 = vadd.f32 0.0, %v7047
      %v7049 = vpop.f32.mrf.mxu0
      %v7050 = vpop.f32.mrf.mxu0
      %v7051 = vadd.f32 0.0, %v7050
      %v7052 = vpop.f32.mrf.mxu0
      %7053 = vdwg.mxu0
      %v7054 = vadd.f32 %v6480, %v6912
      %v7055 = vadd.f32 %v6481, %v6915
      %v7056 = vadd.f32 %v6482, %v6920
      %v7057 = vadd.f32 %v6483, %v6923
      %v7058 = vadd.f32 %v6484, %v6928
      %v7059 = vadd.f32 %v6485, %v6931
      %v7060 = vadd.f32 %v6486, %v6936
      %v7061 = vadd.f32 %v6487, %v6939
      %v7062 = vadd.f32 %v6488, %v6944
      %v7063 = vadd.f32 %v6489, %v6947
      %v7064 = vadd.f32 %v6490, %v6952
      %v7065 = vadd.f32 %v6491, %v6955
      %v7066 = vadd.f32 %v6492, %v6960
      %v7067 = vadd.f32 %v6493, %v6963
      %v7068 = vadd.f32 %v6494, %v6968
      %v7069 = vadd.f32 %v6495, %v6971
      %v7070 = vadd.f32 %v6496, %v6976
      %v7071 = vadd.f32 %v6497, %v6979
      %v7072 = vadd.f32 %v6498, %v6984
      %v7073 = vadd.f32 %v6499, %v6987
      %v7074 = vadd.f32 %v6500, %v6992
      %v7075 = vadd.f32 %v6501, %v6995
      %v7076 = vadd.f32 %v6502, %v7000
      %v7077 = vadd.f32 %v6503, %v7003
      %v7078 = vadd.f32 %v6504, %v7008
      %v7079 = vadd.f32 %v6505, %v7011
      %v7080 = vadd.f32 %v6506, %v7016
      %v7081 = vadd.f32 %v6507, %v7019
      %v7082 = vadd.f32 %v6508, %v7024
      %v7083 = vadd.f32 %v6509, %v7027
      %v7084 = vadd.f32 %v6510, %v7032
      %v7085 = vadd.f32 %v6511, %v7035
      %v7086 = vadd.f32 %v6512, %v7040
      %v7087 = vadd.f32 %v6513, %v7043
      %v7088 = vadd.f32 %v6514, %v7048
      %v7089 = vadd.f32 %v6515, %v7051
      %v7090 = vld [vmem:[#allocation2 + $0x14] sm:$0xf]
      %v7091 = vld [vmem:[#allocation2 + $0x18] sm:$0xf]
      %v7092 = vld [vmem:[#allocation2 + $0x1c] sm:$0xf]
      %v7093 = vld [vmem:[#allocation2 + $0x20] sm:$0xf]
      %v7094 = vld [vmem:[#allocation2 + $0x24] sm:$0xf]
      %v7095 = vld [vmem:[#allocation2 + $0x28] sm:$0xf]
      %v7096 = vld [vmem:[#allocation2 + $0x2c] sm:$0xf]
      %v7097 = vld [vmem:[#allocation2 + $0x30] sm:$0xf]
      %v7098 = vld [vmem:[#allocation2 + $0x34] sm:$0xf]
      %v7099 = vld [vmem:[#allocation2 + $0x38] sm:$0xf]
      %v7100 = vld [vmem:[#allocation2 + $0x3c] sm:$0xf]
      %v7101 = vld [vmem:[#allocation2 + $0x40] sm:$0xf]
      %v7102 = vld [vmem:[#allocation2 + $0x44] sm:$0xf]
      %v7103 = vld [vmem:[#allocation2 + $0x48] sm:$0xf]
      %v7104 = vld [vmem:[#allocation2 + $0x4c] sm:$0xf]
      %v7105 = vld [vmem:[#allocation2 + $0x50] sm:$0xf]
      %v7106 = vld [vmem:[#allocation2 + $0x54] sm:$0xf]
      %v7107 = vld [vmem:[#allocation2 + $0x58] sm:$0xf]
      %v7108 = vld [vmem:[#allocation2 + $0x5c] sm:$0xf]
      %v7109 = vld [vmem:[#allocation2 + $0x60] sm:$0xf]
      %v7110 = vld [vmem:[#allocation2 + $0x64] sm:$0xf]
      %v7111 = vld [vmem:[#allocation2 + $0x68] sm:$0xf]
      %v7112 = vld [vmem:[#allocation2 + $0x6c] sm:$0xf]
      %v7113 = vld [vmem:[#allocation2 + $0x70] sm:$0xf]
      %v7114 = vld [vmem:[#allocation2 + $0x74] sm:$0xf]
      %v7115 = vld [vmem:[#allocation2 + $0x78] sm:$0xf]
      %v7116 = vld [vmem:[#allocation2 + $0x7c] sm:$0xf]
      %v7117 = vld [vmem:[#allocation2 + $0x80] sm:$0xf]
      %v7118 = vld [vmem:[#allocation2 + $0x84] sm:$0xf]
      %v7119 = vld [vmem:[#allocation2 + $0x88] sm:$0xf]
      %v7120 = vld [vmem:[#allocation2 + $0x8c] sm:$0xf]
      %v7121 = vld [vmem:[#allocation2 + $0x90] sm:$0xf]
      %v7122 = vld [vmem:[#allocation2 + $0x94] sm:$0xf]
      %v7123 = vld [vmem:[#allocation2 + $0x98] sm:$0xf]
      %v7124 = vld [vmem:[#allocation2 + $0x9c] sm:$0xf]
      %v7125 = vld [vmem:[#allocation2 + $0xa0] sm:$0xf]
      %v7126 = vld [vmem:[#allocation2 + $0xa4] sm:$0x1]
      %s7127 = scalar_lea.vmem %s4, 384
      %v7128 = vld [vmem:[%s7127] sm:$0xf]
      %v7129 = vld [vmem:[%s7127 + $0x4] sm:$0xf]
      %v7130 = vld [vmem:[%s7127 + $0x8] sm:$0xf]
      %v7131 = vld [vmem:[%s7127 + $0xc] sm:$0xf]
      %v7132 = vld [vmem:[%s7127 + $0x10] sm:$0xf]
      %v7133 = vld [vmem:[%s7127 + $0x14] sm:$0xf]
      %v7134 = vld [vmem:[%s7127 + $0x18] sm:$0xf]
      %v7135 = vld [vmem:[%s7127 + $0x1c] sm:$0xf]
      %v7136 = vld [vmem:[%s7127 + $0x20] sm:$0xf]
      %v7137 = vld [vmem:[%s7127 + $0x24] sm:$0xf]
      %v7138 = vld [vmem:[%s7127 + $0x28] sm:$0xf]
      %v7139 = vld [vmem:[%s7127 + $0x2c] sm:$0xf]
      %v7140 = vld [vmem:[%s7127 + $0x30] sm:$0xf]
      %v7141 = vld [vmem:[%s7127 + $0x34] sm:$0xf]
      %v7142 = vld [vmem:[%s7127 + $0x38] sm:$0xf]
      %v7143 = vld [vmem:[%s7127 + $0x3c] sm:$0xf]
      %v7181 = vunpack.c.l.b16 %v7090
      %v7182 = vunpack.c.l.b16 %v7091
      %v7183 = vunpack.c.l.b16 %v7092
      %v7184 = vunpack.c.l.b16 %v7093
      %v7185 = vunpack.c.l.b16 %v7094
      %v7186 = vunpack.c.l.b16 %v7095
      %v7187 = vunpack.c.l.b16 %v7096
      %v7188 = vunpack.c.l.b16 %v7097
      %v7189 = vunpack.c.l.b16 %v7098
      %v7190 = vunpack.c.l.b16 %v7099
      %v7191 = vunpack.c.l.b16 %v7100
      %v7192 = vunpack.c.l.b16 %v7101
      %v7193 = vunpack.c.l.b16 %v7102
      %v7194 = vunpack.c.l.b16 %v7103
      %v7195 = vunpack.c.l.b16 %v7104
      %v7196 = vunpack.c.l.b16 %v7105
      %v7197 = vunpack.c.l.b16 %v7106
      %v7198 = vunpack.c.l.b16 %v7107
      %v7199 = vunpack.c.l.b16 %v7108
      %v7200 = vunpack.c.l.b16 %v7109
      %v7201 = vunpack.c.l.b16 %v7110
      %v7202 = vunpack.c.l.b16 %v7111
      %v7203 = vunpack.c.l.b16 %v7112
      %v7204 = vunpack.c.l.b16 %v7113
      %v7205 = vunpack.c.l.b16 %v7114
      %v7206 = vunpack.c.l.b16 %v7115
      %v7207 = vunpack.c.l.b16 %v7116
      %v7208 = vunpack.c.l.b16 %v7117
      %v7209 = vunpack.c.l.b16 %v7118
      %v7210 = vunpack.c.l.b16 %v7119
      %v7211 = vunpack.c.l.b16 %v7120
      %v7212 = vunpack.c.l.b16 %v7121
      %v7213 = vunpack.c.l.b16 %v7122
      %v7214 = vunpack.c.l.b16 %v7123
      %v7215 = vunpack.c.l.b16 %v7124
      %v7216 = vunpack.c.l.b16 %v7125
      %v7217 = vunpack.c.l.b16 %v7126
      %v7218 = vpack.c.b16 %v7182, %v7181
      %v7219 = vpack.c.b16 %v7184, %v7183
      %v7220 = vpack.c.b16 %v7186, %v7185
      %v7221 = vpack.c.b16 %v7188, %v7187
      %v7222 = vpack.c.b16 %v7190, %v7189
      %v7223 = vpack.c.b16 %v7192, %v7191
      %v7224 = vpack.c.b16 %v7194, %v7193
      %v7225 = vpack.c.b16 %v7196, %v7195
      %v7226 = vpack.c.b16 %v7198, %v7197
      %v7227 = vpack.c.b16 %v7200, %v7199
      %v7228 = vpack.c.b16 %v7202, %v7201
      %v7229 = vpack.c.b16 %v7204, %v7203
      %v7230 = vpack.c.b16 %v7206, %v7205
      %v7231 = vpack.c.b16 %v7208, %v7207
      %v7232 = vpack.c.b16 %v7210, %v7209
      %v7233 = vpack.c.b16 %v7212, %v7211
      %v7234 = vpack.c.b16 %v7214, %v7213
      %v7235 = vpack.c.b16 %v7216, %v7215
      %v7236 = vpack.c.b16 %v7217, %v7217
      %v7238 = vshrl.u32 %v7218, 16
      %v7240 = vshll.u32 %v7218, 16
      %v7242 = vrot.slane %v7240, 1
      %v7243 = vor.u32 %v7238, %v7242
      %v7245 = vshll.u32 %v7219, 16
      %v7247 = vrot.slane %v7245, 1
      %v7248 = vsel %vm422, %v7243, %v7247
      %v7249 = vshrl.u32 %v7219, 16
      %v7251 = vor.u32 %v7249, %v7247
      %v7253 = vshll.u32 %v7220, 16
      %v7255 = vrot.slane %v7253, 1
      %v7256 = vsel %vm422, %v7251, %v7255
      %v7257 = vshrl.u32 %v7220, 16
      %v7259 = vor.u32 %v7257, %v7255
      %v7261 = vshll.u32 %v7221, 16
      %v7263 = vrot.slane %v7261, 1
      %v7264 = vsel %vm422, %v7259, %v7263
      %v7265 = vshrl.u32 %v7221, 16
      %v7267 = vor.u32 %v7265, %v7263
      %v7269 = vshll.u32 %v7222, 16
      %v7271 = vrot.slane %v7269, 1
      %v7272 = vsel %vm422, %v7267, %v7271
      %v7273 = vshrl.u32 %v7222, 16
      %v7275 = vor.u32 %v7273, %v7271
      %v7277 = vshll.u32 %v7223, 16
      %v7279 = vrot.slane %v7277, 1
      %v7280 = vsel %vm422, %v7275, %v7279
      %v7281 = vshrl.u32 %v7223, 16
      %v7283 = vor.u32 %v7281, %v7279
      %v7285 = vshll.u32 %v7224, 16
      %v7287 = vrot.slane %v7285, 1
      %v7288 = vsel %vm422, %v7283, %v7287
      %v7289 = vshrl.u32 %v7224, 16
      %v7291 = vor.u32 %v7289, %v7287
      %v7293 = vshll.u32 %v7225, 16
      %v7295 = vrot.slane %v7293, 1
      %v7296 = vsel %vm422, %v7291, %v7295
      %v7297 = vshrl.u32 %v7225, 16
      %v7299 = vor.u32 %v7297, %v7295
      %v7301 = vshll.u32 %v7226, 16
      %v7303 = vrot.slane %v7301, 1
      %v7304 = vsel %vm422, %v7299, %v7303
      %v7305 = vshrl.u32 %v7226, 16
      %v7307 = vor.u32 %v7305, %v7303
      %v7309 = vshll.u32 %v7227, 16
      %v7311 = vrot.slane %v7309, 1
      %v7312 = vsel %vm422, %v7307, %v7311
      %v7313 = vshrl.u32 %v7227, 16
      %v7315 = vor.u32 %v7313, %v7311
      %v7317 = vshll.u32 %v7228, 16
      %v7319 = vrot.slane %v7317, 1
      %v7320 = vsel %vm422, %v7315, %v7319
      %v7321 = vshrl.u32 %v7228, 16
      %v7323 = vor.u32 %v7321, %v7319
      %v7325 = vshll.u32 %v7229, 16
      %v7327 = vrot.slane %v7325, 1
      %v7328 = vsel %vm422, %v7323, %v7327
      %v7329 = vshrl.u32 %v7229, 16
      %v7331 = vor.u32 %v7329, %v7327
      %v7333 = vshll.u32 %v7230, 16
      %v7335 = vrot.slane %v7333, 1
      %v7336 = vsel %vm422, %v7331, %v7335
      %v7337 = vshrl.u32 %v7230, 16
      %v7339 = vor.u32 %v7337, %v7335
      %v7341 = vshll.u32 %v7231, 16
      %v7343 = vrot.slane %v7341, 1
      %v7344 = vsel %vm422, %v7339, %v7343
      %v7345 = vshrl.u32 %v7231, 16
      %v7347 = vor.u32 %v7345, %v7343
      %v7349 = vshll.u32 %v7232, 16
      %v7351 = vrot.slane %v7349, 1
      %v7352 = vsel %vm422, %v7347, %v7351
      %v7353 = vshrl.u32 %v7232, 16
      %v7355 = vor.u32 %v7353, %v7351
      %v7357 = vshll.u32 %v7233, 16
      %v7359 = vrot.slane %v7357, 1
      %v7360 = vsel %vm422, %v7355, %v7359
      %v7361 = vshrl.u32 %v7233, 16
      %v7363 = vor.u32 %v7361, %v7359
      %v7365 = vshll.u32 %v7234, 16
      %v7367 = vrot.slane %v7365, 1
      %v7368 = vsel %vm422, %v7363, %v7367
      %v7369 = vshrl.u32 %v7234, 16
      %v7371 = vor.u32 %v7369, %v7367
      %v7373 = vshll.u32 %v7235, 16
      %v7375 = vrot.slane %v7373, 1
      %v7376 = vsel %vm422, %v7371, %v7375
      %v7377 = vshrl.u32 %v7235, 16
      %v7379 = vor.u32 %v7377, %v7375
      %v7381 = vshll.u32 %v7236, 16
      %v7383 = vrot.slane %v7381, 1
      %v7384 = vsel %vm422, %v7379, %v7383
      %v7419 = vunpack.c.l.b16 %v7128
      %v7420 = vunpack.c.l.b16 %v7129
      %v7421 = vunpack.c.l.b16 %v7130
      %v7422 = vunpack.c.l.b16 %v7131
      %v7423 = vunpack.c.l.b16 %v7132
      %v7424 = vunpack.c.l.b16 %v7133
      %v7425 = vunpack.c.l.b16 %v7134
      %v7426 = vunpack.c.l.b16 %v7135
      %v7427 = vunpack.c.l.b16 %v7136
      %v7428 = vunpack.c.l.b16 %v7137
      %v7429 = vunpack.c.l.b16 %v7138
      %v7430 = vunpack.c.l.b16 %v7139
      %v7431 = vunpack.c.l.b16 %v7140
      %v7432 = vunpack.c.l.b16 %v7141
      %v7433 = vunpack.c.l.b16 %v7142
      %v7434 = vunpack.c.l.b16 %v7143
      %v7435 = vpack.c.b16 %v7420, %v7419
      %v7436 = vpack.c.b16 %v7422, %v7421
      %v7437 = vpack.c.b16 %v7424, %v7423
      %v7438 = vpack.c.b16 %v7426, %v7425
      %v7439 = vpack.c.b16 %v7428, %v7427
      %v7440 = vpack.c.b16 %v7430, %v7429
      %v7441 = vpack.c.b16 %v7432, %v7431
      %v7442 = vpack.c.b16 %v7434, %v7433
      %7451 = vmatprep.subr.bf16.mxu0 0
      %7452 = vmatpush1.bf16.msra.mxu0 %v7442
      %7453 = vmatprep.subr.bf16.mxu0 0
      %7454 = vmatpush1.bf16.msra.mxu0 %v7441
      %7455 = vmatprep.subr.bf16.mxu0 0
      %7456 = vmatpush1.bf16.msra.mxu0 %v7440
      %7457 = vmatprep.subr.bf16.mxu0 0
      %7458 = vmatpush1.bf16.msra.mxu0 %v7439
      %7459 = vmatprep.subr.bf16.mxu0 0
      %7460 = vmatpush1.bf16.msra.mxu0 %v7438
      %7461 = vmatprep.subr.bf16.mxu0 0
      %7462 = vmatpush1.bf16.msra.mxu0 %v7437
      %7463 = vmatprep.subr.bf16.mxu0 0
      %7464 = vmatpush1.bf16.msra.mxu0 %v7436
      %7465 = vmatprep.subr.bf16.mxu0 0
      %7466 = vmatpush1.bf16.msra.mxu0 %v7435
      %7467 = vmatprep.subr.bf16.mxu0 0
      %7468 = vmatpush2.bf16.msra.mxu0 0
      %7469 = vmatprep.subr.bf16.mxu0 0
      %7470 = vmatpush2.bf16.msra.mxu0 0
      %7471 = vmatprep.subr.bf16.mxu0 0
      %7472 = vmatpush2.bf16.msra.mxu0 0
      %7473 = vmatprep.subr.bf16.mxu0 0
      %7474 = vmatpush2.bf16.msra.mxu0 0
      %7475 = vmatprep.subr.bf16.mxu0 0
      %7476 = vmatpush2.bf16.msra.mxu0 0
      %7477 = vmatprep.subr.bf16.mxu0 0
      %7478 = vmatpush2.bf16.msra.mxu0 0
      %7479 = vmatprep.subr.bf16.mxu0 0
      %7480 = vmatpush2.bf16.msra.mxu0 0
      %7481 = vmatprep.subr.bf16.mxu0 0
      %7482 = vmatpush2.bf16.msra.mxu0 0
      %7483 = vmatprep.mubr.bf16.mxu0 0
      %7484 = vmatmul.mubr.bf16.gmra.mxu0 %v7248
      %v7485 = vpop.f32.mrf.mxu0
      %v7486 = vadd.f32 0.0, %v7485
      %v7487 = vpop.f32.mrf.mxu0
      %v7488 = vpop.f32.mrf.mxu0
      %v7489 = vadd.f32 0.0, %v7488
      %v7490 = vpop.f32.mrf.mxu0
      %7491 = vmatprep.mubr.bf16.mxu0 0
      %7492 = vmatmul.mubr.bf16.gmra.mxu0 %v7256
      %v7493 = vpop.f32.mrf.mxu0
      %v7494 = vadd.f32 0.0, %v7493
      %v7495 = vpop.f32.mrf.mxu0
      %v7496 = vpop.f32.mrf.mxu0
      %v7497 = vadd.f32 0.0, %v7496
      %v7498 = vpop.f32.mrf.mxu0
      %7499 = vmatprep.mubr.bf16.mxu0 0
      %7500 = vmatmul.mubr.bf16.gmra.mxu0 %v7264
      %v7501 = vpop.f32.mrf.mxu0
      %v7502 = vadd.f32 0.0, %v7501
      %v7503 = vpop.f32.mrf.mxu0
      %v7504 = vpop.f32.mrf.mxu0
      %v7505 = vadd.f32 0.0, %v7504
      %v7506 = vpop.f32.mrf.mxu0
      %7507 = vmatprep.mubr.bf16.mxu0 0
      %7508 = vmatmul.mubr.bf16.gmra.mxu0 %v7272
      %v7509 = vpop.f32.mrf.mxu0
      %v7510 = vadd.f32 0.0, %v7509
      %v7511 = vpop.f32.mrf.mxu0
      %v7512 = vpop.f32.mrf.mxu0
      %v7513 = vadd.f32 0.0, %v7512
      %v7514 = vpop.f32.mrf.mxu0
      %7515 = vmatprep.mubr.bf16.mxu0 0
      %7516 = vmatmul.mubr.bf16.gmra.mxu0 %v7280
      %v7517 = vpop.f32.mrf.mxu0
      %v7518 = vadd.f32 0.0, %v7517
      %v7519 = vpop.f32.mrf.mxu0
      %v7520 = vpop.f32.mrf.mxu0
      %v7521 = vadd.f32 0.0, %v7520
      %v7522 = vpop.f32.mrf.mxu0
      %7523 = vmatprep.mubr.bf16.mxu0 0
      %7524 = vmatmul.mubr.bf16.gmra.mxu0 %v7288
      %v7525 = vpop.f32.mrf.mxu0
      %v7526 = vadd.f32 0.0, %v7525
      %v7527 = vpop.f32.mrf.mxu0
      %v7528 = vpop.f32.mrf.mxu0
      %v7529 = vadd.f32 0.0, %v7528
      %v7530 = vpop.f32.mrf.mxu0
      %7531 = vmatprep.mubr.bf16.mxu0 0
      %7532 = vmatmul.mubr.bf16.gmra.mxu0 %v7296
      %v7533 = vpop.f32.mrf.mxu0
      %v7534 = vadd.f32 0.0, %v7533
      %v7535 = vpop.f32.mrf.mxu0
      %v7536 = vpop.f32.mrf.mxu0
      %v7537 = vadd.f32 0.0, %v7536
      %v7538 = vpop.f32.mrf.mxu0
      %7539 = vmatprep.mubr.bf16.mxu0 0
      %7540 = vmatmul.mubr.bf16.gmra.mxu0 %v7304
      %v7541 = vpop.f32.mrf.mxu0
      %v7542 = vadd.f32 0.0, %v7541
      %v7543 = vpop.f32.mrf.mxu0
      %v7544 = vpop.f32.mrf.mxu0
      %v7545 = vadd.f32 0.0, %v7544
      %v7546 = vpop.f32.mrf.mxu0
      %7547 = vmatprep.mubr.bf16.mxu0 0
      %7548 = vmatmul.mubr.bf16.gmra.mxu0 %v7312
      %v7549 = vpop.f32.mrf.mxu0
      %v7550 = vadd.f32 0.0, %v7549
      %v7551 = vpop.f32.mrf.mxu0
      %v7552 = vpop.f32.mrf.mxu0
      %v7553 = vadd.f32 0.0, %v7552
      %v7554 = vpop.f32.mrf.mxu0
      %7555 = vmatprep.mubr.bf16.mxu0 0
      %7556 = vmatmul.mubr.bf16.gmra.mxu0 %v7320
      %v7557 = vpop.f32.mrf.mxu0
      %v7558 = vadd.f32 0.0, %v7557
      %v7559 = vpop.f32.mrf.mxu0
      %v7560 = vpop.f32.mrf.mxu0
      %v7561 = vadd.f32 0.0, %v7560
      %v7562 = vpop.f32.mrf.mxu0
      %7563 = vmatprep.mubr.bf16.mxu0 0
      %7564 = vmatmul.mubr.bf16.gmra.mxu0 %v7328
      %v7565 = vpop.f32.mrf.mxu0
      %v7566 = vadd.f32 0.0, %v7565
      %v7567 = vpop.f32.mrf.mxu0
      %v7568 = vpop.f32.mrf.mxu0
      %v7569 = vadd.f32 0.0, %v7568
      %v7570 = vpop.f32.mrf.mxu0
      %7571 = vmatprep.mubr.bf16.mxu0 0
      %7572 = vmatmul.mubr.bf16.gmra.mxu0 %v7336
      %v7573 = vpop.f32.mrf.mxu0
      %v7574 = vadd.f32 0.0, %v7573
      %v7575 = vpop.f32.mrf.mxu0
      %v7576 = vpop.f32.mrf.mxu0
      %v7577 = vadd.f32 0.0, %v7576
      %v7578 = vpop.f32.mrf.mxu0
      %7579 = vmatprep.mubr.bf16.mxu0 0
      %7580 = vmatmul.mubr.bf16.gmra.mxu0 %v7344
      %v7581 = vpop.f32.mrf.mxu0
      %v7582 = vadd.f32 0.0, %v7581
      %v7583 = vpop.f32.mrf.mxu0
      %v7584 = vpop.f32.mrf.mxu0
      %v7585 = vadd.f32 0.0, %v7584
      %v7586 = vpop.f32.mrf.mxu0
      %7587 = vmatprep.mubr.bf16.mxu0 0
      %7588 = vmatmul.mubr.bf16.gmra.mxu0 %v7352
      %v7589 = vpop.f32.mrf.mxu0
      %v7590 = vadd.f32 0.0, %v7589
      %v7591 = vpop.f32.mrf.mxu0
      %v7592 = vpop.f32.mrf.mxu0
      %v7593 = vadd.f32 0.0, %v7592
      %v7594 = vpop.f32.mrf.mxu0
      %7595 = vmatprep.mubr.bf16.mxu0 0
      %7596 = vmatmul.mubr.bf16.gmra.mxu0 %v7360
      %v7597 = vpop.f32.mrf.mxu0
      %v7598 = vadd.f32 0.0, %v7597
      %v7599 = vpop.f32.mrf.mxu0
      %v7600 = vpop.f32.mrf.mxu0
      %v7601 = vadd.f32 0.0, %v7600
      %v7602 = vpop.f32.mrf.mxu0
      %7603 = vmatprep.mubr.bf16.mxu0 0
      %7604 = vmatmul.mubr.bf16.gmra.mxu0 %v7368
      %v7605 = vpop.f32.mrf.mxu0
      %v7606 = vadd.f32 0.0, %v7605
      %v7607 = vpop.f32.mrf.mxu0
      %v7608 = vpop.f32.mrf.mxu0
      %v7609 = vadd.f32 0.0, %v7608
      %v7610 = vpop.f32.mrf.mxu0
      %7611 = vmatprep.mubr.bf16.mxu0 0
      %7612 = vmatmul.mubr.bf16.gmra.mxu0 %v7376
      %v7613 = vpop.f32.mrf.mxu0
      %v7614 = vadd.f32 0.0, %v7613
      %v7615 = vpop.f32.mrf.mxu0
      %v7616 = vpop.f32.mrf.mxu0
      %v7617 = vadd.f32 0.0, %v7616
      %v7618 = vpop.f32.mrf.mxu0
      %7619 = vmatprep.mubr.bf16.mxu0 0
      %7620 = vmatmul.mubr.bf16.gmra.mxu0 %v7384
      %v7621 = vpop.f32.mrf.mxu0
      %v7622 = vadd.f32 0.0, %v7621
      %v7623 = vpop.f32.mrf.mxu0
      %v7624 = vpop.f32.mrf.mxu0
      %v7625 = vadd.f32 0.0, %v7624
      %v7626 = vpop.f32.mrf.mxu0
      %7627 = vdwg.mxu0
      %v7628 = vadd.f32 %v7054, %v7486
      %v7629 = vadd.f32 %v7055, %v7489
      %v7630 = vadd.f32 %v7056, %v7494
      %v7631 = vadd.f32 %v7057, %v7497
      %v7632 = vadd.f32 %v7058, %v7502
      %v7633 = vadd.f32 %v7059, %v7505
      %v7634 = vadd.f32 %v7060, %v7510
      %v7635 = vadd.f32 %v7061, %v7513
      %v7636 = vadd.f32 %v7062, %v7518
      %v7637 = vadd.f32 %v7063, %v7521
      %v7638 = vadd.f32 %v7064, %v7526
      %v7639 = vadd.f32 %v7065, %v7529
      %v7640 = vadd.f32 %v7066, %v7534
      %v7641 = vadd.f32 %v7067, %v7537
      %v7642 = vadd.f32 %v7068, %v7542
      %v7643 = vadd.f32 %v7069, %v7545
      %v7644 = vadd.f32 %v7070, %v7550
      %v7645 = vadd.f32 %v7071, %v7553
      %v7646 = vadd.f32 %v7072, %v7558
      %v7647 = vadd.f32 %v7073, %v7561
      %v7648 = vadd.f32 %v7074, %v7566
      %v7649 = vadd.f32 %v7075, %v7569
      %v7650 = vadd.f32 %v7076, %v7574
      %v7651 = vadd.f32 %v7077, %v7577
      %v7652 = vadd.f32 %v7078, %v7582
      %v7653 = vadd.f32 %v7079, %v7585
      %v7654 = vadd.f32 %v7080, %v7590
      %v7655 = vadd.f32 %v7081, %v7593
      %v7656 = vadd.f32 %v7082, %v7598
      %v7657 = vadd.f32 %v7083, %v7601
      %v7658 = vadd.f32 %v7084, %v7606
      %v7659 = vadd.f32 %v7085, %v7609
      %v7660 = vadd.f32 %v7086, %v7614
      %v7661 = vadd.f32 %v7087, %v7617
      %v7662 = vadd.f32 %v7088, %v7622
      %v7663 = vadd.f32 %v7089, %v7625
      %v7664 = vld [vmem:[#allocation2 + $0x14] sm:$0xe]
      %s7665 = scalar_lea.vmem %s4, 448
      %v7666 = vld [vmem:[%s7665] sm:$0xf]
      %v7667 = vld [vmem:[%s7665 + $0x4] sm:$0xf]
      %v7668 = vld [vmem:[%s7665 + $0x8] sm:$0xf]
      %v7669 = vld [vmem:[%s7665 + $0xc] sm:$0xf]
      %v7670 = vld [vmem:[%s7665 + $0x10] sm:$0xf]
      %v7671 = vld [vmem:[%s7665 + $0x14] sm:$0xf]
      %v7672 = vld [vmem:[%s7665 + $0x18] sm:$0xf]
      %v7673 = vld [vmem:[%s7665 + $0x1c] sm:$0xf]
      %v7674 = vld [vmem:[%s7665 + $0x20] sm:$0xf]
      %v7675 = vld [vmem:[%s7665 + $0x24] sm:$0xf]
      %v7676 = vld [vmem:[%s7665 + $0x28] sm:$0xf]
      %v7677 = vld [vmem:[%s7665 + $0x2c] sm:$0xf]
      %v7678 = vld [vmem:[%s7665 + $0x30] sm:$0xf]
      %v7679 = vld [vmem:[%s7665 + $0x34] sm:$0xf]
      %v7680 = vld [vmem:[%s7665 + $0x38] sm:$0xf]
      %v7681 = vld [vmem:[%s7665 + $0x3c] sm:$0xf]
      %v7683 = vunpack.c.l.b16 %v7664
      %v7684 = vpack.c.b16 %v7182, %v7683
      %v7685 = vrot.slane %v7684, 1
      %v7686 = vrot.slane %v7219, 1
      %v7687 = vsel %vm1078, %v7685, %v7686
      %v7688 = vrot.slane %v7220, 1
      %v7689 = vsel %vm1078, %v7686, %v7688
      %v7690 = vrot.slane %v7221, 1
      %v7691 = vsel %vm1078, %v7688, %v7690
      %v7692 = vrot.slane %v7222, 1
      %v7693 = vsel %vm1078, %v7690, %v7692
      %v7694 = vrot.slane %v7223, 1
      %v7695 = vsel %vm1078, %v7692, %v7694
      %v7696 = vrot.slane %v7224, 1
      %v7697 = vsel %vm1078, %v7694, %v7696
      %v7698 = vrot.slane %v7225, 1
      %v7699 = vsel %vm1078, %v7696, %v7698
      %v7700 = vrot.slane %v7226, 1
      %v7701 = vsel %vm1078, %v7698, %v7700
      %v7702 = vrot.slane %v7227, 1
      %v7703 = vsel %vm1078, %v7700, %v7702
      %v7704 = vrot.slane %v7228, 1
      %v7705 = vsel %vm1078, %v7702, %v7704
      %v7706 = vrot.slane %v7229, 1
      %v7707 = vsel %vm1078, %v7704, %v7706
      %v7708 = vrot.slane %v7230, 1
      %v7709 = vsel %vm1078, %v7706, %v7708
      %v7710 = vrot.slane %v7231, 1
      %v7711 = vsel %vm1078, %v7708, %v7710
      %v7712 = vrot.slane %v7232, 1
      %v7713 = vsel %vm1078, %v7710, %v7712
      %v7714 = vrot.slane %v7233, 1
      %v7715 = vsel %vm1078, %v7712, %v7714
      %v7716 = vrot.slane %v7234, 1
      %v7717 = vsel %vm1078, %v7714, %v7716
      %v7718 = vrot.slane %v7235, 1
      %v7719 = vsel %vm1078, %v7716, %v7718
      %v7720 = vrot.slane %v7236, 1
      %v7721 = vsel %vm1078, %v7718, %v7720
      %v7756 = vunpack.c.l.b16 %v7666
      %v7757 = vunpack.c.l.b16 %v7667
      %v7758 = vunpack.c.l.b16 %v7668
      %v7759 = vunpack.c.l.b16 %v7669
      %v7760 = vunpack.c.l.b16 %v7670
      %v7761 = vunpack.c.l.b16 %v7671
      %v7762 = vunpack.c.l.b16 %v7672
      %v7763 = vunpack.c.l.b16 %v7673
      %v7764 = vunpack.c.l.b16 %v7674
      %v7765 = vunpack.c.l.b16 %v7675
      %v7766 = vunpack.c.l.b16 %v7676
      %v7767 = vunpack.c.l.b16 %v7677
      %v7768 = vunpack.c.l.b16 %v7678
      %v7769 = vunpack.c.l.b16 %v7679
      %v7770 = vunpack.c.l.b16 %v7680
      %v7771 = vunpack.c.l.b16 %v7681
      %v7772 = vpack.c.b16 %v7757, %v7756
      %v7773 = vpack.c.b16 %v7759, %v7758
      %v7774 = vpack.c.b16 %v7761, %v7760
      %v7775 = vpack.c.b16 %v7763, %v7762
      %v7776 = vpack.c.b16 %v7765, %v7764
      %v7777 = vpack.c.b16 %v7767, %v7766
      %v7778 = vpack.c.b16 %v7769, %v7768
      %v7779 = vpack.c.b16 %v7771, %v7770
      %7788 = vmatprep.subr.bf16.mxu0 0
      %7789 = vmatpush1.bf16.msra.mxu0 %v7779
      %7790 = vmatprep.subr.bf16.mxu0 0
      %7791 = vmatpush1.bf16.msra.mxu0 %v7778
      %7792 = vmatprep.subr.bf16.mxu0 0
      %7793 = vmatpush1.bf16.msra.mxu0 %v7777
      %7794 = vmatprep.subr.bf16.mxu0 0
      %7795 = vmatpush1.bf16.msra.mxu0 %v7776
      %7796 = vmatprep.subr.bf16.mxu0 0
      %7797 = vmatpush1.bf16.msra.mxu0 %v7775
      %7798 = vmatprep.subr.bf16.mxu0 0
      %7799 = vmatpush1.bf16.msra.mxu0 %v7774
      %7800 = vmatprep.subr.bf16.mxu0 0
      %7801 = vmatpush1.bf16.msra.mxu0 %v7773
      %7802 = vmatprep.subr.bf16.mxu0 0
      %7803 = vmatpush1.bf16.msra.mxu0 %v7772
      %7804 = vmatprep.subr.bf16.mxu0 0
      %7805 = vmatpush2.bf16.msra.mxu0 0
      %7806 = vmatprep.subr.bf16.mxu0 0
      %7807 = vmatpush2.bf16.msra.mxu0 0
      %7808 = vmatprep.subr.bf16.mxu0 0
      %7809 = vmatpush2.bf16.msra.mxu0 0
      %7810 = vmatprep.subr.bf16.mxu0 0
      %7811 = vmatpush2.bf16.msra.mxu0 0
      %7812 = vmatprep.subr.bf16.mxu0 0
      %7813 = vmatpush2.bf16.msra.mxu0 0
      %7814 = vmatprep.subr.bf16.mxu0 0
      %7815 = vmatpush2.bf16.msra.mxu0 0
      %7816 = vmatprep.subr.bf16.mxu0 0
      %7817 = vmatpush2.bf16.msra.mxu0 0
      %7818 = vmatprep.subr.bf16.mxu0 0
      %7819 = vmatpush2.bf16.msra.mxu0 0
      %7820 = vmatprep.mubr.bf16.mxu0 0
      %7821 = vmatmul.mubr.bf16.gmra.mxu0 %v7687
      %v7822 = vpop.f32.mrf.mxu0
      %v7823 = vadd.f32 0.0, %v7822
      %v7824 = vpop.f32.mrf.mxu0
      %v7825 = vpop.f32.mrf.mxu0
      %v7826 = vadd.f32 0.0, %v7825
      %v7827 = vpop.f32.mrf.mxu0
      %7828 = vmatprep.mubr.bf16.mxu0 0
      %7829 = vmatmul.mubr.bf16.gmra.mxu0 %v7689
      %v7830 = vpop.f32.mrf.mxu0
      %v7831 = vadd.f32 0.0, %v7830
      %v7832 = vpop.f32.mrf.mxu0
      %v7833 = vpop.f32.mrf.mxu0
      %v7834 = vadd.f32 0.0, %v7833
      %v7835 = vpop.f32.mrf.mxu0
      %7836 = vmatprep.mubr.bf16.mxu0 0
      %7837 = vmatmul.mubr.bf16.gmra.mxu0 %v7691
      %v7838 = vpop.f32.mrf.mxu0
      %v7839 = vadd.f32 0.0, %v7838
      %v7840 = vpop.f32.mrf.mxu0
      %v7841 = vpop.f32.mrf.mxu0
      %v7842 = vadd.f32 0.0, %v7841
      %v7843 = vpop.f32.mrf.mxu0
      %7844 = vmatprep.mubr.bf16.mxu0 0
      %7845 = vmatmul.mubr.bf16.gmra.mxu0 %v7693
      %v7846 = vpop.f32.mrf.mxu0
      %v7847 = vadd.f32 0.0, %v7846
      %v7848 = vpop.f32.mrf.mxu0
      %v7849 = vpop.f32.mrf.mxu0
      %v7850 = vadd.f32 0.0, %v7849
      %v7851 = vpop.f32.mrf.mxu0
      %7852 = vmatprep.mubr.bf16.mxu0 0
      %7853 = vmatmul.mubr.bf16.gmra.mxu0 %v7695
      %v7854 = vpop.f32.mrf.mxu0
      %v7855 = vadd.f32 0.0, %v7854
      %v7856 = vpop.f32.mrf.mxu0
      %v7857 = vpop.f32.mrf.mxu0
      %v7858 = vadd.f32 0.0, %v7857
      %v7859 = vpop.f32.mrf.mxu0
      %7860 = vmatprep.mubr.bf16.mxu0 0
      %7861 = vmatmul.mubr.bf16.gmra.mxu0 %v7697
      %v7862 = vpop.f32.mrf.mxu0
      %v7863 = vadd.f32 0.0, %v7862
      %v7864 = vpop.f32.mrf.mxu0
      %v7865 = vpop.f32.mrf.mxu0
      %v7866 = vadd.f32 0.0, %v7865
      %v7867 = vpop.f32.mrf.mxu0
      %7868 = vmatprep.mubr.bf16.mxu0 0
      %7869 = vmatmul.mubr.bf16.gmra.mxu0 %v7699
      %v7870 = vpop.f32.mrf.mxu0
      %v7871 = vadd.f32 0.0, %v7870
      %v7872 = vpop.f32.mrf.mxu0
      %v7873 = vpop.f32.mrf.mxu0
      %v7874 = vadd.f32 0.0, %v7873
      %v7875 = vpop.f32.mrf.mxu0
      %7876 = vmatprep.mubr.bf16.mxu0 0
      %7877 = vmatmul.mubr.bf16.gmra.mxu0 %v7701
      %v7878 = vpop.f32.mrf.mxu0
      %v7879 = vadd.f32 0.0, %v7878
      %v7880 = vpop.f32.mrf.mxu0
      %v7881 = vpop.f32.mrf.mxu0
      %v7882 = vadd.f32 0.0, %v7881
      %v7883 = vpop.f32.mrf.mxu0
      %7884 = vmatprep.mubr.bf16.mxu0 0
      %7885 = vmatmul.mubr.bf16.gmra.mxu0 %v7703
      %v7886 = vpop.f32.mrf.mxu0
      %v7887 = vadd.f32 0.0, %v7886
      %v7888 = vpop.f32.mrf.mxu0
      %v7889 = vpop.f32.mrf.mxu0
      %v7890 = vadd.f32 0.0, %v7889
      %v7891 = vpop.f32.mrf.mxu0
      %7892 = vmatprep.mubr.bf16.mxu0 0
      %7893 = vmatmul.mubr.bf16.gmra.mxu0 %v7705
      %v7894 = vpop.f32.mrf.mxu0
      %v7895 = vadd.f32 0.0, %v7894
      %v7896 = vpop.f32.mrf.mxu0
      %v7897 = vpop.f32.mrf.mxu0
      %v7898 = vadd.f32 0.0, %v7897
      %v7899 = vpop.f32.mrf.mxu0
      %7900 = vmatprep.mubr.bf16.mxu0 0
      %7901 = vmatmul.mubr.bf16.gmra.mxu0 %v7707
      %v7902 = vpop.f32.mrf.mxu0
      %v7903 = vadd.f32 0.0, %v7902
      %v7904 = vpop.f32.mrf.mxu0
      %v7905 = vpop.f32.mrf.mxu0
      %v7906 = vadd.f32 0.0, %v7905
      %v7907 = vpop.f32.mrf.mxu0
      %7908 = vmatprep.mubr.bf16.mxu0 0
      %7909 = vmatmul.mubr.bf16.gmra.mxu0 %v7709
      %v7910 = vpop.f32.mrf.mxu0
      %v7911 = vadd.f32 0.0, %v7910
      %v7912 = vpop.f32.mrf.mxu0
      %v7913 = vpop.f32.mrf.mxu0
      %v7914 = vadd.f32 0.0, %v7913
      %v7915 = vpop.f32.mrf.mxu0
      %7916 = vmatprep.mubr.bf16.mxu0 0
      %7917 = vmatmul.mubr.bf16.gmra.mxu0 %v7711
      %v7918 = vpop.f32.mrf.mxu0
      %v7919 = vadd.f32 0.0, %v7918
      %v7920 = vpop.f32.mrf.mxu0
      %v7921 = vpop.f32.mrf.mxu0
      %v7922 = vadd.f32 0.0, %v7921
      %v7923 = vpop.f32.mrf.mxu0
      %7924 = vmatprep.mubr.bf16.mxu0 0
      %7925 = vmatmul.mubr.bf16.gmra.mxu0 %v7713
      %v7926 = vpop.f32.mrf.mxu0
      %v7927 = vadd.f32 0.0, %v7926
      %v7928 = vpop.f32.mrf.mxu0
      %v7929 = vpop.f32.mrf.mxu0
      %v7930 = vadd.f32 0.0, %v7929
      %v7931 = vpop.f32.mrf.mxu0
      %7932 = vmatprep.mubr.bf16.mxu0 0
      %7933 = vmatmul.mubr.bf16.gmra.mxu0 %v7715
      %v7934 = vpop.f32.mrf.mxu0
      %v7935 = vadd.f32 0.0, %v7934
      %v7936 = vpop.f32.mrf.mxu0
      %v7937 = vpop.f32.mrf.mxu0
      %v7938 = vadd.f32 0.0, %v7937
      %v7939 = vpop.f32.mrf.mxu0
      %7940 = vmatprep.mubr.bf16.mxu0 0
      %7941 = vmatmul.mubr.bf16.gmra.mxu0 %v7717
      %v7942 = vpop.f32.mrf.mxu0
      %v7943 = vadd.f32 0.0, %v7942
      %v7944 = vpop.f32.mrf.mxu0
      %v7945 = vpop.f32.mrf.mxu0
      %v7946 = vadd.f32 0.0, %v7945
      %v7947 = vpop.f32.mrf.mxu0
      %7948 = vmatprep.mubr.bf16.mxu0 0
      %7949 = vmatmul.mubr.bf16.gmra.mxu0 %v7719
      %v7950 = vpop.f32.mrf.mxu0
      %v7951 = vadd.f32 0.0, %v7950
      %v7952 = vpop.f32.mrf.mxu0
      %v7953 = vpop.f32.mrf.mxu0
      %v7954 = vadd.f32 0.0, %v7953
      %v7955 = vpop.f32.mrf.mxu0
      %7956 = vmatprep.mubr.bf16.mxu0 0
      %7957 = vmatmul.mubr.bf16.gmra.mxu0 %v7721
      %v7958 = vpop.f32.mrf.mxu0
      %v7959 = vadd.f32 0.0, %v7958
      %v7960 = vpop.f32.mrf.mxu0
      %v7961 = vpop.f32.mrf.mxu0
      %v7962 = vadd.f32 0.0, %v7961
      %v7963 = vpop.f32.mrf.mxu0
      %7964 = vdwg.mxu0
      %v7965 = vadd.f32 %v7628, %v7823
      %v7966 = vadd.f32 %v7629, %v7826
      %v7967 = vadd.f32 %v7630, %v7831
      %v7968 = vadd.f32 %v7631, %v7834
      %v7969 = vadd.f32 %v7632, %v7839
      %v7970 = vadd.f32 %v7633, %v7842
      %v7971 = vadd.f32 %v7634, %v7847
      %v7972 = vadd.f32 %v7635, %v7850
      %v7973 = vadd.f32 %v7636, %v7855
      %v7974 = vadd.f32 %v7637, %v7858
      %v7975 = vadd.f32 %v7638, %v7863
      %v7976 = vadd.f32 %v7639, %v7866
      %v7977 = vadd.f32 %v7640, %v7871
      %v7978 = vadd.f32 %v7641, %v7874
      %v7979 = vadd.f32 %v7642, %v7879
      %v7980 = vadd.f32 %v7643, %v7882
      %v7981 = vadd.f32 %v7644, %v7887
      %v7982 = vadd.f32 %v7645, %v7890
      %v7983 = vadd.f32 %v7646, %v7895
      %v7984 = vadd.f32 %v7647, %v7898
      %v7985 = vadd.f32 %v7648, %v7903
      %v7986 = vadd.f32 %v7649, %v7906
      %v7987 = vadd.f32 %v7650, %v7911
      %v7988 = vadd.f32 %v7651, %v7914
      %v7989 = vadd.f32 %v7652, %v7919
      %v7990 = vadd.f32 %v7653, %v7922
      %v7991 = vadd.f32 %v7654, %v7927
      %v7992 = vadd.f32 %v7655, %v7930
      %v7993 = vadd.f32 %v7656, %v7935
      %v7994 = vadd.f32 %v7657, %v7938
      %v7995 = vadd.f32 %v7658, %v7943
      %v7996 = vadd.f32 %v7659, %v7946
      %v7997 = vadd.f32 %v7660, %v7951
      %v7998 = vadd.f32 %v7661, %v7954
      %v7999 = vadd.f32 %v7662, %v7959
      %v8000 = vadd.f32 %v7663, %v7962
      %v8001 = vld [vmem:[#allocation2 + $0xa4] sm:$0x3]
      %s8002 = scalar_lea.vmem %s4, 512
      %v8003 = vld [vmem:[%s8002] sm:$0xf]
      %v8004 = vld [vmem:[%s8002 + $0x4] sm:$0xf]
      %v8005 = vld [vmem:[%s8002 + $0x8] sm:$0xf]
      %v8006 = vld [vmem:[%s8002 + $0xc] sm:$0xf]
      %v8007 = vld [vmem:[%s8002 + $0x10] sm:$0xf]
      %v8008 = vld [vmem:[%s8002 + $0x14] sm:$0xf]
      %v8009 = vld [vmem:[%s8002 + $0x18] sm:$0xf]
      %v8010 = vld [vmem:[%s8002 + $0x1c] sm:$0xf]
      %v8011 = vld [vmem:[%s8002 + $0x20] sm:$0xf]
      %v8012 = vld [vmem:[%s8002 + $0x24] sm:$0xf]
      %v8013 = vld [vmem:[%s8002 + $0x28] sm:$0xf]
      %v8014 = vld [vmem:[%s8002 + $0x2c] sm:$0xf]
      %v8015 = vld [vmem:[%s8002 + $0x30] sm:$0xf]
      %v8016 = vld [vmem:[%s8002 + $0x34] sm:$0xf]
      %v8017 = vld [vmem:[%s8002 + $0x38] sm:$0xf]
      %v8018 = vld [vmem:[%s8002 + $0x3c] sm:$0xf]
      %v8020 = vunpack.c.l.b16 %v8001
      %v8021 = vpack.c.b16 %v8020, %v8020
      %v8023 = vshrl.u32 %v7684, 16
      %v8025 = vrot.slane %v8023, 1
      %v8026 = vshll.u32 %v7684, 16
      %v8028 = vrot.slane %v8026, 2
      %v8029 = vor.u32 %v8025, %v8028
      %v8030 = vrot.slane %v7249, 1
      %v8031 = vrot.slane %v7245, 2
      %v8032 = vor.u32 %v8030, %v8031
      %v8033 = vsel %vm1879, %v8029, %v8032
      %v8034 = vrot.slane %v7257, 1
      %v8035 = vrot.slane %v7253, 2
      %v8036 = vor.u32 %v8034, %v8035
      %v8037 = vsel %vm1879, %v8032, %v8036
      %v8038 = vrot.slane %v7265, 1
      %v8039 = vrot.slane %v7261, 2
      %v8040 = vor.u32 %v8038, %v8039
      %v8041 = vsel %vm1879, %v8036, %v8040
      %v8042 = vrot.slane %v7273, 1
      %v8043 = vrot.slane %v7269, 2
      %v8044 = vor.u32 %v8042, %v8043
      %v8045 = vsel %vm1879, %v8040, %v8044
      %v8046 = vrot.slane %v7281, 1
      %v8047 = vrot.slane %v7277, 2
      %v8048 = vor.u32 %v8046, %v8047
      %v8049 = vsel %vm1879, %v8044, %v8048
      %v8050 = vrot.slane %v7289, 1
      %v8051 = vrot.slane %v7285, 2
      %v8052 = vor.u32 %v8050, %v8051
      %v8053 = vsel %vm1879, %v8048, %v8052
      %v8054 = vrot.slane %v7297, 1
      %v8055 = vrot.slane %v7293, 2
      %v8056 = vor.u32 %v8054, %v8055
      %v8057 = vsel %vm1879, %v8052, %v8056
      %v8058 = vrot.slane %v7305, 1
      %v8059 = vrot.slane %v7301, 2
      %v8060 = vor.u32 %v8058, %v8059
      %v8061 = vsel %vm1879, %v8056, %v8060
      %v8062 = vrot.slane %v7313, 1
      %v8063 = vrot.slane %v7309, 2
      %v8064 = vor.u32 %v8062, %v8063
      %v8065 = vsel %vm1879, %v8060, %v8064
      %v8066 = vrot.slane %v7321, 1
      %v8067 = vrot.slane %v7317, 2
      %v8068 = vor.u32 %v8066, %v8067
      %v8069 = vsel %vm1879, %v8064, %v8068
      %v8070 = vrot.slane %v7329, 1
      %v8071 = vrot.slane %v7325, 2
      %v8072 = vor.u32 %v8070, %v8071
      %v8073 = vsel %vm1879, %v8068, %v8072
      %v8074 = vrot.slane %v7337, 1
      %v8075 = vrot.slane %v7333, 2
      %v8076 = vor.u32 %v8074, %v8075
      %v8077 = vsel %vm1879, %v8072, %v8076
      %v8078 = vrot.slane %v7345, 1
      %v8079 = vrot.slane %v7341, 2
      %v8080 = vor.u32 %v8078, %v8079
      %v8081 = vsel %vm1879, %v8076, %v8080
      %v8082 = vrot.slane %v7353, 1
      %v8083 = vrot.slane %v7349, 2
      %v8084 = vor.u32 %v8082, %v8083
      %v8085 = vsel %vm1879, %v8080, %v8084
      %v8086 = vrot.slane %v7361, 1
      %v8087 = vrot.slane %v7357, 2
      %v8088 = vor.u32 %v8086, %v8087
      %v8089 = vsel %vm1879, %v8084, %v8088
      %v8090 = vrot.slane %v7369, 1
      %v8091 = vrot.slane %v7365, 2
      %v8092 = vor.u32 %v8090, %v8091
      %v8093 = vsel %vm1879, %v8088, %v8092
      %v8094 = vrot.slane %v7377, 1
      %v8095 = vrot.slane %v7373, 2
      %v8096 = vor.u32 %v8094, %v8095
      %v8097 = vsel %vm1879, %v8092, %v8096
      %v8099 = vshrl.u32 %v8021, 16
      %v8101 = vrot.slane %v8099, 1
      %v8102 = vshll.u32 %v8021, 16
      %v8104 = vrot.slane %v8102, 2
      %v8105 = vor.u32 %v8101, %v8104
      %v8106 = vsel %vm1879, %v8096, %v8105
      %v8141 = vunpack.c.l.b16 %v8003
      %v8142 = vunpack.c.l.b16 %v8004
      %v8143 = vunpack.c.l.b16 %v8005
      %v8144 = vunpack.c.l.b16 %v8006
      %v8145 = vunpack.c.l.b16 %v8007
      %v8146 = vunpack.c.l.b16 %v8008
      %v8147 = vunpack.c.l.b16 %v8009
      %v8148 = vunpack.c.l.b16 %v8010
      %v8149 = vunpack.c.l.b16 %v8011
      %v8150 = vunpack.c.l.b16 %v8012
      %v8151 = vunpack.c.l.b16 %v8013
      %v8152 = vunpack.c.l.b16 %v8014
      %v8153 = vunpack.c.l.b16 %v8015
      %v8154 = vunpack.c.l.b16 %v8016
      %v8155 = vunpack.c.l.b16 %v8017
      %v8156 = vunpack.c.l.b16 %v8018
      %v8157 = vpack.c.b16 %v8142, %v8141
      %v8158 = vpack.c.b16 %v8144, %v8143
      %v8159 = vpack.c.b16 %v8146, %v8145
      %v8160 = vpack.c.b16 %v8148, %v8147
      %v8161 = vpack.c.b16 %v8150, %v8149
      %v8162 = vpack.c.b16 %v8152, %v8151
      %v8163 = vpack.c.b16 %v8154, %v8153
      %v8164 = vpack.c.b16 %v8156, %v8155
      %8173 = vmatprep.subr.bf16.mxu0 0
      %8174 = vmatpush1.bf16.msra.mxu0 %v8164
      %8175 = vmatprep.subr.bf16.mxu0 0
      %8176 = vmatpush1.bf16.msra.mxu0 %v8163
      %8177 = vmatprep.subr.bf16.mxu0 0
      %8178 = vmatpush1.bf16.msra.mxu0 %v8162
      %8179 = vmatprep.subr.bf16.mxu0 0
      %8180 = vmatpush1.bf16.msra.mxu0 %v8161
      %8181 = vmatprep.subr.bf16.mxu0 0
      %8182 = vmatpush1.bf16.msra.mxu0 %v8160
      %8183 = vmatprep.subr.bf16.mxu0 0
      %8184 = vmatpush1.bf16.msra.mxu0 %v8159
      %8185 = vmatprep.subr.bf16.mxu0 0
      %8186 = vmatpush1.bf16.msra.mxu0 %v8158
      %8187 = vmatprep.subr.bf16.mxu0 0
      %8188 = vmatpush1.bf16.msra.mxu0 %v8157
      %8189 = vmatprep.subr.bf16.mxu0 0
      %8190 = vmatpush2.bf16.msra.mxu0 0
      %8191 = vmatprep.subr.bf16.mxu0 0
      %8192 = vmatpush2.bf16.msra.mxu0 0
      %8193 = vmatprep.subr.bf16.mxu0 0
      %8194 = vmatpush2.bf16.msra.mxu0 0
      %8195 = vmatprep.subr.bf16.mxu0 0
      %8196 = vmatpush2.bf16.msra.mxu0 0
      %8197 = vmatprep.subr.bf16.mxu0 0
      %8198 = vmatpush2.bf16.msra.mxu0 0
      %8199 = vmatprep.subr.bf16.mxu0 0
      %8200 = vmatpush2.bf16.msra.mxu0 0
      %8201 = vmatprep.subr.bf16.mxu0 0
      %8202 = vmatpush2.bf16.msra.mxu0 0
      %8203 = vmatprep.subr.bf16.mxu0 0
      %8204 = vmatpush2.bf16.msra.mxu0 0
      %8205 = vmatprep.mubr.bf16.mxu0 0
      %8206 = vmatmul.mubr.bf16.gmra.mxu0 %v8033
      %v8207 = vpop.f32.mrf.mxu0
      %v8208 = vadd.f32 0.0, %v8207
      %v8209 = vpop.f32.mrf.mxu0
      %v8210 = vpop.f32.mrf.mxu0
      %v8211 = vadd.f32 0.0, %v8210
      %v8212 = vpop.f32.mrf.mxu0
      %8213 = vmatprep.mubr.bf16.mxu0 0
      %8214 = vmatmul.mubr.bf16.gmra.mxu0 %v8037
      %v8215 = vpop.f32.mrf.mxu0
      %v8216 = vadd.f32 0.0, %v8215
      %v8217 = vpop.f32.mrf.mxu0
      %v8218 = vpop.f32.mrf.mxu0
      %v8219 = vadd.f32 0.0, %v8218
      %v8220 = vpop.f32.mrf.mxu0
      %8221 = vmatprep.mubr.bf16.mxu0 0
      %8222 = vmatmul.mubr.bf16.gmra.mxu0 %v8041
      %v8223 = vpop.f32.mrf.mxu0
      %v8224 = vadd.f32 0.0, %v8223
      %v8225 = vpop.f32.mrf.mxu0
      %v8226 = vpop.f32.mrf.mxu0
      %v8227 = vadd.f32 0.0, %v8226
      %v8228 = vpop.f32.mrf.mxu0
      %8229 = vmatprep.mubr.bf16.mxu0 0
      %8230 = vmatmul.mubr.bf16.gmra.mxu0 %v8045
      %v8231 = vpop.f32.mrf.mxu0
      %v8232 = vadd.f32 0.0, %v8231
      %v8233 = vpop.f32.mrf.mxu0
      %v8234 = vpop.f32.mrf.mxu0
      %v8235 = vadd.f32 0.0, %v8234
      %v8236 = vpop.f32.mrf.mxu0
      %8237 = vmatprep.mubr.bf16.mxu0 0
      %8238 = vmatmul.mubr.bf16.gmra.mxu0 %v8049
      %v8239 = vpop.f32.mrf.mxu0
      %v8240 = vadd.f32 0.0, %v8239
      %v8241 = vpop.f32.mrf.mxu0
      %v8242 = vpop.f32.mrf.mxu0
      %v8243 = vadd.f32 0.0, %v8242
      %v8244 = vpop.f32.mrf.mxu0
      %8245 = vmatprep.mubr.bf16.mxu0 0
      %8246 = vmatmul.mubr.bf16.gmra.mxu0 %v8053
      %v8247 = vpop.f32.mrf.mxu0
      %v8248 = vadd.f32 0.0, %v8247
      %v8249 = vpop.f32.mrf.mxu0
      %v8250 = vpop.f32.mrf.mxu0
      %v8251 = vadd.f32 0.0, %v8250
      %v8252 = vpop.f32.mrf.mxu0
      %8253 = vmatprep.mubr.bf16.mxu0 0
      %8254 = vmatmul.mubr.bf16.gmra.mxu0 %v8057
      %v8255 = vpop.f32.mrf.mxu0
      %v8256 = vadd.f32 0.0, %v8255
      %v8257 = vpop.f32.mrf.mxu0
      %v8258 = vpop.f32.mrf.mxu0
      %v8259 = vadd.f32 0.0, %v8258
      %v8260 = vpop.f32.mrf.mxu0
      %8261 = vmatprep.mubr.bf16.mxu0 0
      %8262 = vmatmul.mubr.bf16.gmra.mxu0 %v8061
      %v8263 = vpop.f32.mrf.mxu0
      %v8264 = vadd.f32 0.0, %v8263
      %v8265 = vpop.f32.mrf.mxu0
      %v8266 = vpop.f32.mrf.mxu0
      %v8267 = vadd.f32 0.0, %v8266
      %v8268 = vpop.f32.mrf.mxu0
      %8269 = vmatprep.mubr.bf16.mxu0 0
      %8270 = vmatmul.mubr.bf16.gmra.mxu0 %v8065
      %v8271 = vpop.f32.mrf.mxu0
      %v8272 = vadd.f32 0.0, %v8271
      %v8273 = vpop.f32.mrf.mxu0
      %v8274 = vpop.f32.mrf.mxu0
      %v8275 = vadd.f32 0.0, %v8274
      %v8276 = vpop.f32.mrf.mxu0
      %8277 = vmatprep.mubr.bf16.mxu0 0
      %8278 = vmatmul.mubr.bf16.gmra.mxu0 %v8069
      %v8279 = vpop.f32.mrf.mxu0
      %v8280 = vadd.f32 0.0, %v8279
      %v8281 = vpop.f32.mrf.mxu0
      %v8282 = vpop.f32.mrf.mxu0
      %v8283 = vadd.f32 0.0, %v8282
      %v8284 = vpop.f32.mrf.mxu0
      %8285 = vmatprep.mubr.bf16.mxu0 0
      %8286 = vmatmul.mubr.bf16.gmra.mxu0 %v8073
      %v8287 = vpop.f32.mrf.mxu0
      %v8288 = vadd.f32 0.0, %v8287
      %v8289 = vpop.f32.mrf.mxu0
      %v8290 = vpop.f32.mrf.mxu0
      %v8291 = vadd.f32 0.0, %v8290
      %v8292 = vpop.f32.mrf.mxu0
      %8293 = vmatprep.mubr.bf16.mxu0 0
      %8294 = vmatmul.mubr.bf16.gmra.mxu0 %v8077
      %v8295 = vpop.f32.mrf.mxu0
      %v8296 = vadd.f32 0.0, %v8295
      %v8297 = vpop.f32.mrf.mxu0
      %v8298 = vpop.f32.mrf.mxu0
      %v8299 = vadd.f32 0.0, %v8298
      %v8300 = vpop.f32.mrf.mxu0
      %8301 = vmatprep.mubr.bf16.mxu0 0
      %8302 = vmatmul.mubr.bf16.gmra.mxu0 %v8081
      %v8303 = vpop.f32.mrf.mxu0
      %v8304 = vadd.f32 0.0, %v8303
      %v8305 = vpop.f32.mrf.mxu0
      %v8306 = vpop.f32.mrf.mxu0
      %v8307 = vadd.f32 0.0, %v8306
      %v8308 = vpop.f32.mrf.mxu0
      %8309 = vmatprep.mubr.bf16.mxu0 0
      %8310 = vmatmul.mubr.bf16.gmra.mxu0 %v8085
      %v8311 = vpop.f32.mrf.mxu0
      %v8312 = vadd.f32 0.0, %v8311
      %v8313 = vpop.f32.mrf.mxu0
      %v8314 = vpop.f32.mrf.mxu0
      %v8315 = vadd.f32 0.0, %v8314
      %v8316 = vpop.f32.mrf.mxu0
      %8317 = vmatprep.mubr.bf16.mxu0 0
      %8318 = vmatmul.mubr.bf16.gmra.mxu0 %v8089
      %v8319 = vpop.f32.mrf.mxu0
      %v8320 = vadd.f32 0.0, %v8319
      %v8321 = vpop.f32.mrf.mxu0
      %v8322 = vpop.f32.mrf.mxu0
      %v8323 = vadd.f32 0.0, %v8322
      %v8324 = vpop.f32.mrf.mxu0
      %8325 = vmatprep.mubr.bf16.mxu0 0
      %8326 = vmatmul.mubr.bf16.gmra.mxu0 %v8093
      %v8327 = vpop.f32.mrf.mxu0
      %v8328 = vadd.f32 0.0, %v8327
      %v8329 = vpop.f32.mrf.mxu0
      %v8330 = vpop.f32.mrf.mxu0
      %v8331 = vadd.f32 0.0, %v8330
      %v8332 = vpop.f32.mrf.mxu0
      %8333 = vmatprep.mubr.bf16.mxu0 0
      %8334 = vmatmul.mubr.bf16.gmra.mxu0 %v8097
      %v8335 = vpop.f32.mrf.mxu0
      %v8336 = vadd.f32 0.0, %v8335
      %v8337 = vpop.f32.mrf.mxu0
      %v8338 = vpop.f32.mrf.mxu0
      %v8339 = vadd.f32 0.0, %v8338
      %v8340 = vpop.f32.mrf.mxu0
      %8341 = vmatprep.mubr.bf16.mxu0 0
      %8342 = vmatmul.mubr.bf16.gmra.mxu0 %v8106
      %v8343 = vpop.f32.mrf.mxu0
      %v8344 = vadd.f32 0.0, %v8343
      %v8345 = vpop.f32.mrf.mxu0
      %v8346 = vpop.f32.mrf.mxu0
      %v8347 = vadd.f32 0.0, %v8346
      %v8348 = vpop.f32.mrf.mxu0
      %8349 = vdwg.mxu0
      %v8350 = vadd.f32 %v7965, %v8208
      %v8351 = vadd.f32 %v7966, %v8211
      %v8352 = vadd.f32 %v7967, %v8216
      %v8353 = vadd.f32 %v7968, %v8219
      %v8354 = vadd.f32 %v7969, %v8224
      %v8355 = vadd.f32 %v7970, %v8227
      %v8356 = vadd.f32 %v7971, %v8232
      %v8357 = vadd.f32 %v7972, %v8235
      %v8358 = vadd.f32 %v7973, %v8240
      %v8359 = vadd.f32 %v7974, %v8243
      %v8360 = vadd.f32 %v7975, %v8248
      %v8361 = vadd.f32 %v7976, %v8251
      %v8362 = vadd.f32 %v7977, %v8256
      %v8363 = vadd.f32 %v7978, %v8259
      %v8364 = vadd.f32 %v7979, %v8264
      %v8365 = vadd.f32 %v7980, %v8267
      %v8366 = vadd.f32 %v7981, %v8272
      %v8367 = vadd.f32 %v7982, %v8275
      %v8368 = vadd.f32 %v7983, %v8280
      %v8369 = vadd.f32 %v7984, %v8283
      %v8370 = vadd.f32 %v7985, %v8288
      %v8371 = vadd.f32 %v7986, %v8291
      %v8372 = vadd.f32 %v7987, %v8296
      %v8373 = vadd.f32 %v7988, %v8299
      %v8374 = vadd.f32 %v7989, %v8304
      %v8375 = vadd.f32 %v7990, %v8307
      %v8376 = vadd.f32 %v7991, %v8312
      %v8377 = vadd.f32 %v7992, %v8315
      %v8378 = vadd.f32 %v7993, %v8320
      %v8379 = vadd.f32 %v7994, %v8323
      %v8380 = vadd.f32 %v7995, %v8328
      %v8381 = vadd.f32 %v7996, %v8331
      %v8382 = vadd.f32 %v7997, %v8336
      %v8383 = vadd.f32 %v7998, %v8339
      %v8384 = vadd.f32 %v7999, %v8344
      %v8385 = vadd.f32 %v8000, %v8347
      %v8386 = vld [vmem:[%s246 + $0x8] sm:$0xe]
      %v8387 = vld [vmem:[%s246 + $0xc] sm:$0xf]
      %v8388 = vld [vmem:[%s246 + $0x10] sm:$0xf]
      %v8389 = vld [vmem:[%s246 + $0x14] sm:$0xf]
      %v8390 = vld [vmem:[%s246 + $0x18] sm:$0xf]
      %v8391 = vld [vmem:[%s246 + $0x1c] sm:$0xf]
      %v8392 = vld [vmem:[%s246 + $0x20] sm:$0xf]
      %v8393 = vld [vmem:[%s246 + $0x24] sm:$0xf]
      %v8394 = vld [vmem:[%s246 + $0x28] sm:$0xf]
      %v8395 = vld [vmem:[%s246 + $0x2c] sm:$0xf]
      %v8396 = vld [vmem:[%s246 + $0x30] sm:$0xf]
      %v8397 = vld [vmem:[%s246 + $0x34] sm:$0xf]
      %v8398 = vld [vmem:[%s246 + $0x38] sm:$0xf]
      %v8399 = vld [vmem:[%s246 + $0x3c] sm:$0xf]
      %v8400 = vld [vmem:[%s246 + $0x40] sm:$0xf]
      %v8401 = vld [vmem:[%s246 + $0x44] sm:$0xf]
      %v8402 = vld [vmem:[%s246 + $0x48] sm:$0xf]
      %v8403 = vld [vmem:[%s246 + $0x4c] sm:$0xf]
      %v8404 = vld [vmem:[%s246 + $0x50] sm:$0xf]
      %v8405 = vld [vmem:[%s246 + $0x54] sm:$0xf]
      %v8406 = vld [vmem:[%s246 + $0x58] sm:$0xf]
      %v8407 = vld [vmem:[%s246 + $0x5c] sm:$0xf]
      %v8408 = vld [vmem:[%s246 + $0x60] sm:$0xf]
      %v8409 = vld [vmem:[%s246 + $0x64] sm:$0xf]
      %v8410 = vld [vmem:[%s246 + $0x68] sm:$0xf]
      %v8411 = vld [vmem:[%s246 + $0x6c] sm:$0xf]
      %v8412 = vld [vmem:[%s246 + $0x70] sm:$0xf]
      %v8413 = vld [vmem:[%s246 + $0x74] sm:$0xf]
      %v8414 = vld [vmem:[%s246 + $0x78] sm:$0xf]
      %v8415 = vld [vmem:[%s246 + $0x7c] sm:$0xf]
      %v8416 = vld [vmem:[%s246 + $0x80] sm:$0xf]
      %v8417 = vld [vmem:[%s246 + $0x84] sm:$0xf]
      %v8418 = vld [vmem:[%s246 + $0x88] sm:$0xf]
      %v8419 = vld [vmem:[%s246 + $0x8c] sm:$0xf]
      %v8420 = vld [vmem:[%s246 + $0x90] sm:$0xf]
      %v8421 = vld [vmem:[%s246 + $0x94] sm:$0xf]
      %v8422 = vld [vmem:[%s246 + $0x98] sm:$0x3]
      %v8423 = vunpack.c.l.bf16 %v8386
      %v8424 = vunpack.c.l.bf16 %v8387
      %v8425 = vunpack.c.l.bf16 %v8388
      %v8426 = vunpack.c.l.bf16 %v8389
      %v8427 = vunpack.c.l.bf16 %v8390
      %v8428 = vunpack.c.l.bf16 %v8391
      %v8429 = vunpack.c.l.bf16 %v8392
      %v8430 = vunpack.c.l.bf16 %v8393
      %v8431 = vunpack.c.l.bf16 %v8394
      %v8432 = vunpack.c.l.bf16 %v8395
      %v8433 = vunpack.c.l.bf16 %v8396
      %v8434 = vunpack.c.l.bf16 %v8397
      %v8435 = vunpack.c.l.bf16 %v8398
      %v8436 = vunpack.c.l.bf16 %v8399
      %v8437 = vunpack.c.l.bf16 %v8400
      %v8438 = vunpack.c.l.bf16 %v8401
      %v8439 = vunpack.c.l.bf16 %v8402
      %v8440 = vunpack.c.l.bf16 %v8403
      %v8441 = vunpack.c.l.bf16 %v8404
      %v8442 = vunpack.c.l.bf16 %v8405
      %v8443 = vunpack.c.l.bf16 %v8406
      %v8444 = vunpack.c.l.bf16 %v8407
      %v8445 = vunpack.c.l.bf16 %v8408
      %v8446 = vunpack.c.l.bf16 %v8409
      %v8447 = vunpack.c.l.bf16 %v8410
      %v8448 = vunpack.c.l.bf16 %v8411
      %v8449 = vunpack.c.l.bf16 %v8412
      %v8450 = vunpack.c.l.bf16 %v8413
      %v8451 = vunpack.c.l.bf16 %v8414
      %v8452 = vunpack.c.l.bf16 %v8415
      %v8453 = vunpack.c.l.bf16 %v8416
      %v8454 = vunpack.c.l.bf16 %v8417
      %v8455 = vunpack.c.l.bf16 %v8418
      %v8456 = vunpack.c.l.bf16 %v8419
      %v8457 = vunpack.c.l.bf16 %v8420
      %v8458 = vunpack.c.l.bf16 %v8421
      %v8459 = vunpack.c.l.bf16 %v8422
      %v8460 = vld [vmem:[%s5] sm:$0x1]
      %v8462 = vlaneseq
      %v8463 = vshrl.u32 %v8462, 7
      %v8464 = vsub.s32 0, %v8463
      %v8465 = vrot.slane %v8460, %v8464
      %v8467 = vadd.f32 %v8350, %v8465
      %v8468 = vadd.f32 %v8351, %v8465
      %v8469 = vadd.f32 %v8352, %v8465
      %v8470 = vadd.f32 %v8353, %v8465
      %v8471 = vadd.f32 %v8354, %v8465
      %v8472 = vadd.f32 %v8355, %v8465
      %v8473 = vadd.f32 %v8356, %v8465
      %v8474 = vadd.f32 %v8357, %v8465
      %v8475 = vadd.f32 %v8358, %v8465
      %v8476 = vadd.f32 %v8359, %v8465
      %v8477 = vadd.f32 %v8360, %v8465
      %v8478 = vadd.f32 %v8361, %v8465
      %v8479 = vadd.f32 %v8362, %v8465
      %v8480 = vadd.f32 %v8363, %v8465
      %v8481 = vadd.f32 %v8364, %v8465
      %v8482 = vadd.f32 %v8365, %v8465
      %v8483 = vadd.f32 %v8366, %v8465
      %v8484 = vadd.f32 %v8367, %v8465
      %v8485 = vadd.f32 %v8368, %v8465
      %v8486 = vadd.f32 %v8369, %v8465
      %v8487 = vadd.f32 %v8370, %v8465
      %v8488 = vadd.f32 %v8371, %v8465
      %v8489 = vadd.f32 %v8372, %v8465
      %v8490 = vadd.f32 %v8373, %v8465
      %v8491 = vadd.f32 %v8374, %v8465
      %v8492 = vadd.f32 %v8375, %v8465
      %v8493 = vadd.f32 %v8376, %v8465
      %v8494 = vadd.f32 %v8377, %v8465
      %v8495 = vadd.f32 %v8378, %v8465
      %v8496 = vadd.f32 %v8379, %v8465
      %v8497 = vadd.f32 %v8380, %v8465
      %v8498 = vadd.f32 %v8381, %v8465
      %v8499 = vadd.f32 %v8382, %v8465
      %v8500 = vadd.f32 %v8383, %v8465
      %v8501 = vadd.f32 %v8384, %v8465
      %v8502 = vadd.f32 %v8385, %v8465
      %vm8540 = vcmask 1044480
      %v8541 = vrot.slane %v8423, 3
      %v8542 = vrot.slane %v8424, 3
      %v8543 = vsel %vm8540, %v8541, %v8542
      %v8544 = vrot.slane %v8425, 3
      %v8545 = vsel %vm8540, %v8542, %v8544
      %v8546 = vrot.slane %v8426, 3
      %v8547 = vsel %vm8540, %v8544, %v8546
      %v8548 = vrot.slane %v8427, 3
      %v8549 = vsel %vm8540, %v8546, %v8548
      %v8550 = vrot.slane %v8428, 3
      %v8551 = vsel %vm8540, %v8548, %v8550
      %v8552 = vrot.slane %v8429, 3
      %v8553 = vsel %vm8540, %v8550, %v8552
      %v8554 = vrot.slane %v8430, 3
      %v8555 = vsel %vm8540, %v8552, %v8554
      %v8556 = vrot.slane %v8431, 3
      %v8557 = vsel %vm8540, %v8554, %v8556
      %v8558 = vrot.slane %v8432, 3
      %v8559 = vsel %vm8540, %v8556, %v8558
      %v8560 = vrot.slane %v8433, 3
      %v8561 = vsel %vm8540, %v8558, %v8560
      %v8562 = vrot.slane %v8434, 3
      %v8563 = vsel %vm8540, %v8560, %v8562
      %v8564 = vrot.slane %v8435, 3
      %v8565 = vsel %vm8540, %v8562, %v8564
      %v8566 = vrot.slane %v8436, 3
      %v8567 = vsel %vm8540, %v8564, %v8566
      %v8568 = vrot.slane %v8437, 3
      %v8569 = vsel %vm8540, %v8566, %v8568
      %v8570 = vrot.slane %v8438, 3
      %v8571 = vsel %vm8540, %v8568, %v8570
      %v8572 = vrot.slane %v8439, 3
      %v8573 = vsel %vm8540, %v8570, %v8572
      %v8574 = vrot.slane %v8440, 3
      %v8575 = vsel %vm8540, %v8572, %v8574
      %v8576 = vrot.slane %v8441, 3
      %v8577 = vsel %vm8540, %v8574, %v8576
      %v8578 = vrot.slane %v8442, 3
      %v8579 = vsel %vm8540, %v8576, %v8578
      %v8580 = vrot.slane %v8443, 3
      %v8581 = vsel %vm8540, %v8578, %v8580
      %v8582 = vrot.slane %v8444, 3
      %v8583 = vsel %vm8540, %v8580, %v8582
      %v8584 = vrot.slane %v8445, 3
      %v8585 = vsel %vm8540, %v8582, %v8584
      %v8586 = vrot.slane %v8446, 3
      %v8587 = vsel %vm8540, %v8584, %v8586
      %v8588 = vrot.slane %v8447, 3
      %v8589 = vsel %vm8540, %v8586, %v8588
      %v8590 = vrot.slane %v8448, 3
      %v8591 = vsel %vm8540, %v8588, %v8590
      %v8592 = vrot.slane %v8449, 3
      %v8593 = vsel %vm8540, %v8590, %v8592
      %v8594 = vrot.slane %v8450, 3
      %v8595 = vsel %vm8540, %v8592, %v8594
      %v8596 = vrot.slane %v8451, 3
      %v8597 = vsel %vm8540, %v8594, %v8596
      %v8598 = vrot.slane %v8452, 3
      %v8599 = vsel %vm8540, %v8596, %v8598
      %v8600 = vrot.slane %v8453, 3
      %v8601 = vsel %vm8540, %v8598, %v8600
      %v8602 = vrot.slane %v8454, 3
      %v8603 = vsel %vm8540, %v8600, %v8602
      %v8604 = vrot.slane %v8455, 3
      %v8605 = vsel %vm8540, %v8602, %v8604
      %v8606 = vrot.slane %v8456, 3
      %v8607 = vsel %vm8540, %v8604, %v8606
      %v8608 = vrot.slane %v8457, 3
      %v8609 = vsel %vm8540, %v8606, %v8608
      %v8610 = vrot.slane %v8458, 3
      %v8611 = vsel %vm8540, %v8608, %v8610
      %v8612 = vrot.slane %v8459, 3
      %v8613 = vsel %vm8540, %v8610, %v8612
      %v8650 = vadd.f32 %v8467, %v8543
      %v8651 = vadd.f32 %v8468, %v8545
      %v8652 = vadd.f32 %v8469, %v8547
      %v8653 = vadd.f32 %v8470, %v8549
      %v8654 = vadd.f32 %v8471, %v8551
      %v8655 = vadd.f32 %v8472, %v8553
      %v8656 = vadd.f32 %v8473, %v8555
      %v8657 = vadd.f32 %v8474, %v8557
      %v8658 = vadd.f32 %v8475, %v8559
      %v8659 = vadd.f32 %v8476, %v8561
      %v8660 = vadd.f32 %v8477, %v8563
      %v8661 = vadd.f32 %v8478, %v8565
      %v8662 = vadd.f32 %v8479, %v8567
      %v8663 = vadd.f32 %v8480, %v8569
      %v8664 = vadd.f32 %v8481, %v8571
      %v8665 = vadd.f32 %v8482, %v8573
      %v8666 = vadd.f32 %v8483, %v8575
      %v8667 = vadd.f32 %v8484, %v8577
      %v8668 = vadd.f32 %v8485, %v8579
      %v8669 = vadd.f32 %v8486, %v8581
      %v8670 = vadd.f32 %v8487, %v8583
      %v8671 = vadd.f32 %v8488, %v8585
      %v8672 = vadd.f32 %v8489, %v8587
      %v8673 = vadd.f32 %v8490, %v8589
      %v8674 = vadd.f32 %v8491, %v8591
      %v8675 = vadd.f32 %v8492, %v8593
      %v8676 = vadd.f32 %v8493, %v8595
      %v8677 = vadd.f32 %v8494, %v8597
      %v8678 = vadd.f32 %v8495, %v8599
      %v8679 = vadd.f32 %v8496, %v8601
      %v8680 = vadd.f32 %v8497, %v8603
      %v8681 = vadd.f32 %v8498, %v8605
      %v8682 = vadd.f32 %v8499, %v8607
      %v8683 = vadd.f32 %v8500, %v8609
      %v8684 = vadd.f32 %v8501, %v8611
      %v8685 = vadd.f32 %v8502, %v8613
      %v8686 = vmax.f32 %v8650, 0.0
      %v8687 = vmax.f32 %v8651, 0.0
      %v8688 = vmax.f32 %v8652, 0.0
      %v8689 = vmax.f32 %v8653, 0.0
      %v8690 = vmax.f32 %v8654, 0.0
      %v8691 = vmax.f32 %v8655, 0.0
      %v8692 = vmax.f32 %v8656, 0.0
      %v8693 = vmax.f32 %v8657, 0.0
      %v8694 = vmax.f32 %v8658, 0.0
      %v8695 = vmax.f32 %v8659, 0.0
      %v8696 = vmax.f32 %v8660, 0.0
      %v8697 = vmax.f32 %v8661, 0.0
      %v8698 = vmax.f32 %v8662, 0.0
      %v8699 = vmax.f32 %v8663, 0.0
      %v8700 = vmax.f32 %v8664, 0.0
      %v8701 = vmax.f32 %v8665, 0.0
      %v8702 = vmax.f32 %v8666, 0.0
      %v8703 = vmax.f32 %v8667, 0.0
      %v8704 = vmax.f32 %v8668, 0.0
      %v8705 = vmax.f32 %v8669, 0.0
      %v8706 = vmax.f32 %v8670, 0.0
      %v8707 = vmax.f32 %v8671, 0.0
      %v8708 = vmax.f32 %v8672, 0.0
      %v8709 = vmax.f32 %v8673, 0.0
      %v8710 = vmax.f32 %v8674, 0.0
      %v8711 = vmax.f32 %v8675, 0.0
      %v8712 = vmax.f32 %v8676, 0.0
      %v8713 = vmax.f32 %v8677, 0.0
      %v8714 = vmax.f32 %v8678, 0.0
      %v8715 = vmax.f32 %v8679, 0.0
      %v8716 = vmax.f32 %v8680, 0.0
      %v8717 = vmax.f32 %v8681, 0.0
      %v8718 = vmax.f32 %v8682, 0.0
      %v8719 = vmax.f32 %v8683, 0.0
      %v8720 = vmax.f32 %v8684, 0.0
      %v8721 = vmax.f32 %v8685, 0.0
      %v8722 = vpack.c.bf16 %v8687, %v8686
      %v8723 = vpack.c.bf16 %v8689, %v8688
      %v8724 = vpack.c.bf16 %v8691, %v8690
      %v8725 = vpack.c.bf16 %v8693, %v8692
      %v8726 = vpack.c.bf16 %v8695, %v8694
      %v8727 = vpack.c.bf16 %v8697, %v8696
      %v8728 = vpack.c.bf16 %v8699, %v8698
      %v8729 = vpack.c.bf16 %v8701, %v8700
      %v8730 = vpack.c.bf16 %v8703, %v8702
      %v8731 = vpack.c.bf16 %v8705, %v8704
      %v8732 = vpack.c.bf16 %v8707, %v8706
      %v8733 = vpack.c.bf16 %v8709, %v8708
      %v8734 = vpack.c.bf16 %v8711, %v8710
      %v8735 = vpack.c.bf16 %v8713, %v8712
      %v8736 = vpack.c.bf16 %v8715, %v8714
      %v8737 = vpack.c.bf16 %v8717, %v8716
      %v8738 = vpack.c.bf16 %v8719, %v8718
      %v8739 = vpack.c.bf16 %v8721, %v8720
      %v8758 = vunpack.c.l.b16 %v8722
      %v8759 = vunpack.c.h.b16 %v8722
      %v8760 = vunpack.c.l.b16 %v8723
      %v8761 = vunpack.c.h.b16 %v8723
      %v8762 = vunpack.c.l.b16 %v8724
      %v8763 = vunpack.c.h.b16 %v8724
      %v8764 = vunpack.c.l.b16 %v8725
      %v8765 = vunpack.c.h.b16 %v8725
      %v8766 = vunpack.c.l.b16 %v8726
      %v8767 = vunpack.c.h.b16 %v8726
      %v8768 = vunpack.c.l.b16 %v8727
      %v8769 = vunpack.c.h.b16 %v8727
      %v8770 = vunpack.c.l.b16 %v8728
      %v8771 = vunpack.c.h.b16 %v8728
      %v8772 = vunpack.c.l.b16 %v8729
      %v8773 = vunpack.c.h.b16 %v8729
      %v8774 = vunpack.c.l.b16 %v8730
      %v8775 = vunpack.c.h.b16 %v8730
      %v8776 = vunpack.c.l.b16 %v8731
      %v8777 = vunpack.c.h.b16 %v8731
      %v8778 = vunpack.c.l.b16 %v8732
      %v8779 = vunpack.c.h.b16 %v8732
      %v8780 = vunpack.c.l.b16 %v8733
      %v8781 = vunpack.c.h.b16 %v8733
      %v8782 = vunpack.c.l.b16 %v8734
      %v8783 = vunpack.c.h.b16 %v8734
      %v8784 = vunpack.c.l.b16 %v8735
      %v8785 = vunpack.c.h.b16 %v8735
      %v8786 = vunpack.c.l.b16 %v8736
      %v8787 = vunpack.c.h.b16 %v8736
      %v8788 = vunpack.c.l.b16 %v8737
      %v8789 = vunpack.c.h.b16 %v8737
      %v8790 = vunpack.c.l.b16 %v8738
      %v8791 = vunpack.c.h.b16 %v8738
      %v8792 = vunpack.c.l.b16 %v8739
      %v8793 = vunpack.c.h.b16 %v8739
      %v8794 = vpack.c.b16 %v8758, %v8758
      %v8795 = vpack.c.b16 %v8759, %v8759
      %v8796 = vpack.c.b16 %v8760, %v8760
      %v8797 = vpack.c.b16 %v8761, %v8761
      %v8798 = vpack.c.b16 %v8762, %v8762
      %v8799 = vpack.c.b16 %v8763, %v8763
      %v8800 = vpack.c.b16 %v8764, %v8764
      %v8801 = vpack.c.b16 %v8765, %v8765
      %v8802 = vpack.c.b16 %v8766, %v8766
      %v8803 = vpack.c.b16 %v8767, %v8767
      %v8804 = vpack.c.b16 %v8768, %v8768
      %v8805 = vpack.c.b16 %v8769, %v8769
      %v8806 = vpack.c.b16 %v8770, %v8770
      %v8807 = vpack.c.b16 %v8771, %v8771
      %v8808 = vpack.c.b16 %v8772, %v8772
      %v8809 = vpack.c.b16 %v8773, %v8773
      %v8810 = vpack.c.b16 %v8774, %v8774
      %v8811 = vpack.c.b16 %v8775, %v8775
      %v8812 = vpack.c.b16 %v8776, %v8776
      %v8813 = vpack.c.b16 %v8777, %v8777
      %v8814 = vpack.c.b16 %v8778, %v8778
      %v8815 = vpack.c.b16 %v8779, %v8779
      %v8816 = vpack.c.b16 %v8780, %v8780
      %v8817 = vpack.c.b16 %v8781, %v8781
      %v8818 = vpack.c.b16 %v8782, %v8782
      %v8819 = vpack.c.b16 %v8783, %v8783
      %v8820 = vpack.c.b16 %v8784, %v8784
      %v8821 = vpack.c.b16 %v8785, %v8785
      %v8822 = vpack.c.b16 %v8786, %v8786
      %v8823 = vpack.c.b16 %v8787, %v8787
      %v8824 = vpack.c.b16 %v8788, %v8788
      %v8825 = vpack.c.b16 %v8789, %v8789
      %v8826 = vpack.c.b16 %v8790, %v8790
      %v8827 = vpack.c.b16 %v8791, %v8791
      %v8828 = vpack.c.b16 %v8792, %v8792
      %v8829 = vpack.c.b16 %v8793, %v8793
      %8866 = vst [vmem:[%s251] sm:$0xf] %v8794
      %8867 = vst [vmem:[%s251 + $0x4] sm:$0xf] %v8795
      %8868 = vst [vmem:[%s251 + $0x8] sm:$0xf] %v8796
      %8869 = vst [vmem:[%s251 + $0xc] sm:$0xf] %v8797
      %8870 = vst [vmem:[%s251 + $0x10] sm:$0xf] %v8798
      %8871 = vst [vmem:[%s251 + $0x14] sm:$0xf] %v8799
      %8872 = vst [vmem:[%s251 + $0x18] sm:$0xf] %v8800
      %8873 = vst [vmem:[%s251 + $0x1c] sm:$0xf] %v8801
      %8874 = vst [vmem:[%s251 + $0x20] sm:$0xf] %v8802
      %8875 = vst [vmem:[%s251 + $0x24] sm:$0xf] %v8803
      %8876 = vst [vmem:[%s251 + $0x28] sm:$0xf] %v8804
      %8877 = vst [vmem:[%s251 + $0x2c] sm:$0xf] %v8805
      %8878 = vst [vmem:[%s251 + $0x30] sm:$0xf] %v8806
      %8879 = vst [vmem:[%s251 + $0x34] sm:$0xf] %v8807
      %8880 = vst [vmem:[%s251 + $0x38] sm:$0xf] %v8808
      %8881 = vst [vmem:[%s251 + $0x3c] sm:$0xf] %v8809
      %8882 = vst [vmem:[%s251 + $0x40] sm:$0xf] %v8810
      %8883 = vst [vmem:[%s251 + $0x44] sm:$0xf] %v8811
      %8884 = vst [vmem:[%s251 + $0x48] sm:$0xf] %v8812
      %8885 = vst [vmem:[%s251 + $0x4c] sm:$0xf] %v8813
      %8886 = vst [vmem:[%s251 + $0x50] sm:$0xf] %v8814
      %8887 = vst [vmem:[%s251 + $0x54] sm:$0xf] %v8815
      %8888 = vst [vmem:[%s251 + $0x58] sm:$0xf] %v8816
      %8889 = vst [vmem:[%s251 + $0x5c] sm:$0xf] %v8817
      %8890 = vst [vmem:[%s251 + $0x60] sm:$0xf] %v8818
      %8891 = vst [vmem:[%s251 + $0x64] sm:$0xf] %v8819
      %8892 = vst [vmem:[%s251 + $0x68] sm:$0xf] %v8820
      %8893 = vst [vmem:[%s251 + $0x6c] sm:$0xf] %v8821
      %8894 = vst [vmem:[%s251 + $0x70] sm:$0xf] %v8822
      %8895 = vst [vmem:[%s251 + $0x74] sm:$0xf] %v8823
      %8896 = vst [vmem:[%s251 + $0x78] sm:$0xf] %v8824
      %8897 = vst [vmem:[%s251 + $0x7c] sm:$0xf] %v8825
      %8898 = vst [vmem:[%s251 + $0x80] sm:$0xf] %v8826
      %8899 = vst [vmem:[%s251 + $0x84] sm:$0xf] %v8827
      %8900 = vst [vmem:[%s251 + $0x88] sm:$0xf] %v8828
      %8901 = vst [vmem:[%s251 + $0x8c] sm:$0xf] %v8829
      %p8902 = scmp.lt.s32.totalorder %s17, 1
      %s8903 = scalar_select %p8902, %s17, 1
      %s8904 = smul.addr %s8903, 36
      %s8905 = smul.addr %s8904, 4
      %s8906 = scalar_lea.vmem %s6, %s8905
      // Predicated region
      $region45: #{a_call__.1} parent=43 // pred_check
        %p8907 = pneg %p166
      $region46: #{a_call__.1} parent=43 // pred_check_branch
        %8909 = sbr.rel (%p8907) target = $region48
      $region47: #{a_call__.1} parent=43 // pred_region
        _
      $region48: #{a_call__.1} parent=43 // pred_fallthru
        _
    $region44: #{a_call__.1} parent=5 // pred_fallthru
      _
    %p8910 = scmp.le.s32.totalorder 2, %s12
    // Predicated region
    $region49: #{a_call__.1} parent=5 // pred_check
      %p8911 = pneg %p8910
    $region50: #{a_call__.1} parent=5 // pred_check_branch
      %8913 = sbr.rel (%p8911) target = $region52
    $region51: #{a_call__.1} parent=5 // pred_region
      %s8914 = ssub.s32 %s12, 2
      // Predicated region
      $region53: #{a_call__.1} parent=51 // pred_check
        %p8915 = pneg %p172
      $region54: #{a_call__.1} parent=51 // pred_check_branch
        %8917 = sbr.rel (%p8915) target = $region56
      $region55: #{a_call__.1} parent=51 // pred_region
        %p8918 = scmp.lt.s32.totalorder %s18, 1
        %s8919 = scalar_select %p8918, %s18, 1
        %s8920 = smul.addr %s8919, 36
        %s8921 = smul.addr %s8920, 4
        %s8922 = scalar_lea.vmem %s6, %s8921
      $region56: #{a_call__.1} parent=51 // pred_fallthru
        _
    $region52: #{a_call__.1} parent=5 // pred_fallthru
      _
  $region6: #{a_call__.1} parent=0 // loop_footer
    %s16 = sadd.s32 1, %s12
  $region7: #{a_call__.1} parent=0 // loop_footer_branch
    %11 = sbr.rel target = $region3
  $region8: #{a_call__.1} parent=0 // loop_exit
    _

</llo_original>
